<compile_context>
chip_gen: v5e
topology: v5e:2x2
jax: 0.10.0
libtpu: 0.0.40
codegen_flags: <defaults>
</compile_context>

<pallas_src>
import jax
import jax.numpy as jnp
from jax import lax
from jax.experimental import pallas as pl
from jax.experimental.pallas import tpu as pltpu

BN_EPS = 1e-5
# Per-generation note: keep total live tile bytes (bf16 patches tile is the
# dominant term, 9*C lanes wide) well under ~48 MiB for v7x (64 MiB physical
# VMEM); v5e/v6e can take larger batch tiles.  Demo shapes are tiny.
VMEM_LIMIT = 32 * 1024 * 1024


def _im2col_3x3(z4, patches_ref):
    """Write im2col patches of a 3x3 / stride-1 / pad-1 conv into VMEM scratch.

    z4: (TN, H, W, C) bf16 with W % 8 == 0 and C % 128 == 0.
    patches_ref: (TN*H*W, 9*C) bf16.  Tap column order (kh, kw, c) matches the
    HWIO conv weight flattened to (9*C, Cout).
    """
    TN, H, W, C = z4.shape
    TM = TN * H * W
    dt = z4.dtype

    # (1) H zero-pad via a concat along the untiled H axis (last two dims W, C
    #     stay tiled and aligned).
    zrow = jnp.zeros((TN, 1, W, C), dt)
    zp = jnp.concatenate([zrow, z4, zrow], axis=1)              # (TN, H+2, W, C)
    Mp = TN * (H + 2) * W
    zpf = zp.reshape(Mp, C)                                     # layout-compatible (W % 8 == 0)

    # (2) W-shifted variants of the whole padded image: one 1-sublane shift
    #     each (vs. 6 misaligned tap slices before), boundary column masked.
    #     In the flattened (w fastest) view a shift by one W position is a
    #     shift by one row.
    #     TODO(synk): switch to pltpu.roll (XLU sublane rotate) once bf16
    #     sublane rotates are confirmed; the concat lowers to one shift copy.
    zrow1 = jnp.zeros((1, C), dt)
    wpos = lax.broadcasted_iota(jnp.int32, (Mp, C), 0) % W
    left = jnp.concatenate([zrow1, zpf[:Mp - 1, :]], axis=0)    # value at w-1
    left = jnp.where(wpos == 0, 0.0, left)
    right = jnp.concatenate([zpf[1:, :], zrow1], axis=0)        # value at w+1
    right = jnp.where(wpos == W - 1, 0.0, right)
    variants = (left.reshape(TN, H + 2, W, C), zp,
                right.reshape(TN, H + 2, W, C))

    # (3) One aligned, lane-dense store per tap (C multiple of 128) into the
    #     bf16 patches scratch; kh slices are along the untiled H axis.
    for kh in range(3):
        for kw in range(3):
            tap = variants[kw][:, kh:kh + H, :, :].reshape(TM, C)
            col = (kh * 3 + kw) * C
            patches_ref[:, col:col + C] = tap


# ---------------- stage 1: conv1 (3x3) + shortcut conv (1x1) + BN partials ---
def _stage1_kernel(x_ref, w1_ref, ws_ref, c1_ref, sc_ref, st_ref, patches_ref):
    TN, H, W, Cin = x_ref.shape
    Cout = c1_ref.shape[-1]
    TM = TN * H * W

    @pl.when(pl.program_id(0) == 0)
    def _():
        st_ref[...] = jnp.zeros_like(st_ref)

    x4 = x_ref[...]                                            # bf16 tile
    _im2col_3x3(x4, patches_ref)
    c1 = jnp.dot(patches_ref[...], w1_ref[...],
                 preferred_element_type=jnp.float32)           # (TM, Cout) f32
    sc = jnp.dot(x4.reshape(TM, Cin), ws_ref[...],
                 preferred_element_type=jnp.float32)           # (TM, Cout) f32

    c1_ref[...] = c1.reshape(TN, H, W, Cout).astype(c1_ref.dtype)
    sc_ref[...] = sc.reshape(TN, H, W, Cout).astype(sc_ref.dtype)

    # BatchNorm pass 1: per-channel sum / sum-of-squares accumulated across
    # grid steps in a revisited output block.
    st_ref[0:1, :] += jnp.sum(c1, axis=0, keepdims=True)
    st_ref[1:2, :] += jnp.sum(c1 * c1, axis=0, keepdims=True)
    st_ref[2:3, :] += jnp.sum(sc, axis=0, keepdims=True)
    st_ref[3:4, :] += jnp.sum(sc * sc, axis=0, keepdims=True)


# ---------------- stage 2: BN1 apply + ReLU + conv2 (3x3) + BN2 partials -----
def _stage2_kernel(c1_ref, s1_ref, b1_ref, w2_ref, c2_ref, st_ref, patches_ref):
    TN, H, W, Cout = c1_ref.shape
    TM = TN * H * W

    @pl.when(pl.program_id(0) == 0)
    def _():
        st_ref[...] = jnp.zeros_like(st_ref)

    y = jnp.maximum(
        c1_ref[...].astype(jnp.float32) * s1_ref[...] + b1_ref[...], 0.0)
    _im2col_3x3(y.astype(jnp.bfloat16), patches_ref)
    c2 = jnp.dot(patches_ref[...], w2_ref[...],
                 preferred_element_type=jnp.float32)           # (TM, Cout) f32

    c2_ref[...] = c2.reshape(TN, H, W, Cout).astype(c2_ref.dtype)
    st_ref[0:1, :] += jnp.sum(c2, axis=0, keepdims=True)
    st_ref[1:2, :] += jnp.sum(c2 * c2, axis=0, keepdims=True)


# ---------------- stage 3: BN2 + SE gate + BN_s(shortcut) + add + ReLU -------
def _stage3_kernel(c2_ref, sc_ref, s2_ref, b2_ref, ss_ref, bs_ref,
                   f1w_ref, f1b_ref, f2w_ref, f2b_ref, o_ref):
    TN, H, W, Cout = c2_ref.shape
    out = c2_ref[...].astype(jnp.float32) * s2_ref[...] + b2_ref[...]

    # SE-style gate (guessed SequecialHGELUV4D): out + aa(out) == out*(1+gate)
    pooled = jnp.mean(out.reshape(TN, H * W, Cout), axis=1)     # (TN, Cout) GAP
    hid = jax.nn.gelu(jnp.dot(pooled, f1w_ref[...],
                              preferred_element_type=jnp.float32) + f1b_ref[...])
    gate = jax.nn.sigmoid(jnp.dot(hid, f2w_ref[...],
                                  preferred_element_type=jnp.float32) + f2b_ref[...])

    sc = sc_ref[...].astype(jnp.float32) * ss_ref[...] + bs_ref[...]
    o_ref[...] = jnp.maximum(out * (1.0 + gate[:, None, None, :]) + sc, 0.0)


def _bn_fold(s, ss, count, gamma, beta):
    """Finalize BN batch stats (biased var) into a per-channel scale/shift."""
    mean = s / count
    var = jnp.maximum(ss / count - mean * mean, 0.0)
    scale = gamma * lax.rsqrt(var + BN_EPS)
    shift = beta - mean * scale
    return scale, shift


def basic_block_forward(x_nchw, params, *, tile_n=2):
    N, Cin, H, W = x_nchw.shape
    Cout = params["w1"].shape[-1]
    assert W % 8 == 0 and Cin % 128 == 0 and Cout % 128 == 0
    assert N % tile_n == 0
    gN = N // tile_n
    M = N * H * W
    TM = tile_n * H * W   # production note: pick tile_n so TM >= 512 (MXU fill)

    # Activations to the kernels are bf16 (halves HBM->VMEM DMA and all
    # pad/shift/tap copy bytes; matmuls already consume bf16).
    x = jnp.transpose(x_nchw.astype(jnp.bfloat16), (0, 2, 3, 1))   # NHWC bf16

    # Conv weights flattened to im2col layout, bf16 (MXU native).
    w1 = params["w1"].reshape(9 * Cin, Cout).astype(jnp.bfloat16)
    w2 = params["w2"].reshape(9 * Cout, Cout).astype(jnp.bfloat16)
    ws = params["ws"].astype(jnp.bfloat16)

    # SE/gate MLP zero-padded to 128 lanes (exact: padded units contribute 0).
    hidden = params["f1w"].shape[1]
    hp = max(128, ((hidden + 127) // 128) * 128)
    f1w = jnp.zeros((Cout, hp), jnp.float32).at[:, :hidden].set(params["f1w"])
    f1b = jnp.zeros((1, hp), jnp.float32).at[:, :hidden].set(params["f1b"])
    f2w = jnp.zeros((hp, Cout), jnp.float32).at[:hidden, :].set(params["f2w"])
    f2b = params["f2b"]

    act_blk = lambda c: pl.BlockSpec((tile_n, H, W, c), lambda i: (i, 0, 0, 0))
    full = lambda shape: pl.BlockSpec(shape, lambda i: (0,) * len(shape))

    cp_arb = pltpu.CompilerParams(dimension_semantics=("arbitrary",),
                                  vmem_limit_bytes=VMEM_LIMIT)
    cp_par = pltpu.CompilerParams(dimension_semantics=("parallel",),
                                  vmem_limit_bytes=VMEM_LIMIT)

    # ---- stage 1: conv1 + shortcut conv, accumulate BN partial sums --------
    c1_raw, sc_raw, st1 = pl.pallas_call(
        _stage1_kernel,
        grid=(gN,),
        in_specs=[act_blk(Cin), full((9 * Cin, Cout)), full((Cin, Cout))],
        out_specs=(act_blk(Cout), act_blk(Cout), full((8, Cout))),
        out_shape=(jax.ShapeDtypeStruct((N, H, W, Cout), jnp.bfloat16),
                   jax.ShapeDtypeStruct((N, H, W, Cout), jnp.bfloat16),
                   jax.ShapeDtypeStruct((8, Cout), jnp.float32)),
        scratch_shapes=[pltpu.VMEM((TM, 9 * Cin), jnp.bfloat16)],
        compiler_params=cp_arb,
    )(x, w1, ws)

    scale1, shift1 = _bn_fold(st1[0:1], st1[1:2], M, params["g1"], params["b1"])
    scale_s, shift_s = _bn_fold(st1[2:3], st1[3:4], M, params["gs"], params["bs"])

    # ---- stage 2: BN1 + ReLU + conv2, accumulate BN2 partial sums ----------
    c2_raw, st2 = pl.pallas_call(
        _stage2_kernel,
        grid=(gN,),
        in_specs=[act_blk(Cout), full((1, Cout)), full((1, Cout)),
                  full((9 * Cout, Cout))],
        out_specs=(act_blk(Cout), full((8, Cout))),
        out_shape=(jax.ShapeDtypeStruct((N, H, W, Cout), jnp.bfloat16),
                   jax.ShapeDtypeStruct((8, Cout), jnp.float32)),
        scratch_shapes=[pltpu.VMEM((TM, 9 * Cout), jnp.bfloat16)],
        compiler_params=cp_arb,
    )(c1_raw, scale1, shift1, w2)

    scale2, shift2 = _bn_fold(st2[0:1], st2[1:2], M, params["g2"], params["b2"])

    # ---- stage 3: BN2 + SE gate + shortcut BN + add + ReLU (parallel) ------
    out = pl.pallas_call(
        _stage3_kernel,
        grid=(gN,),
        in_specs=[act_blk(Cout), act_blk(Cout),
                  full((1, Cout)), full((1, Cout)),
                  full((1, Cout)), full((1, Cout)),
                  full((Cout, hp)), full((1, hp)), full((hp, Cout)),
                  full((1, Cout))],
        out_specs=act_blk(Cout),
        out_shape=jax.ShapeDtypeStruct((N, H, W, Cout), jnp.float32),
        compiler_params=cp_par,
    )(c2_raw, sc_raw, scale2, shift2, scale_s, shift_s, f1w, f1b, f2w, f2b)

    # Module interface is NCHW f32 (keep NHWC/bf16 end-to-end when chaining).
    return jnp.transpose(out, (0, 3, 1, 2))


def make_params(key, in_channels, out_channels, r=16):
    """Deterministic synthetic parameters matching the module's shapes."""
    hidden = max(out_channels // r, 1)
    ks = jax.random.split(key, 13)
    n = lambda k, shape, s=0.1: s * jax.random.normal(k, shape, jnp.float32)
    return {
        "w1": n(ks[0], (3, 3, in_channels, out_channels)),   # conv1 3x3 (HWIO)
        "g1": 1.0 + n(ks[1], (1, out_channels)),
        "b1": n(ks[2], (1, out_channels)),
        "w2": n(ks[3], (3, 3, out_channels, out_channels)),  # conv2 3x3 (HWIO)
        "g2": 1.0 + n(ks[4], (1, out_channels)),
        "b2": n(ks[5], (1, out_channels)),
        "ws": n(ks[6], (in_channels, out_channels)),         # shortcut 1x1 (IO)
        "gs": 1.0 + n(ks[7], (1, out_channels)),
        "bs": n(ks[8], (1, out_channels)),
        "f1w": n(ks[9], (out_channels, hidden)),             # aa (SE-style) MLP
        "f1b": n(ks[10], (1, hidden)),
        "f2w": n(ks[11], (hidden, out_channels)),
        "f2b": n(ks[12], (1, out_channels)),
    }


def basic_block_reference(x_nchw, params):
    """Pure-JAX reference mirroring the kernel's numerics (bf16 matmuls)."""
    x = jnp.transpose(x_nchw.astype(jnp.bfloat16), (0, 2, 3, 1))

    def conv3x3(z, w):
        return lax.conv_general_dilated(
            z.astype(jnp.bfloat16), w.astype(jnp.bfloat16),
            window_strides=(1, 1), padding="SAME",
            dimension_numbers=("NHWC", "HWIO", "NHWC"),
            preferred_element_type=jnp.float32)

    def bn(z, g, b):
        m = jnp.mean(z, axis=(0, 1, 2), keepdims=True)
        v = jnp.maximum(jnp.mean(z * z, axis=(0, 1, 2), keepdims=True) - m * m, 0.0)
        return ((z - m) * lax.rsqrt(v + BN_EPS) * g.reshape(1, 1, 1, -1)
                + b.reshape(1, 1, 1, -1))

    r16 = lambda z: z.astype(jnp.bfloat16).astype(jnp.float32)  # mimic bf16 staging

    c1 = r16(conv3x3(x, params["w1"]))
    y = jnp.maximum(bn(c1, params["g1"], params["b1"]), 0.0)
    c2 = r16(conv3x3(y, params["w2"]))
    out = bn(c2, params["g2"], params["b2"])

    pooled = jnp.mean(out, axis=(1, 2))
    hid = jax.nn.gelu(pooled @ params["f1w"] + params["f1b"])
    gate = jax.nn.sigmoid(hid @ params["f2w"] + params["f2b"])

    sc = jnp.einsum("nhwc,cd->nhwd", x, params["ws"].astype(jnp.bfloat16),
                    preferred_element_type=jnp.float32)
    sc = bn(r16(sc), params["gs"], params["bs"])
    o = jnp.maximum(out * (1.0 + gate[:, None, None, :]) + sc, 0.0)
    return jnp.transpose(o, (0, 3, 1, 2))


if __name__ == "__main__":
    key = jax.random.PRNGKey(0)
    kx, kp = jax.random.split(key)

    # Stride=1 BasicBlock with in_channels != out_channels so the 1x1-conv
    # shortcut is exercised.  Channels are multiples of 128 (lane-dense),
    # W a multiple of 8 (sublane-aligned im2col), batch tiled over a grid of 2.
    N, Cin, Cout, H, W = 4, 128, 256, 8, 8
    x = jax.random.normal(kx, (N, Cin, H, W), jnp.float32)
    params = make_params(kp, Cin, Cout, r=16)

    fwd = jax.jit(lambda xx, pp: basic_block_forward(xx, pp, tile_n=2))
    out = fwd(x, params)
    jax.block_until_ready(out)

    assert out.shape == (N, Cout, H, W)
    assert bool(jnp.all(jnp.isfinite(out)))

    ref = basic_block_reference(x, params)
    err = float(jnp.max(jnp.abs(out - ref)))
    assert err < 1e-1, f"mismatch vs reference: {err}"
    print("KERNEL_OK")
</pallas_src>

<mosaic_0001>
module attributes {stable_mosaic.version = 11 : i64} {
  func.func @_stage1_kernel(%arg0: i32, %arg1: memref<2x8x8x128xbf16, #tpu.memory_space<vmem>>, %arg2: memref<1152x256xbf16, #tpu.memory_space<vmem>>, %arg3: memref<128x256xbf16, #tpu.memory_space<vmem>>, %arg4: memref<2x8x8x256xbf16, #tpu.memory_space<vmem>>, %arg5: memref<2x8x8x256xbf16, #tpu.memory_space<vmem>>, %arg6: memref<8x256xf32, #tpu.memory_space<vmem>>, %arg7: memref<128x1152xbf16, #tpu.memory_space<vmem>>) attributes {dimension_semantics = [#tpu.dimension_semantics<arbitrary>], iteration_bounds = array<i64: 2>, scalar_prefetch = 0 : i64, scratch_operands = 1 : i64, tpu.core_type = #tpu.core_type<tc>, window_params = [{transform_indices = @transform_0, window_bounds = array<i64: 2, 8, 8, 128>}, {pipeline_mode = #tpu.pipeline_mode<synchronous>, transform_indices = @transform_1, window_bounds = array<i64: 1152, 256>}, {pipeline_mode = #tpu.pipeline_mode<synchronous>, transform_indices = @transform_2, window_bounds = array<i64: 128, 256>}, {transform_indices = @transform_3, window_bounds = array<i64: 2, 8, 8, 256>}, {transform_indices = @transform_4, window_bounds = array<i64: 2, 8, 8, 256>}, {pipeline_mode = #tpu.pipeline_mode<synchronous>, transform_indices = @transform_5, window_bounds = array<i64: 8, 256>}]} {
    %c0_i32 = arith.constant 0 : i32
    %0 = arith.cmpi eq, %arg0, %c0_i32 : i32
    %1 = arith.extui %0 : i1 to i32
    %c0_i32_0 = arith.constant 0 : i32
    %2 = arith.cmpi ne, %1, %c0_i32_0 : i32
    scf.if %2 {
      %cst_55 = arith.constant 0.000000e+00 : f32
      %102 = vector.broadcast %cst_55 : f32 to vector<8x256xf32>
      %c0_56 = arith.constant 0 : index
      %c0_57 = arith.constant 0 : index
      %103 = vector.load %arg6[%c0_56, %c0_57] : memref<8x256xf32, #tpu.memory_space<vmem>>, vector<8x256xf32>
      tpu.vector_store %arg6[%c0_56, %c0_57], %102 {strides = array<i32>} : memref<8x256xf32, #tpu.memory_space<vmem>>, vector<8x256xf32>,
    } else {
    }
    %c0 = arith.constant 0 : index
    %c0_1 = arith.constant 0 : index
    %c0_2 = arith.constant 0 : index
    %c0_3 = arith.constant 0 : index
    %3 = vector.load %arg1[%c0, %c0_1, %c0_2, %c0_3] : memref<2x8x8x128xbf16, #tpu.memory_space<vmem>>, vector<2x8x8x128xbf16>
    %cst = arith.constant 0.000000e+00 : bf16
    %4 = vector.broadcast %cst : bf16 to vector<2x1x8x128xbf16>
    %5 = tpu.concatenate %4, %3, %4 in 1 : vector<2x1x8x128xbf16>, vector<2x8x8x128xbf16>, vector<2x1x8x128xbf16> -> vector<2x10x8x128xbf16>
    %6 = vector.shape_cast %5 : vector<2x10x8x128xbf16> to vector<160x128xbf16>
    %cst_4 = arith.constant 0.000000e+00 : bf16
    %7 = vector.broadcast %cst_4 : bf16 to vector<1x128xbf16>
    %8 = tpu.iota {dimensions = array<i32: 0>} : vector<160x128xi32>
    %c8_i32 = arith.constant 8 : i32
    %c0_i32_5 = arith.constant 0 : i32
    %9 = arith.cmpi eq, %c8_i32, %c0_i32_5 : i32
    %c1_i32 = arith.constant 1 : i32
    %10 = arith.select %9, %c1_i32, %c8_i32 : i32
    %11 = vector.broadcast %10 : i32 to vector<160x128xi32>
    %12 = arith.remsi %8, %11 : vector<160x128xi32>
    %c0_i32_6 = arith.constant 0 : i32
    %13 = vector.broadcast %c0_i32_6 : i32 to vector<160x128xi32>
    %14 = arith.cmpi ne, %12, %13 : vector<160x128xi32>
    %c0_i32_7 = arith.constant 0 : i32
    %15 = vector.broadcast %c0_i32_7 : i32 to vector<160x128xi32>
    %16 = arith.cmpi slt, %12, %15 : vector<160x128xi32>
    %c0_i32_8 = arith.constant 0 : i32
    %17 = arith.cmpi slt, %10, %c0_i32_8 : i32
    %18 = vector.broadcast %17 : i1 to vector<160x128xi1>
    %19 = vector.broadcast %18 : vector<160x128xi1> to vector<160x128xi1>
    %20 = arith.xori %16, %19 : vector<160x128xi1>
    %21 = arith.andi %20, %14 : vector<160x128xi1>
    %22 = vector.broadcast %10 : i32 to vector<160x128xi32>
    %23 = arith.addi %12, %22 : vector<160x128xi32>
    %24 = arith.select %21, %23, %12 : vector<160x128xi1>, vector<160x128xi32>
    %25 = vector.extract_strided_slice %6 {offsets = [0, 0], sizes = [159, 128], strides = [1, 1]} : vector<160x128xbf16> to vector<159x128xbf16>
    %26 = tpu.concatenate %7, %25 in 0 : vector<1x128xbf16>, vector<159x128xbf16> -> vector<160x128xbf16>
    %c0_i32_9 = arith.constant 0 : i32
    %27 = vector.broadcast %c0_i32_9 : i32 to vector<160x128xi32>
    %28 = arith.cmpi eq, %24, %27 : vector<160x128xi32>
    %cst_10 = arith.constant 0.000000e+00 : f32
    %29 = arith.truncf %cst_10 : f32 to bf16
    %30 = vector.broadcast %29 : bf16 to vector<160x128xbf16>
    %31 = arith.select %28, %30, %26 : vector<160x128xi1>, vector<160x128xbf16>
    %32 = vector.extract_strided_slice %6 {offsets = [1, 0], sizes = [159, 128], strides = [1, 1]} : vector<160x128xbf16> to vector<159x128xbf16>
    %33 = tpu.concatenate %32, %7 in 0 : vector<159x128xbf16>, vector<1x128xbf16> -> vector<160x128xbf16>
    %c7_i32 = arith.constant 7 : i32
    %34 = vector.broadcast %c7_i32 : i32 to vector<160x128xi32>
    %35 = arith.cmpi eq, %24, %34 : vector<160x128xi32>
    %cst_11 = arith.constant 0.000000e+00 : f32
    %36 = arith.truncf %cst_11 : f32 to bf16
    %37 = vector.broadcast %36 : bf16 to vector<160x128xbf16>
    %38 = arith.select %35, %37, %33 : vector<160x128xi1>, vector<160x128xbf16>
    %39 = vector.shape_cast %31 : vector<160x128xbf16> to vector<2x10x8x128xbf16>
    %40 = vector.shape_cast %38 : vector<160x128xbf16> to vector<2x10x8x128xbf16>
    %41 = vector.extract_strided_slice %39 {offsets = [0, 0, 0, 0], sizes = [2, 8, 8, 128], strides = [1, 1, 1, 1]} : vector<2x10x8x128xbf16> to vector<2x8x8x128xbf16>
    %42 = vector.shape_cast %41 : vector<2x8x8x128xbf16> to vector<128x128xbf16>
    %c0_12 = arith.constant 0 : index
    %c0_13 = arith.constant 0 : index
    %43 = vector.load %arg7[%c0_12, %c0_13] : memref<128x1152xbf16, #tpu.memory_space<vmem>>, vector<128x128xbf16>
    tpu.vector_store %arg7[%c0_12, %c0_13], %42 {strides = array<i32>} : memref<128x1152xbf16, #tpu.memory_space<vmem>>, vector<128x128xbf16>,
    %44 = vector.extract_strided_slice %5 {offsets = [0, 0, 0, 0], sizes = [2, 8, 8, 128], strides = [1, 1, 1, 1]} : vector<2x10x8x128xbf16> to vector<2x8x8x128xbf16>
    %45 = vector.shape_cast %44 : vector<2x8x8x128xbf16> to vector<128x128xbf16>
    %c0_14 = arith.constant 0 : index
    %c128 = arith.constant 128 : index
    %46 = vector.load %arg7[%c0_14, %c128] : memref<128x1152xbf16, #tpu.memory_space<vmem>>, vector<128x128xbf16>
    tpu.vector_store %arg7[%c0_14, %c128], %45 {strides = array<i32>} : memref<128x1152xbf16, #tpu.memory_space<vmem>>, vector<128x128xbf16>,
    %47 = vector.extract_strided_slice %40 {offsets = [0, 0, 0, 0], sizes = [2, 8, 8, 128], strides = [1, 1, 1, 1]} : vector<2x10x8x128xbf16> to vector<2x8x8x128xbf16>
    %48 = vector.shape_cast %47 : vector<2x8x8x128xbf16> to vector<128x128xbf16>
    %c0_15 = arith.constant 0 : index
    %c256 = arith.constant 256 : index
    %49 = vector.load %arg7[%c0_15, %c256] : memref<128x1152xbf16, #tpu.memory_space<vmem>>, vector<128x128xbf16>
    tpu.vector_store %arg7[%c0_15, %c256], %48 {strides = array<i32>} : memref<128x1152xbf16, #tpu.memory_space<vmem>>, vector<128x128xbf16>,
    %50 = vector.extract_strided_slice %39 {offsets = [0, 1, 0, 0], sizes = [2, 8, 8, 128], strides = [1, 1, 1, 1]} : vector<2x10x8x128xbf16> to vector<2x8x8x128xbf16>
    %51 = vector.shape_cast %50 : vector<2x8x8x128xbf16> to vector<128x128xbf16>
    %c0_16 = arith.constant 0 : index
    %c384 = arith.constant 384 : index
    %52 = vector.load %arg7[%c0_16, %c384] : memref<128x1152xbf16, #tpu.memory_space<vmem>>, vector<128x128xbf16>
    tpu.vector_store %arg7[%c0_16, %c384], %51 {strides = array<i32>} : memref<128x1152xbf16, #tpu.memory_space<vmem>>, vector<128x128xbf16>,
    %53 = vector.extract_strided_slice %5 {offsets = [0, 1, 0, 0], sizes = [2, 8, 8, 128], strides = [1, 1, 1, 1]} : vector<2x10x8x128xbf16> to vector<2x8x8x128xbf16>
    %54 = vector.shape_cast %53 : vector<2x8x8x128xbf16> to vector<128x128xbf16>
    %c0_17 = arith.constant 0 : index
    %c512 = arith.constant 512 : index
    %55 = vector.load %arg7[%c0_17, %c512] : memref<128x1152xbf16, #tpu.memory_space<vmem>>, vector<128x128xbf16>
    tpu.vector_store %arg7[%c0_17, %c512], %54 {strides = array<i32>} : memref<128x1152xbf16, #tpu.memory_space<vmem>>, vector<128x128xbf16>,
    %56 = vector.extract_strided_slice %40 {offsets = [0, 1, 0, 0], sizes = [2, 8, 8, 128], strides = [1, 1, 1, 1]} : vector<2x10x8x128xbf16> to vector<2x8x8x128xbf16>
    %57 = vector.shape_cast %56 : vector<2x8x8x128xbf16> to vector<128x128xbf16>
    %c0_18 = arith.constant 0 : index
    %c640 = arith.constant 640 : index
    %58 = vector.load %arg7[%c0_18, %c640] : memref<128x1152xbf16, #tpu.memory_space<vmem>>, vector<128x128xbf16>
    tpu.vector_store %arg7[%c0_18, %c640], %57 {strides = array<i32>} : memref<128x1152xbf16, #tpu.memory_space<vmem>>, vector<128x128xbf16>,
    %59 = vector.extract_strided_slice %39 {offsets = [0, 2, 0, 0], sizes = [2, 8, 8, 128], strides = [1, 1, 1, 1]} : vector<2x10x8x128xbf16> to vector<2x8x8x128xbf16>
    %60 = vector.shape_cast %59 : vector<2x8x8x128xbf16> to vector<128x128xbf16>
    %c0_19 = arith.constant 0 : index
    %c768 = arith.constant 768 : index
    %61 = vector.load %arg7[%c0_19, %c768] : memref<128x1152xbf16, #tpu.memory_space<vmem>>, vector<128x128xbf16>
    tpu.vector_store %arg7[%c0_19, %c768], %60 {strides = array<i32>} : memref<128x1152xbf16, #tpu.memory_space<vmem>>, vector<128x128xbf16>,
    %62 = vector.extract_strided_slice %5 {offsets = [0, 2, 0, 0], sizes = [2, 8, 8, 128], strides = [1, 1, 1, 1]} : vector<2x10x8x128xbf16> to vector<2x8x8x128xbf16>
    %63 = vector.shape_cast %62 : vector<2x8x8x128xbf16> to vector<128x128xbf16>
    %c0_20 = arith.constant 0 : index
    %c896 = arith.constant 896 : index
    %64 = vector.load %arg7[%c0_20, %c896] : memref<128x1152xbf16, #tpu.memory_space<vmem>>, vector<128x128xbf16>
    tpu.vector_store %arg7[%c0_20, %c896], %63 {strides = array<i32>} : memref<128x1152xbf16, #tpu.memory_space<vmem>>, vector<128x128xbf16>,
    %65 = vector.extract_strided_slice %40 {offsets = [0, 2, 0, 0], sizes = [2, 8, 8, 128], strides = [1, 1, 1, 1]} : vector<2x10x8x128xbf16> to vector<2x8x8x128xbf16>
    %66 = vector.shape_cast %65 : vector<2x8x8x128xbf16> to vector<128x128xbf16>
    %c0_21 = arith.constant 0 : index
    %c1024 = arith.constant 1024 : index
    %67 = vector.load %arg7[%c0_21, %c1024] : memref<128x1152xbf16, #tpu.memory_space<vmem>>, vector<128x128xbf16>
    tpu.vector_store %arg7[%c0_21, %c1024], %66 {strides = array<i32>} : memref<128x1152xbf16, #tpu.memory_space<vmem>>, vector<128x128xbf16>,
    %c0_22 = arith.constant 0 : index
    %c0_23 = arith.constant 0 : index
    %68 = vector.load %arg7[%c0_22, %c0_23] : memref<128x1152xbf16, #tpu.memory_space<vmem>>, vector<128x1152xbf16>
    %c0_24 = arith.constant 0 : index
    %c0_25 = arith.constant 0 : index
    %69 = vector.load %arg2[%c0_24, %c0_25] : memref<1152x256xbf16, #tpu.memory_space<vmem>>, vector<1152x256xbf16>
    %cst_26 = arith.constant dense<0.000000e+00> : vector<128x256xf32>
    %70 = tpu.matmul %68, %69, %cst_26 {dimension_numbers = #tpu.dot_dimension_numbers<[1], [0], [0], [1], [0, 0, 1, 1], [], []>} : vector<128x1152xbf16>, vector<1152x256xbf16>, vector<128x256xf32> -> vector<128x256xf32>
    %71 = vector.shape_cast %3 : vector<2x8x8x128xbf16> to vector<128x128xbf16>
    %c0_27 = arith.constant 0 : index
    %c0_28 = arith.constant 0 : index
    %72 = vector.load %arg3[%c0_27, %c0_28] : memref<128x256xbf16, #tpu.memory_space<vmem>>, vector<128x256xbf16>
    %cst_29 = arith.constant dense<0.000000e+00> : vector<128x256xf32>
    %73 = tpu.matmul %71, %72, %cst_29 {dimension_numbers = #tpu.dot_dimension_numbers<[1], [0], [0], [1], [0, 0, 1, 1], [], []>} : vector<128x128xbf16>, vector<128x256xbf16>, vector<128x256xf32> -> vector<128x256xf32>
    %74 = vector.shape_cast %70 : vector<128x256xf32> to vector<2x8x8x256xf32>
    %75 = arith.truncf %74 : vector<2x8x8x256xf32> to vector<2x8x8x256xbf16>
    %c0_30 = arith.constant 0 : index
    %c0_31 = arith.constant 0 : index
    %c0_32 = arith.constant 0 : index
    %c0_33 = arith.constant 0 : index
    %76 = vector.load %arg4[%c0_30, %c0_31, %c0_32, %c0_33] : memref<2x8x8x256xbf16, #tpu.memory_space<vmem>>, vector<2x8x8x256xbf16>
    tpu.vector_store %arg4[%c0_30, %c0_31, %c0_32, %c0_33], %75 {strides = array<i32>} : memref<2x8x8x256xbf16, #tpu.memory_space<vmem>>, vector<2x8x8x256xbf16>,
    %77 = vector.shape_cast %73 : vector<128x256xf32> to vector<2x8x8x256xf32>
    %78 = arith.truncf %77 : vector<2x8x8x256xf32> to vector<2x8x8x256xbf16>
    %c0_34 = arith.constant 0 : index
    %c0_35 = arith.constant 0 : index
    %c0_36 = arith.constant 0 : index
    %c0_37 = arith.constant 0 : index
    %79 = vector.load %arg5[%c0_34, %c0_35, %c0_36, %c0_37] : memref<2x8x8x256xbf16, #tpu.memory_space<vmem>>, vector<2x8x8x256xbf16>
    tpu.vector_store %arg5[%c0_34, %c0_35, %c0_36, %c0_37], %78 {strides = array<i32>} : memref<2x8x8x256xbf16, #tpu.memory_space<vmem>>, vector<2x8x8x256xbf16>,
    %c0_38 = arith.constant 0 : index
    %c0_39 = arith.constant 0 : index
    %80 = vector.load %arg6[%c0_38, %c0_39] : memref<8x256xf32, #tpu.memory_space<vmem>>, vector<1x256xf32>
    %cst_40 = arith.constant dense<0.000000e+00> : vector<256xf32>
    %81 = vector.multi_reduction <add>, %70, %cst_40 [0] : vector<128x256xf32> to vector<256xf32>
    %82 = vector.shape_cast %81 : vector<256xf32> to vector<1x256xf32>
    %83 = arith.addf %80, %82 : vector<1x256xf32>
    %c0_41 = arith.constant 0 : index
    %c0_42 = arith.constant 0 : index
    %84 = vector.load %arg6[%c0_41, %c0_42] : memref<8x256xf32, #tpu.memory_space<vmem>>, vector<1x256xf32>
    tpu.vector_store %arg6[%c0_41, %c0_42], %83 {strides = array<i32>} : memref<8x256xf32, #tpu.memory_space<vmem>>, vector<1x256xf32>,
    %c1 = arith.constant 1 : index
    %c0_43 = arith.constant 0 : index
    %85 = vector.load %arg6[%c1, %c0_43] : memref<8x256xf32, #tpu.memory_space<vmem>>, vector<1x256xf32>
    %86 = arith.mulf %70, %70 : vector<128x256xf32>
    %cst_44 = arith.constant dense<0.000000e+00> : vector<256xf32>
    %87 = vector.multi_reduction <add>, %86, %cst_44 [0] : vector<128x256xf32> to vector<256xf32>
    %88 = vector.shape_cast %87 : vector<256xf32> to vector<1x256xf32>
    %89 = arith.addf %85, %88 : vector<1x256xf32>
    %c1_45 = arith.constant 1 : index
    %c0_46 = arith.constant 0 : index
    %90 = vector.load %arg6[%c1_45, %c0_46] : memref<8x256xf32, #tpu.memory_space<vmem>>, vector<1x256xf32>
    tpu.vector_store %arg6[%c1_45, %c0_46], %89 {strides = array<i32>} : memref<8x256xf32, #tpu.memory_space<vmem>>, vector<1x256xf32>,
    %c2 = arith.constant 2 : index
    %c0_47 = arith.constant 0 : index
    %91 = vector.load %arg6[%c2, %c0_47] : memref<8x256xf32, #tpu.memory_space<vmem>>, vector<1x256xf32>
    %cst_48 = arith.constant dense<0.000000e+00> : vector<256xf32>
    %92 = vector.multi_reduction <add>, %73, %cst_48 [0] : vector<128x256xf32> to vector<256xf32>
    %93 = vector.shape_cast %92 : vector<256xf32> to vector<1x256xf32>
    %94 = arith.addf %91, %93 : vector<1x256xf32>
    %c2_49 = arith.constant 2 : index
    %c0_50 = arith.constant 0 : index
    %95 = vector.load %arg6[%c2_49, %c0_50] : memref<8x256xf32, #tpu.memory_space<vmem>>, vector<1x256xf32>
    tpu.vector_store %arg6[%c2_49, %c0_50], %94 {strides = array<i32>} : memref<8x256xf32, #tpu.memory_space<vmem>>, vector<1x256xf32>,
    %c3 = arith.constant 3 : index
    %c0_51 = arith.constant 0 : index
    %96 = vector.load %arg6[%c3, %c0_51] : memref<8x256xf32, #tpu.memory_space<vmem>>, vector<1x256xf32>
    %97 = arith.mulf %73, %73 : vector<128x256xf32>
    %cst_52 = arith.constant dense<0.000000e+00> : vector<256xf32>
    %98 = vector.multi_reduction <add>, %97, %cst_52 [0] : vector<128x256xf32> to vector<256xf32>
    %99 = vector.shape_cast %98 : vector<256xf32> to vector<1x256xf32>
    %100 = arith.addf %96, %99 : vector<1x256xf32>
    %c3_53 = arith.constant 3 : index
    %c0_54 = arith.constant 0 : index
    %101 = vector.load %arg6[%c3_53, %c0_54] : memref<8x256xf32, #tpu.memory_space<vmem>>, vector<1x256xf32>
    tpu.vector_store %arg6[%c3_53, %c0_54], %100 {strides = array<i32>} : memref<8x256xf32, #tpu.memory_space<vmem>>, vector<1x256xf32>,
    return
  }
  func.func @transform_0(%arg0: i32) -> (i32, i32, i32, i32) {
    %c0_i32 = arith.constant 0 : i32
    %c0_i32_0 = arith.constant 0 : i32
    %c0_i32_1 = arith.constant 0 : i32
    %c0_i32_2 = arith.constant 0 : i32
    return %arg0, %c0_i32, %c0_i32_0, %c0_i32_1 : i32, i32, i32, i32
  }
  func.func @transform_1(%arg0: i32) -> (i32, i32) {
    %c0_i32 = arith.constant 0 : i32
    %c0_i32_0 = arith.constant 0 : i32
    %c0_i32_1 = arith.constant 0 : i32
    return %c0_i32, %c0_i32_0 : i32, i32
  }
  func.func @transform_2(%arg0: i32) -> (i32, i32) {
    %c0_i32 = arith.constant 0 : i32
    %c0_i32_0 = arith.constant 0 : i32
    %c0_i32_1 = arith.constant 0 : i32
    return %c0_i32, %c0_i32_0 : i32, i32
  }
  func.func @transform_3(%arg0: i32) -> (i32, i32, i32, i32) {
    %c0_i32 = arith.constant 0 : i32
    %c0_i32_0 = arith.constant 0 : i32
    %c0_i32_1 = arith.constant 0 : i32
    %c0_i32_2 = arith.constant 0 : i32
    return %arg0, %c0_i32, %c0_i32_0, %c0_i32_1 : i32, i32, i32, i32
  }
  func.func @transform_4(%arg0: i32) -> (i32, i32, i32, i32) {
    %c0_i32 = arith.constant 0 : i32
    %c0_i32_0 = arith.constant 0 : i32
    %c0_i32_1 = arith.constant 0 : i32
    %c0_i32_2 = arith.constant 0 : i32
    return %arg0, %c0_i32, %c0_i32_0, %c0_i32_1 : i32, i32, i32, i32
  }
  func.func @transform_5(%arg0: i32) -> (i32, i32) {
    %c0_i32 = arith.constant 0 : i32
    %c0_i32_0 = arith.constant 0 : i32
    %c0_i32_1 = arith.constant 0 : i32
    return %c0_i32, %c0_i32_0 : i32, i32
  }
}

module attributes {stable_mosaic.version = 11 : i64} {
  func.func @_stage2_kernel(%arg0: i32, %arg1: memref<2x8x8x256xbf16, #tpu.memory_space<vmem>>, %arg2: memref<1x256xf32, #tpu.memory_space<vmem>>, %arg3: memref<1x256xf32, #tpu.memory_space<vmem>>, %arg4: memref<2304x256xbf16, #tpu.memory_space<vmem>>, %arg5: memref<2x8x8x256xbf16, #tpu.memory_space<vmem>>, %arg6: memref<8x256xf32, #tpu.memory_space<vmem>>, %arg7: memref<128x2304xbf16, #tpu.memory_space<vmem>>) attributes {dimension_semantics = [#tpu.dimension_semantics<arbitrary>], iteration_bounds = array<i64: 2>, scalar_prefetch = 0 : i64, scratch_operands = 1 : i64, tpu.core_type = #tpu.core_type<tc>, window_params = [{transform_indices = @transform_0, window_bounds = array<i64: 2, 8, 8, 256>}, {pipeline_mode = #tpu.pipeline_mode<synchronous>, transform_indices = @transform_1, window_bounds = array<i64: 1, 256>}, {pipeline_mode = #tpu.pipeline_mode<synchronous>, transform_indices = @transform_2, window_bounds = array<i64: 1, 256>}, {pipeline_mode = #tpu.pipeline_mode<synchronous>, transform_indices = @transform_3, window_bounds = array<i64: 2304, 256>}, {transform_indices = @transform_4, window_bounds = array<i64: 2, 8, 8, 256>}, {pipeline_mode = #tpu.pipeline_mode<synchronous>, transform_indices = @transform_5, window_bounds = array<i64: 8, 256>}]} {
    %c0_i32 = arith.constant 0 : i32
    %0 = arith.cmpi eq, %arg0, %c0_i32 : i32
    %1 = arith.extui %0 : i1 to i32
    %c0_i32_0 = arith.constant 0 : i32
    %2 = arith.cmpi ne, %1, %c0_i32_0 : i32
    scf.if %2 {
      %cst_45 = arith.constant 0.000000e+00 : f32
      %97 = vector.broadcast %cst_45 : f32 to vector<8x256xf32>
      %c0_46 = arith.constant 0 : index
      %c0_47 = arith.constant 0 : index
      %98 = vector.load %arg6[%c0_46, %c0_47] : memref<8x256xf32, #tpu.memory_space<vmem>>, vector<8x256xf32>
      tpu.vector_store %arg6[%c0_46, %c0_47], %97 {strides = array<i32>} : memref<8x256xf32, #tpu.memory_space<vmem>>, vector<8x256xf32>,
    } else {
    }
    %c0 = arith.constant 0 : index
    %c0_1 = arith.constant 0 : index
    %c0_2 = arith.constant 0 : index
    %c0_3 = arith.constant 0 : index
    %3 = vector.load %arg1[%c0, %c0_1, %c0_2, %c0_3] : memref<2x8x8x256xbf16, #tpu.memory_space<vmem>>, vector<2x8x8x256xbf16>
    %4 = arith.extf %3 : vector<2x8x8x256xbf16> to vector<2x8x8x256xf32>
    %c0_4 = arith.constant 0 : index
    %c0_5 = arith.constant 0 : index
    %5 = vector.load %arg2[%c0_4, %c0_5] : memref<1x256xf32, #tpu.memory_space<vmem>>, vector<1x256xf32>
    %6 = vector.shape_cast %5 : vector<1x256xf32> to vector<1x1x1x256xf32>
    %7 = vector.broadcast %6 : vector<1x1x1x256xf32> to vector<2x8x8x256xf32>
    %8 = arith.mulf %4, %7 : vector<2x8x8x256xf32>
    %c0_6 = arith.constant 0 : index
    %c0_7 = arith.constant 0 : index
    %9 = vector.load %arg3[%c0_6, %c0_7] : memref<1x256xf32, #tpu.memory_space<vmem>>, vector<1x256xf32>
    %10 = vector.shape_cast %9 : vector<1x256xf32> to vector<1x1x1x256xf32>
    %11 = vector.broadcast %10 : vector<1x1x1x256xf32> to vector<2x8x8x256xf32>
    %12 = arith.addf %8, %11 : vector<2x8x8x256xf32>
    %cst = arith.constant 0.000000e+00 : f32
    %13 = vector.broadcast %cst : f32 to vector<2x8x8x256xf32>
    %14 = arith.maximumf %12, %13 : vector<2x8x8x256xf32>
    %15 = arith.truncf %14 : vector<2x8x8x256xf32> to vector<2x8x8x256xbf16>
    %cst_8 = arith.constant 0.000000e+00 : bf16
    %16 = vector.broadcast %cst_8 : bf16 to vector<2x1x8x256xbf16>
    %17 = tpu.concatenate %16, %15, %16 in 1 : vector<2x1x8x256xbf16>, vector<2x8x8x256xbf16>, vector<2x1x8x256xbf16> -> vector<2x10x8x256xbf16>
    %18 = vector.shape_cast %17 : vector<2x10x8x256xbf16> to vector<160x256xbf16>
    %cst_9 = arith.constant 0.000000e+00 : bf16
    %19 = vector.broadcast %cst_9 : bf16 to vector<1x256xbf16>
    %20 = tpu.iota {dimensions = array<i32: 0>} : vector<160x256xi32>
    %c8_i32 = arith.constant 8 : i32
    %c0_i32_10 = arith.constant 0 : i32
    %21 = arith.cmpi eq, %c8_i32, %c0_i32_10 : i32
    %c1_i32 = arith.constant 1 : i32
    %22 = arith.select %21, %c1_i32, %c8_i32 : i32
    %23 = vector.broadcast %22 : i32 to vector<160x256xi32>
    %24 = arith.remsi %20, %23 : vector<160x256xi32>
    %c0_i32_11 = arith.constant 0 : i32
    %25 = vector.broadcast %c0_i32_11 : i32 to vector<160x256xi32>
    %26 = arith.cmpi ne, %24, %25 : vector<160x256xi32>
    %c0_i32_12 = arith.constant 0 : i32
    %27 = vector.broadcast %c0_i32_12 : i32 to vector<160x256xi32>
    %28 = arith.cmpi slt, %24, %27 : vector<160x256xi32>
    %c0_i32_13 = arith.constant 0 : i32
    %29 = arith.cmpi slt, %22, %c0_i32_13 : i32
    %30 = vector.broadcast %29 : i1 to vector<160x256xi1>
    %31 = vector.broadcast %30 : vector<160x256xi1> to vector<160x256xi1>
    %32 = arith.xori %28, %31 : vector<160x256xi1>
    %33 = arith.andi %32, %26 : vector<160x256xi1>
    %34 = vector.broadcast %22 : i32 to vector<160x256xi32>
    %35 = arith.addi %24, %34 : vector<160x256xi32>
    %36 = arith.select %33, %35, %24 : vector<160x256xi1>, vector<160x256xi32>
    %37 = vector.extract_strided_slice %18 {offsets = [0, 0], sizes = [159, 256], strides = [1, 1]} : vector<160x256xbf16> to vector<159x256xbf16>
    %38 = tpu.concatenate %19, %37 in 0 : vector<1x256xbf16>, vector<159x256xbf16> -> vector<160x256xbf16>
    %c0_i32_14 = arith.constant 0 : i32
    %39 = vector.broadcast %c0_i32_14 : i32 to vector<160x256xi32>
    %40 = arith.cmpi eq, %36, %39 : vector<160x256xi32>
    %cst_15 = arith.constant 0.000000e+00 : f32
    %41 = arith.truncf %cst_15 : f32 to bf16
    %42 = vector.broadcast %41 : bf16 to vector<160x256xbf16>
    %43 = arith.select %40, %42, %38 : vector<160x256xi1>, vector<160x256xbf16>
    %44 = vector.extract_strided_slice %18 {offsets = [1, 0], sizes = [159, 256], strides = [1, 1]} : vector<160x256xbf16> to vector<159x256xbf16>
    %45 = tpu.concatenate %44, %19 in 0 : vector<159x256xbf16>, vector<1x256xbf16> -> vector<160x256xbf16>
    %c7_i32 = arith.constant 7 : i32
    %46 = vector.broadcast %c7_i32 : i32 to vector<160x256xi32>
    %47 = arith.cmpi eq, %36, %46 : vector<160x256xi32>
    %cst_16 = arith.constant 0.000000e+00 : f32
    %48 = arith.truncf %cst_16 : f32 to bf16
    %49 = vector.broadcast %48 : bf16 to vector<160x256xbf16>
    %50 = arith.select %47, %49, %45 : vector<160x256xi1>, vector<160x256xbf16>
    %51 = vector.shape_cast %43 : vector<160x256xbf16> to vector<2x10x8x256xbf16>
    %52 = vector.shape_cast %50 : vector<160x256xbf16> to vector<2x10x8x256xbf16>
    %53 = vector.extract_strided_slice %51 {offsets = [0, 0, 0, 0], sizes = [2, 8, 8, 256], strides = [1, 1, 1, 1]} : vector<2x10x8x256xbf16> to vector<2x8x8x256xbf16>
    %54 = vector.shape_cast %53 : vector<2x8x8x256xbf16> to vector<128x256xbf16>
    %c0_17 = arith.constant 0 : index
    %c0_18 = arith.constant 0 : index
    %55 = vector.load %arg7[%c0_17, %c0_18] : memref<128x2304xbf16, #tpu.memory_space<vmem>>, vector<128x256xbf16>
    tpu.vector_store %arg7[%c0_17, %c0_18], %54 {strides = array<i32>} : memref<128x2304xbf16, #tpu.memory_space<vmem>>, vector<128x256xbf16>,
    %56 = vector.extract_strided_slice %17 {offsets = [0, 0, 0, 0], sizes = [2, 8, 8, 256], strides = [1, 1, 1, 1]} : vector<2x10x8x256xbf16> to vector<2x8x8x256xbf16>
    %57 = vector.shape_cast %56 : vector<2x8x8x256xbf16> to vector<128x256xbf16>
    %c0_19 = arith.constant 0 : index
    %c256 = arith.constant 256 : index
    %58 = vector.load %arg7[%c0_19, %c256] : memref<128x2304xbf16, #tpu.memory_space<vmem>>, vector<128x256xbf16>
    tpu.vector_store %arg7[%c0_19, %c256], %57 {strides = array<i32>} : memref<128x2304xbf16, #tpu.memory_space<vmem>>, vector<128x256xbf16>,
    %59 = vector.extract_strided_slice %52 {offsets = [0, 0, 0, 0], sizes = [2, 8, 8, 256], strides = [1, 1, 1, 1]} : vector<2x10x8x256xbf16> to vector<2x8x8x256xbf16>
    %60 = vector.shape_cast %59 : vector<2x8x8x256xbf16> to vector<128x256xbf16>
    %c0_20 = arith.constant 0 : index
    %c512 = arith.constant 512 : index
    %61 = vector.load %arg7[%c0_20, %c512] : memref<128x2304xbf16, #tpu.memory_space<vmem>>, vector<128x256xbf16>
    tpu.vector_store %arg7[%c0_20, %c512], %60 {strides = array<i32>} : memref<128x2304xbf16, #tpu.memory_space<vmem>>, vector<128x256xbf16>,
    %62 = vector.extract_strided_slice %51 {offsets = [0, 1, 0, 0], sizes = [2, 8, 8, 256], strides = [1, 1, 1, 1]} : vector<2x10x8x256xbf16> to vector<2x8x8x256xbf16>
    %63 = vector.shape_cast %62 : vector<2x8x8x256xbf16> to vector<128x256xbf16>
    %c0_21 = arith.constant 0 : index
    %c768 = arith.constant 768 : index
    %64 = vector.load %arg7[%c0_21, %c768] : memref<128x2304xbf16, #tpu.memory_space<vmem>>, vector<128x256xbf16>
    tpu.vector_store %arg7[%c0_21, %c768], %63 {strides = array<i32>} : memref<128x2304xbf16, #tpu.memory_space<vmem>>, vector<128x256xbf16>,
    %65 = vector.extract_strided_slice %17 {offsets = [0, 1, 0, 0], sizes = [2, 8, 8, 256], strides = [1, 1, 1, 1]} : vector<2x10x8x256xbf16> to vector<2x8x8x256xbf16>
    %66 = vector.shape_cast %65 : vector<2x8x8x256xbf16> to vector<128x256xbf16>
    %c0_22 = arith.constant 0 : index
    %c1024 = arith.constant 1024 : index
    %67 = vector.load %arg7[%c0_22, %c1024] : memref<128x2304xbf16, #tpu.memory_space<vmem>>, vector<128x256xbf16>
    tpu.vector_store %arg7[%c0_22, %c1024], %66 {strides = array<i32>} : memref<128x2304xbf16, #tpu.memory_space<vmem>>, vector<128x256xbf16>,
    %68 = vector.extract_strided_slice %52 {offsets = [0, 1, 0, 0], sizes = [2, 8, 8, 256], strides = [1, 1, 1, 1]} : vector<2x10x8x256xbf16> to vector<2x8x8x256xbf16>
    %69 = vector.shape_cast %68 : vector<2x8x8x256xbf16> to vector<128x256xbf16>
    %c0_23 = arith.constant 0 : index
    %c1280 = arith.constant 1280 : index
    %70 = vector.load %arg7[%c0_23, %c1280] : memref<128x2304xbf16, #tpu.memory_space<vmem>>, vector<128x256xbf16>
    tpu.vector_store %arg7[%c0_23, %c1280], %69 {strides = array<i32>} : memref<128x2304xbf16, #tpu.memory_space<vmem>>, vector<128x256xbf16>,
    %71 = vector.extract_strided_slice %51 {offsets = [0, 2, 0, 0], sizes = [2, 8, 8, 256], strides = [1, 1, 1, 1]} : vector<2x10x8x256xbf16> to vector<2x8x8x256xbf16>
    %72 = vector.shape_cast %71 : vector<2x8x8x256xbf16> to vector<128x256xbf16>
    %c0_24 = arith.constant 0 : index
    %c1536 = arith.constant 1536 : index
    %73 = vector.load %arg7[%c0_24, %c1536] : memref<128x2304xbf16, #tpu.memory_space<vmem>>, vector<128x256xbf16>
    tpu.vector_store %arg7[%c0_24, %c1536], %72 {strides = array<i32>} : memref<128x2304xbf16, #tpu.memory_space<vmem>>, vector<128x256xbf16>,
    %74 = vector.extract_strided_slice %17 {offsets = [0, 2, 0, 0], sizes = [2, 8, 8, 256], strides = [1, 1, 1, 1]} : vector<2x10x8x256xbf16> to vector<2x8x8x256xbf16>
    %75 = vector.shape_cast %74 : vector<2x8x8x256xbf16> to vector<128x256xbf16>
    %c0_25 = arith.constant 0 : index
    %c1792 = arith.constant 1792 : index
    %76 = vector.load %arg7[%c0_25, %c1792] : memref<128x2304xbf16, #tpu.memory_space<vmem>>, vector<128x256xbf16>
    tpu.vector_store %arg7[%c0_25, %c1792], %75 {strides = array<i32>} : memref<128x2304xbf16, #tpu.memory_space<vmem>>, vector<128x256xbf16>,
    %77 = vector.extract_strided_slice %52 {offsets = [0, 2, 0, 0], sizes = [2, 8, 8, 256], strides = [1, 1, 1, 1]} : vector<2x10x8x256xbf16> to vector<2x8x8x256xbf16>
    %78 = vector.shape_cast %77 : vector<2x8x8x256xbf16> to vector<128x256xbf16>
    %c0_26 = arith.constant 0 : index
    %c2048 = arith.constant 2048 : index
    %79 = vector.load %arg7[%c0_26, %c2048] : memref<128x2304xbf16, #tpu.memory_space<vmem>>, vector<128x256xbf16>
    tpu.vector_store %arg7[%c0_26, %c2048], %78 {strides = array<i32>} : memref<128x2304xbf16, #tpu.memory_space<vmem>>, vector<128x256xbf16>,
    %c0_27 = arith.constant 0 : index
    %c0_28 = arith.constant 0 : index
    %80 = vector.load %arg7[%c0_27, %c0_28] : memref<128x2304xbf16, #tpu.memory_space<vmem>>, vector<128x2304xbf16>
    %c0_29 = arith.constant 0 : index
    %c0_30 = arith.constant 0 : index
    %81 = vector.load %arg4[%c0_29, %c0_30] : memref<2304x256xbf16, #tpu.memory_space<vmem>>, vector<2304x256xbf16>
    %cst_31 = arith.constant dense<0.000000e+00> : vector<128x256xf32>
    %82 = tpu.matmul %80, %81, %cst_31 {dimension_numbers = #tpu.dot_dimension_numbers<[1], [0], [0], [1], [0, 0, 1, 1], [], []>} : vector<128x2304xbf16>, vector<2304x256xbf16>, vector<128x256xf32> -> vector<128x256xf32>
    %83 = vector.shape_cast %82 : vector<128x256xf32> to vector<2x8x8x256xf32>
    %84 = arith.truncf %83 : vector<2x8x8x256xf32> to vector<2x8x8x256xbf16>
    %c0_32 = arith.constant 0 : index
    %c0_33 = arith.constant 0 : index
    %c0_34 = arith.constant 0 : index
    %c0_35 = arith.constant 0 : index
    %85 = vector.load %arg5[%c0_32, %c0_33, %c0_34, %c0_35] : memref<2x8x8x256xbf16, #tpu.memory_space<vmem>>, vector<2x8x8x256xbf16>
    tpu.vector_store %arg5[%c0_32, %c0_33, %c0_34, %c0_35], %84 {strides = array<i32>} : memref<2x8x8x256xbf16, #tpu.memory_space<vmem>>, vector<2x8x8x256xbf16>,
    %c0_36 = arith.constant 0 : index
    %c0_37 = arith.constant 0 : index
    %86 = vector.load %arg6[%c0_36, %c0_37] : memref<8x256xf32, #tpu.memory_space<vmem>>, vector<1x256xf32>
    %cst_38 = arith.constant dense<0.000000e+00> : vector<256xf32>
    %87 = vector.multi_reduction <add>, %82, %cst_38 [0] : vector<128x256xf32> to vector<256xf32>
    %88 = vector.shape_cast %87 : vector<256xf32> to vector<1x256xf32>
    %89 = arith.addf %86, %88 : vector<1x256xf32>
    %c0_39 = arith.constant 0 : index
    %c0_40 = arith.constant 0 : index
    %90 = vector.load %arg6[%c0_39, %c0_40] : memref<8x256xf32, #tpu.memory_space<vmem>>, vector<1x256xf32>
    tpu.vector_store %arg6[%c0_39, %c0_40], %89 {strides = array<i32>} : memref<8x256xf32, #tpu.memory_space<vmem>>, vector<1x256xf32>,
    %c1 = arith.constant 1 : index
    %c0_41 = arith.constant 0 : index
    %91 = vector.load %arg6[%c1, %c0_41] : memref<8x256xf32, #tpu.memory_space<vmem>>, vector<1x256xf32>
    %92 = arith.mulf %82, %82 : vector<128x256xf32>
    %cst_42 = arith.constant dense<0.000000e+00> : vector<256xf32>
    %93 = vector.multi_reduction <add>, %92, %cst_42 [0] : vector<128x256xf32> to vector<256xf32>
    %94 = vector.shape_cast %93 : vector<256xf32> to vector<1x256xf32>
    %95 = arith.addf %91, %94 : vector<1x256xf32>
    %c1_43 = arith.constant 1 : index
    %c0_44 = arith.constant 0 : index
    %96 = vector.load %arg6[%c1_43, %c0_44] : memref<8x256xf32, #tpu.memory_space<vmem>>, vector<1x256xf32>
    tpu.vector_store %arg6[%c1_43, %c0_44], %95 {strides = array<i32>} : memref<8x256xf32, #tpu.memory_space<vmem>>, vector<1x256xf32>,
    return
  }
  func.func @transform_0(%arg0: i32) -> (i32, i32, i32, i32) {
    %c0_i32 = arith.constant 0 : i32
    %c0_i32_0 = arith.constant 0 : i32
    %c0_i32_1 = arith.constant 0 : i32
    %c0_i32_2 = arith.constant 0 : i32
    return %arg0, %c0_i32, %c0_i32_0, %c0_i32_1 : i32, i32, i32, i32
  }
  func.func @transform_1(%arg0: i32) -> (i32, i32) {
    %c0_i32 = arith.constant 0 : i32
    %c0_i32_0 = arith.constant 0 : i32
    %c0_i32_1 = arith.constant 0 : i32
    return %c0_i32, %c0_i32_0 : i32, i32
  }
  func.func @transform_2(%arg0: i32) -> (i32, i32) {
    %c0_i32 = arith.constant 0 : i32
    %c0_i32_0 = arith.constant 0 : i32
    %c0_i32_1 = arith.constant 0 : i32
    return %c0_i32, %c0_i32_0 : i32, i32
  }
  func.func @transform_3(%arg0: i32) -> (i32, i32) {
    %c0_i32 = arith.constant 0 : i32
    %c0_i32_0 = arith.constant 0 : i32
    %c0_i32_1 = arith.constant 0 : i32
    return %c0_i32, %c0_i32_0 : i32, i32
  }
  func.func @transform_4(%arg0: i32) -> (i32, i32, i32, i32) {
    %c0_i32 = arith.constant 0 : i32
    %c0_i32_0 = arith.constant 0 : i32
    %c0_i32_1 = arith.constant 0 : i32
    %c0_i32_2 = arith.constant 0 : i32
    return %arg0, %c0_i32, %c0_i32_0, %c0_i32_1 : i32, i32, i32, i32
  }
  func.func @transform_5(%arg0: i32) -> (i32, i32) {
    %c0_i32 = arith.constant 0 : i32
    %c0_i32_0 = arith.constant 0 : i32
    %c0_i32_1 = arith.constant 0 : i32
    return %c0_i32, %c0_i32_0 : i32, i32
  }
}

module attributes {stable_mosaic.version = 11 : i64} {
  func.func @_stage3_kernel(%arg0: i32, %arg1: memref<2x8x8x256xbf16, #tpu.memory_space<vmem>>, %arg2: memref<2x8x8x256xbf16, #tpu.memory_space<vmem>>, %arg3: memref<1x256xf32, #tpu.memory_space<vmem>>, %arg4: memref<1x256xf32, #tpu.memory_space<vmem>>, %arg5: memref<1x256xf32, #tpu.memory_space<vmem>>, %arg6: memref<1x256xf32, #tpu.memory_space<vmem>>, %arg7: memref<256x128xf32, #tpu.memory_space<vmem>>, %arg8: memref<1x128xf32, #tpu.memory_space<vmem>>, %arg9: memref<128x256xf32, #tpu.memory_space<vmem>>, %arg10: memref<1x256xf32, #tpu.memory_space<vmem>>, %arg11: memref<2x8x8x256xf32, #tpu.memory_space<vmem>>) attributes {dimension_semantics = [#tpu.dimension_semantics<parallel>], iteration_bounds = array<i64: 2>, scalar_prefetch = 0 : i64, scratch_operands = 0 : i64, tpu.core_type = #tpu.core_type<tc>, window_params = [{transform_indices = @transform_0, window_bounds = array<i64: 2, 8, 8, 256>}, {transform_indices = @transform_1, window_bounds = array<i64: 2, 8, 8, 256>}, {pipeline_mode = #tpu.pipeline_mode<synchronous>, transform_indices = @transform_2, window_bounds = array<i64: 1, 256>}, {pipeline_mode = #tpu.pipeline_mode<synchronous>, transform_indices = @transform_3, window_bounds = array<i64: 1, 256>}, {pipeline_mode = #tpu.pipeline_mode<synchronous>, transform_indices = @transform_4, window_bounds = array<i64: 1, 256>}, {pipeline_mode = #tpu.pipeline_mode<synchronous>, transform_indices = @transform_5, window_bounds = array<i64: 1, 256>}, {pipeline_mode = #tpu.pipeline_mode<synchronous>, transform_indices = @transform_6, window_bounds = array<i64: 256, 128>}, {pipeline_mode = #tpu.pipeline_mode<synchronous>, transform_indices = @transform_7, window_bounds = array<i64: 1, 128>}, {pipeline_mode = #tpu.pipeline_mode<synchronous>, transform_indices = @transform_8, window_bounds = array<i64: 128, 256>}, {pipeline_mode = #tpu.pipeline_mode<synchronous>, transform_indices = @transform_9, window_bounds = array<i64: 1, 256>}, {transform_indices = @transform_10, window_bounds = array<i64: 2, 8, 8, 256>}]} {
    %c0 = arith.constant 0 : index
    %c0_0 = arith.constant 0 : index
    %c0_1 = arith.constant 0 : index
    %c0_2 = arith.constant 0 : index
    %0 = vector.load %arg1[%c0, %c0_0, %c0_1, %c0_2] : memref<2x8x8x256xbf16, #tpu.memory_space<vmem>>, vector<2x8x8x256xbf16>
    %1 = arith.extf %0 : vector<2x8x8x256xbf16> to vector<2x8x8x256xf32>
    %c0_3 = arith.constant 0 : index
    %c0_4 = arith.constant 0 : index
    %2 = vector.load %arg3[%c0_3, %c0_4] : memref<1x256xf32, #tpu.memory_space<vmem>>, vector<1x256xf32>
    %3 = vector.shape_cast %2 : vector<1x256xf32> to vector<1x1x1x256xf32>
    %4 = vector.broadcast %3 : vector<1x1x1x256xf32> to vector<2x8x8x256xf32>
    %5 = arith.mulf %1, %4 : vector<2x8x8x256xf32>
    %c0_5 = arith.constant 0 : index
    %c0_6 = arith.constant 0 : index
    %6 = vector.load %arg4[%c0_5, %c0_6] : memref<1x256xf32, #tpu.memory_space<vmem>>, vector<1x256xf32>
    %7 = vector.shape_cast %6 : vector<1x256xf32> to vector<1x1x1x256xf32>
    %8 = vector.broadcast %7 : vector<1x1x1x256xf32> to vector<2x8x8x256xf32>
    %9 = arith.addf %5, %8 : vector<2x8x8x256xf32>
    %10 = vector.shape_cast %9 : vector<2x8x8x256xf32> to vector<2x64x256xf32>
    %cst = arith.constant dense<0.000000e+00> : vector<2x256xf32>
    %11 = vector.multi_reduction <add>, %10, %cst [1] : vector<2x64x256xf32> to vector<2x256xf32>
    %cst_7 = arith.constant 6.400000e+01 : f32
    %12 = vector.broadcast %cst_7 : f32 to vector<2x256xf32>
    %13 = arith.divf %11, %12 : vector<2x256xf32>
    %c0_8 = arith.constant 0 : index
    %c0_9 = arith.constant 0 : index
    %14 = vector.load %arg7[%c0_8, %c0_9] : memref<256x128xf32, #tpu.memory_space<vmem>>, vector<256x128xf32>
    %cst_10 = arith.constant dense<0.000000e+00> : vector<2x128xf32>
    %15 = tpu.matmul %13, %14, %cst_10 {dimension_numbers = #tpu.dot_dimension_numbers<[1], [0], [0], [1], [0, 0, 1, 1], [], []>} : vector<2x256xf32>, vector<256x128xf32>, vector<2x128xf32> -> vector<2x128xf32>
    %c0_11 = arith.constant 0 : index
    %c0_12 = arith.constant 0 : index
    %16 = vector.load %arg8[%c0_11, %c0_12] : memref<1x128xf32, #tpu.memory_space<vmem>>, vector<1x128xf32>
    %17 = vector.broadcast %16 : vector<1x128xf32> to vector<2x128xf32>
    %18 = arith.addf %15, %17 : vector<2x128xf32>
    %19 = arith.mulf %18, %18 : vector<2x128xf32>
    %20 = arith.mulf %18, %19 : vector<2x128xf32>
    %cst_13 = arith.constant 4.471500e-02 : f32
    %21 = vector.broadcast %cst_13 : f32 to vector<2x128xf32>
    %22 = arith.mulf %21, %20 : vector<2x128xf32>
    %23 = arith.addf %18, %22 : vector<2x128xf32>
    %cst_14 = arith.constant 0.797884583 : f32
    %24 = vector.broadcast %cst_14 : f32 to vector<2x128xf32>
    %25 = arith.mulf %24, %23 : vector<2x128xf32>
    %26 = math.tanh %25 : vector<2x128xf32>
    %cst_15 = arith.constant 1.000000e+00 : f32
    %27 = vector.broadcast %cst_15 : f32 to vector<2x128xf32>
    %28 = arith.addf %27, %26 : vector<2x128xf32>
    %cst_16 = arith.constant 5.000000e-01 : f32
    %29 = vector.broadcast %cst_16 : f32 to vector<2x128xf32>
    %30 = arith.mulf %29, %28 : vector<2x128xf32>
    %31 = arith.mulf %18, %30 : vector<2x128xf32>
    %c0_17 = arith.constant 0 : index
    %c0_18 = arith.constant 0 : index
    %32 = vector.load %arg9[%c0_17, %c0_18] : memref<128x256xf32, #tpu.memory_space<vmem>>, vector<128x256xf32>
    %cst_19 = arith.constant dense<0.000000e+00> : vector<2x256xf32>
    %33 = tpu.matmul %31, %32, %cst_19 {dimension_numbers = #tpu.dot_dimension_numbers<[1], [0], [0], [1], [0, 0, 1, 1], [], []>} : vector<2x128xf32>, vector<128x256xf32>, vector<2x256xf32> -> vector<2x256xf32>
    %c0_20 = arith.constant 0 : index
    %c0_21 = arith.constant 0 : index
    %34 = vector.load %arg10[%c0_20, %c0_21] : memref<1x256xf32, #tpu.memory_space<vmem>>, vector<1x256xf32>
    %35 = vector.broadcast %34 : vector<1x256xf32> to vector<2x256xf32>
    %36 = arith.addf %33, %35 : vector<2x256xf32>
    %37 = arith.negf %36 : vector<2x256xf32>
    %38 = math.exp %37 : vector<2x256xf32>
    %cst_22 = arith.constant 1.000000e+00 : f32
    %39 = vector.broadcast %cst_22 : f32 to vector<2x256xf32>
    %40 = arith.addf %39, %38 : vector<2x256xf32>
    %41 = arith.divf %39, %40 : vector<2x256xf32>
    %c0_23 = arith.constant 0 : index
    %c0_24 = arith.constant 0 : index
    %c0_25 = arith.constant 0 : index
    %c0_26 = arith.constant 0 : index
    %42 = vector.load %arg2[%c0_23, %c0_24, %c0_25, %c0_26] : memref<2x8x8x256xbf16, #tpu.memory_space<vmem>>, vector<2x8x8x256xbf16>
    %43 = arith.extf %42 : vector<2x8x8x256xbf16> to vector<2x8x8x256xf32>
    %c0_27 = arith.constant 0 : index
    %c0_28 = arith.constant 0 : index
    %44 = vector.load %arg5[%c0_27, %c0_28] : memref<1x256xf32, #tpu.memory_space<vmem>>, vector<1x256xf32>
    %45 = vector.shape_cast %44 : vector<1x256xf32> to vector<1x1x1x256xf32>
    %46 = vector.broadcast %45 : vector<1x1x1x256xf32> to vector<2x8x8x256xf32>
    %47 = arith.mulf %43, %46 : vector<2x8x8x256xf32>
    %c0_29 = arith.constant 0 : index
    %c0_30 = arith.constant 0 : index
    %48 = vector.load %arg6[%c0_29, %c0_30] : memref<1x256xf32, #tpu.memory_space<vmem>>, vector<1x256xf32>
    %49 = vector.shape_cast %48 : vector<1x256xf32> to vector<1x1x1x256xf32>
    %50 = vector.broadcast %49 : vector<1x1x1x256xf32> to vector<2x8x8x256xf32>
    %51 = arith.addf %47, %50 : vector<2x8x8x256xf32>
    %52 = vector.shape_cast %41 : vector<2x256xf32> to vector<2x1x1x256xf32>
    %cst_31 = arith.constant 1.000000e+00 : f32
    %53 = vector.broadcast %cst_31 : f32 to vector<2x1x1x256xf32>
    %54 = arith.addf %53, %52 : vector<2x1x1x256xf32>
    %55 = vector.broadcast %54 : vector<2x1x1x256xf32> to vector<2x8x8x256xf32>
    %56 = arith.mulf %9, %55 : vector<2x8x8x256xf32>
    %57 = arith.addf %56, %51 : vector<2x8x8x256xf32>
    %cst_32 = arith.constant 0.000000e+00 : f32
    %58 = vector.broadcast %cst_32 : f32 to vector<2x8x8x256xf32>
    %59 = arith.maximumf %57, %58 : vector<2x8x8x256xf32>
    %c0_33 = arith.constant 0 : index
    %c0_34 = arith.constant 0 : index
    %c0_35 = arith.constant 0 : index
    %c0_36 = arith.constant 0 : index
    %60 = vector.load %arg11[%c0_33, %c0_34, %c0_35, %c0_36] : memref<2x8x8x256xf32, #tpu.memory_space<vmem>>, vector<2x8x8x256xf32>
    tpu.vector_store %arg11[%c0_33, %c0_34, %c0_35, %c0_36], %59 {strides = array<i32>} : memref<2x8x8x256xf32, #tpu.memory_space<vmem>>, vector<2x8x8x256xf32>,
    return
  }
  func.func @transform_0(%arg0: i32) -> (i32, i32, i32, i32) {
    %c0_i32 = arith.constant 0 : i32
    %c0_i32_0 = arith.constant 0 : i32
    %c0_i32_1 = arith.constant 0 : i32
    %c0_i32_2 = arith.constant 0 : i32
    return %arg0, %c0_i32, %c0_i32_0, %c0_i32_1 : i32, i32, i32, i32
  }
  func.func @transform_1(%arg0: i32) -> (i32, i32, i32, i32) {
    %c0_i32 = arith.constant 0 : i32
    %c0_i32_0 = arith.constant 0 : i32
    %c0_i32_1 = arith.constant 0 : i32
    %c0_i32_2 = arith.constant 0 : i32
    return %arg0, %c0_i32, %c0_i32_0, %c0_i32_1 : i32, i32, i32, i32
  }
  func.func @transform_2(%arg0: i32) -> (i32, i32) {
    %c0_i32 = arith.constant 0 : i32
    %c0_i32_0 = arith.constant 0 : i32
    %c0_i32_1 = arith.constant 0 : i32
    return %c0_i32, %c0_i32_0 : i32, i32
  }
  func.func @transform_3(%arg0: i32) -> (i32, i32) {
    %c0_i32 = arith.constant 0 : i32
    %c0_i32_0 = arith.constant 0 : i32
    %c0_i32_1 = arith.constant 0 : i32
    return %c0_i32, %c0_i32_0 : i32, i32
  }
  func.func @transform_4(%arg0: i32) -> (i32, i32) {
    %c0_i32 = arith.constant 0 : i32
    %c0_i32_0 = arith.constant 0 : i32
    %c0_i32_1 = arith.constant 0 : i32
    return %c0_i32, %c0_i32_0 : i32, i32
  }
  func.func @transform_5(%arg0: i32) -> (i32, i32) {
    %c0_i32 = arith.constant 0 : i32
    %c0_i32_0 = arith.constant 0 : i32
    %c0_i32_1 = arith.constant 0 : i32
    return %c0_i32, %c0_i32_0 : i32, i32
  }
  func.func @transform_6(%arg0: i32) -> (i32, i32) {
    %c0_i32 = arith.constant 0 : i32
    %c0_i32_0 = arith.constant 0 : i32
    %c0_i32_1 = arith.constant 0 : i32
    return %c0_i32, %c0_i32_0 : i32, i32
  }
  func.func @transform_7(%arg0: i32) -> (i32, i32) {
    %c0_i32 = arith.constant 0 : i32
    %c0_i32_0 = arith.constant 0 : i32
    %c0_i32_1 = arith.constant 0 : i32
    return %c0_i32, %c0_i32_0 : i32, i32
  }
  func.func @transform_8(%arg0: i32) -> (i32, i32) {
    %c0_i32 = arith.constant 0 : i32
    %c0_i32_0 = arith.constant 0 : i32
    %c0_i32_1 = arith.constant 0 : i32
    return %c0_i32, %c0_i32_0 : i32, i32
  }
  func.func @transform_9(%arg0: i32) -> (i32, i32) {
    %c0_i32 = arith.constant 0 : i32
    %c0_i32_0 = arith.constant 0 : i32
    %c0_i32_1 = arith.constant 0 : i32
    return %c0_i32, %c0_i32_0 : i32, i32
  }
  func.func @transform_10(%arg0: i32) -> (i32, i32, i32, i32) {
    %c0_i32 = arith.constant 0 : i32
    %c0_i32_0 = arith.constant 0 : i32
    %c0_i32_1 = arith.constant 0 : i32
    %c0_i32_2 = arith.constant 0 : i32
    return %arg0, %c0_i32, %c0_i32_0, %c0_i32_1 : i32, i32, i32, i32
  }
}

</mosaic_0001>

<llo_original>
// kernel: _lambda_.5
$region0: #{_lambda_.5}
  #allocation0 [shape = 'u32[]', space=smem, size = 0x4, offset = 0x4, fixed_abs, tag = 'smem constant byte address 0x4 - core index']
  #allocation1 [shape = 'u32[72,128]{1,0:T(1,128)}', space=vmem, size = 0x9000, scoped, tag = 'internal scratch']
  %s0 = inlined_call_operand.vmem [shape: bf16[4,8,8,256], index: 0, kind: input, shape index: {}]
  %s1 = inlined_call_operand.vmem [shape: bf16[4,8,8,256], index: 1, kind: input, shape index: {}]
  %s2 = inlined_call_operand.vmem [shape: f32[1,256], index: 2, kind: input, shape index: {}]
  %s3 = inlined_call_operand.vmem [shape: f32[1,256], index: 3, kind: input, shape index: {}]
  %s4 = inlined_call_operand.vmem [shape: f32[1,256], index: 4, kind: input, shape index: {}]
  %s5 = inlined_call_operand.vmem [shape: f32[1,256], index: 5, kind: input, shape index: {}]
  %s6 = inlined_call_operand.vmem [shape: f32[256,128], index: 6, kind: input, shape index: {}]
  %s7 = inlined_call_operand.vmem [shape: f32[1,128], index: 7, kind: input, shape index: {}]
  %s8 = inlined_call_operand.vmem [shape: f32[128,256], index: 8, kind: input, shape index: {}]
  %s9 = inlined_call_operand.vmem [shape: f32[1,256], index: 9, kind: input, shape index: {}]
  %s10 = inlined_call_operand.hbm [shape: f32[4,8,8,256], index: 10, kind: output, shape index: {}]
  %s11 = sld [smem:[#allocation0]]
  $region73: #{_lambda_.5} parent=0
    _
  %s13 = ssub.s32 1, %s11
  %s14 = scalar_select 0, %s13, %s11
  $region1: #{_lambda_.5} parent=0
    #allocation2 [shape = 'u8[262144]{0}', space=vmem, size = 0x40000, scoped, tag = 'output window, operand 0']
    #allocation3 [shape = 's32[2]{0}', space=sflag, size = 0x8, scoped, tag = 'scoped memory for _lambda_.5']
    %15 = vsyncpa [#allocation3], 0
    %s16 = scalar_lea.sflag [#allocation3], 1
    %17 = vsyncpa %s16, 0
    loop: start=0, step=1, limit=4
    $region2: #{_lambda_.5} parent=1 // loop_pre_header
      _
    $region3: #{_lambda_.5} parent=1 // loop_header
      %s19 = sphi 0, %s23
      %p20 = scmp.ge.s32.totalorder %s19, 4
      %s29 = sphi 0, %s31
      %s32 = sphi 0, %s29
      %s33 = sphi 0, %s32
      %s49 = sphi 0, %s33
      %s55 = sphi 0, %s57
      %s58 = sphi 0, %s55
      %s59 = sphi 0, %s58
      %s75 = sphi 0, %s59
      %s79 = sphi 0, %s79
      %s81 = sphi 0, %s79
      %s82 = sphi 0, %s81
      %s96 = sphi 0, %s82
      %s100 = sphi 0, %s100
      %s102 = sphi 0, %s100
      %s103 = sphi 0, %s102
      %s117 = sphi 0, %s103
      %s121 = sphi 0, %s121
      %s123 = sphi 0, %s121
      %s124 = sphi 0, %s123
      %s138 = sphi 0, %s124
      %s142 = sphi 0, %s142
      %s144 = sphi 0, %s142
      %s145 = sphi 0, %s144
      %s159 = sphi 0, %s145
      %s163 = sphi 0, %s163
      %s165 = sphi 0, %s163
      %s166 = sphi 0, %s165
      %s180 = sphi 0, %s166
      %s184 = sphi 0, %s184
      %s186 = sphi 0, %s184
      %s187 = sphi 0, %s186
      %s201 = sphi 0, %s187
      %s205 = sphi 0, %s205
      %s207 = sphi 0, %s205
      %s208 = sphi 0, %s207
      %s222 = sphi 0, %s208
      %s226 = sphi 0, %s226
      %s228 = sphi 0, %s226
      %s229 = sphi 0, %s228
      %s243 = sphi 0, %s229
      %s249 = sphi 0, %s251
      %s252 = sphi 0, %s249
      %s253 = sphi 0, %s252
      %s269 = sphi 0, %s253
    $region4: #{_lambda_.5} parent=1 // loop_header_branch
      %22 = sbr.rel (%p20) target = $region8
    $region5: #{_lambda_.5} parent=1 // loop_body
      %s24 = ssub.s32 %s19, 1
      %s25 = ssub.s32 %s19, 2
      %s26 = sadd.s32 %s19, 1
      %s27 = ssub.s32 %s19, %s26
      %p28 = scmp.eq.s32.totalorder %s27, 0
      %s30 = sadd.s32 %s29, 1
      %s31 = scalar_select %p28, %s29, %s30
      %p34 = pneg %p28
      %p35 = scmp.eq.s32.totalorder %s19, 1
      %p36 = por %p34, %p35
      %p37 = scmp.ne.s32.totalorder %s29, %s32
      %p38 = scmp.eq.s32.totalorder %s19, 0
      %p39 = por %p37, %p38
      %p40 = scmp.ne.s32.totalorder %s29, %s32
      %p41 = scmp.eq.s32.totalorder %s24, 1
      %p42 = por %p40, %p41
      %p43 = scmp.ne.s32.totalorder %s32, %s33
      %p44 = scmp.eq.s32.totalorder %s24, 0
      %p45 = por %p43, %p44
      %p46 = scmp.ne.s32.totalorder %s32, %s33
      %p47 = scmp.eq.s32.totalorder %s25, 1
      %p48 = por %p46, %p47
      %p50 = scmp.ne.s32.totalorder %s33, %s49
      %p51 = scmp.eq.s32.totalorder %s25, 0
      %p52 = por %p50, %p51
      %s53 = ssub.s32 %s19, %s26
      %p54 = scmp.eq.s32.totalorder %s53, 0
      %s56 = sadd.s32 %s55, 1
      %s57 = scalar_select %p54, %s55, %s56
      %p60 = pneg %p54
      %p61 = scmp.eq.s32.totalorder %s19, 1
      %p62 = por %p60, %p61
      %p63 = scmp.ne.s32.totalorder %s55, %s58
      %p64 = scmp.eq.s32.totalorder %s19, 0
      %p65 = por %p63, %p64
      %p66 = scmp.ne.s32.totalorder %s55, %s58
      %p67 = scmp.eq.s32.totalorder %s24, 1
      %p68 = por %p66, %p67
      %p69 = scmp.ne.s32.totalorder %s58, %s59
      %p70 = scmp.eq.s32.totalorder %s24, 0
      %p71 = por %p69, %p70
      %p72 = scmp.ne.s32.totalorder %s58, %s59
      %p73 = scmp.eq.s32.totalorder %s25, 1
      %p74 = por %p72, %p73
      %p76 = scmp.ne.s32.totalorder %s59, %s75
      %p77 = scmp.eq.s32.totalorder %s25, 0
      %p78 = por %p76, %p77
      %s80 = sadd.s32 %s79, 1
      %p83 = scmp.eq.s32.totalorder %s19, 1
      %p84 = scmp.ne.s32.totalorder %s79, %s81
      %p85 = scmp.eq.s32.totalorder %s19, 0
      %p86 = por %p84, %p85
      %p87 = scmp.ne.s32.totalorder %s79, %s81
      %p88 = scmp.eq.s32.totalorder %s24, 1
      %p89 = por %p87, %p88
      %p90 = scmp.ne.s32.totalorder %s81, %s82
      %p91 = scmp.eq.s32.totalorder %s24, 0
      %p92 = por %p90, %p91
      %p93 = scmp.ne.s32.totalorder %s81, %s82
      %p94 = scmp.eq.s32.totalorder %s25, 1
      %p95 = por %p93, %p94
      %p97 = scmp.ne.s32.totalorder %s82, %s96
      %p98 = scmp.eq.s32.totalorder %s25, 0
      %p99 = por %p97, %p98
      %s101 = sadd.s32 %s100, 1
      %p104 = scmp.eq.s32.totalorder %s19, 1
      %p105 = scmp.ne.s32.totalorder %s100, %s102
      %p106 = scmp.eq.s32.totalorder %s19, 0
      %p107 = por %p105, %p106
      %p108 = scmp.ne.s32.totalorder %s100, %s102
      %p109 = scmp.eq.s32.totalorder %s24, 1
      %p110 = por %p108, %p109
      %p111 = scmp.ne.s32.totalorder %s102, %s103
      %p112 = scmp.eq.s32.totalorder %s24, 0
      %p113 = por %p111, %p112
      %p114 = scmp.ne.s32.totalorder %s102, %s103
      %p115 = scmp.eq.s32.totalorder %s25, 1
      %p116 = por %p114, %p115
      %p118 = scmp.ne.s32.totalorder %s103, %s117
      %p119 = scmp.eq.s32.totalorder %s25, 0
      %p120 = por %p118, %p119
      %s122 = sadd.s32 %s121, 1
      %p125 = scmp.eq.s32.totalorder %s19, 1
      %p126 = scmp.ne.s32.totalorder %s121, %s123
      %p127 = scmp.eq.s32.totalorder %s19, 0
      %p128 = por %p126, %p127
      %p129 = scmp.ne.s32.totalorder %s121, %s123
      %p130 = scmp.eq.s32.totalorder %s24, 1
      %p131 = por %p129, %p130
      %p132 = scmp.ne.s32.totalorder %s123, %s124
      %p133 = scmp.eq.s32.totalorder %s24, 0
      %p134 = por %p132, %p133
      %p135 = scmp.ne.s32.totalorder %s123, %s124
      %p136 = scmp.eq.s32.totalorder %s25, 1
      %p137 = por %p135, %p136
      %p139 = scmp.ne.s32.totalorder %s124, %s138
      %p140 = scmp.eq.s32.totalorder %s25, 0
      %p141 = por %p139, %p140
      %s143 = sadd.s32 %s142, 1
      %p146 = scmp.eq.s32.totalorder %s19, 1
      %p147 = scmp.ne.s32.totalorder %s142, %s144
      %p148 = scmp.eq.s32.totalorder %s19, 0
      %p149 = por %p147, %p148
      %p150 = scmp.ne.s32.totalorder %s142, %s144
      %p151 = scmp.eq.s32.totalorder %s24, 1
      %p152 = por %p150, %p151
      %p153 = scmp.ne.s32.totalorder %s144, %s145
      %p154 = scmp.eq.s32.totalorder %s24, 0
      %p155 = por %p153, %p154
      %p156 = scmp.ne.s32.totalorder %s144, %s145
      %p157 = scmp.eq.s32.totalorder %s25, 1
      %p158 = por %p156, %p157
      %p160 = scmp.ne.s32.totalorder %s145, %s159
      %p161 = scmp.eq.s32.totalorder %s25, 0
      %p162 = por %p160, %p161
      %s164 = sadd.s32 %s163, 1
      %p167 = scmp.eq.s32.totalorder %s19, 1
      %p168 = scmp.ne.s32.totalorder %s163, %s165
      %p169 = scmp.eq.s32.totalorder %s19, 0
      %p170 = por %p168, %p169
      %p171 = scmp.ne.s32.totalorder %s163, %s165
      %p172 = scmp.eq.s32.totalorder %s24, 1
      %p173 = por %p171, %p172
      %p174 = scmp.ne.s32.totalorder %s165, %s166
      %p175 = scmp.eq.s32.totalorder %s24, 0
      %p176 = por %p174, %p175
      %p177 = scmp.ne.s32.totalorder %s165, %s166
      %p178 = scmp.eq.s32.totalorder %s25, 1
      %p179 = por %p177, %p178
      %p181 = scmp.ne.s32.totalorder %s166, %s180
      %p182 = scmp.eq.s32.totalorder %s25, 0
      %p183 = por %p181, %p182
      %s185 = sadd.s32 %s184, 1
      %p188 = scmp.eq.s32.totalorder %s19, 1
      %p189 = scmp.ne.s32.totalorder %s184, %s186
      %p190 = scmp.eq.s32.totalorder %s19, 0
      %p191 = por %p189, %p190
      %p192 = scmp.ne.s32.totalorder %s184, %s186
      %p193 = scmp.eq.s32.totalorder %s24, 1
      %p194 = por %p192, %p193
      %p195 = scmp.ne.s32.totalorder %s186, %s187
      %p196 = scmp.eq.s32.totalorder %s24, 0
      %p197 = por %p195, %p196
      %p198 = scmp.ne.s32.totalorder %s186, %s187
      %p199 = scmp.eq.s32.totalorder %s25, 1
      %p200 = por %p198, %p199
      %p202 = scmp.ne.s32.totalorder %s187, %s201
      %p203 = scmp.eq.s32.totalorder %s25, 0
      %p204 = por %p202, %p203
      %s206 = sadd.s32 %s205, 1
      %p209 = scmp.eq.s32.totalorder %s19, 1
      %p210 = scmp.ne.s32.totalorder %s205, %s207
      %p211 = scmp.eq.s32.totalorder %s19, 0
      %p212 = por %p210, %p211
      %p213 = scmp.ne.s32.totalorder %s205, %s207
      %p214 = scmp.eq.s32.totalorder %s24, 1
      %p215 = por %p213, %p214
      %p216 = scmp.ne.s32.totalorder %s207, %s208
      %p217 = scmp.eq.s32.totalorder %s24, 0
      %p218 = por %p216, %p217
      %p219 = scmp.ne.s32.totalorder %s207, %s208
      %p220 = scmp.eq.s32.totalorder %s25, 1
      %p221 = por %p219, %p220
      %p223 = scmp.ne.s32.totalorder %s208, %s222
      %p224 = scmp.eq.s32.totalorder %s25, 0
      %p225 = por %p223, %p224
      %s227 = sadd.s32 %s226, 1
      %p230 = scmp.eq.s32.totalorder %s19, 1
      %p231 = scmp.ne.s32.totalorder %s226, %s228
      %p232 = scmp.eq.s32.totalorder %s19, 0
      %p233 = por %p231, %p232
      %p234 = scmp.ne.s32.totalorder %s226, %s228
      %p235 = scmp.eq.s32.totalorder %s24, 1
      %p236 = por %p234, %p235
      %p237 = scmp.ne.s32.totalorder %s228, %s229
      %p238 = scmp.eq.s32.totalorder %s24, 0
      %p239 = por %p237, %p238
      %p240 = scmp.ne.s32.totalorder %s228, %s229
      %p241 = scmp.eq.s32.totalorder %s25, 1
      %p242 = por %p240, %p241
      %p244 = scmp.ne.s32.totalorder %s229, %s243
      %p245 = scmp.eq.s32.totalorder %s25, 0
      %p246 = por %p244, %p245
      %s247 = ssub.s32 %s19, %s26
      %p248 = scmp.eq.s32.totalorder %s247, 0
      %s250 = sadd.s32 %s249, 1
      %s251 = scalar_select %p248, %s249, %s250
      %p254 = pneg %p248
      %p255 = scmp.eq.s32.totalorder %s19, 1
      %p256 = por %p254, %p255
      %p257 = scmp.ne.s32.totalorder %s249, %s252
      %p258 = scmp.eq.s32.totalorder %s19, 0
      %p259 = por %p257, %p258
      %p260 = scmp.ne.s32.totalorder %s249, %s252
      %p261 = scmp.eq.s32.totalorder %s24, 1
      %p262 = por %p260, %p261
      %p263 = scmp.ne.s32.totalorder %s252, %s253
      %p264 = scmp.eq.s32.totalorder %s24, 0
      %p265 = por %p263, %p264
      %p266 = scmp.ne.s32.totalorder %s252, %s253
      %p267 = scmp.eq.s32.totalorder %s25, 1
      %p268 = por %p266, %p267
      %p270 = scmp.ne.s32.totalorder %s253, %s269
      %p271 = scmp.eq.s32.totalorder %s25, 0
      %p272 = por %p270, %p271
      %p273 = scmp.le.s32.totalorder 1, %s19
      %p274 = scmp.lt.s32.totalorder %s19, 3
      %p275 = pnand %p273, %p274
      %p276 = pneg %p275
      // Predicated region
      $region9: #{_lambda_.5} parent=5 // pred_check
        _
      $region10: #{_lambda_.5} parent=5 // pred_check_branch
        %278 = sbr.rel (%p275) target = $region12
      $region11: #{_lambda_.5} parent=5 // pred_region
        %s279 = ssub.s32 %s19, 1
        // Predicated region
        $region13: #{_lambda_.5} parent=11 // pred_check
          %p280 = pneg %p92
        $region14: #{_lambda_.5} parent=11 // pred_check_branch
          %282 = sbr.rel (%p280) target = $region16
        $region15: #{_lambda_.5} parent=11 // pred_region
          _
        $region16: #{_lambda_.5} parent=11 // pred_fallthru
          _
        // Predicated region
        $region17: #{_lambda_.5} parent=11 // pred_check
          %p283 = pneg %p113
        $region18: #{_lambda_.5} parent=11 // pred_check_branch
          %285 = sbr.rel (%p283) target = $region20
        $region19: #{_lambda_.5} parent=11 // pred_region
          _
        $region20: #{_lambda_.5} parent=11 // pred_fallthru
          _
        // Predicated region
        $region21: #{_lambda_.5} parent=11 // pred_check
          %p286 = pneg %p134
        $region22: #{_lambda_.5} parent=11 // pred_check_branch
          %288 = sbr.rel (%p286) target = $region24
        $region23: #{_lambda_.5} parent=11 // pred_region
          _
        $region24: #{_lambda_.5} parent=11 // pred_fallthru
          _
        // Predicated region
        $region25: #{_lambda_.5} parent=11 // pred_check
          %p289 = pneg %p155
        $region26: #{_lambda_.5} parent=11 // pred_check_branch
          %291 = sbr.rel (%p289) target = $region28
        $region27: #{_lambda_.5} parent=11 // pred_region
          _
        $region28: #{_lambda_.5} parent=11 // pred_fallthru
          _
        // Predicated region
        $region29: #{_lambda_.5} parent=11 // pred_check
          %p292 = pneg %p176
        $region30: #{_lambda_.5} parent=11 // pred_check_branch
          %294 = sbr.rel (%p292) target = $region32
        $region31: #{_lambda_.5} parent=11 // pred_region
          _
        $region32: #{_lambda_.5} parent=11 // pred_fallthru
          _
        // Predicated region
        $region33: #{_lambda_.5} parent=11 // pred_check
          %p295 = pneg %p197
        $region34: #{_lambda_.5} parent=11 // pred_check_branch
          %297 = sbr.rel (%p295) target = $region36
        $region35: #{_lambda_.5} parent=11 // pred_region
          _
        $region36: #{_lambda_.5} parent=11 // pred_fallthru
          _
        // Predicated region
        $region37: #{_lambda_.5} parent=11 // pred_check
          %p298 = pneg %p218
        $region38: #{_lambda_.5} parent=11 // pred_check_branch
          %300 = sbr.rel (%p298) target = $region40
        $region39: #{_lambda_.5} parent=11 // pred_region
          _
        $region40: #{_lambda_.5} parent=11 // pred_fallthru
          _
        // Predicated region
        $region41: #{_lambda_.5} parent=11 // pred_check
          %p301 = pneg %p239
        $region42: #{_lambda_.5} parent=11 // pred_check_branch
          %303 = sbr.rel (%p301) target = $region44
        $region43: #{_lambda_.5} parent=11 // pred_region
          _
        $region44: #{_lambda_.5} parent=11 // pred_fallthru
          _
      $region12: #{_lambda_.5} parent=5 // pred_fallthru
        _
      %p304 = scmp.lt.s32.totalorder %s19, 2
      // Predicated region
      $region45: #{_lambda_.5} parent=5 // pred_check
        %p305 = pneg %p304
      $region46: #{_lambda_.5} parent=5 // pred_check_branch
        %307 = sbr.rel (%p305) target = $region48
      $region47: #{_lambda_.5} parent=5 // pred_region
        // Predicated region
        $region49: #{_lambda_.5} parent=47 // pred_check
          %p308 = pneg %p39
        $region50: #{_lambda_.5} parent=47 // pred_check_branch
          %310 = sbr.rel (%p308) target = $region52
        $region51: #{_lambda_.5} parent=47 // pred_region
          %s311 = smul.u32 2, %s19
          %p312 = scmp.lt.s32.totalorder %s311, 3
          %s313 = scalar_select %p312, %s311, 3
          %s314 = smul.addr %s313, 16
          %s315 = smul.addr %s314, 4
          %s316 = scalar_lea.vmem %s0, %s315
          %s317 = smul.u32 2, %s19
        $region52: #{_lambda_.5} parent=47 // pred_fallthru
          _
        // Predicated region
        $region53: #{_lambda_.5} parent=47 // pred_check
          %p318 = pneg %p65
        $region54: #{_lambda_.5} parent=47 // pred_check_branch
          %320 = sbr.rel (%p318) target = $region56
        $region55: #{_lambda_.5} parent=47 // pred_region
          %s321 = smul.u32 2, %s19
          %p322 = scmp.lt.s32.totalorder %s321, 3
          %s323 = scalar_select %p322, %s321, 3
          %s324 = smul.addr %s323, 16
          %s325 = smul.addr %s324, 4
          %s326 = scalar_lea.vmem %s1, %s325
          %s327 = smul.u32 2, %s19
        $region56: #{_lambda_.5} parent=47 // pred_fallthru
          _
      $region48: #{_lambda_.5} parent=5 // pred_fallthru
        _
      %p328 = scmp.le.s32.totalorder 1, %s19
      %p329 = scmp.lt.s32.totalorder %s19, 3
      %p330 = pnand %p328, %p329
      %p331 = pneg %p330
      // Predicated region
      $region57: #{_lambda_.5} parent=5 // pred_check
        _
      $region58: #{_lambda_.5} parent=5 // pred_check_branch
        %333 = sbr.rel (%p330) target = $region60
      $region59: #{_lambda_.5} parent=5 // pred_region
        %s334 = ssub.s32 %s19, 1
        %s335 = smul.u32 2, %s24
        %p336 = scmp.lt.s32.totalorder %s335, 3
        %s337 = scalar_select %p336, %s335, 3
        %s338 = smul.addr %s337, 16
        %s339 = smul.addr %s338, 4
        %s340 = scalar_lea.vmem %s0, %s339
        %p341 = pneg %p45
        %p342 = pneg %p42
        %s343 = smul.u32 2, %s24
        %p344 = scmp.lt.s32.totalorder %s343, 3
        %s345 = scalar_select %p344, %s343, 3
        %s346 = smul.addr %s345, 16
        %s347 = smul.addr %s346, 4
        %s348 = scalar_lea.vmem %s1, %s347
        %p349 = pneg %p71
        %p350 = pneg %p68
        %p351 = pneg %p92
        %p352 = pneg %p89
        %p353 = pneg %p113
        %p354 = pneg %p110
        %p355 = pneg %p134
        %p356 = pneg %p131
        %p357 = pneg %p155
        %p358 = pneg %p152
        %p359 = pneg %p176
        %p360 = pneg %p173
        %p361 = pneg %p197
        %p362 = pneg %p194
        %p363 = pneg %p218
        %p364 = pneg %p215
        %p365 = pneg %p239
        %p366 = pneg %p236
        %p367 = pneg %p265
        %p368 = pneg %p262
        %s369 = sand.u32 %s252, 1
        %s370 = scalar_lea.sflag [#allocation3], %s369
        %s371 = sand.u32 %s252, 1
        %s372 = smul.addr %s371, 256
        %s373 = scalar_lea.vmem [#allocation2], %s372
        %s374 = smul.u32 2, %s24
        %p375 = scmp.lt.s32.totalorder %s374, 3
        %s376 = scalar_select %p375, %s374, 3
        %s377 = smul.addr %s376, 16
        %s378 = smul.addr %s377, 4
        %s379 = scalar_lea.vmem %s0, %s378
        %s380 = smul.u32 2, %s24
        %s381 = smul.u32 2, %s24
        %p382 = scmp.lt.s32.totalorder %s381, 3
        %s383 = scalar_select %p382, %s381, 3
        %s384 = smul.addr %s383, 16
        %s385 = smul.addr %s384, 4
        %s386 = scalar_lea.vmem %s1, %s385
        %s387 = smul.u32 2, %s24
        %s388 = smul.u32 2, %s24
        %v389 = vld [vmem:[%s379] sm:$0xff]
        %v390 = vld [vmem:[%s379 + $0x8] sm:$0xff]
        %v391 = vld [vmem:[%s379 + $0x10] sm:$0xff]
        %v392 = vld [vmem:[%s379 + $0x18] sm:$0xff]
        %v393 = vld [vmem:[%s379 + $0x20] sm:$0xff]
        %v394 = vld [vmem:[%s379 + $0x28] sm:$0xff]
        %v395 = vld [vmem:[%s379 + $0x30] sm:$0xff]
        %v396 = vld [vmem:[%s379 + $0x38] sm:$0xff]
        %v397 = vld [vmem:[%s379 + $0x40] sm:$0xff]
        %v398 = vld [vmem:[%s379 + $0x48] sm:$0xff]
        %v399 = vld [vmem:[%s379 + $0x50] sm:$0xff]
        %v400 = vld [vmem:[%s379 + $0x58] sm:$0xff]
        %v401 = vld [vmem:[%s379 + $0x60] sm:$0xff]
        %v402 = vld [vmem:[%s379 + $0x68] sm:$0xff]
        %v403 = vld [vmem:[%s379 + $0x70] sm:$0xff]
        %v404 = vld [vmem:[%s379 + $0x78] sm:$0xff]
        %v405 = vunpack.c.l.bf16 %v389
        %v406 = vunpack.c.h.bf16 %v389
        %v407 = vunpack.c.l.bf16 %v390
        %v408 = vunpack.c.h.bf16 %v390
        %v409 = vunpack.c.l.bf16 %v391
        %v410 = vunpack.c.h.bf16 %v391
        %v411 = vunpack.c.l.bf16 %v392
        %v412 = vunpack.c.h.bf16 %v392
        %v413 = vunpack.c.l.bf16 %v393
        %v414 = vunpack.c.h.bf16 %v393
        %v415 = vunpack.c.l.bf16 %v394
        %v416 = vunpack.c.h.bf16 %v394
        %v417 = vunpack.c.l.bf16 %v395
        %v418 = vunpack.c.h.bf16 %v395
        %v419 = vunpack.c.l.bf16 %v396
        %v420 = vunpack.c.h.bf16 %v396
        %v421 = vunpack.c.l.bf16 %v397
        %v422 = vunpack.c.h.bf16 %v397
        %v423 = vunpack.c.l.bf16 %v398
        %v424 = vunpack.c.h.bf16 %v398
        %v425 = vunpack.c.l.bf16 %v399
        %v426 = vunpack.c.h.bf16 %v399
        %v427 = vunpack.c.l.bf16 %v400
        %v428 = vunpack.c.h.bf16 %v400
        %v429 = vunpack.c.l.bf16 %v401
        %v430 = vunpack.c.h.bf16 %v401
        %v431 = vunpack.c.l.bf16 %v402
        %v432 = vunpack.c.h.bf16 %v402
        %v433 = vunpack.c.l.bf16 %v403
        %v434 = vunpack.c.h.bf16 %v403
        %v435 = vunpack.c.l.bf16 %v404
        %v436 = vunpack.c.h.bf16 %v404
        %v437 = vld [vmem:[%s2] sm:$0x3]
        %v439 = vperm.slane %v437, 0
        %v440 = vperm.slane %v437, 1
        %v443 = vmul.f32 %v405, %v439
        %v444 = vmul.f32 %v406, %v440
        %v445 = vmul.f32 %v407, %v439
        %v446 = vmul.f32 %v408, %v440
        %v447 = vmul.f32 %v409, %v439
        %v448 = vmul.f32 %v410, %v440
        %v449 = vmul.f32 %v411, %v439
        %v450 = vmul.f32 %v412, %v440
        %v451 = vmul.f32 %v413, %v439
        %v452 = vmul.f32 %v414, %v440
        %v453 = vmul.f32 %v415, %v439
        %v454 = vmul.f32 %v416, %v440
        %v455 = vmul.f32 %v417, %v439
        %v456 = vmul.f32 %v418, %v440
        %v457 = vmul.f32 %v419, %v439
        %v458 = vmul.f32 %v420, %v440
        %v459 = vmul.f32 %v421, %v439
        %v460 = vmul.f32 %v422, %v440
        %v461 = vmul.f32 %v423, %v439
        %v462 = vmul.f32 %v424, %v440
        %v463 = vmul.f32 %v425, %v439
        %v464 = vmul.f32 %v426, %v440
        %v465 = vmul.f32 %v427, %v439
        %v466 = vmul.f32 %v428, %v440
        %v467 = vmul.f32 %v429, %v439
        %v468 = vmul.f32 %v430, %v440
        %v469 = vmul.f32 %v431, %v439
        %v470 = vmul.f32 %v432, %v440
        %v471 = vmul.f32 %v433, %v439
        %v472 = vmul.f32 %v434, %v440
        %v473 = vmul.f32 %v435, %v439
        %v474 = vmul.f32 %v436, %v440
        %v475 = vld [vmem:[%s3] sm:$0x3]
        %v477 = vperm.slane %v475, 0
        %v478 = vperm.slane %v475, 1
        %v481 = vadd.f32 %v443, %v477
        %v482 = vadd.f32 %v444, %v478
        %v483 = vadd.f32 %v445, %v477
        %v484 = vadd.f32 %v446, %v478
        %v485 = vadd.f32 %v447, %v477
        %v486 = vadd.f32 %v448, %v478
        %v487 = vadd.f32 %v449, %v477
        %v488 = vadd.f32 %v450, %v478
        %v489 = vadd.f32 %v451, %v477
        %v490 = vadd.f32 %v452, %v478
        %v491 = vadd.f32 %v453, %v477
        %v492 = vadd.f32 %v454, %v478
        %v493 = vadd.f32 %v455, %v477
        %v494 = vadd.f32 %v456, %v478
        %v495 = vadd.f32 %v457, %v477
        %v496 = vadd.f32 %v458, %v478
        %v497 = vadd.f32 %v459, %v477
        %v498 = vadd.f32 %v460, %v478
        %v499 = vadd.f32 %v461, %v477
        %v500 = vadd.f32 %v462, %v478
        %v501 = vadd.f32 %v463, %v477
        %v502 = vadd.f32 %v464, %v478
        %v503 = vadd.f32 %v465, %v477
        %v504 = vadd.f32 %v466, %v478
        %v505 = vadd.f32 %v467, %v477
        %v506 = vadd.f32 %v468, %v478
        %v507 = vadd.f32 %v469, %v477
        %v508 = vadd.f32 %v470, %v478
        %v509 = vadd.f32 %v471, %v477
        %v510 = vadd.f32 %v472, %v478
        %v511 = vadd.f32 %v473, %v477
        %v512 = vadd.f32 %v474, %v478
        %v513 = vadd.f32 %v481, %v483
        %v514 = vadd.f32 %v513, %v485
        %v515 = vadd.f32 %v514, %v487
        %v516 = vadd.f32 %v515, %v489
        %v517 = vadd.f32 %v516, %v491
        %v518 = vadd.f32 %v517, %v493
        %v519 = vadd.f32 %v518, %v495
        %v520 = vrot.slane %v519, 4
        %v521 = vadd.f32 %v519, %v520
        %v522 = vrot.slane %v521, 2
        %v523 = vadd.f32 %v521, %v522
        %v524 = vrot.slane %v523, 1
        %v525 = vadd.f32 %v523, %v524
        %v526 = vadd.f32 %v482, %v484
        %v527 = vadd.f32 %v526, %v486
        %v528 = vadd.f32 %v527, %v488
        %v529 = vadd.f32 %v528, %v490
        %v530 = vadd.f32 %v529, %v492
        %v531 = vadd.f32 %v530, %v494
        %v532 = vadd.f32 %v531, %v496
        %v533 = vrot.slane %v532, 4
        %v534 = vadd.f32 %v532, %v533
        %v535 = vrot.slane %v534, 2
        %v536 = vadd.f32 %v534, %v535
        %v537 = vrot.slane %v536, 1
        %v538 = vadd.f32 %v536, %v537
        %v539 = vadd.f32 %v497, %v499
        %v540 = vadd.f32 %v539, %v501
        %v541 = vadd.f32 %v540, %v503
        %v542 = vadd.f32 %v541, %v505
        %v543 = vadd.f32 %v542, %v507
        %v544 = vadd.f32 %v543, %v509
        %v545 = vadd.f32 %v544, %v511
        %v546 = vrot.slane %v545, 4
        %v547 = vadd.f32 %v545, %v546
        %v548 = vrot.slane %v547, 2
        %v549 = vadd.f32 %v547, %v548
        %v550 = vrot.slane %v549, 1
        %v551 = vadd.f32 %v549, %v550
        %v552 = vadd.f32 %v498, %v500
        %v553 = vadd.f32 %v552, %v502
        %v554 = vadd.f32 %v553, %v504
        %v555 = vadd.f32 %v554, %v506
        %v556 = vadd.f32 %v555, %v508
        %v557 = vadd.f32 %v556, %v510
        %v558 = vadd.f32 %v557, %v512
        %v559 = vrot.slane %v558, 4
        %v560 = vadd.f32 %v558, %v559
        %v561 = vrot.slane %v560, 2
        %v562 = vadd.f32 %v560, %v561
        %v563 = vrot.slane %v562, 1
        %v564 = vadd.f32 %v562, %v563
        %v565 = vrcp.pop 64.0
        %v566 = vmul.f32 64.0, %v565
        %v567 = vsub.f32 1.0, %v566
        %v568 = vmul.f32 %v565, %v567
        %v569 = vadd.f32 %v565, %v568
        %vm570 = vweird.f32 %v565
        %v571 = vsel %vm570, %v565, %v569
        %v572 = vmul.f32 %v525, %v571
        %v573 = vmul.f32 %v538, %v571
        %v574 = vmul.f32 %v551, %v571
        %v575 = vmul.f32 %v564, %v571
        %v576 = vld [vmem:[%s6] sm:$0xff]
        %v577 = vld [vmem:[%s6 + $0x8] sm:$0xff]
        %v578 = vld [vmem:[%s6 + $0x10] sm:$0xff]
        %v579 = vld [vmem:[%s6 + $0x18] sm:$0xff]
        %v580 = vld [vmem:[%s6 + $0x20] sm:$0xff]
        %v581 = vld [vmem:[%s6 + $0x28] sm:$0xff]
        %v582 = vld [vmem:[%s6 + $0x30] sm:$0xff]
        %v583 = vld [vmem:[%s6 + $0x38] sm:$0xff]
        %v584 = vld [vmem:[%s6 + $0x40] sm:$0xff]
        %v585 = vld [vmem:[%s6 + $0x48] sm:$0xff]
        %v586 = vld [vmem:[%s6 + $0x50] sm:$0xff]
        %v587 = vld [vmem:[%s6 + $0x58] sm:$0xff]
        %v588 = vld [vmem:[%s6 + $0x60] sm:$0xff]
        %v589 = vld [vmem:[%s6 + $0x68] sm:$0xff]
        %v590 = vld [vmem:[%s6 + $0x70] sm:$0xff]
        %v591 = vld [vmem:[%s6 + $0x78] sm:$0xff]
        %v592 = vld [vmem:[%s6 + $0x80] sm:$0xff]
        %v593 = vld [vmem:[%s6 + $0x88] sm:$0xff]
        %v594 = vld [vmem:[%s6 + $0x90] sm:$0xff]
        %v595 = vld [vmem:[%s6 + $0x98] sm:$0xff]
        %v596 = vld [vmem:[%s6 + $0xa0] sm:$0xff]
        %v597 = vld [vmem:[%s6 + $0xa8] sm:$0xff]
        %v598 = vld [vmem:[%s6 + $0xb0] sm:$0xff]
        %v599 = vld [vmem:[%s6 + $0xb8] sm:$0xff]
        %v600 = vld [vmem:[%s6 + $0xc0] sm:$0xff]
        %v601 = vld [vmem:[%s6 + $0xc8] sm:$0xff]
        %v602 = vld [vmem:[%s6 + $0xd0] sm:$0xff]
        %v603 = vld [vmem:[%s6 + $0xd8] sm:$0xff]
        %v604 = vld [vmem:[%s6 + $0xe0] sm:$0xff]
        %v605 = vld [vmem:[%s6 + $0xe8] sm:$0xff]
        %v606 = vld [vmem:[%s6 + $0xf0] sm:$0xff]
        %v607 = vld [vmem:[%s6 + $0xf8] sm:$0xff]
        %v608 = vld [vmem:[%s7] sm:$0x1]
        %v610 = vperm.slane %v608, 0
        %vm616 = vcmask 1041409
        %v617 = vsel %vm616, %v574, %v572
        %v618 = vsel %vm616, %v575, %v573
        %621 = vmatpush.msra.mxu0 %v591
        %622 = vmatpush.msra.mxu0 %v590
        %623 = vmatpush.msra.mxu0 %v589
        %624 = vmatpush.msra.mxu0 %v588
        %625 = vmatpush.msra.mxu0 %v587
        %626 = vmatpush.msra.mxu0 %v586
        %627 = vmatpush.msra.mxu0 %v585
        %628 = vmatpush.msra.mxu0 %v584
        %629 = vmatpush.msra.mxu0 %v583
        %630 = vmatpush.msra.mxu0 %v582
        %631 = vmatpush.msra.mxu0 %v581
        %632 = vmatpush.msra.mxu0 %v580
        %633 = vmatpush.msra.mxu0 %v579
        %634 = vmatpush.msra.mxu0 %v578
        %635 = vmatpush.msra.mxu0 %v577
        %636 = vmatpush.msra.mxu0 %v576
        %637 = vmatmul.f32.gmra.mxu0 %v617
        %v638 = vpop.f32.mrf.mxu0
        %v639 = vadd.f32 %v610, %v638
        %640 = vdwg.mxu0
        %641 = vmatpush.msra.mxu0 %v607
        %642 = vmatpush.msra.mxu0 %v606
        %643 = vmatpush.msra.mxu0 %v605
        %644 = vmatpush.msra.mxu0 %v604
        %645 = vmatpush.msra.mxu0 %v603
        %646 = vmatpush.msra.mxu0 %v602
        %647 = vmatpush.msra.mxu0 %v601
        %648 = vmatpush.msra.mxu0 %v600
        %649 = vmatpush.msra.mxu0 %v599
        %650 = vmatpush.msra.mxu0 %v598
        %651 = vmatpush.msra.mxu0 %v597
        %652 = vmatpush.msra.mxu0 %v596
        %653 = vmatpush.msra.mxu0 %v595
        %654 = vmatpush.msra.mxu0 %v594
        %655 = vmatpush.msra.mxu0 %v593
        %656 = vmatpush.msra.mxu0 %v592
        %657 = vmatmul.f32.gmra.mxu0 %v618
        %v658 = vpop.f32.mrf.mxu0
        %v659 = vadd.f32 %v639, %v658
        %660 = vdwg.mxu0
        %v661 = vmul.f32 %v659, %v659
        %v662 = vmul.f32 %v659, %v661
        %v663 = vmul.f32 %v662, 0.044715
        %v664 = vadd.f32 %v659, %v663
        %v665 = vmul.f32 %v664, 0.7978846
        %v666 = vtanh.pop %v665
        %v667 = vadd.f32 %v666, 1.0
        %v668 = vmul.f32 %v667, 0.5
        %v669 = vmul.f32 %v659, %v668
        %v670 = vld [vmem:[%s8] sm:$0xff]
        %v671 = vld [vmem:[%s8 + $0x8] sm:$0xff]
        %v672 = vld [vmem:[%s8 + $0x10] sm:$0xff]
        %v673 = vld [vmem:[%s8 + $0x18] sm:$0xff]
        %v674 = vld [vmem:[%s8 + $0x20] sm:$0xff]
        %v675 = vld [vmem:[%s8 + $0x28] sm:$0xff]
        %v676 = vld [vmem:[%s8 + $0x30] sm:$0xff]
        %v677 = vld [vmem:[%s8 + $0x38] sm:$0xff]
        %v678 = vld [vmem:[%s8 + $0x40] sm:$0xff]
        %v679 = vld [vmem:[%s8 + $0x48] sm:$0xff]
        %v680 = vld [vmem:[%s8 + $0x50] sm:$0xff]
        %v681 = vld [vmem:[%s8 + $0x58] sm:$0xff]
        %v682 = vld [vmem:[%s8 + $0x60] sm:$0xff]
        %v683 = vld [vmem:[%s8 + $0x68] sm:$0xff]
        %v684 = vld [vmem:[%s8 + $0x70] sm:$0xff]
        %v685 = vld [vmem:[%s8 + $0x78] sm:$0xff]
        %v686 = vld [vmem:[%s8 + $0x80] sm:$0xff]
        %v687 = vld [vmem:[%s8 + $0x88] sm:$0xff]
        %v688 = vld [vmem:[%s8 + $0x90] sm:$0xff]
        %v689 = vld [vmem:[%s8 + $0x98] sm:$0xff]
        %v690 = vld [vmem:[%s8 + $0xa0] sm:$0xff]
        %v691 = vld [vmem:[%s8 + $0xa8] sm:$0xff]
        %v692 = vld [vmem:[%s8 + $0xb0] sm:$0xff]
        %v693 = vld [vmem:[%s8 + $0xb8] sm:$0xff]
        %v694 = vld [vmem:[%s8 + $0xc0] sm:$0xff]
        %v695 = vld [vmem:[%s8 + $0xc8] sm:$0xff]
        %v696 = vld [vmem:[%s8 + $0xd0] sm:$0xff]
        %v697 = vld [vmem:[%s8 + $0xd8] sm:$0xff]
        %v698 = vld [vmem:[%s8 + $0xe0] sm:$0xff]
        %v699 = vld [vmem:[%s8 + $0xe8] sm:$0xff]
        %v700 = vld [vmem:[%s8 + $0xf0] sm:$0xff]
        %v701 = vld [vmem:[%s8 + $0xf8] sm:$0xff]
        %v702 = vld [vmem:[%s9] sm:$0x3]
        %v704 = vperm.slane %v702, 0
        %v705 = vperm.slane %v702, 1
        %708 = vmatpush.msra.mxu0 %v700
        %709 = vmatpush.msra.mxu0 %v698
        %710 = vmatpush.msra.mxu0 %v696
        %711 = vmatpush.msra.mxu0 %v694
        %712 = vmatpush.msra.mxu0 %v692
        %713 = vmatpush.msra.mxu0 %v690
        %714 = vmatpush.msra.mxu0 %v688
        %715 = vmatpush.msra.mxu0 %v686
        %716 = vmatpush.msra.mxu0 %v684
        %717 = vmatpush.msra.mxu0 %v682
        %718 = vmatpush.msra.mxu0 %v680
        %719 = vmatpush.msra.mxu0 %v678
        %720 = vmatpush.msra.mxu0 %v676
        %721 = vmatpush.msra.mxu0 %v674
        %722 = vmatpush.msra.mxu0 %v672
        %723 = vmatpush.msra.mxu0 %v670
        %724 = vmatmul.f32.gmra.mxu0 %v669
        %v725 = vpop.f32.mrf.mxu0
        %v726 = vadd.f32 %v704, %v725
        %727 = vdwg.mxu0
        %728 = vmatpush.msra.mxu0 %v701
        %729 = vmatpush.msra.mxu0 %v699
        %730 = vmatpush.msra.mxu0 %v697
        %731 = vmatpush.msra.mxu0 %v695
        %732 = vmatpush.msra.mxu0 %v693
        %733 = vmatpush.msra.mxu0 %v691
        %734 = vmatpush.msra.mxu0 %v689
        %735 = vmatpush.msra.mxu0 %v687
        %736 = vmatpush.msra.mxu0 %v685
        %737 = vmatpush.msra.mxu0 %v683
        %738 = vmatpush.msra.mxu0 %v681
        %739 = vmatpush.msra.mxu0 %v679
        %740 = vmatpush.msra.mxu0 %v677
        %741 = vmatpush.msra.mxu0 %v675
        %742 = vmatpush.msra.mxu0 %v673
        %743 = vmatpush.msra.mxu0 %v671
        %744 = vmatmul.f32.gmra.mxu0 %v669
        %v745 = vpop.f32.mrf.mxu0
        %v746 = vadd.f32 %v705, %v745
        %747 = vdwg.mxu0
        %v748 = vxor.u32 %v726, 2147483648
        %v749 = vxor.u32 %v746, 2147483648
        %v750 = vmul.f32 %v748, 1.442695
        %v751 = vpow.pop %v750
        %v752 = vmul.f32 %v749, 1.442695
        %v753 = vpow.pop %v752
        %v754 = vadd.f32 %v751, 1.0
        %v755 = vadd.f32 %v753, 1.0
        %v756 = vrcp.pop %v754
        %v757 = vmul.f32 %v754, %v756
        %v758 = vsub.f32 1.0, %v757
        %v759 = vmul.f32 %v756, %v758
        %v760 = vadd.f32 %v756, %v759
        %vm761 = vweird.f32 %v754
        %vm762 = vweird.f32 %v756
        %vm763 = vmor %vm761, %vm762
        %v764 = vsel %vm763, %v756, %v760
        %v765 = vand.u32 2147483647, %v754
        %vm766 = vcmp.eq.f32.partialorder %v765, 8.507059e+37
        %v767 = vand.u32 %v754, 2147483648
        %v768 = vor.u32 1.1754944e-38, %v767
        %v769 = vsel %vm766, %v768, %v764
        %v770 = vmul.f32 1.0, %v769
        %v771 = vrcp.pop %v755
        %v772 = vmul.f32 %v755, %v771
        %v773 = vsub.f32 1.0, %v772
        %v774 = vmul.f32 %v771, %v773
        %v775 = vadd.f32 %v771, %v774
        %vm776 = vweird.f32 %v755
        %vm777 = vweird.f32 %v771
        %vm778 = vmor %vm776, %vm777
        %v779 = vsel %vm778, %v771, %v775
        %v780 = vand.u32 2147483647, %v755
        %vm781 = vcmp.eq.f32.partialorder %v780, 8.507059e+37
        %v782 = vand.u32 %v755, 2147483648
        %v783 = vor.u32 1.1754944e-38, %v782
        %v784 = vsel %vm781, %v783, %v779
        %v785 = vmul.f32 1.0, %v784
        %v786 = vld [vmem:[%s386] sm:$0xff]
        %v787 = vld [vmem:[%s386 + $0x8] sm:$0xff]
        %v788 = vld [vmem:[%s386 + $0x10] sm:$0xff]
        %v789 = vld [vmem:[%s386 + $0x18] sm:$0xff]
        %v790 = vld [vmem:[%s386 + $0x20] sm:$0xff]
        %v791 = vld [vmem:[%s386 + $0x28] sm:$0xff]
        %v792 = vld [vmem:[%s386 + $0x30] sm:$0xff]
        %v793 = vld [vmem:[%s386 + $0x38] sm:$0xff]
        %v794 = vld [vmem:[%s386 + $0x40] sm:$0xff]
        %v795 = vld [vmem:[%s386 + $0x48] sm:$0xff]
        %v796 = vld [vmem:[%s386 + $0x50] sm:$0xff]
        %v797 = vld [vmem:[%s386 + $0x58] sm:$0xff]
        %v798 = vld [vmem:[%s386 + $0x60] sm:$0xff]
        %v799 = vld [vmem:[%s386 + $0x68] sm:$0xff]
        %v800 = vld [vmem:[%s386 + $0x70] sm:$0xff]
        %v801 = vld [vmem:[%s386 + $0x78] sm:$0xff]
        %v802 = vunpack.c.l.bf16 %v786
        %v803 = vunpack.c.h.bf16 %v786
        %v804 = vunpack.c.l.bf16 %v787
        %v805 = vunpack.c.h.bf16 %v787
        %v806 = vunpack.c.l.bf16 %v788
        %v807 = vunpack.c.h.bf16 %v788
        %v808 = vunpack.c.l.bf16 %v789
        %v809 = vunpack.c.h.bf16 %v789
        %v810 = vunpack.c.l.bf16 %v790
        %v811 = vunpack.c.h.bf16 %v790
        %v812 = vunpack.c.l.bf16 %v791
        %v813 = vunpack.c.h.bf16 %v791
        %v814 = vunpack.c.l.bf16 %v792
        %v815 = vunpack.c.h.bf16 %v792
        %v816 = vunpack.c.l.bf16 %v793
        %v817 = vunpack.c.h.bf16 %v793
        %v818 = vunpack.c.l.bf16 %v794
        %v819 = vunpack.c.h.bf16 %v794
        %v820 = vunpack.c.l.bf16 %v795
        %v821 = vunpack.c.h.bf16 %v795
        %v822 = vunpack.c.l.bf16 %v796
        %v823 = vunpack.c.h.bf16 %v796
        %v824 = vunpack.c.l.bf16 %v797
        %v825 = vunpack.c.h.bf16 %v797
        %v826 = vunpack.c.l.bf16 %v798
        %v827 = vunpack.c.h.bf16 %v798
        %v828 = vunpack.c.l.bf16 %v799
        %v829 = vunpack.c.h.bf16 %v799
        %v830 = vunpack.c.l.bf16 %v800
        %v831 = vunpack.c.h.bf16 %v800
        %v832 = vunpack.c.l.bf16 %v801
        %v833 = vunpack.c.h.bf16 %v801
        %v834 = vld [vmem:[%s4] sm:$0x3]
        %v836 = vperm.slane %v834, 0
        %v837 = vperm.slane %v834, 1
        %v840 = vmul.f32 %v802, %v836
        %v841 = vmul.f32 %v803, %v837
        %v842 = vmul.f32 %v804, %v836
        %v843 = vmul.f32 %v805, %v837
        %v844 = vmul.f32 %v806, %v836
        %v845 = vmul.f32 %v807, %v837
        %v846 = vmul.f32 %v808, %v836
        %v847 = vmul.f32 %v809, %v837
        %v848 = vmul.f32 %v810, %v836
        %v849 = vmul.f32 %v811, %v837
        %v850 = vmul.f32 %v812, %v836
        %v851 = vmul.f32 %v813, %v837
        %v852 = vmul.f32 %v814, %v836
        %v853 = vmul.f32 %v815, %v837
        %v854 = vmul.f32 %v816, %v836
        %v855 = vmul.f32 %v817, %v837
        %v856 = vmul.f32 %v818, %v836
        %v857 = vmul.f32 %v819, %v837
        %v858 = vmul.f32 %v820, %v836
        %v859 = vmul.f32 %v821, %v837
        %v860 = vmul.f32 %v822, %v836
        %v861 = vmul.f32 %v823, %v837
        %v862 = vmul.f32 %v824, %v836
        %v863 = vmul.f32 %v825, %v837
        %v864 = vmul.f32 %v826, %v836
        %v865 = vmul.f32 %v827, %v837
        %v866 = vmul.f32 %v828, %v836
        %v867 = vmul.f32 %v829, %v837
        %v868 = vmul.f32 %v830, %v836
        %v869 = vmul.f32 %v831, %v837
        %v870 = vmul.f32 %v832, %v836
        %v871 = vmul.f32 %v833, %v837
        %v872 = vld [vmem:[%s5] sm:$0x3]
        %v874 = vperm.slane %v872, 0
        %v875 = vperm.slane %v872, 1
        %v878 = vadd.f32 %v840, %v874
        %v879 = vadd.f32 %v841, %v875
        %v880 = vadd.f32 %v842, %v874
        %v881 = vadd.f32 %v843, %v875
        %v882 = vadd.f32 %v844, %v874
        %v883 = vadd.f32 %v845, %v875
        %v884 = vadd.f32 %v846, %v874
        %v885 = vadd.f32 %v847, %v875
        %v886 = vadd.f32 %v848, %v874
        %v887 = vadd.f32 %v849, %v875
        %v888 = vadd.f32 %v850, %v874
        %v889 = vadd.f32 %v851, %v875
        %v890 = vadd.f32 %v852, %v874
        %v891 = vadd.f32 %v853, %v875
        %v892 = vadd.f32 %v854, %v874
        %v893 = vadd.f32 %v855, %v875
        %v894 = vadd.f32 %v856, %v874
        %v895 = vadd.f32 %v857, %v875
        %v896 = vadd.f32 %v858, %v874
        %v897 = vadd.f32 %v859, %v875
        %v898 = vadd.f32 %v860, %v874
        %v899 = vadd.f32 %v861, %v875
        %v900 = vadd.f32 %v862, %v874
        %v901 = vadd.f32 %v863, %v875
        %v902 = vadd.f32 %v864, %v874
        %v903 = vadd.f32 %v865, %v875
        %v904 = vadd.f32 %v866, %v874
        %v905 = vadd.f32 %v867, %v875
        %v906 = vadd.f32 %v868, %v874
        %v907 = vadd.f32 %v869, %v875
        %v908 = vadd.f32 %v870, %v874
        %v909 = vadd.f32 %v871, %v875
        %v912 = vrot.slane %v785, 7
        %vm913 = vcmask 1040384
        %v914 = vsel %vm913, %v770, %v912
        %v915 = vsel %vm616, %v770, %v912
        %v916 = vrot.slane %v915, 1
        %v919 = vadd.f32 %v914, 1.0
        %v920 = vadd.f32 %v916, 1.0
        %v923 = vperm.slane %v919, 0
        %v924 = vperm.slane %v919, 1
        %v925 = vperm.slane %v920, 0
        %v926 = vperm.slane %v920, 1
        %v931 = vmul.f32 %v481, %v923
        %v932 = vmul.f32 %v482, %v924
        %v933 = vmul.f32 %v483, %v923
        %v934 = vmul.f32 %v484, %v924
        %v935 = vmul.f32 %v485, %v923
        %v936 = vmul.f32 %v486, %v924
        %v937 = vmul.f32 %v487, %v923
        %v938 = vmul.f32 %v488, %v924
        %v939 = vmul.f32 %v489, %v923
        %v940 = vmul.f32 %v490, %v924
        %v941 = vmul.f32 %v491, %v923
        %v942 = vmul.f32 %v492, %v924
        %v943 = vmul.f32 %v493, %v923
        %v944 = vmul.f32 %v494, %v924
        %v945 = vmul.f32 %v495, %v923
        %v946 = vmul.f32 %v496, %v924
        %v947 = vmul.f32 %v497, %v925
        %v948 = vmul.f32 %v498, %v926
        %v949 = vmul.f32 %v499, %v925
        %v950 = vmul.f32 %v500, %v926
        %v951 = vmul.f32 %v501, %v925
        %v952 = vmul.f32 %v502, %v926
        %v953 = vmul.f32 %v503, %v925
        %v954 = vmul.f32 %v504, %v926
        %v955 = vmul.f32 %v505, %v925
        %v956 = vmul.f32 %v506, %v926
        %v957 = vmul.f32 %v507, %v925
        %v958 = vmul.f32 %v508, %v926
        %v959 = vmul.f32 %v509, %v925
        %v960 = vmul.f32 %v510, %v926
        %v961 = vmul.f32 %v511, %v925
        %v962 = vmul.f32 %v512, %v926
        %v963 = vadd.f32 %v931, %v878
        %v964 = vadd.f32 %v932, %v879
        %v965 = vadd.f32 %v933, %v880
        %v966 = vadd.f32 %v934, %v881
        %v967 = vadd.f32 %v935, %v882
        %v968 = vadd.f32 %v936, %v883
        %v969 = vadd.f32 %v937, %v884
        %v970 = vadd.f32 %v938, %v885
        %v971 = vadd.f32 %v939, %v886
        %v972 = vadd.f32 %v940, %v887
        %v973 = vadd.f32 %v941, %v888
        %v974 = vadd.f32 %v942, %v889
        %v975 = vadd.f32 %v943, %v890
        %v976 = vadd.f32 %v944, %v891
        %v977 = vadd.f32 %v945, %v892
        %v978 = vadd.f32 %v946, %v893
        %v979 = vadd.f32 %v947, %v894
        %v980 = vadd.f32 %v948, %v895
        %v981 = vadd.f32 %v949, %v896
        %v982 = vadd.f32 %v950, %v897
        %v983 = vadd.f32 %v951, %v898
        %v984 = vadd.f32 %v952, %v899
        %v985 = vadd.f32 %v953, %v900
        %v986 = vadd.f32 %v954, %v901
        %v987 = vadd.f32 %v955, %v902
        %v988 = vadd.f32 %v956, %v903
        %v989 = vadd.f32 %v957, %v904
        %v990 = vadd.f32 %v958, %v905
        %v991 = vadd.f32 %v959, %v906
        %v992 = vadd.f32 %v960, %v907
        %v993 = vadd.f32 %v961, %v908
        %v994 = vadd.f32 %v962, %v909
        %v995 = vmax.f32 %v963, 0.0
        %v996 = vmax.f32 %v964, 0.0
        %v997 = vmax.f32 %v965, 0.0
        %v998 = vmax.f32 %v966, 0.0
        %v999 = vmax.f32 %v967, 0.0
        %v1000 = vmax.f32 %v968, 0.0
        %v1001 = vmax.f32 %v969, 0.0
        %v1002 = vmax.f32 %v970, 0.0
        %v1003 = vmax.f32 %v971, 0.0
        %v1004 = vmax.f32 %v972, 0.0
        %v1005 = vmax.f32 %v973, 0.0
        %v1006 = vmax.f32 %v974, 0.0
        %v1007 = vmax.f32 %v975, 0.0
        %v1008 = vmax.f32 %v976, 0.0
        %v1009 = vmax.f32 %v977, 0.0
        %v1010 = vmax.f32 %v978, 0.0
        %v1011 = vmax.f32 %v979, 0.0
        %v1012 = vmax.f32 %v980, 0.0
        %v1013 = vmax.f32 %v981, 0.0
        %v1014 = vmax.f32 %v982, 0.0
        %v1015 = vmax.f32 %v983, 0.0
        %v1016 = vmax.f32 %v984, 0.0
        %v1017 = vmax.f32 %v985, 0.0
        %v1018 = vmax.f32 %v986, 0.0
        %v1019 = vmax.f32 %v987, 0.0
        %v1020 = vmax.f32 %v988, 0.0
        %v1021 = vmax.f32 %v989, 0.0
        %v1022 = vmax.f32 %v990, 0.0
        %v1023 = vmax.f32 %v991, 0.0
        %v1024 = vmax.f32 %v992, 0.0
        %v1025 = vmax.f32 %v993, 0.0
        %v1026 = vmax.f32 %v994, 0.0
        %1027 = vst [vmem:[%s373] sm:$0xff] %v995
        %1028 = vst [vmem:[%s373 + $0x8] sm:$0xff] %v996
        %1029 = vst [vmem:[%s373 + $0x10] sm:$0xff] %v997
        %1030 = vst [vmem:[%s373 + $0x18] sm:$0xff] %v998
        %1031 = vst [vmem:[%s373 + $0x20] sm:$0xff] %v999
        %1032 = vst [vmem:[%s373 + $0x28] sm:$0xff] %v1000
        %1033 = vst [vmem:[%s373 + $0x30] sm:$0xff] %v1001
        %1034 = vst [vmem:[%s373 + $0x38] sm:$0xff] %v1002
        %1035 = vst [vmem:[%s373 + $0x40] sm:$0xff] %v1003
        %1036 = vst [vmem:[%s373 + $0x48] sm:$0xff] %v1004
        %1037 = vst [vmem:[%s373 + $0x50] sm:$0xff] %v1005
        %1038 = vst [vmem:[%s373 + $0x58] sm:$0xff] %v1006
        %1039 = vst [vmem:[%s373 + $0x60] sm:$0xff] %v1007
        %1040 = vst [vmem:[%s373 + $0x68] sm:$0xff] %v1008
        %1041 = vst [vmem:[%s373 + $0x70] sm:$0xff] %v1009
        %1042 = vst [vmem:[%s373 + $0x78] sm:$0xff] %v1010
        %1043 = vst [vmem:[%s373 + $0x80] sm:$0xff] %v1011
        %1044 = vst [vmem:[%s373 + $0x88] sm:$0xff] %v1012
        %1045 = vst [vmem:[%s373 + $0x90] sm:$0xff] %v1013
        %1046 = vst [vmem:[%s373 + $0x98] sm:$0xff] %v1014
        %1047 = vst [vmem:[%s373 + $0xa0] sm:$0xff] %v1015
        %1048 = vst [vmem:[%s373 + $0xa8] sm:$0xff] %v1016
        %1049 = vst [vmem:[%s373 + $0xb0] sm:$0xff] %v1017
        %1050 = vst [vmem:[%s373 + $0xb8] sm:$0xff] %v1018
        %1051 = vst [vmem:[%s373 + $0xc0] sm:$0xff] %v1019
        %1052 = vst [vmem:[%s373 + $0xc8] sm:$0xff] %v1020
        %1053 = vst [vmem:[%s373 + $0xd0] sm:$0xff] %v1021
        %1054 = vst [vmem:[%s373 + $0xd8] sm:$0xff] %v1022
        %1055 = vst [vmem:[%s373 + $0xe0] sm:$0xff] %v1023
        %1056 = vst [vmem:[%s373 + $0xe8] sm:$0xff] %v1024
        %1057 = vst [vmem:[%s373 + $0xf0] sm:$0xff] %v1025
        %1058 = vst [vmem:[%s373 + $0xf8] sm:$0xff] %v1026
        %s1059 = sand.u32 %s252, 1
        %s1060 = scalar_lea.sflag [#allocation3], %s1059
        %s1061 = sand.u32 %s252, 1
        %s1062 = smul.addr %s1061, 256
        %s1063 = scalar_lea.vmem [#allocation2], %s1062
        // Predicated region
        $region61: #{_lambda_.5} parent=59 // pred_check
          %p1064 = pneg %p262
        $region62: #{_lambda_.5} parent=59 // pred_check_branch
          %1066 = sbr.rel (%p1064) target = $region64
        $region63: #{_lambda_.5} parent=59 // pred_region
          %s1067 = smul.u32 2, %s24
          %1069 = vsyncadd %s1060, 0
          %s1070 = smul.addr %s1067, 16
          %s1071 = smul.addr %s1070, 8
          %s1072 = scalar_lea.hbm %s10, %s1071
          %s1073 = sshll.u32 %s1063, 4
          %s1074 = int_to_ptr.vmem [resolvable:$true] %s1073
          %s1075 = sshll.u32 %s1072, 4
          %s1076 = int_to_ptr.hbm [resolvable:$true] %s1075
          %1081 = dma.vmem_to_hbm [thread:$0]  %s1074, 4096, %s1076, %s1060, 256, 256, 16
        $region64: #{_lambda_.5} parent=59 // pred_fallthru
          _
      $region60: #{_lambda_.5} parent=5 // pred_fallthru
        _
      %p1082 = scmp.le.s32.totalorder 2, %s19
      // Predicated region
      $region65: #{_lambda_.5} parent=5 // pred_check
        %p1083 = pneg %p1082
      $region66: #{_lambda_.5} parent=5 // pred_check_branch
        %1085 = sbr.rel (%p1083) target = $region68
      $region67: #{_lambda_.5} parent=5 // pred_region
        %s1086 = ssub.s32 %s19, 2
        // Predicated region
        $region69: #{_lambda_.5} parent=67 // pred_check
          %p1087 = pneg %p268
        $region70: #{_lambda_.5} parent=67 // pred_check_branch
          %1089 = sbr.rel (%p1087) target = $region72
        $region71: #{_lambda_.5} parent=67 // pred_region
          %s1090 = sand.u32 %s253, 1
          %s1091 = scalar_lea.sflag [#allocation3], %s1090
          %s1092 = sand.u32 %s253, 1
          %s1093 = smul.addr %s1092, 256
          %s1094 = scalar_lea.vmem [#allocation2], %s1093
          %1096 = dma.done %s1091, 4096
        $region72: #{_lambda_.5} parent=67 // pred_fallthru
          _
      $region68: #{_lambda_.5} parent=5 // pred_fallthru
        _
    $region6: #{_lambda_.5} parent=1 // loop_footer
      %s23 = sadd.s32 1, %s19
    $region7: #{_lambda_.5} parent=1 // loop_footer_branch
      %18 = sbr.rel target = $region3
    $region8: #{_lambda_.5} parent=1 // loop_exit
      _
    %1097 = vsyncpa [#allocation3], 1
    %s1098 = scalar_lea.sflag [#allocation3], 1
    %1099 = vsyncpa %s1098, 1

// kernel: _lambda_.3
$region0: #{_lambda_.3}
  #allocation0 [shape = 'u32[]', space=smem, size = 0x4, offset = 0x4, fixed_abs, tag = 'smem constant byte address 0x4 - core index']
  #allocation1 [shape = 'u32[72,128]{1,0:T(1,128)}', space=vmem, size = 0x9000, scoped, tag = 'internal scratch']
  #allocation2 [shape = 'bf16[128,1152]{1,0:T(8,128)(2,1)}', space=vmem, size = 0x48000, scoped, tag = 'scratch operand']
  %s0 = inlined_call_operand.vmem [shape: bf16[4,8,8,128], index: 0, kind: input, shape index: {}]
  %s1 = inlined_call_operand.vmem [shape: bf16[1152,256], index: 1, kind: input, shape index: {}]
  %s2 = inlined_call_operand.vmem [shape: bf16[128,256], index: 2, kind: input, shape index: {}]
  %s3 = inlined_call_operand.vmem [shape: bf16[4,8,8,256], index: 3, kind: output, shape index: {0}]
  %s4 = inlined_call_operand.vmem [shape: bf16[4,8,8,256], index: 4, kind: output, shape index: {1}]
  %s5 = inlined_call_operand.vmem [shape: f32[8,256], index: 5, kind: output, shape index: {2}]
  %6 = xla_tuple %s3, %s4, %s5
  %s7 = sld [smem:[#allocation0]]
  $region65: #{_lambda_.3} parent=0
    _
  %s9 = ssub.s32 1, %s7
  %s10 = scalar_select 0, %s9, %s7
  loop: start=0, step=1, limit=4
  $region2: #{_lambda_.3} parent=0 // loop_pre_header
    _
  $region3: #{_lambda_.3} parent=0 // loop_header
    %s12 = sphi 0, %s16
    %p13 = scmp.ge.s32.totalorder %s12, 4
    %s22 = sphi 0, %s24
    %s25 = sphi 0, %s22
    %s26 = sphi 0, %s25
    %s42 = sphi 0, %s26
    %s46 = sphi 0, %s46
    %s48 = sphi 0, %s46
    %s49 = sphi 0, %s48
    %s63 = sphi 0, %s49
    %s67 = sphi 0, %s67
    %s69 = sphi 0, %s67
    %s70 = sphi 0, %s69
    %s84 = sphi 0, %s70
    %s90 = sphi 0, %s92
    %s93 = sphi 0, %s90
    %s94 = sphi 0, %s93
    %s110 = sphi 0, %s94
    %s116 = sphi 0, %s118
    %s119 = sphi 0, %s116
    %s120 = sphi 0, %s119
    %s136 = sphi 0, %s120
    %s140 = sphi 0, %s140
    %s142 = sphi 0, %s140
    %s143 = sphi 0, %s142
    %s157 = sphi 0, %s143
  $region4: #{_lambda_.3} parent=0 // loop_header_branch
    %15 = sbr.rel (%p13) target = $region8
  $region5: #{_lambda_.3} parent=0 // loop_body
    %s17 = ssub.s32 %s12, 1
    %s18 = ssub.s32 %s12, 2
    %s19 = sadd.s32 %s12, 1
    %s20 = ssub.s32 %s12, %s19
    %p21 = scmp.eq.s32.totalorder %s20, 0
    %s23 = sadd.s32 %s22, 1
    %s24 = scalar_select %p21, %s22, %s23
    %p27 = pneg %p21
    %p28 = scmp.eq.s32.totalorder %s12, 1
    %p29 = por %p27, %p28
    %p30 = scmp.ne.s32.totalorder %s22, %s25
    %p31 = scmp.eq.s32.totalorder %s12, 0
    %p32 = por %p30, %p31
    %p33 = scmp.ne.s32.totalorder %s22, %s25
    %p34 = scmp.eq.s32.totalorder %s17, 1
    %p35 = por %p33, %p34
    %p36 = scmp.ne.s32.totalorder %s25, %s26
    %p37 = scmp.eq.s32.totalorder %s17, 0
    %p38 = por %p36, %p37
    %p39 = scmp.ne.s32.totalorder %s25, %s26
    %p40 = scmp.eq.s32.totalorder %s18, 1
    %p41 = por %p39, %p40
    %p43 = scmp.ne.s32.totalorder %s26, %s42
    %p44 = scmp.eq.s32.totalorder %s18, 0
    %p45 = por %p43, %p44
    %s47 = sadd.s32 %s46, 1
    %p50 = scmp.eq.s32.totalorder %s12, 1
    %p51 = scmp.ne.s32.totalorder %s46, %s48
    %p52 = scmp.eq.s32.totalorder %s12, 0
    %p53 = por %p51, %p52
    %p54 = scmp.ne.s32.totalorder %s46, %s48
    %p55 = scmp.eq.s32.totalorder %s17, 1
    %p56 = por %p54, %p55
    %p57 = scmp.ne.s32.totalorder %s48, %s49
    %p58 = scmp.eq.s32.totalorder %s17, 0
    %p59 = por %p57, %p58
    %p60 = scmp.ne.s32.totalorder %s48, %s49
    %p61 = scmp.eq.s32.totalorder %s18, 1
    %p62 = por %p60, %p61
    %p64 = scmp.ne.s32.totalorder %s49, %s63
    %p65 = scmp.eq.s32.totalorder %s18, 0
    %p66 = por %p64, %p65
    %s68 = sadd.s32 %s67, 1
    %p71 = scmp.eq.s32.totalorder %s12, 1
    %p72 = scmp.ne.s32.totalorder %s67, %s69
    %p73 = scmp.eq.s32.totalorder %s12, 0
    %p74 = por %p72, %p73
    %p75 = scmp.ne.s32.totalorder %s67, %s69
    %p76 = scmp.eq.s32.totalorder %s17, 1
    %p77 = por %p75, %p76
    %p78 = scmp.ne.s32.totalorder %s69, %s70
    %p79 = scmp.eq.s32.totalorder %s17, 0
    %p80 = por %p78, %p79
    %p81 = scmp.ne.s32.totalorder %s69, %s70
    %p82 = scmp.eq.s32.totalorder %s18, 1
    %p83 = por %p81, %p82
    %p85 = scmp.ne.s32.totalorder %s70, %s84
    %p86 = scmp.eq.s32.totalorder %s18, 0
    %p87 = por %p85, %p86
    %s88 = ssub.s32 %s12, %s19
    %p89 = scmp.eq.s32.totalorder %s88, 0
    %s91 = sadd.s32 %s90, 1
    %s92 = scalar_select %p89, %s90, %s91
    %p95 = pneg %p89
    %p96 = scmp.eq.s32.totalorder %s12, 1
    %p97 = por %p95, %p96
    %p98 = scmp.ne.s32.totalorder %s90, %s93
    %p99 = scmp.eq.s32.totalorder %s12, 0
    %p100 = por %p98, %p99
    %p101 = scmp.ne.s32.totalorder %s90, %s93
    %p102 = scmp.eq.s32.totalorder %s17, 1
    %p103 = por %p101, %p102
    %p104 = scmp.ne.s32.totalorder %s93, %s94
    %p105 = scmp.eq.s32.totalorder %s17, 0
    %p106 = por %p104, %p105
    %p107 = scmp.ne.s32.totalorder %s93, %s94
    %p108 = scmp.eq.s32.totalorder %s18, 1
    %p109 = por %p107, %p108
    %p111 = scmp.ne.s32.totalorder %s94, %s110
    %p112 = scmp.eq.s32.totalorder %s18, 0
    %p113 = por %p111, %p112
    %s114 = ssub.s32 %s12, %s19
    %p115 = scmp.eq.s32.totalorder %s114, 0
    %s117 = sadd.s32 %s116, 1
    %s118 = scalar_select %p115, %s116, %s117
    %p121 = pneg %p115
    %p122 = scmp.eq.s32.totalorder %s12, 1
    %p123 = por %p121, %p122
    %p124 = scmp.ne.s32.totalorder %s116, %s119
    %p125 = scmp.eq.s32.totalorder %s12, 0
    %p126 = por %p124, %p125
    %p127 = scmp.ne.s32.totalorder %s116, %s119
    %p128 = scmp.eq.s32.totalorder %s17, 1
    %p129 = por %p127, %p128
    %p130 = scmp.ne.s32.totalorder %s119, %s120
    %p131 = scmp.eq.s32.totalorder %s17, 0
    %p132 = por %p130, %p131
    %p133 = scmp.ne.s32.totalorder %s119, %s120
    %p134 = scmp.eq.s32.totalorder %s18, 1
    %p135 = por %p133, %p134
    %p137 = scmp.ne.s32.totalorder %s120, %s136
    %p138 = scmp.eq.s32.totalorder %s18, 0
    %p139 = por %p137, %p138
    %s141 = sadd.s32 %s140, 1
    %p144 = scmp.eq.s32.totalorder %s12, 1
    %p145 = scmp.ne.s32.totalorder %s140, %s142
    %p146 = scmp.eq.s32.totalorder %s12, 0
    %p147 = por %p145, %p146
    %p148 = scmp.ne.s32.totalorder %s140, %s142
    %p149 = scmp.eq.s32.totalorder %s17, 1
    %p150 = por %p148, %p149
    %p151 = scmp.ne.s32.totalorder %s142, %s143
    %p152 = scmp.eq.s32.totalorder %s17, 0
    %p153 = por %p151, %p152
    %p154 = scmp.ne.s32.totalorder %s142, %s143
    %p155 = scmp.eq.s32.totalorder %s18, 1
    %p156 = por %p154, %p155
    %p158 = scmp.ne.s32.totalorder %s143, %s157
    %p159 = scmp.eq.s32.totalorder %s18, 0
    %p160 = por %p158, %p159
    %p161 = scmp.le.s32.totalorder 1, %s12
    %p162 = scmp.lt.s32.totalorder %s12, 3
    %p163 = pnand %p161, %p162
    %p164 = pneg %p163
    // Predicated region
    $region9: #{_lambda_.3} parent=5 // pred_check
      _
    $region10: #{_lambda_.3} parent=5 // pred_check_branch
      %166 = sbr.rel (%p163) target = $region12
    $region11: #{_lambda_.3} parent=5 // pred_region
      %s167 = ssub.s32 %s12, 1
      // Predicated region
      $region13: #{_lambda_.3} parent=11 // pred_check
        %p168 = pneg %p59
      $region14: #{_lambda_.3} parent=11 // pred_check_branch
        %170 = sbr.rel (%p168) target = $region16
      $region15: #{_lambda_.3} parent=11 // pred_region
        _
      $region16: #{_lambda_.3} parent=11 // pred_fallthru
        _
      // Predicated region
      $region17: #{_lambda_.3} parent=11 // pred_check
        %p171 = pneg %p80
      $region18: #{_lambda_.3} parent=11 // pred_check_branch
        %173 = sbr.rel (%p171) target = $region20
      $region19: #{_lambda_.3} parent=11 // pred_region
        _
      $region20: #{_lambda_.3} parent=11 // pred_fallthru
        _
    $region12: #{_lambda_.3} parent=5 // pred_fallthru
      _
    %p174 = scmp.lt.s32.totalorder %s12, 2
    // Predicated region
    $region21: #{_lambda_.3} parent=5 // pred_check
      %p175 = pneg %p174
    $region22: #{_lambda_.3} parent=5 // pred_check_branch
      %177 = sbr.rel (%p175) target = $region24
    $region23: #{_lambda_.3} parent=5 // pred_region
      // Predicated region
      $region25: #{_lambda_.3} parent=23 // pred_check
        %p178 = pneg %p32
      $region26: #{_lambda_.3} parent=23 // pred_check_branch
        %180 = sbr.rel (%p178) target = $region28
      $region27: #{_lambda_.3} parent=23 // pred_region
        %s181 = smul.u32 2, %s12
        %p182 = scmp.lt.s32.totalorder %s181, 3
        %s183 = scalar_select %p182, %s181, 3
        %s184 = smul.addr %s183, 8
        %s185 = smul.addr %s184, 4
        %s186 = scalar_lea.vmem %s0, %s185
        %s187 = smul.u32 2, %s12
      $region28: #{_lambda_.3} parent=23 // pred_fallthru
        _
    $region24: #{_lambda_.3} parent=5 // pred_fallthru
      _
    %p188 = scmp.le.s32.totalorder 1, %s12
    %p189 = scmp.lt.s32.totalorder %s12, 3
    %p190 = pnand %p188, %p189
    %p191 = pneg %p190
    // Predicated region
    $region29: #{_lambda_.3} parent=5 // pred_check
      _
    $region30: #{_lambda_.3} parent=5 // pred_check_branch
      %193 = sbr.rel (%p190) target = $region32
    $region31: #{_lambda_.3} parent=5 // pred_region
      %s194 = ssub.s32 %s12, 1
      %s195 = smul.u32 2, %s17
      %p196 = scmp.lt.s32.totalorder %s195, 3
      %s197 = scalar_select %p196, %s195, 3
      %s198 = smul.addr %s197, 8
      %s199 = smul.addr %s198, 4
      %s200 = scalar_lea.vmem %s0, %s199
      %p201 = pneg %p38
      %p202 = pneg %p35
      %p203 = pneg %p59
      %p204 = pneg %p56
      %p205 = pneg %p80
      %p206 = pneg %p77
      %p207 = pneg %p106
      %p208 = pneg %p103
      %s209 = smul.u32 2, %s17
      %p210 = scmp.lt.s32.totalorder %s209, 3
      %s211 = scalar_select %p210, %s209, 3
      %s212 = smul.addr %s211, 16
      %s213 = smul.addr %s212, 4
      %s214 = scalar_lea.vmem %s3, %s213
      %p215 = pneg %p132
      %p216 = pneg %p129
      %s217 = smul.u32 2, %s17
      %p218 = scmp.lt.s32.totalorder %s217, 3
      %s219 = scalar_select %p218, %s217, 3
      %s220 = smul.addr %s219, 16
      %s221 = smul.addr %s220, 4
      %s222 = scalar_lea.vmem %s4, %s221
      %p223 = pneg %p153
      %p224 = pneg %p150
      %s225 = smul.u32 2, %s17
      %p226 = scmp.lt.s32.totalorder %s225, 3
      %s227 = scalar_select %p226, %s225, 3
      %s228 = smul.addr %s227, 8
      %s229 = smul.addr %s228, 4
      %s230 = scalar_lea.vmem %s0, %s229
      %s231 = smul.u32 2, %s17
      %s232 = smul.u32 2, %s17
      %p233 = scmp.lt.s32.totalorder %s232, 3
      %s234 = scalar_select %p233, %s232, 3
      %s235 = smul.addr %s234, 16
      %s236 = smul.addr %s235, 4
      %s237 = scalar_lea.vmem %s3, %s236
      %s238 = smul.u32 2, %s17
      %s239 = smul.u32 2, %s17
      %p240 = scmp.lt.s32.totalorder %s239, 3
      %s241 = scalar_select %p240, %s239, 3
      %s242 = smul.addr %s241, 16
      %s243 = smul.addr %s242, 4
      %s244 = scalar_lea.vmem %s4, %s243
      %s245 = smul.u32 2, %s17
      %p249 = scmp.eq.s32.totalorder %s17, 0
      // Predicated region
      $region33: #{_lambda_.3} parent=31 // pred_check
        %p250 = pneg %p249
      $region34: #{_lambda_.3} parent=31 // pred_check_branch
        %252 = sbr.rel (%p250) target = $region36
      $region35: #{_lambda_.3} parent=31 // pred_region
        %253 = vst [vmem:[%s5] sm:$0xff] 0.0
        %254 = vst [vmem:[%s5 + $0x8] sm:$0xff] 0.0
      $region36: #{_lambda_.3} parent=31 // pred_fallthru
        _
      %v255 = vld [vmem:[%s230] sm:$0xf]
      %v256 = vld [vmem:[%s230 + $0x4] sm:$0xf]
      %v257 = vld [vmem:[%s230 + $0x8] sm:$0xf]
      %v258 = vld [vmem:[%s230 + $0xc] sm:$0xf]
      %v259 = vld [vmem:[%s230 + $0x10] sm:$0xf]
      %v260 = vld [vmem:[%s230 + $0x14] sm:$0xf]
      %v261 = vld [vmem:[%s230 + $0x18] sm:$0xf]
      %v262 = vld [vmem:[%s230 + $0x1c] sm:$0xf]
      %v263 = vld [vmem:[%s230 + $0x20] sm:$0xf]
      %v264 = vld [vmem:[%s230 + $0x24] sm:$0xf]
      %v265 = vld [vmem:[%s230 + $0x28] sm:$0xf]
      %v266 = vld [vmem:[%s230 + $0x2c] sm:$0xf]
      %v267 = vld [vmem:[%s230 + $0x30] sm:$0xf]
      %v268 = vld [vmem:[%s230 + $0x34] sm:$0xf]
      %v269 = vld [vmem:[%s230 + $0x38] sm:$0xf]
      %v270 = vld [vmem:[%s230 + $0x3c] sm:$0xf]
      %v271 = vlaneseq
      %v272 = vshrl.u32 %v271, 7
      %v273 = vadd.s32 %v272, 8
      %v274 = vadd.s32 %v272, 16
      %v275 = vadd.s32 %v272, 24
      %v276 = vadd.s32 %v272, 32
      %v277 = vadd.s32 %v272, 40
      %v278 = vadd.s32 %v272, 48
      %v279 = vadd.s32 %v272, 56
      %v280 = vadd.s32 %v272, 64
      %v281 = vadd.s32 %v272, 72
      %v282 = vadd.s32 %v272, 80
      %v283 = vadd.s32 %v272, 88
      %v284 = vadd.s32 %v272, 96
      %v285 = vadd.s32 %v272, 104
      %v286 = vadd.s32 %v272, 112
      %v287 = vadd.s32 %v272, 120
      %v288 = vadd.s32 %v272, 128
      %v289 = vadd.s32 %v272, 136
      %v290 = vadd.s32 %v272, 144
      %v291 = vadd.s32 %v272, 152
      %vm292 = vcmp.lt.s32.totalorder %v272, 0
      %v293 = vsub.s32 0, %v272
      %v294 = vsel %vm292, %v293, %v272
      %v295 = vshrl.u32 %v294, 3
      %v296 = vand.u32 %v294, 7
      %v297 = vsub.s32 0, %v296
      %v298 = vsel %vm292, %v297, %v296
      %vm299 = vcmp.lt.s32.totalorder %v273, 0
      %v300 = vsub.s32 0, %v273
      %v301 = vsel %vm299, %v300, %v273
      %v302 = vshrl.u32 %v301, 3
      %v303 = vand.u32 %v301, 7
      %v304 = vsub.s32 0, %v303
      %v305 = vsel %vm299, %v304, %v303
      %vm306 = vcmp.lt.s32.totalorder %v274, 0
      %v307 = vsub.s32 0, %v274
      %v308 = vsel %vm306, %v307, %v274
      %v309 = vshrl.u32 %v308, 3
      %v310 = vand.u32 %v308, 7
      %v311 = vsub.s32 0, %v310
      %v312 = vsel %vm306, %v311, %v310
      %vm313 = vcmp.lt.s32.totalorder %v275, 0
      %v314 = vsub.s32 0, %v275
      %v315 = vsel %vm313, %v314, %v275
      %v316 = vshrl.u32 %v315, 3
      %v317 = vand.u32 %v315, 7
      %v318 = vsub.s32 0, %v317
      %v319 = vsel %vm313, %v318, %v317
      %vm320 = vcmp.lt.s32.totalorder %v276, 0
      %v321 = vsub.s32 0, %v276
      %v322 = vsel %vm320, %v321, %v276
      %v323 = vshrl.u32 %v322, 3
      %v324 = vand.u32 %v322, 7
      %v325 = vsub.s32 0, %v324
      %v326 = vsel %vm320, %v325, %v324
      %vm327 = vcmp.lt.s32.totalorder %v277, 0
      %v328 = vsub.s32 0, %v277
      %v329 = vsel %vm327, %v328, %v277
      %v330 = vshrl.u32 %v329, 3
      %v331 = vand.u32 %v329, 7
      %v332 = vsub.s32 0, %v331
      %v333 = vsel %vm327, %v332, %v331
      %vm334 = vcmp.lt.s32.totalorder %v278, 0
      %v335 = vsub.s32 0, %v278
      %v336 = vsel %vm334, %v335, %v278
      %v337 = vshrl.u32 %v336, 3
      %v338 = vand.u32 %v336, 7
      %v339 = vsub.s32 0, %v338
      %v340 = vsel %vm334, %v339, %v338
      %vm341 = vcmp.lt.s32.totalorder %v279, 0
      %v342 = vsub.s32 0, %v279
      %v343 = vsel %vm341, %v342, %v279
      %v344 = vshrl.u32 %v343, 3
      %v345 = vand.u32 %v343, 7
      %v346 = vsub.s32 0, %v345
      %v347 = vsel %vm341, %v346, %v345
      %vm348 = vcmp.lt.s32.totalorder %v280, 0
      %v349 = vsub.s32 0, %v280
      %v350 = vsel %vm348, %v349, %v280
      %v351 = vshrl.u32 %v350, 3
      %v352 = vand.u32 %v350, 7
      %v353 = vsub.s32 0, %v352
      %v354 = vsel %vm348, %v353, %v352
      %vm355 = vcmp.lt.s32.totalorder %v281, 0
      %v356 = vsub.s32 0, %v281
      %v357 = vsel %vm355, %v356, %v281
      %v358 = vshrl.u32 %v357, 3
      %v359 = vand.u32 %v357, 7
      %v360 = vsub.s32 0, %v359
      %v361 = vsel %vm355, %v360, %v359
      %vm362 = vcmp.lt.s32.totalorder %v282, 0
      %v363 = vsub.s32 0, %v282
      %v364 = vsel %vm362, %v363, %v282
      %v365 = vshrl.u32 %v364, 3
      %v366 = vand.u32 %v364, 7
      %v367 = vsub.s32 0, %v366
      %v368 = vsel %vm362, %v367, %v366
      %vm369 = vcmp.lt.s32.totalorder %v283, 0
      %v370 = vsub.s32 0, %v283
      %v371 = vsel %vm369, %v370, %v283
      %v372 = vshrl.u32 %v371, 3
      %v373 = vand.u32 %v371, 7
      %v374 = vsub.s32 0, %v373
      %v375 = vsel %vm369, %v374, %v373
      %vm376 = vcmp.lt.s32.totalorder %v284, 0
      %v377 = vsub.s32 0, %v284
      %v378 = vsel %vm376, %v377, %v284
      %v379 = vshrl.u32 %v378, 3
      %v380 = vand.u32 %v378, 7
      %v381 = vsub.s32 0, %v380
      %v382 = vsel %vm376, %v381, %v380
      %vm383 = vcmp.lt.s32.totalorder %v285, 0
      %v384 = vsub.s32 0, %v285
      %v385 = vsel %vm383, %v384, %v285
      %v386 = vshrl.u32 %v385, 3
      %v387 = vand.u32 %v385, 7
      %v388 = vsub.s32 0, %v387
      %v389 = vsel %vm383, %v388, %v387
      %vm390 = vcmp.lt.s32.totalorder %v286, 0
      %v391 = vsub.s32 0, %v286
      %v392 = vsel %vm390, %v391, %v286
      %v393 = vshrl.u32 %v392, 3
      %v394 = vand.u32 %v392, 7
      %v395 = vsub.s32 0, %v394
      %v396 = vsel %vm390, %v395, %v394
      %vm397 = vcmp.lt.s32.totalorder %v287, 0
      %v398 = vsub.s32 0, %v287
      %v399 = vsel %vm397, %v398, %v287
      %v400 = vshrl.u32 %v399, 3
      %v401 = vand.u32 %v399, 7
      %v402 = vsub.s32 0, %v401
      %v403 = vsel %vm397, %v402, %v401
      %vm404 = vcmp.lt.s32.totalorder %v288, 0
      %v405 = vsub.s32 0, %v288
      %v406 = vsel %vm404, %v405, %v288
      %v407 = vshrl.u32 %v406, 3
      %v408 = vand.u32 %v406, 7
      %v409 = vsub.s32 0, %v408
      %v410 = vsel %vm404, %v409, %v408
      %vm411 = vcmp.lt.s32.totalorder %v289, 0
      %v412 = vsub.s32 0, %v289
      %v413 = vsel %vm411, %v412, %v289
      %v414 = vshrl.u32 %v413, 3
      %v415 = vand.u32 %v413, 7
      %v416 = vsub.s32 0, %v415
      %v417 = vsel %vm411, %v416, %v415
      %vm418 = vcmp.lt.s32.totalorder %v290, 0
      %v419 = vsub.s32 0, %v290
      %v420 = vsel %vm418, %v419, %v290
      %v421 = vshrl.u32 %v420, 3
      %v422 = vand.u32 %v420, 7
      %v423 = vsub.s32 0, %v422
      %v424 = vsel %vm418, %v423, %v422
      %vm425 = vcmp.lt.s32.totalorder %v291, 0
      %v426 = vsub.s32 0, %v291
      %v427 = vsel %vm425, %v426, %v291
      %v428 = vshrl.u32 %v427, 3
      %v429 = vand.u32 %v427, 7
      %v430 = vsub.s32 0, %v429
      %v431 = vsel %vm425, %v430, %v429
      %vm432 = vcmp.ne.s32.totalorder %v298, 0
      %vm433 = vcmp.ne.s32.totalorder %v305, 0
      %vm434 = vcmp.ne.s32.totalorder %v312, 0
      %vm435 = vcmp.ne.s32.totalorder %v319, 0
      %vm436 = vcmp.ne.s32.totalorder %v326, 0
      %vm437 = vcmp.ne.s32.totalorder %v333, 0
      %vm438 = vcmp.ne.s32.totalorder %v340, 0
      %vm439 = vcmp.ne.s32.totalorder %v347, 0
      %vm440 = vcmp.ne.s32.totalorder %v354, 0
      %vm441 = vcmp.ne.s32.totalorder %v361, 0
      %vm442 = vcmp.ne.s32.totalorder %v368, 0
      %vm443 = vcmp.ne.s32.totalorder %v375, 0
      %vm444 = vcmp.ne.s32.totalorder %v382, 0
      %vm445 = vcmp.ne.s32.totalorder %v389, 0
      %vm446 = vcmp.ne.s32.totalorder %v396, 0
      %vm447 = vcmp.ne.s32.totalorder %v403, 0
      %vm448 = vcmp.ne.s32.totalorder %v410, 0
      %vm449 = vcmp.ne.s32.totalorder %v417, 0
      %vm450 = vcmp.ne.s32.totalorder %v424, 0
      %vm451 = vcmp.ne.s32.totalorder %v431, 0
      %vm452 = vcmp.lt.s32.totalorder %v298, 0
      %vm453 = vcmp.lt.s32.totalorder %v305, 0
      %vm454 = vcmp.lt.s32.totalorder %v312, 0
      %vm455 = vcmp.lt.s32.totalorder %v319, 0
      %vm456 = vcmp.lt.s32.totalorder %v326, 0
      %vm457 = vcmp.lt.s32.totalorder %v333, 0
      %vm458 = vcmp.lt.s32.totalorder %v340, 0
      %vm459 = vcmp.lt.s32.totalorder %v347, 0
      %vm460 = vcmp.lt.s32.totalorder %v354, 0
      %vm461 = vcmp.lt.s32.totalorder %v361, 0
      %vm462 = vcmp.lt.s32.totalorder %v368, 0
      %vm463 = vcmp.lt.s32.totalorder %v375, 0
      %vm464 = vcmp.lt.s32.totalorder %v382, 0
      %vm465 = vcmp.lt.s32.totalorder %v389, 0
      %vm466 = vcmp.lt.s32.totalorder %v396, 0
      %vm467 = vcmp.lt.s32.totalorder %v403, 0
      %vm468 = vcmp.lt.s32.totalorder %v410, 0
      %vm469 = vcmp.lt.s32.totalorder %v417, 0
      %vm470 = vcmp.lt.s32.totalorder %v424, 0
      %vm471 = vcmp.lt.s32.totalorder %v431, 0
      %vm472 = vmand %vm452, %vm432
      %vm473 = vmand %vm453, %vm433
      %vm474 = vmand %vm454, %vm434
      %vm475 = vmand %vm455, %vm435
      %vm476 = vmand %vm456, %vm436
      %vm477 = vmand %vm457, %vm437
      %vm478 = vmand %vm458, %vm438
      %vm479 = vmand %vm459, %vm439
      %vm480 = vmand %vm460, %vm440
      %vm481 = vmand %vm461, %vm441
      %vm482 = vmand %vm462, %vm442
      %vm483 = vmand %vm463, %vm443
      %vm484 = vmand %vm464, %vm444
      %vm485 = vmand %vm465, %vm445
      %vm486 = vmand %vm466, %vm446
      %vm487 = vmand %vm467, %vm447
      %vm488 = vmand %vm468, %vm448
      %vm489 = vmand %vm469, %vm449
      %vm490 = vmand %vm470, %vm450
      %vm491 = vmand %vm471, %vm451
      %v492 = vadd.s32 %v298, 8
      %v493 = vadd.s32 %v305, 8
      %v494 = vadd.s32 %v312, 8
      %v495 = vadd.s32 %v319, 8
      %v496 = vadd.s32 %v326, 8
      %v497 = vadd.s32 %v333, 8
      %v498 = vadd.s32 %v340, 8
      %v499 = vadd.s32 %v347, 8
      %v500 = vadd.s32 %v354, 8
      %v501 = vadd.s32 %v361, 8
      %v502 = vadd.s32 %v368, 8
      %v503 = vadd.s32 %v375, 8
      %v504 = vadd.s32 %v382, 8
      %v505 = vadd.s32 %v389, 8
      %v506 = vadd.s32 %v396, 8
      %v507 = vadd.s32 %v403, 8
      %v508 = vadd.s32 %v410, 8
      %v509 = vadd.s32 %v417, 8
      %v510 = vadd.s32 %v424, 8
      %v511 = vadd.s32 %v431, 8
      %v512 = vsel %vm472, %v492, %v298
      %v513 = vsel %vm473, %v493, %v305
      %v514 = vsel %vm474, %v494, %v312
      %v515 = vsel %vm475, %v495, %v319
      %v516 = vsel %vm476, %v496, %v326
      %v517 = vsel %vm477, %v497, %v333
      %v518 = vsel %vm478, %v498, %v340
      %v519 = vsel %vm479, %v499, %v347
      %v520 = vsel %vm480, %v500, %v354
      %v521 = vsel %vm481, %v501, %v361
      %v522 = vsel %vm482, %v502, %v368
      %v523 = vsel %vm483, %v503, %v375
      %v524 = vsel %vm484, %v504, %v382
      %v525 = vsel %vm485, %v505, %v389
      %v526 = vsel %vm486, %v506, %v396
      %v527 = vsel %vm487, %v507, %v403
      %v528 = vsel %vm488, %v508, %v410
      %v529 = vsel %vm489, %v509, %v417
      %v530 = vsel %vm490, %v510, %v424
      %v531 = vsel %vm491, %v511, %v431
      %v549 = vunpack.c.l.b16 0
      %v550 = vunpack.c.l.b16 %v255
      %v551 = vunpack.c.l.b16 %v256
      %v552 = vunpack.c.l.b16 %v257
      %v553 = vunpack.c.l.b16 %v258
      %v554 = vunpack.c.l.b16 %v259
      %v555 = vunpack.c.l.b16 %v260
      %v556 = vunpack.c.l.b16 %v261
      %v557 = vunpack.c.l.b16 %v262
      %v558 = vunpack.c.l.b16 %v263
      %v559 = vunpack.c.l.b16 %v264
      %v560 = vunpack.c.l.b16 %v265
      %v561 = vunpack.c.l.b16 %v266
      %v562 = vunpack.c.l.b16 %v267
      %v563 = vunpack.c.l.b16 %v268
      %v564 = vunpack.c.l.b16 %v269
      %v565 = vunpack.c.l.b16 %v270
      %v566 = vpack.c.b16 %v550, %v549
      %v567 = vpack.c.b16 %v552, %v551
      %v568 = vpack.c.b16 %v554, %v553
      %v569 = vpack.c.b16 %v556, %v555
      %v570 = vpack.c.b16 %v549, %v557
      %v571 = vpack.c.b16 %v558, %v549
      %v572 = vpack.c.b16 %v560, %v559
      %v573 = vpack.c.b16 %v562, %v561
      %v574 = vpack.c.b16 %v564, %v563
      %v575 = vpack.c.b16 %v549, %v565
      %vm576 = vsmask.f32 256
      %v578 = vshrl.u32 %v566, 16
      %v580 = vrot.slane %v578, 7
      %v581 = vshll.u32 %v566, 16
      %v583 = vor.u32 %v580, %v581
      %v585 = vshrl.u32 %v567, 16
      %v587 = vrot.slane %v585, 7
      %v588 = vshll.u32 %v567, 16
      %v590 = vor.u32 %v587, %v588
      %v591 = vsel %vm576, %v580, %v590
      %v593 = vshrl.u32 %v568, 16
      %v595 = vrot.slane %v593, 7
      %v596 = vshll.u32 %v568, 16
      %v598 = vor.u32 %v595, %v596
      %v599 = vsel %vm576, %v587, %v598
      %v601 = vshrl.u32 %v569, 16
      %v603 = vrot.slane %v601, 7
      %v604 = vshll.u32 %v569, 16
      %v606 = vor.u32 %v603, %v604
      %v607 = vsel %vm576, %v595, %v606
      %v609 = vshrl.u32 %v570, 16
      %v611 = vrot.slane %v609, 7
      %v612 = vshll.u32 %v570, 16
      %v614 = vor.u32 %v611, %v612
      %v615 = vsel %vm576, %v603, %v614
      %v617 = vshrl.u32 %v571, 16
      %v619 = vrot.slane %v617, 7
      %v620 = vshll.u32 %v571, 16
      %v622 = vor.u32 %v619, %v620
      %v623 = vsel %vm576, %v611, %v622
      %v625 = vshrl.u32 %v572, 16
      %v627 = vrot.slane %v625, 7
      %v628 = vshll.u32 %v572, 16
      %v630 = vor.u32 %v627, %v628
      %v631 = vsel %vm576, %v619, %v630
      %v633 = vshrl.u32 %v573, 16
      %v635 = vrot.slane %v633, 7
      %v636 = vshll.u32 %v573, 16
      %v638 = vor.u32 %v635, %v636
      %v639 = vsel %vm576, %v627, %v638
      %v641 = vshrl.u32 %v574, 16
      %v643 = vrot.slane %v641, 7
      %v644 = vshll.u32 %v574, 16
      %v646 = vor.u32 %v643, %v644
      %v647 = vsel %vm576, %v635, %v646
      %v649 = vshrl.u32 %v575, 16
      %v651 = vrot.slane %v649, 7
      %v652 = vshll.u32 %v575, 16
      %v654 = vor.u32 %v651, %v652
      %v655 = vsel %vm576, %v643, %v654
      %vm666 = vcmask 1040384
      %vm667 = vmand %vm666, %vm576
      %v668 = vsel %vm667, 0, %v583
      %vm669 = vcmp.eq.s32.totalorder %v512, 0
      %vm670 = vcmp.eq.s32.totalorder %v513, 0
      %vm671 = vcmp.eq.s32.totalorder %v514, 0
      %vm672 = vcmp.eq.s32.totalorder %v515, 0
      %vm673 = vcmp.eq.s32.totalorder %v516, 0
      %vm674 = vcmp.eq.s32.totalorder %v517, 0
      %vm675 = vcmp.eq.s32.totalorder %v518, 0
      %vm676 = vcmp.eq.s32.totalorder %v519, 0
      %vm677 = vcmp.eq.s32.totalorder %v520, 0
      %vm678 = vcmp.eq.s32.totalorder %v521, 0
      %vm679 = vcmp.eq.s32.totalorder %v522, 0
      %vm680 = vcmp.eq.s32.totalorder %v523, 0
      %vm681 = vcmp.eq.s32.totalorder %v524, 0
      %vm682 = vcmp.eq.s32.totalorder %v525, 0
      %vm683 = vcmp.eq.s32.totalorder %v526, 0
      %vm684 = vcmp.eq.s32.totalorder %v527, 0
      %vm685 = vcmp.eq.s32.totalorder %v528, 0
      %vm686 = vcmp.eq.s32.totalorder %v529, 0
      %vm687 = vcmp.eq.s32.totalorder %v530, 0
      %vm688 = vcmp.eq.s32.totalorder %v531, 0
      %vm689 = vmpackc.low %vm669, %vm669
      %vm690 = vmpackc.low %vm670, %vm670
      %vm691 = vmpackc.low %vm671, %vm671
      %vm692 = vmpackc.low %vm672, %vm672
      %vm693 = vmpackc.low %vm673, %vm673
      %vm694 = vmpackc.low %vm674, %vm674
      %vm695 = vmpackc.low %vm675, %vm675
      %vm696 = vmpackc.low %vm676, %vm676
      %vm697 = vmpackc.low %vm677, %vm677
      %vm698 = vmpackc.low %vm678, %vm678
      %vm699 = vmpackc.low %vm679, %vm679
      %vm700 = vmpackc.low %vm680, %vm680
      %vm701 = vmpackc.low %vm681, %vm681
      %vm702 = vmpackc.low %vm682, %vm682
      %vm703 = vmpackc.low %vm683, %vm683
      %vm704 = vmpackc.low %vm684, %vm684
      %vm705 = vmpackc.low %vm685, %vm685
      %vm706 = vmpackc.low %vm686, %vm686
      %vm707 = vmpackc.low %vm687, %vm687
      %vm708 = vmpackc.low %vm688, %vm688
      %v709 = vsel %vm689, 65537, 0
      %v710 = vsel %vm690, 65537, 0
      %v711 = vsel %vm691, 65537, 0
      %v712 = vsel %vm692, 65537, 0
      %v713 = vsel %vm693, 65537, 0
      %v714 = vsel %vm694, 65537, 0
      %v715 = vsel %vm695, 65537, 0
      %v716 = vsel %vm696, 65537, 0
      %v717 = vsel %vm697, 65537, 0
      %v718 = vsel %vm698, 65537, 0
      %v719 = vsel %vm699, 65537, 0
      %v720 = vsel %vm700, 65537, 0
      %v721 = vsel %vm701, 65537, 0
      %v722 = vsel %vm702, 65537, 0
      %v723 = vsel %vm703, 65537, 0
      %v724 = vsel %vm704, 65537, 0
      %v725 = vsel %vm705, 65537, 0
      %v726 = vsel %vm706, 65537, 0
      %v727 = vsel %vm707, 65537, 0
      %v728 = vsel %vm708, 65537, 0
      %v729 = vunpack.c.l.b16 %v709
      %v730 = vunpack.c.l.b16 %v710
      %v731 = vunpack.c.l.b16 %v711
      %v732 = vunpack.c.l.b16 %v712
      %v733 = vunpack.c.l.b16 %v713
      %v734 = vunpack.c.l.b16 %v714
      %v735 = vunpack.c.l.b16 %v715
      %v736 = vunpack.c.l.b16 %v716
      %v737 = vunpack.c.l.b16 %v717
      %v738 = vunpack.c.l.b16 %v718
      %v739 = vunpack.c.l.b16 %v719
      %v740 = vunpack.c.l.b16 %v720
      %v741 = vunpack.c.l.b16 %v721
      %v742 = vunpack.c.l.b16 %v722
      %v743 = vunpack.c.l.b16 %v723
      %v744 = vunpack.c.l.b16 %v724
      %v745 = vunpack.c.l.b16 %v725
      %v746 = vunpack.c.l.b16 %v726
      %v747 = vunpack.c.l.b16 %v727
      %v748 = vunpack.c.l.b16 %v728
      %v749 = vpack.c.b16 %v730, %v729
      %v750 = vpack.c.b16 %v732, %v731
      %v751 = vpack.c.b16 %v734, %v733
      %v752 = vpack.c.b16 %v736, %v735
      %v753 = vpack.c.b16 %v738, %v737
      %v754 = vpack.c.b16 %v740, %v739
      %v755 = vpack.c.b16 %v742, %v741
      %v756 = vpack.c.b16 %v744, %v743
      %v757 = vpack.c.b16 %v746, %v745
      %v758 = vpack.c.b16 %v748, %v747
      %v759 = vunpack.c.l.b16 %v749
      %v760 = vunpack.c.h.b16 %v749
      %v761 = vunpack.c.l.b16 0
      %v762 = vunpack.c.h.b16 0
      %vm763 = vcmp.ne.s32.totalorder %v759, %v761
      %vm764 = vcmp.ne.s32.totalorder %v760, %v762
      %vm765 = vmpackc.low %vm764, %vm763
      %v766 = vunpack.c.l.b16 %v750
      %v767 = vunpack.c.h.b16 %v750
      %v768 = vunpack.c.l.b16 0
      %v769 = vunpack.c.h.b16 0
      %vm770 = vcmp.ne.s32.totalorder %v766, %v768
      %vm771 = vcmp.ne.s32.totalorder %v767, %v769
      %vm772 = vmpackc.low %vm771, %vm770
      %v773 = vunpack.c.l.b16 %v751
      %v774 = vunpack.c.h.b16 %v751
      %v775 = vunpack.c.l.b16 0
      %v776 = vunpack.c.h.b16 0
      %vm777 = vcmp.ne.s32.totalorder %v773, %v775
      %vm778 = vcmp.ne.s32.totalorder %v774, %v776
      %vm779 = vmpackc.low %vm778, %vm777
      %v780 = vunpack.c.l.b16 %v752
      %v781 = vunpack.c.h.b16 %v752
      %v782 = vunpack.c.l.b16 0
      %v783 = vunpack.c.h.b16 0
      %vm784 = vcmp.ne.s32.totalorder %v780, %v782
      %vm785 = vcmp.ne.s32.totalorder %v781, %v783
      %vm786 = vmpackc.low %vm785, %vm784
      %v787 = vunpack.c.l.b16 %v753
      %v788 = vunpack.c.h.b16 %v753
      %v789 = vunpack.c.l.b16 0
      %v790 = vunpack.c.h.b16 0
      %vm791 = vcmp.ne.s32.totalorder %v787, %v789
      %vm792 = vcmp.ne.s32.totalorder %v788, %v790
      %vm793 = vmpackc.low %vm792, %vm791
      %v794 = vunpack.c.l.b16 %v754
      %v795 = vunpack.c.h.b16 %v754
      %v796 = vunpack.c.l.b16 0
      %v797 = vunpack.c.h.b16 0
      %vm798 = vcmp.ne.s32.totalorder %v794, %v796
      %vm799 = vcmp.ne.s32.totalorder %v795, %v797
      %vm800 = vmpackc.low %vm799, %vm798
      %v801 = vunpack.c.l.b16 %v755
      %v802 = vunpack.c.h.b16 %v755
      %v803 = vunpack.c.l.b16 0
      %v804 = vunpack.c.h.b16 0
      %vm805 = vcmp.ne.s32.totalorder %v801, %v803
      %vm806 = vcmp.ne.s32.totalorder %v802, %v804
      %vm807 = vmpackc.low %vm806, %vm805
      %v808 = vunpack.c.l.b16 %v756
      %v809 = vunpack.c.h.b16 %v756
      %v810 = vunpack.c.l.b16 0
      %v811 = vunpack.c.h.b16 0
      %vm812 = vcmp.ne.s32.totalorder %v808, %v810
      %vm813 = vcmp.ne.s32.totalorder %v809, %v811
      %vm814 = vmpackc.low %vm813, %vm812
      %v815 = vunpack.c.l.b16 %v757
      %v816 = vunpack.c.h.b16 %v757
      %v817 = vunpack.c.l.b16 0
      %v818 = vunpack.c.h.b16 0
      %vm819 = vcmp.ne.s32.totalorder %v815, %v817
      %vm820 = vcmp.ne.s32.totalorder %v816, %v818
      %vm821 = vmpackc.low %vm820, %vm819
      %v822 = vunpack.c.l.b16 %v758
      %v823 = vunpack.c.h.b16 %v758
      %v824 = vunpack.c.l.b16 0
      %v825 = vunpack.c.h.b16 0
      %vm826 = vcmp.ne.s32.totalorder %v822, %v824
      %vm827 = vcmp.ne.s32.totalorder %v823, %v825
      %vm828 = vmpackc.low %vm827, %vm826
      %v829 = vsel %vm765, 0, %v668
      %v830 = vsel %vm772, 0, %v591
      %v831 = vsel %vm779, 0, %v599
      %v832 = vsel %vm786, 0, %v607
      %v833 = vsel %vm793, 0, %v615
      %v834 = vsel %vm800, 0, %v623
      %v835 = vsel %vm807, 0, %v631
      %v836 = vsel %vm814, 0, %v639
      %v837 = vsel %vm821, 0, %v647
      %v838 = vsel %vm828, 0, %v655
      %vm839 = vsmask.f32 7424
      %v840 = vrot.slane %v581, 1
      %v841 = vor.u32 %v578, %v840
      %v842 = vrot.slane %v588, 1
      %v843 = vsel %vm839, %v841, %v842
      %v844 = vor.u32 %v585, %v842
      %v845 = vrot.slane %v596, 1
      %v846 = vsel %vm839, %v844, %v845
      %v847 = vor.u32 %v593, %v845
      %v848 = vrot.slane %v604, 1
      %v849 = vsel %vm839, %v847, %v848
      %v850 = vor.u32 %v601, %v848
      %v851 = vrot.slane %v612, 1
      %v852 = vsel %vm839, %v850, %v851
      %v853 = vor.u32 %v609, %v851
      %v854 = vrot.slane %v620, 1
      %v855 = vsel %vm839, %v853, %v854
      %v856 = vor.u32 %v617, %v854
      %v857 = vrot.slane %v628, 1
      %v858 = vsel %vm839, %v856, %v857
      %v859 = vor.u32 %v625, %v857
      %v860 = vrot.slane %v636, 1
      %v861 = vsel %vm839, %v859, %v860
      %v862 = vor.u32 %v633, %v860
      %v863 = vrot.slane %v644, 1
      %v864 = vsel %vm839, %v862, %v863
      %v865 = vor.u32 %v641, %v863
      %v866 = vrot.slane %v652, 1
      %v867 = vsel %vm839, %v865, %v866
      %v868 = vor.u32 %v649, %v866
      %vm879 = vcmask 1047552
      %vm880 = vmand %vm879, %vm839
      %v881 = vsel %vm880, %v868, 0
      %vm882 = vcmp.eq.s32.totalorder %v512, 7
      %vm883 = vcmp.eq.s32.totalorder %v513, 7
      %vm884 = vcmp.eq.s32.totalorder %v514, 7
      %vm885 = vcmp.eq.s32.totalorder %v515, 7
      %vm886 = vcmp.eq.s32.totalorder %v516, 7
      %vm887 = vcmp.eq.s32.totalorder %v517, 7
      %vm888 = vcmp.eq.s32.totalorder %v518, 7
      %vm889 = vcmp.eq.s32.totalorder %v519, 7
      %vm890 = vcmp.eq.s32.totalorder %v520, 7
      %vm891 = vcmp.eq.s32.totalorder %v521, 7
      %vm892 = vcmp.eq.s32.totalorder %v522, 7
      %vm893 = vcmp.eq.s32.totalorder %v523, 7
      %vm894 = vcmp.eq.s32.totalorder %v524, 7
      %vm895 = vcmp.eq.s32.totalorder %v525, 7
      %vm896 = vcmp.eq.s32.totalorder %v526, 7
      %vm897 = vcmp.eq.s32.totalorder %v527, 7
      %vm898 = vcmp.eq.s32.totalorder %v528, 7
      %vm899 = vcmp.eq.s32.totalorder %v529, 7
      %vm900 = vcmp.eq.s32.totalorder %v530, 7
      %vm901 = vcmp.eq.s32.totalorder %v531, 7
      %vm902 = vmpackc.low %vm882, %vm882
      %vm903 = vmpackc.low %vm883, %vm883
      %vm904 = vmpackc.low %vm884, %vm884
      %vm905 = vmpackc.low %vm885, %vm885
      %vm906 = vmpackc.low %vm886, %vm886
      %vm907 = vmpackc.low %vm887, %vm887
      %vm908 = vmpackc.low %vm888, %vm888
      %vm909 = vmpackc.low %vm889, %vm889
      %vm910 = vmpackc.low %vm890, %vm890
      %vm911 = vmpackc.low %vm891, %vm891
      %vm912 = vmpackc.low %vm892, %vm892
      %vm913 = vmpackc.low %vm893, %vm893
      %vm914 = vmpackc.low %vm894, %vm894
      %vm915 = vmpackc.low %vm895, %vm895
      %vm916 = vmpackc.low %vm896, %vm896
      %vm917 = vmpackc.low %vm897, %vm897
      %vm918 = vmpackc.low %vm898, %vm898
      %vm919 = vmpackc.low %vm899, %vm899
      %vm920 = vmpackc.low %vm900, %vm900
      %vm921 = vmpackc.low %vm901, %vm901
      %v922 = vsel %vm902, 65537, 0
      %v923 = vsel %vm903, 65537, 0
      %v924 = vsel %vm904, 65537, 0
      %v925 = vsel %vm905, 65537, 0
      %v926 = vsel %vm906, 65537, 0
      %v927 = vsel %vm907, 65537, 0
      %v928 = vsel %vm908, 65537, 0
      %v929 = vsel %vm909, 65537, 0
      %v930 = vsel %vm910, 65537, 0
      %v931 = vsel %vm911, 65537, 0
      %v932 = vsel %vm912, 65537, 0
      %v933 = vsel %vm913, 65537, 0
      %v934 = vsel %vm914, 65537, 0
      %v935 = vsel %vm915, 65537, 0
      %v936 = vsel %vm916, 65537, 0
      %v937 = vsel %vm917, 65537, 0
      %v938 = vsel %vm918, 65537, 0
      %v939 = vsel %vm919, 65537, 0
      %v940 = vsel %vm920, 65537, 0
      %v941 = vsel %vm921, 65537, 0
      %v942 = vunpack.c.l.b16 %v922
      %v943 = vunpack.c.l.b16 %v923
      %v944 = vunpack.c.l.b16 %v924
      %v945 = vunpack.c.l.b16 %v925
      %v946 = vunpack.c.l.b16 %v926
      %v947 = vunpack.c.l.b16 %v927
      %v948 = vunpack.c.l.b16 %v928
      %v949 = vunpack.c.l.b16 %v929
      %v950 = vunpack.c.l.b16 %v930
      %v951 = vunpack.c.l.b16 %v931
      %v952 = vunpack.c.l.b16 %v932
      %v953 = vunpack.c.l.b16 %v933
      %v954 = vunpack.c.l.b16 %v934
      %v955 = vunpack.c.l.b16 %v935
      %v956 = vunpack.c.l.b16 %v936
      %v957 = vunpack.c.l.b16 %v937
      %v958 = vunpack.c.l.b16 %v938
      %v959 = vunpack.c.l.b16 %v939
      %v960 = vunpack.c.l.b16 %v940
      %v961 = vunpack.c.l.b16 %v941
      %v962 = vpack.c.b16 %v943, %v942
      %v963 = vpack.c.b16 %v945, %v944
      %v964 = vpack.c.b16 %v947, %v946
      %v965 = vpack.c.b16 %v949, %v948
      %v966 = vpack.c.b16 %v951, %v950
      %v967 = vpack.c.b16 %v953, %v952
      %v968 = vpack.c.b16 %v955, %v954
      %v969 = vpack.c.b16 %v957, %v956
      %v970 = vpack.c.b16 %v959, %v958
      %v971 = vpack.c.b16 %v961, %v960
      %v972 = vunpack.c.l.b16 %v962
      %v973 = vunpack.c.h.b16 %v962
      %v974 = vunpack.c.l.b16 0
      %v975 = vunpack.c.h.b16 0
      %vm976 = vcmp.ne.s32.totalorder %v972, %v974
      %vm977 = vcmp.ne.s32.totalorder %v973, %v975
      %vm978 = vmpackc.low %vm977, %vm976
      %v979 = vunpack.c.l.b16 %v963
      %v980 = vunpack.c.h.b16 %v963
      %v981 = vunpack.c.l.b16 0
      %v982 = vunpack.c.h.b16 0
      %vm983 = vcmp.ne.s32.totalorder %v979, %v981
      %vm984 = vcmp.ne.s32.totalorder %v980, %v982
      %vm985 = vmpackc.low %vm984, %vm983
      %v986 = vunpack.c.l.b16 %v964
      %v987 = vunpack.c.h.b16 %v964
      %v988 = vunpack.c.l.b16 0
      %v989 = vunpack.c.h.b16 0
      %vm990 = vcmp.ne.s32.totalorder %v986, %v988
      %vm991 = vcmp.ne.s32.totalorder %v987, %v989
      %vm992 = vmpackc.low %vm991, %vm990
      %v993 = vunpack.c.l.b16 %v965
      %v994 = vunpack.c.h.b16 %v965
      %v995 = vunpack.c.l.b16 0
      %v996 = vunpack.c.h.b16 0
      %vm997 = vcmp.ne.s32.totalorder %v993, %v995
      %vm998 = vcmp.ne.s32.totalorder %v994, %v996
      %vm999 = vmpackc.low %vm998, %vm997
      %v1000 = vunpack.c.l.b16 %v966
      %v1001 = vunpack.c.h.b16 %v966
      %v1002 = vunpack.c.l.b16 0
      %v1003 = vunpack.c.h.b16 0
      %vm1004 = vcmp.ne.s32.totalorder %v1000, %v1002
      %vm1005 = vcmp.ne.s32.totalorder %v1001, %v1003
      %vm1006 = vmpackc.low %vm1005, %vm1004
      %v1007 = vunpack.c.l.b16 %v967
      %v1008 = vunpack.c.h.b16 %v967
      %v1009 = vunpack.c.l.b16 0
      %v1010 = vunpack.c.h.b16 0
      %vm1011 = vcmp.ne.s32.totalorder %v1007, %v1009
      %vm1012 = vcmp.ne.s32.totalorder %v1008, %v1010
      %vm1013 = vmpackc.low %vm1012, %vm1011
      %v1014 = vunpack.c.l.b16 %v968
      %v1015 = vunpack.c.h.b16 %v968
      %v1016 = vunpack.c.l.b16 0
      %v1017 = vunpack.c.h.b16 0
      %vm1018 = vcmp.ne.s32.totalorder %v1014, %v1016
      %vm1019 = vcmp.ne.s32.totalorder %v1015, %v1017
      %vm1020 = vmpackc.low %vm1019, %vm1018
      %v1021 = vunpack.c.l.b16 %v969
      %v1022 = vunpack.c.h.b16 %v969
      %v1023 = vunpack.c.l.b16 0
      %v1024 = vunpack.c.h.b16 0
      %vm1025 = vcmp.ne.s32.totalorder %v1021, %v1023
      %vm1026 = vcmp.ne.s32.totalorder %v1022, %v1024
      %vm1027 = vmpackc.low %vm1026, %vm1025
      %v1028 = vunpack.c.l.b16 %v970
      %v1029 = vunpack.c.h.b16 %v970
      %v1030 = vunpack.c.l.b16 0
      %v1031 = vunpack.c.h.b16 0
      %vm1032 = vcmp.ne.s32.totalorder %v1028, %v1030
      %vm1033 = vcmp.ne.s32.totalorder %v1029, %v1031
      %vm1034 = vmpackc.low %vm1033, %vm1032
      %v1035 = vunpack.c.l.b16 %v971
      %v1036 = vunpack.c.h.b16 %v971
      %v1037 = vunpack.c.l.b16 0
      %v1038 = vunpack.c.h.b16 0
      %vm1039 = vcmp.ne.s32.totalorder %v1035, %v1037
      %vm1040 = vcmp.ne.s32.totalorder %v1036, %v1038
      %vm1041 = vmpackc.low %vm1040, %vm1039
      %v1042 = vsel %vm978, 0, %v843
      %v1043 = vsel %vm985, 0, %v846
      %v1044 = vsel %vm992, 0, %v849
      %v1045 = vsel %vm999, 0, %v852
      %v1046 = vsel %vm1006, 0, %v855
      %v1047 = vsel %vm1013, 0, %v858
      %v1048 = vsel %vm1020, 0, %v861
      %v1049 = vsel %vm1027, 0, %v864
      %v1050 = vsel %vm1034, 0, %v867
      %v1051 = vsel %vm1041, 0, %v881
      %v1062 = vunpack.c.l.b16 %v829
      %v1063 = vunpack.c.h.b16 %v829
      %v1064 = vunpack.c.l.b16 %v830
      %v1065 = vunpack.c.h.b16 %v830
      %v1066 = vunpack.c.l.b16 %v831
      %v1067 = vunpack.c.h.b16 %v831
      %v1068 = vunpack.c.l.b16 %v832
      %v1069 = vunpack.c.h.b16 %v832
      %v1070 = vunpack.c.l.b16 %v833
      %v1071 = vunpack.c.h.b16 %v833
      %v1072 = vunpack.c.l.b16 %v834
      %v1073 = vunpack.c.h.b16 %v834
      %v1074 = vunpack.c.l.b16 %v835
      %v1075 = vunpack.c.h.b16 %v835
      %v1076 = vunpack.c.l.b16 %v836
      %v1077 = vunpack.c.h.b16 %v836
      %v1078 = vunpack.c.l.b16 %v837
      %v1079 = vunpack.c.h.b16 %v837
      %v1080 = vunpack.c.l.b16 %v838
      %v1081 = vunpack.c.h.b16 %v838
      %v1082 = vpack.c.b16 %v1062, %v1062
      %v1083 = vpack.c.b16 %v1063, %v1063
      %v1084 = vpack.c.b16 %v1064, %v1064
      %v1085 = vpack.c.b16 %v1065, %v1065
      %v1086 = vpack.c.b16 %v1066, %v1066
      %v1087 = vpack.c.b16 %v1067, %v1067
      %v1088 = vpack.c.b16 %v1068, %v1068
      %v1089 = vpack.c.b16 %v1069, %v1069
      %v1090 = vpack.c.b16 %v1070, %v1070
      %v1091 = vpack.c.b16 %v1071, %v1071
      %v1092 = vpack.c.b16 %v1072, %v1072
      %v1093 = vpack.c.b16 %v1073, %v1073
      %v1094 = vpack.c.b16 %v1074, %v1074
      %v1095 = vpack.c.b16 %v1075, %v1075
      %v1096 = vpack.c.b16 %v1076, %v1076
      %v1097 = vpack.c.b16 %v1077, %v1077
      %v1098 = vpack.c.b16 %v1078, %v1078
      %v1099 = vpack.c.b16 %v1079, %v1079
      %v1100 = vpack.c.b16 %v1080, %v1080
      %v1101 = vpack.c.b16 %v1081, %v1081
      %v1132 = vunpack.c.l.b16 %v1042
      %v1133 = vunpack.c.h.b16 %v1042
      %v1134 = vunpack.c.l.b16 %v1043
      %v1135 = vunpack.c.h.b16 %v1043
      %v1136 = vunpack.c.l.b16 %v1044
      %v1137 = vunpack.c.h.b16 %v1044
      %v1138 = vunpack.c.l.b16 %v1045
      %v1139 = vunpack.c.h.b16 %v1045
      %v1140 = vunpack.c.l.b16 %v1046
      %v1141 = vunpack.c.h.b16 %v1046
      %v1142 = vunpack.c.l.b16 %v1047
      %v1143 = vunpack.c.h.b16 %v1047
      %v1144 = vunpack.c.l.b16 %v1048
      %v1145 = vunpack.c.h.b16 %v1048
      %v1146 = vunpack.c.l.b16 %v1049
      %v1147 = vunpack.c.h.b16 %v1049
      %v1148 = vunpack.c.l.b16 %v1050
      %v1149 = vunpack.c.h.b16 %v1050
      %v1150 = vunpack.c.l.b16 %v1051
      %v1151 = vunpack.c.h.b16 %v1051
      %v1152 = vpack.c.b16 %v1132, %v1132
      %v1153 = vpack.c.b16 %v1133, %v1133
      %v1154 = vpack.c.b16 %v1134, %v1134
      %v1155 = vpack.c.b16 %v1135, %v1135
      %v1156 = vpack.c.b16 %v1136, %v1136
      %v1157 = vpack.c.b16 %v1137, %v1137
      %v1158 = vpack.c.b16 %v1138, %v1138
      %v1159 = vpack.c.b16 %v1139, %v1139
      %v1160 = vpack.c.b16 %v1140, %v1140
      %v1161 = vpack.c.b16 %v1141, %v1141
      %v1162 = vpack.c.b16 %v1142, %v1142
      %v1163 = vpack.c.b16 %v1143, %v1143
      %v1164 = vpack.c.b16 %v1144, %v1144
      %v1165 = vpack.c.b16 %v1145, %v1145
      %v1166 = vpack.c.b16 %v1146, %v1146
      %v1167 = vpack.c.b16 %v1147, %v1147
      %v1168 = vpack.c.b16 %v1148, %v1148
      %v1169 = vpack.c.b16 %v1149, %v1149
      %v1170 = vpack.c.b16 %v1150, %v1150
      %v1171 = vpack.c.b16 %v1151, %v1151
      %1192 = vst [vmem:[#allocation2] sm:$0xf] %v1082
      %1193 = vst [vmem:[#allocation2 + $0x24] sm:$0xf] %v1083
      %1194 = vst [vmem:[#allocation2 + $0x48] sm:$0xf] %v1084
      %1195 = vst [vmem:[#allocation2 + $0x6c] sm:$0xf] %v1085
      %1196 = vst [vmem:[#allocation2 + $0x90] sm:$0xf] %v1086
      %1197 = vst [vmem:[#allocation2 + $0xb4] sm:$0xf] %v1087
      %1198 = vst [vmem:[#allocation2 + $0xd8] sm:$0xf] %v1088
      %1199 = vst [vmem:[#allocation2 + $0xfc] sm:$0xf] %v1089
      %1200 = vst [vmem:[#allocation2 + $0x120] sm:$0xf] %v1092
      %1201 = vst [vmem:[#allocation2 + $0x144] sm:$0xf] %v1093
      %1202 = vst [vmem:[#allocation2 + $0x168] sm:$0xf] %v1094
      %1203 = vst [vmem:[#allocation2 + $0x18c] sm:$0xf] %v1095
      %1204 = vst [vmem:[#allocation2 + $0x1b0] sm:$0xf] %v1096
      %1205 = vst [vmem:[#allocation2 + $0x1d4] sm:$0xf] %v1097
      %1206 = vst [vmem:[#allocation2 + $0x1f8] sm:$0xf] %v1098
      %1207 = vst [vmem:[#allocation2 + $0x21c] sm:$0xf] %v1099
      %1208 = vst [vmem:[#allocation2 + $0x4] sm:$0xf] 0
      %1209 = vst [vmem:[#allocation2 + $0x28] sm:$0xf] %v255
      %1210 = vst [vmem:[#allocation2 + $0x4c] sm:$0xf] %v256
      %1211 = vst [vmem:[#allocation2 + $0x70] sm:$0xf] %v257
      %1212 = vst [vmem:[#allocation2 + $0x94] sm:$0xf] %v258
      %1213 = vst [vmem:[#allocation2 + $0xb8] sm:$0xf] %v259
      %1214 = vst [vmem:[#allocation2 + $0xdc] sm:$0xf] %v260
      %1215 = vst [vmem:[#allocation2 + $0x100] sm:$0xf] %v261
      %1216 = vst [vmem:[#allocation2 + $0x124] sm:$0xf] 0
      %1217 = vst [vmem:[#allocation2 + $0x148] sm:$0xf] %v263
      %1218 = vst [vmem:[#allocation2 + $0x16c] sm:$0xf] %v264
      %1219 = vst [vmem:[#allocation2 + $0x190] sm:$0xf] %v265
      %1220 = vst [vmem:[#allocation2 + $0x1b4] sm:$0xf] %v266
      %1221 = vst [vmem:[#allocation2 + $0x1d8] sm:$0xf] %v267
      %1222 = vst [vmem:[#allocation2 + $0x1fc] sm:$0xf] %v268
      %1223 = vst [vmem:[#allocation2 + $0x220] sm:$0xf] %v269
      %1224 = vst [vmem:[#allocation2 + $0x8] sm:$0xf] %v1152
      %1225 = vst [vmem:[#allocation2 + $0x2c] sm:$0xf] %v1153
      %1226 = vst [vmem:[#allocation2 + $0x50] sm:$0xf] %v1154
      %1227 = vst [vmem:[#allocation2 + $0x74] sm:$0xf] %v1155
      %1228 = vst [vmem:[#allocation2 + $0x98] sm:$0xf] %v1156
      %1229 = vst [vmem:[#allocation2 + $0xbc] sm:$0xf] %v1157
      %1230 = vst [vmem:[#allocation2 + $0xe0] sm:$0xf] %v1158
      %1231 = vst [vmem:[#allocation2 + $0x104] sm:$0xf] %v1159
      %1232 = vst [vmem:[#allocation2 + $0x128] sm:$0xf] %v1162
      %1233 = vst [vmem:[#allocation2 + $0x14c] sm:$0xf] %v1163
      %1234 = vst [vmem:[#allocation2 + $0x170] sm:$0xf] %v1164
      %1235 = vst [vmem:[#allocation2 + $0x194] sm:$0xf] %v1165
      %1236 = vst [vmem:[#allocation2 + $0x1b8] sm:$0xf] %v1166
      %1237 = vst [vmem:[#allocation2 + $0x1dc] sm:$0xf] %v1167
      %1238 = vst [vmem:[#allocation2 + $0x200] sm:$0xf] %v1168
      %1239 = vst [vmem:[#allocation2 + $0x224] sm:$0xf] %v1169
      %1240 = vst [vmem:[#allocation2 + $0xc] sm:$0xf] %v1083
      %1241 = vst [vmem:[#allocation2 + $0x30] sm:$0xf] %v1084
      %1242 = vst [vmem:[#allocation2 + $0x54] sm:$0xf] %v1085
      %1243 = vst [vmem:[#allocation2 + $0x78] sm:$0xf] %v1086
      %1244 = vst [vmem:[#allocation2 + $0x9c] sm:$0xf] %v1087
      %1245 = vst [vmem:[#allocation2 + $0xc0] sm:$0xf] %v1088
      %1246 = vst [vmem:[#allocation2 + $0xe4] sm:$0xf] %v1089
      %1247 = vst [vmem:[#allocation2 + $0x108] sm:$0xf] %v1090
      %1248 = vst [vmem:[#allocation2 + $0x12c] sm:$0xf] %v1093
      %1249 = vst [vmem:[#allocation2 + $0x150] sm:$0xf] %v1094
      %1250 = vst [vmem:[#allocation2 + $0x174] sm:$0xf] %v1095
      %1251 = vst [vmem:[#allocation2 + $0x198] sm:$0xf] %v1096
      %1252 = vst [vmem:[#allocation2 + $0x1bc] sm:$0xf] %v1097
      %1253 = vst [vmem:[#allocation2 + $0x1e0] sm:$0xf] %v1098
      %1254 = vst [vmem:[#allocation2 + $0x204] sm:$0xf] %v1099
      %1255 = vst [vmem:[#allocation2 + $0x228] sm:$0xf] %v1100
      %1256 = vst [vmem:[#allocation2 + $0x10] sm:$0xf] %v255
      %1257 = vst [vmem:[#allocation2 + $0x34] sm:$0xf] %v256
      %1258 = vst [vmem:[#allocation2 + $0x58] sm:$0xf] %v257
      %1259 = vst [vmem:[#allocation2 + $0x7c] sm:$0xf] %v258
      %1260 = vst [vmem:[#allocation2 + $0xa0] sm:$0xf] %v259
      %1261 = vst [vmem:[#allocation2 + $0xc4] sm:$0xf] %v260
      %1262 = vst [vmem:[#allocation2 + $0xe8] sm:$0xf] %v261
      %1263 = vst [vmem:[#allocation2 + $0x10c] sm:$0xf] %v262
      %1264 = vst [vmem:[#allocation2 + $0x130] sm:$0xf] %v263
      %1265 = vst [vmem:[#allocation2 + $0x154] sm:$0xf] %v264
      %1266 = vst [vmem:[#allocation2 + $0x178] sm:$0xf] %v265
      %1267 = vst [vmem:[#allocation2 + $0x19c] sm:$0xf] %v266
      %1268 = vst [vmem:[#allocation2 + $0x1c0] sm:$0xf] %v267
      %1269 = vst [vmem:[#allocation2 + $0x1e4] sm:$0xf] %v268
      %1270 = vst [vmem:[#allocation2 + $0x208] sm:$0xf] %v269
      %1271 = vst [vmem:[#allocation2 + $0x22c] sm:$0xf] %v270
      %1272 = vst [vmem:[#allocation2 + $0x14] sm:$0xf] %v1153
      %1273 = vst [vmem:[#allocation2 + $0x38] sm:$0xf] %v1154
      %1274 = vst [vmem:[#allocation2 + $0x5c] sm:$0xf] %v1155
      %1275 = vst [vmem:[#allocation2 + $0x80] sm:$0xf] %v1156
      %1276 = vst [vmem:[#allocation2 + $0xa4] sm:$0xf] %v1157
      %1277 = vst [vmem:[#allocation2 + $0xc8] sm:$0xf] %v1158
      %1278 = vst [vmem:[#allocation2 + $0xec] sm:$0xf] %v1159
      %1279 = vst [vmem:[#allocation2 + $0x110] sm:$0xf] %v1160
      %1280 = vst [vmem:[#allocation2 + $0x134] sm:$0xf] %v1163
      %1281 = vst [vmem:[#allocation2 + $0x158] sm:$0xf] %v1164
      %1282 = vst [vmem:[#allocation2 + $0x17c] sm:$0xf] %v1165
      %1283 = vst [vmem:[#allocation2 + $0x1a0] sm:$0xf] %v1166
      %1284 = vst [vmem:[#allocation2 + $0x1c4] sm:$0xf] %v1167
      %1285 = vst [vmem:[#allocation2 + $0x1e8] sm:$0xf] %v1168
      %1286 = vst [vmem:[#allocation2 + $0x20c] sm:$0xf] %v1169
      %1287 = vst [vmem:[#allocation2 + $0x230] sm:$0xf] %v1170
      %1288 = vst [vmem:[#allocation2 + $0x18] sm:$0xf] %v1084
      %1289 = vst [vmem:[#allocation2 + $0x3c] sm:$0xf] %v1085
      %1290 = vst [vmem:[#allocation2 + $0x60] sm:$0xf] %v1086
      %1291 = vst [vmem:[#allocation2 + $0x84] sm:$0xf] %v1087
      %1292 = vst [vmem:[#allocation2 + $0xa8] sm:$0xf] %v1088
      %1293 = vst [vmem:[#allocation2 + $0xcc] sm:$0xf] %v1089
      %1294 = vst [vmem:[#allocation2 + $0xf0] sm:$0xf] %v1090
      %1295 = vst [vmem:[#allocation2 + $0x114] sm:$0xf] %v1091
      %1296 = vst [vmem:[#allocation2 + $0x138] sm:$0xf] %v1094
      %1297 = vst [vmem:[#allocation2 + $0x15c] sm:$0xf] %v1095
      %1298 = vst [vmem:[#allocation2 + $0x180] sm:$0xf] %v1096
      %1299 = vst [vmem:[#allocation2 + $0x1a4] sm:$0xf] %v1097
      %1300 = vst [vmem:[#allocation2 + $0x1c8] sm:$0xf] %v1098
      %1301 = vst [vmem:[#allocation2 + $0x1ec] sm:$0xf] %v1099
      %1302 = vst [vmem:[#allocation2 + $0x210] sm:$0xf] %v1100
      %1303 = vst [vmem:[#allocation2 + $0x234] sm:$0xf] %v1101
      %1304 = vst [vmem:[#allocation2 + $0x1c] sm:$0xf] %v256
      %1305 = vst [vmem:[#allocation2 + $0x40] sm:$0xf] %v257
      %1306 = vst [vmem:[#allocation2 + $0x64] sm:$0xf] %v258
      %1307 = vst [vmem:[#allocation2 + $0x88] sm:$0xf] %v259
      %1308 = vst [vmem:[#allocation2 + $0xac] sm:$0xf] %v260
      %1309 = vst [vmem:[#allocation2 + $0xd0] sm:$0xf] %v261
      %1310 = vst [vmem:[#allocation2 + $0xf4] sm:$0xf] %v262
      %1311 = vst [vmem:[#allocation2 + $0x118] sm:$0xf] 0
      %1312 = vst [vmem:[#allocation2 + $0x13c] sm:$0xf] %v264
      %1313 = vst [vmem:[#allocation2 + $0x160] sm:$0xf] %v265
      %1314 = vst [vmem:[#allocation2 + $0x184] sm:$0xf] %v266
      %1315 = vst [vmem:[#allocation2 + $0x1a8] sm:$0xf] %v267
      %1316 = vst [vmem:[#allocation2 + $0x1cc] sm:$0xf] %v268
      %1317 = vst [vmem:[#allocation2 + $0x1f0] sm:$0xf] %v269
      %1318 = vst [vmem:[#allocation2 + $0x214] sm:$0xf] %v270
      %1319 = vst [vmem:[#allocation2 + $0x238] sm:$0xf] 0
      %1320 = vst [vmem:[#allocation2 + $0x20] sm:$0xf] %v1154
      %1321 = vst [vmem:[#allocation2 + $0x44] sm:$0xf] %v1155
      %1322 = vst [vmem:[#allocation2 + $0x68] sm:$0xf] %v1156
      %1323 = vst [vmem:[#allocation2 + $0x8c] sm:$0xf] %v1157
      %1324 = vst [vmem:[#allocation2 + $0xb0] sm:$0xf] %v1158
      %1325 = vst [vmem:[#allocation2 + $0xd4] sm:$0xf] %v1159
      %1326 = vst [vmem:[#allocation2 + $0xf8] sm:$0xf] %v1160
      %1327 = vst [vmem:[#allocation2 + $0x11c] sm:$0xf] %v1161
      %1328 = vst [vmem:[#allocation2 + $0x140] sm:$0xf] %v1164
      %1329 = vst [vmem:[#allocation2 + $0x164] sm:$0xf] %v1165
      %1330 = vst [vmem:[#allocation2 + $0x188] sm:$0xf] %v1166
      %1331 = vst [vmem:[#allocation2 + $0x1ac] sm:$0xf] %v1167
      %1332 = vst [vmem:[#allocation2 + $0x1d0] sm:$0xf] %v1168
      %1333 = vst [vmem:[#allocation2 + $0x1f4] sm:$0xf] %v1169
      %1334 = vst [vmem:[#allocation2 + $0x218] sm:$0xf] %v1170
      %1335 = vst [vmem:[#allocation2 + $0x23c] sm:$0xf] %v1171
      %v1336 = vld [vmem:[#allocation2] sm:$0xff]
      %v1337 = vld [vmem:[#allocation2 + $0x8] sm:$0xff]
      %v1338 = vld [vmem:[#allocation2 + $0x10] sm:$0xff]
      %v1339 = vld [vmem:[#allocation2 + $0x18] sm:$0xff]
      %v1340 = vld [vmem:[#allocation2 + $0x20] sm:$0xf]
      %v1341 = vld [vmem:[#allocation2 + $0x24] sm:$0xff]
      %v1342 = vld [vmem:[#allocation2 + $0x2c] sm:$0xff]
      %v1343 = vld [vmem:[#allocation2 + $0x34] sm:$0xff]
      %v1344 = vld [vmem:[#allocation2 + $0x3c] sm:$0xff]
      %v1345 = vld [vmem:[#allocation2 + $0x44] sm:$0xf]
      %v1346 = vld [vmem:[#allocation2 + $0x48] sm:$0xff]
      %v1347 = vld [vmem:[#allocation2 + $0x50] sm:$0xff]
      %v1348 = vld [vmem:[#allocation2 + $0x58] sm:$0xff]
      %v1349 = vld [vmem:[#allocation2 + $0x60] sm:$0xff]
      %v1350 = vld [vmem:[#allocation2 + $0x68] sm:$0xf]
      %v1351 = vld [vmem:[#allocation2 + $0x6c] sm:$0xff]
      %v1352 = vld [vmem:[#allocation2 + $0x74] sm:$0xff]
      %v1353 = vld [vmem:[#allocation2 + $0x7c] sm:$0xff]
      %v1354 = vld [vmem:[#allocation2 + $0x84] sm:$0xff]
      %v1355 = vld [vmem:[#allocation2 + $0x8c] sm:$0xf]
      %v1356 = vld [vmem:[#allocation2 + $0x90] sm:$0xff]
      %v1357 = vld [vmem:[#allocation2 + $0x98] sm:$0xff]
      %v1358 = vld [vmem:[#allocation2 + $0xa0] sm:$0xff]
      %v1359 = vld [vmem:[#allocation2 + $0xa8] sm:$0xff]
      %v1360 = vld [vmem:[#allocation2 + $0xb0] sm:$0xf]
      %v1361 = vld [vmem:[#allocation2 + $0xb4] sm:$0xff]
      %v1362 = vld [vmem:[#allocation2 + $0xbc] sm:$0xff]
      %v1363 = vld [vmem:[#allocation2 + $0xc4] sm:$0xff]
      %v1364 = vld [vmem:[#allocation2 + $0xcc] sm:$0xff]
      %v1365 = vld [vmem:[#allocation2 + $0xd4] sm:$0xf]
      %v1366 = vld [vmem:[#allocation2 + $0xd8] sm:$0xff]
      %v1367 = vld [vmem:[#allocation2 + $0xe0] sm:$0xff]
      %v1368 = vld [vmem:[#allocation2 + $0xe8] sm:$0xff]
      %v1369 = vld [vmem:[#allocation2 + $0xf0] sm:$0xff]
      %v1370 = vld [vmem:[#allocation2 + $0xf8] sm:$0xf]
      %v1371 = vld [vmem:[#allocation2 + $0xfc] sm:$0xff]
      %v1372 = vld [vmem:[#allocation2 + $0x104] sm:$0xff]
      %v1373 = vld [vmem:[#allocation2 + $0x10c] sm:$0xff]
      %v1374 = vld [vmem:[#allocation2 + $0x114] sm:$0xff]
      %v1375 = vld [vmem:[#allocation2 + $0x11c] sm:$0xf]
      %v1376 = vld [vmem:[#allocation2 + $0x120] sm:$0xff]
      %v1377 = vld [vmem:[#allocation2 + $0x128] sm:$0xff]
      %v1378 = vld [vmem:[#allocation2 + $0x130] sm:$0xff]
      %v1379 = vld [vmem:[#allocation2 + $0x138] sm:$0xff]
      %v1380 = vld [vmem:[#allocation2 + $0x140] sm:$0xf]
      %v1381 = vld [vmem:[#allocation2 + $0x144] sm:$0xff]
      %v1382 = vld [vmem:[#allocation2 + $0x14c] sm:$0xff]
      %v1383 = vld [vmem:[#allocation2 + $0x154] sm:$0xff]
      %v1384 = vld [vmem:[#allocation2 + $0x15c] sm:$0xff]
      %v1385 = vld [vmem:[#allocation2 + $0x164] sm:$0xf]
      %v1386 = vld [vmem:[#allocation2 + $0x168] sm:$0xff]
      %v1387 = vld [vmem:[#allocation2 + $0x170] sm:$0xff]
      %v1388 = vld [vmem:[#allocation2 + $0x178] sm:$0xff]
      %v1389 = vld [vmem:[#allocation2 + $0x180] sm:$0xff]
      %v1390 = vld [vmem:[#allocation2 + $0x188] sm:$0xf]
      %v1391 = vld [vmem:[#allocation2 + $0x18c] sm:$0xff]
      %v1392 = vld [vmem:[#allocation2 + $0x194] sm:$0xff]
      %v1393 = vld [vmem:[#allocation2 + $0x19c] sm:$0xff]
      %v1394 = vld [vmem:[#allocation2 + $0x1a4] sm:$0xff]
      %v1395 = vld [vmem:[#allocation2 + $0x1ac] sm:$0xf]
      %v1396 = vld [vmem:[#allocation2 + $0x1b0] sm:$0xff]
      %v1397 = vld [vmem:[#allocation2 + $0x1b8] sm:$0xff]
      %v1398 = vld [vmem:[#allocation2 + $0x1c0] sm:$0xff]
      %v1399 = vld [vmem:[#allocation2 + $0x1c8] sm:$0xff]
      %v1400 = vld [vmem:[#allocation2 + $0x1d0] sm:$0xf]
      %v1401 = vld [vmem:[#allocation2 + $0x1d4] sm:$0xff]
      %v1402 = vld [vmem:[#allocation2 + $0x1dc] sm:$0xff]
      %v1403 = vld [vmem:[#allocation2 + $0x1e4] sm:$0xff]
      %v1404 = vld [vmem:[#allocation2 + $0x1ec] sm:$0xff]
      %v1405 = vld [vmem:[#allocation2 + $0x1f4] sm:$0xf]
      %v1406 = vld [vmem:[#allocation2 + $0x1f8] sm:$0xff]
      %v1407 = vld [vmem:[#allocation2 + $0x200] sm:$0xff]
      %v1408 = vld [vmem:[#allocation2 + $0x208] sm:$0xff]
      %v1409 = vld [vmem:[#allocation2 + $0x210] sm:$0xff]
      %v1410 = vld [vmem:[#allocation2 + $0x218] sm:$0xf]
      %v1411 = vld [vmem:[#allocation2 + $0x21c] sm:$0xff]
      %v1412 = vld [vmem:[#allocation2 + $0x224] sm:$0xff]
      %v1413 = vld [vmem:[#allocation2 + $0x22c] sm:$0xff]
      %v1414 = vld [vmem:[#allocation2 + $0x234] sm:$0xff]
      %v1415 = vld [vmem:[#allocation2 + $0x23c] sm:$0xf]
      %v1416 = vld [vmem:[%s1] sm:$0xff]
      %v1417 = vld [vmem:[%s1 + $0x8] sm:$0xff]
      %v1418 = vld [vmem:[%s1 + $0x10] sm:$0xff]
      %v1419 = vld [vmem:[%s1 + $0x18] sm:$0xff]
      %v1420 = vld [vmem:[%s1 + $0x20] sm:$0xff]
      %v1421 = vld [vmem:[%s1 + $0x28] sm:$0xff]
      %v1422 = vld [vmem:[%s1 + $0x30] sm:$0xff]
      %v1423 = vld [vmem:[%s1 + $0x38] sm:$0xff]
      %v1424 = vld [vmem:[%s1 + $0x40] sm:$0xff]
      %v1425 = vld [vmem:[%s1 + $0x48] sm:$0xff]
      %v1426 = vld [vmem:[%s1 + $0x50] sm:$0xff]
      %v1427 = vld [vmem:[%s1 + $0x58] sm:$0xff]
      %v1428 = vld [vmem:[%s1 + $0x60] sm:$0xff]
      %v1429 = vld [vmem:[%s1 + $0x68] sm:$0xff]
      %v1430 = vld [vmem:[%s1 + $0x70] sm:$0xff]
      %v1431 = vld [vmem:[%s1 + $0x78] sm:$0xff]
      %v1432 = vld [vmem:[%s1 + $0x80] sm:$0xff]
      %v1433 = vld [vmem:[%s1 + $0x88] sm:$0xff]
      %v1434 = vld [vmem:[%s1 + $0x90] sm:$0xff]
      %v1435 = vld [vmem:[%s1 + $0x98] sm:$0xff]
      %v1436 = vld [vmem:[%s1 + $0xa0] sm:$0xff]
      %v1437 = vld [vmem:[%s1 + $0xa8] sm:$0xff]
      %v1438 = vld [vmem:[%s1 + $0xb0] sm:$0xff]
      %v1439 = vld [vmem:[%s1 + $0xb8] sm:$0xff]
      %v1440 = vld [vmem:[%s1 + $0xc0] sm:$0xff]
      %v1441 = vld [vmem:[%s1 + $0xc8] sm:$0xff]
      %v1442 = vld [vmem:[%s1 + $0xd0] sm:$0xff]
      %v1443 = vld [vmem:[%s1 + $0xd8] sm:$0xff]
      %v1444 = vld [vmem:[%s1 + $0xe0] sm:$0xff]
      %v1445 = vld [vmem:[%s1 + $0xe8] sm:$0xff]
      %v1446 = vld [vmem:[%s1 + $0xf0] sm:$0xff]
      %v1447 = vld [vmem:[%s1 + $0xf8] sm:$0xff]
      %v1448 = vld [vmem:[%s1 + $0x100] sm:$0xff]
      %v1449 = vld [vmem:[%s1 + $0x108] sm:$0xff]
      %v1450 = vld [vmem:[%s1 + $0x110] sm:$0xff]
      %v1451 = vld [vmem:[%s1 + $0x118] sm:$0xff]
      %v1452 = vld [vmem:[%s1 + $0x120] sm:$0xff]
      %v1453 = vld [vmem:[%s1 + $0x128] sm:$0xff]
      %v1454 = vld [vmem:[%s1 + $0x130] sm:$0xff]
      %v1455 = vld [vmem:[%s1 + $0x138] sm:$0xff]
      %v1456 = vld [vmem:[%s1 + $0x140] sm:$0xff]
      %v1457 = vld [vmem:[%s1 + $0x148] sm:$0xff]
      %v1458 = vld [vmem:[%s1 + $0x150] sm:$0xff]
      %v1459 = vld [vmem:[%s1 + $0x158] sm:$0xff]
      %v1460 = vld [vmem:[%s1 + $0x160] sm:$0xff]
      %v1461 = vld [vmem:[%s1 + $0x168] sm:$0xff]
      %v1462 = vld [vmem:[%s1 + $0x170] sm:$0xff]
      %v1463 = vld [vmem:[%s1 + $0x178] sm:$0xff]
      %v1464 = vld [vmem:[%s1 + $0x180] sm:$0xff]
      %v1465 = vld [vmem:[%s1 + $0x188] sm:$0xff]
      %v1466 = vld [vmem:[%s1 + $0x190] sm:$0xff]
      %v1467 = vld [vmem:[%s1 + $0x198] sm:$0xff]
      %v1468 = vld [vmem:[%s1 + $0x1a0] sm:$0xff]
      %v1469 = vld [vmem:[%s1 + $0x1a8] sm:$0xff]
      %v1470 = vld [vmem:[%s1 + $0x1b0] sm:$0xff]
      %v1471 = vld [vmem:[%s1 + $0x1b8] sm:$0xff]
      %v1472 = vld [vmem:[%s1 + $0x1c0] sm:$0xff]
      %v1473 = vld [vmem:[%s1 + $0x1c8] sm:$0xff]
      %v1474 = vld [vmem:[%s1 + $0x1d0] sm:$0xff]
      %v1475 = vld [vmem:[%s1 + $0x1d8] sm:$0xff]
      %v1476 = vld [vmem:[%s1 + $0x1e0] sm:$0xff]
      %v1477 = vld [vmem:[%s1 + $0x1e8] sm:$0xff]
      %v1478 = vld [vmem:[%s1 + $0x1f0] sm:$0xff]
      %v1479 = vld [vmem:[%s1 + $0x1f8] sm:$0xff]
      %v1480 = vld [vmem:[%s1 + $0x200] sm:$0xff]
      %v1481 = vld [vmem:[%s1 + $0x208] sm:$0xff]
      %v1482 = vld [vmem:[%s1 + $0x210] sm:$0xff]
      %v1483 = vld [vmem:[%s1 + $0x218] sm:$0xff]
      %v1484 = vld [vmem:[%s1 + $0x220] sm:$0xff]
      %v1485 = vld [vmem:[%s1 + $0x228] sm:$0xff]
      %v1486 = vld [vmem:[%s1 + $0x230] sm:$0xff]
      %v1487 = vld [vmem:[%s1 + $0x238] sm:$0xff]
      %v1488 = vld [vmem:[%s1 + $0x240] sm:$0xff]
      %v1489 = vld [vmem:[%s1 + $0x248] sm:$0xff]
      %v1490 = vld [vmem:[%s1 + $0x250] sm:$0xff]
      %v1491 = vld [vmem:[%s1 + $0x258] sm:$0xff]
      %v1492 = vld [vmem:[%s1 + $0x260] sm:$0xff]
      %v1493 = vld [vmem:[%s1 + $0x268] sm:$0xff]
      %v1494 = vld [vmem:[%s1 + $0x270] sm:$0xff]
      %v1495 = vld [vmem:[%s1 + $0x278] sm:$0xff]
      %v1496 = vld [vmem:[%s1 + $0x280] sm:$0xff]
      %v1497 = vld [vmem:[%s1 + $0x288] sm:$0xff]
      %v1498 = vld [vmem:[%s1 + $0x290] sm:$0xff]
      %v1499 = vld [vmem:[%s1 + $0x298] sm:$0xff]
      %v1500 = vld [vmem:[%s1 + $0x2a0] sm:$0xff]
      %v1501 = vld [vmem:[%s1 + $0x2a8] sm:$0xff]
      %v1502 = vld [vmem:[%s1 + $0x2b0] sm:$0xff]
      %v1503 = vld [vmem:[%s1 + $0x2b8] sm:$0xff]
      %v1504 = vld [vmem:[%s1 + $0x2c0] sm:$0xff]
      %v1505 = vld [vmem:[%s1 + $0x2c8] sm:$0xff]
      %v1506 = vld [vmem:[%s1 + $0x2d0] sm:$0xff]
      %v1507 = vld [vmem:[%s1 + $0x2d8] sm:$0xff]
      %v1508 = vld [vmem:[%s1 + $0x2e0] sm:$0xff]
      %v1509 = vld [vmem:[%s1 + $0x2e8] sm:$0xff]
      %v1510 = vld [vmem:[%s1 + $0x2f0] sm:$0xff]
      %v1511 = vld [vmem:[%s1 + $0x2f8] sm:$0xff]
      %v1512 = vld [vmem:[%s1 + $0x300] sm:$0xff]
      %v1513 = vld [vmem:[%s1 + $0x308] sm:$0xff]
      %v1514 = vld [vmem:[%s1 + $0x310] sm:$0xff]
      %v1515 = vld [vmem:[%s1 + $0x318] sm:$0xff]
      %v1516 = vld [vmem:[%s1 + $0x320] sm:$0xff]
      %v1517 = vld [vmem:[%s1 + $0x328] sm:$0xff]
      %v1518 = vld [vmem:[%s1 + $0x330] sm:$0xff]
      %v1519 = vld [vmem:[%s1 + $0x338] sm:$0xff]
      %v1520 = vld [vmem:[%s1 + $0x340] sm:$0xff]
      %v1521 = vld [vmem:[%s1 + $0x348] sm:$0xff]
      %v1522 = vld [vmem:[%s1 + $0x350] sm:$0xff]
      %v1523 = vld [vmem:[%s1 + $0x358] sm:$0xff]
      %v1524 = vld [vmem:[%s1 + $0x360] sm:$0xff]
      %v1525 = vld [vmem:[%s1 + $0x368] sm:$0xff]
      %v1526 = vld [vmem:[%s1 + $0x370] sm:$0xff]
      %v1527 = vld [vmem:[%s1 + $0x378] sm:$0xff]
      %v1528 = vld [vmem:[%s1 + $0x380] sm:$0xff]
      %v1529 = vld [vmem:[%s1 + $0x388] sm:$0xff]
      %v1530 = vld [vmem:[%s1 + $0x390] sm:$0xff]
      %v1531 = vld [vmem:[%s1 + $0x398] sm:$0xff]
      %v1532 = vld [vmem:[%s1 + $0x3a0] sm:$0xff]
      %v1533 = vld [vmem:[%s1 + $0x3a8] sm:$0xff]
      %v1534 = vld [vmem:[%s1 + $0x3b0] sm:$0xff]
      %v1535 = vld [vmem:[%s1 + $0x3b8] sm:$0xff]
      %v1536 = vld [vmem:[%s1 + $0x3c0] sm:$0xff]
      %v1537 = vld [vmem:[%s1 + $0x3c8] sm:$0xff]
      %v1538 = vld [vmem:[%s1 + $0x3d0] sm:$0xff]
      %v1539 = vld [vmem:[%s1 + $0x3d8] sm:$0xff]
      %v1540 = vld [vmem:[%s1 + $0x3e0] sm:$0xff]
      %v1541 = vld [vmem:[%s1 + $0x3e8] sm:$0xff]
      %v1542 = vld [vmem:[%s1 + $0x3f0] sm:$0xff]
      %v1543 = vld [vmem:[%s1 + $0x3f8] sm:$0xff]
      %v1544 = vld [vmem:[%s1 + $0x400] sm:$0xff]
      %v1545 = vld [vmem:[%s1 + $0x408] sm:$0xff]
      %v1546 = vld [vmem:[%s1 + $0x410] sm:$0xff]
      %v1547 = vld [vmem:[%s1 + $0x418] sm:$0xff]
      %v1548 = vld [vmem:[%s1 + $0x420] sm:$0xff]
      %v1549 = vld [vmem:[%s1 + $0x428] sm:$0xff]
      %v1550 = vld [vmem:[%s1 + $0x430] sm:$0xff]
      %v1551 = vld [vmem:[%s1 + $0x438] sm:$0xff]
      %v1552 = vld [vmem:[%s1 + $0x440] sm:$0xff]
      %v1553 = vld [vmem:[%s1 + $0x448] sm:$0xff]
      %v1554 = vld [vmem:[%s1 + $0x450] sm:$0xff]
      %v1555 = vld [vmem:[%s1 + $0x458] sm:$0xff]
      %v1556 = vld [vmem:[%s1 + $0x460] sm:$0xff]
      %v1557 = vld [vmem:[%s1 + $0x468] sm:$0xff]
      %v1558 = vld [vmem:[%s1 + $0x470] sm:$0xff]
      %v1559 = vld [vmem:[%s1 + $0x478] sm:$0xff]
      %v1640 = vunpack.c.l.b16 %v1336
      %v1641 = vunpack.c.h.b16 %v1336
      %v1642 = vunpack.c.l.b16 %v1337
      %v1643 = vunpack.c.h.b16 %v1337
      %v1644 = vunpack.c.l.b16 %v1338
      %v1645 = vunpack.c.h.b16 %v1338
      %v1646 = vunpack.c.l.b16 %v1339
      %v1647 = vunpack.c.h.b16 %v1339
      %v1648 = vunpack.c.l.b16 %v1340
      %v1649 = vunpack.c.l.b16 %v1341
      %v1650 = vunpack.c.h.b16 %v1341
      %v1651 = vunpack.c.l.b16 %v1342
      %v1652 = vunpack.c.h.b16 %v1342
      %v1653 = vunpack.c.l.b16 %v1343
      %v1654 = vunpack.c.h.b16 %v1343
      %v1655 = vunpack.c.l.b16 %v1344
      %v1656 = vunpack.c.h.b16 %v1344
      %v1657 = vunpack.c.l.b16 %v1345
      %v1658 = vunpack.c.l.b16 %v1346
      %v1659 = vunpack.c.h.b16 %v1346
      %v1660 = vunpack.c.l.b16 %v1347
      %v1661 = vunpack.c.h.b16 %v1347
      %v1662 = vunpack.c.l.b16 %v1348
      %v1663 = vunpack.c.h.b16 %v1348
      %v1664 = vunpack.c.l.b16 %v1349
      %v1665 = vunpack.c.h.b16 %v1349
      %v1666 = vunpack.c.l.b16 %v1350
      %v1667 = vunpack.c.l.b16 %v1351
      %v1668 = vunpack.c.h.b16 %v1351
      %v1669 = vunpack.c.l.b16 %v1352
      %v1670 = vunpack.c.h.b16 %v1352
      %v1671 = vunpack.c.l.b16 %v1353
      %v1672 = vunpack.c.h.b16 %v1353
      %v1673 = vunpack.c.l.b16 %v1354
      %v1674 = vunpack.c.h.b16 %v1354
      %v1675 = vunpack.c.l.b16 %v1355
      %v1676 = vunpack.c.l.b16 %v1356
      %v1677 = vunpack.c.h.b16 %v1356
      %v1678 = vunpack.c.l.b16 %v1357
      %v1679 = vunpack.c.h.b16 %v1357
      %v1680 = vunpack.c.l.b16 %v1358
      %v1681 = vunpack.c.h.b16 %v1358
      %v1682 = vunpack.c.l.b16 %v1359
      %v1683 = vunpack.c.h.b16 %v1359
      %v1684 = vunpack.c.l.b16 %v1360
      %v1685 = vunpack.c.l.b16 %v1361
      %v1686 = vunpack.c.h.b16 %v1361
      %v1687 = vunpack.c.l.b16 %v1362
      %v1688 = vunpack.c.h.b16 %v1362
      %v1689 = vunpack.c.l.b16 %v1363
      %v1690 = vunpack.c.h.b16 %v1363
      %v1691 = vunpack.c.l.b16 %v1364
      %v1692 = vunpack.c.h.b16 %v1364
      %v1693 = vunpack.c.l.b16 %v1365
      %v1694 = vunpack.c.l.b16 %v1366
      %v1695 = vunpack.c.h.b16 %v1366
      %v1696 = vunpack.c.l.b16 %v1367
      %v1697 = vunpack.c.h.b16 %v1367
      %v1698 = vunpack.c.l.b16 %v1368
      %v1699 = vunpack.c.h.b16 %v1368
      %v1700 = vunpack.c.l.b16 %v1369
      %v1701 = vunpack.c.h.b16 %v1369
      %v1702 = vunpack.c.l.b16 %v1370
      %v1703 = vunpack.c.l.b16 %v1371
      %v1704 = vunpack.c.h.b16 %v1371
      %v1705 = vunpack.c.l.b16 %v1372
      %v1706 = vunpack.c.h.b16 %v1372
      %v1707 = vunpack.c.l.b16 %v1373
      %v1708 = vunpack.c.h.b16 %v1373
      %v1709 = vunpack.c.l.b16 %v1374
      %v1710 = vunpack.c.h.b16 %v1374
      %v1711 = vunpack.c.l.b16 %v1375
      %v1712 = vunpack.c.l.b16 %v1376
      %v1713 = vunpack.c.h.b16 %v1376
      %v1714 = vunpack.c.l.b16 %v1377
      %v1715 = vunpack.c.h.b16 %v1377
      %v1716 = vunpack.c.l.b16 %v1378
      %v1717 = vunpack.c.h.b16 %v1378
      %v1718 = vunpack.c.l.b16 %v1379
      %v1719 = vunpack.c.h.b16 %v1379
      %v1720 = vunpack.c.l.b16 %v1380
      %v1721 = vunpack.c.l.b16 %v1381
      %v1722 = vunpack.c.h.b16 %v1381
      %v1723 = vunpack.c.l.b16 %v1382
      %v1724 = vunpack.c.h.b16 %v1382
      %v1725 = vunpack.c.l.b16 %v1383
      %v1726 = vunpack.c.h.b16 %v1383
      %v1727 = vunpack.c.l.b16 %v1384
      %v1728 = vunpack.c.h.b16 %v1384
      %v1729 = vunpack.c.l.b16 %v1385
      %v1730 = vunpack.c.l.b16 %v1386
      %v1731 = vunpack.c.h.b16 %v1386
      %v1732 = vunpack.c.l.b16 %v1387
      %v1733 = vunpack.c.h.b16 %v1387
      %v1734 = vunpack.c.l.b16 %v1388
      %v1735 = vunpack.c.h.b16 %v1388
      %v1736 = vunpack.c.l.b16 %v1389
      %v1737 = vunpack.c.h.b16 %v1389
      %v1738 = vunpack.c.l.b16 %v1390
      %v1739 = vunpack.c.l.b16 %v1391
      %v1740 = vunpack.c.h.b16 %v1391
      %v1741 = vunpack.c.l.b16 %v1392
      %v1742 = vunpack.c.h.b16 %v1392
      %v1743 = vunpack.c.l.b16 %v1393
      %v1744 = vunpack.c.h.b16 %v1393
      %v1745 = vunpack.c.l.b16 %v1394
      %v1746 = vunpack.c.h.b16 %v1394
      %v1747 = vunpack.c.l.b16 %v1395
      %v1748 = vunpack.c.l.b16 %v1396
      %v1749 = vunpack.c.h.b16 %v1396
      %v1750 = vunpack.c.l.b16 %v1397
      %v1751 = vunpack.c.h.b16 %v1397
      %v1752 = vunpack.c.l.b16 %v1398
      %v1753 = vunpack.c.h.b16 %v1398
      %v1754 = vunpack.c.l.b16 %v1399
      %v1755 = vunpack.c.h.b16 %v1399
      %v1756 = vunpack.c.l.b16 %v1400
      %v1757 = vunpack.c.l.b16 %v1401
      %v1758 = vunpack.c.h.b16 %v1401
      %v1759 = vunpack.c.l.b16 %v1402
      %v1760 = vunpack.c.h.b16 %v1402
      %v1761 = vunpack.c.l.b16 %v1403
      %v1762 = vunpack.c.h.b16 %v1403
      %v1763 = vunpack.c.l.b16 %v1404
      %v1764 = vunpack.c.h.b16 %v1404
      %v1765 = vunpack.c.l.b16 %v1405
      %v1766 = vunpack.c.l.b16 %v1406
      %v1767 = vunpack.c.h.b16 %v1406
      %v1768 = vunpack.c.l.b16 %v1407
      %v1769 = vunpack.c.h.b16 %v1407
      %v1770 = vunpack.c.l.b16 %v1408
      %v1771 = vunpack.c.h.b16 %v1408
      %v1772 = vunpack.c.l.b16 %v1409
      %v1773 = vunpack.c.h.b16 %v1409
      %v1774 = vunpack.c.l.b16 %v1410
      %v1775 = vunpack.c.l.b16 %v1411
      %v1776 = vunpack.c.h.b16 %v1411
      %v1777 = vunpack.c.l.b16 %v1412
      %v1778 = vunpack.c.h.b16 %v1412
      %v1779 = vunpack.c.l.b16 %v1413
      %v1780 = vunpack.c.h.b16 %v1413
      %v1781 = vunpack.c.l.b16 %v1414
      %v1782 = vunpack.c.h.b16 %v1414
      %v1783 = vunpack.c.l.b16 %v1415
      %v1784 = vpack.c.b16 %v1649, %v1640
      %v1785 = vpack.c.b16 %v1650, %v1641
      %v1786 = vpack.c.b16 %v1651, %v1642
      %v1787 = vpack.c.b16 %v1652, %v1643
      %v1788 = vpack.c.b16 %v1653, %v1644
      %v1789 = vpack.c.b16 %v1654, %v1645
      %v1790 = vpack.c.b16 %v1655, %v1646
      %v1791 = vpack.c.b16 %v1656, %v1647
      %v1792 = vpack.c.b16 %v1657, %v1648
      %v1793 = vpack.c.b16 %v1667, %v1658
      %v1794 = vpack.c.b16 %v1668, %v1659
      %v1795 = vpack.c.b16 %v1669, %v1660
      %v1796 = vpack.c.b16 %v1670, %v1661
      %v1797 = vpack.c.b16 %v1671, %v1662
      %v1798 = vpack.c.b16 %v1672, %v1663
      %v1799 = vpack.c.b16 %v1673, %v1664
      %v1800 = vpack.c.b16 %v1674, %v1665
      %v1801 = vpack.c.b16 %v1675, %v1666
      %v1802 = vpack.c.b16 %v1685, %v1676
      %v1803 = vpack.c.b16 %v1686, %v1677
      %v1804 = vpack.c.b16 %v1687, %v1678
      %v1805 = vpack.c.b16 %v1688, %v1679
      %v1806 = vpack.c.b16 %v1689, %v1680
      %v1807 = vpack.c.b16 %v1690, %v1681
      %v1808 = vpack.c.b16 %v1691, %v1682
      %v1809 = vpack.c.b16 %v1692, %v1683
      %v1810 = vpack.c.b16 %v1693, %v1684
      %v1811 = vpack.c.b16 %v1703, %v1694
      %v1812 = vpack.c.b16 %v1704, %v1695
      %v1813 = vpack.c.b16 %v1705, %v1696
      %v1814 = vpack.c.b16 %v1706, %v1697
      %v1815 = vpack.c.b16 %v1707, %v1698
      %v1816 = vpack.c.b16 %v1708, %v1699
      %v1817 = vpack.c.b16 %v1709, %v1700
      %v1818 = vpack.c.b16 %v1710, %v1701
      %v1819 = vpack.c.b16 %v1711, %v1702
      %v1820 = vpack.c.b16 %v1721, %v1712
      %v1821 = vpack.c.b16 %v1722, %v1713
      %v1822 = vpack.c.b16 %v1723, %v1714
      %v1823 = vpack.c.b16 %v1724, %v1715
      %v1824 = vpack.c.b16 %v1725, %v1716
      %v1825 = vpack.c.b16 %v1726, %v1717
      %v1826 = vpack.c.b16 %v1727, %v1718
      %v1827 = vpack.c.b16 %v1728, %v1719
      %v1828 = vpack.c.b16 %v1729, %v1720
      %v1829 = vpack.c.b16 %v1739, %v1730
      %v1830 = vpack.c.b16 %v1740, %v1731
      %v1831 = vpack.c.b16 %v1741, %v1732
      %v1832 = vpack.c.b16 %v1742, %v1733
      %v1833 = vpack.c.b16 %v1743, %v1734
      %v1834 = vpack.c.b16 %v1744, %v1735
      %v1835 = vpack.c.b16 %v1745, %v1736
      %v1836 = vpack.c.b16 %v1746, %v1737
      %v1837 = vpack.c.b16 %v1747, %v1738
      %v1838 = vpack.c.b16 %v1757, %v1748
      %v1839 = vpack.c.b16 %v1758, %v1749
      %v1840 = vpack.c.b16 %v1759, %v1750
      %v1841 = vpack.c.b16 %v1760, %v1751
      %v1842 = vpack.c.b16 %v1761, %v1752
      %v1843 = vpack.c.b16 %v1762, %v1753
      %v1844 = vpack.c.b16 %v1763, %v1754
      %v1845 = vpack.c.b16 %v1764, %v1755
      %v1846 = vpack.c.b16 %v1765, %v1756
      %v1847 = vpack.c.b16 %v1775, %v1766
      %v1848 = vpack.c.b16 %v1776, %v1767
      %v1849 = vpack.c.b16 %v1777, %v1768
      %v1850 = vpack.c.b16 %v1778, %v1769
      %v1851 = vpack.c.b16 %v1779, %v1770
      %v1852 = vpack.c.b16 %v1780, %v1771
      %v1853 = vpack.c.b16 %v1781, %v1772
      %v1854 = vpack.c.b16 %v1782, %v1773
      %v1855 = vpack.c.b16 %v1783, %v1774
      %v2072 = vunpack.c.l.b16 %v1416
      %v2073 = vunpack.c.h.b16 %v1416
      %v2074 = vunpack.c.l.b16 %v1417
      %v2075 = vunpack.c.h.b16 %v1417
      %v2076 = vunpack.c.l.b16 %v1418
      %v2077 = vunpack.c.h.b16 %v1418
      %v2078 = vunpack.c.l.b16 %v1419
      %v2079 = vunpack.c.h.b16 %v1419
      %v2080 = vunpack.c.l.b16 %v1420
      %v2081 = vunpack.c.h.b16 %v1420
      %v2082 = vunpack.c.l.b16 %v1421
      %v2083 = vunpack.c.h.b16 %v1421
      %v2084 = vunpack.c.l.b16 %v1422
      %v2085 = vunpack.c.h.b16 %v1422
      %v2086 = vunpack.c.l.b16 %v1423
      %v2087 = vunpack.c.h.b16 %v1423
      %v2088 = vunpack.c.l.b16 %v1424
      %v2089 = vunpack.c.h.b16 %v1424
      %v2090 = vunpack.c.l.b16 %v1425
      %v2091 = vunpack.c.h.b16 %v1425
      %v2092 = vunpack.c.l.b16 %v1426
      %v2093 = vunpack.c.h.b16 %v1426
      %v2094 = vunpack.c.l.b16 %v1427
      %v2095 = vunpack.c.h.b16 %v1427
      %v2096 = vunpack.c.l.b16 %v1428
      %v2097 = vunpack.c.h.b16 %v1428
      %v2098 = vunpack.c.l.b16 %v1429
      %v2099 = vunpack.c.h.b16 %v1429
      %v2100 = vunpack.c.l.b16 %v1430
      %v2101 = vunpack.c.h.b16 %v1430
      %v2102 = vunpack.c.l.b16 %v1431
      %v2103 = vunpack.c.h.b16 %v1431
      %v2104 = vunpack.c.l.b16 %v1432
      %v2105 = vunpack.c.h.b16 %v1432
      %v2106 = vunpack.c.l.b16 %v1433
      %v2107 = vunpack.c.h.b16 %v1433
      %v2108 = vunpack.c.l.b16 %v1434
      %v2109 = vunpack.c.h.b16 %v1434
      %v2110 = vunpack.c.l.b16 %v1435
      %v2111 = vunpack.c.h.b16 %v1435
      %v2112 = vunpack.c.l.b16 %v1436
      %v2113 = vunpack.c.h.b16 %v1436
      %v2114 = vunpack.c.l.b16 %v1437
      %v2115 = vunpack.c.h.b16 %v1437
      %v2116 = vunpack.c.l.b16 %v1438
      %v2117 = vunpack.c.h.b16 %v1438
      %v2118 = vunpack.c.l.b16 %v1439
      %v2119 = vunpack.c.h.b16 %v1439
      %v2120 = vunpack.c.l.b16 %v1440
      %v2121 = vunpack.c.h.b16 %v1440
      %v2122 = vunpack.c.l.b16 %v1441
      %v2123 = vunpack.c.h.b16 %v1441
      %v2124 = vunpack.c.l.b16 %v1442
      %v2125 = vunpack.c.h.b16 %v1442
      %v2126 = vunpack.c.l.b16 %v1443
      %v2127 = vunpack.c.h.b16 %v1443
      %v2128 = vunpack.c.l.b16 %v1444
      %v2129 = vunpack.c.h.b16 %v1444
      %v2130 = vunpack.c.l.b16 %v1445
      %v2131 = vunpack.c.h.b16 %v1445
      %v2132 = vunpack.c.l.b16 %v1446
      %v2133 = vunpack.c.h.b16 %v1446
      %v2134 = vunpack.c.l.b16 %v1447
      %v2135 = vunpack.c.h.b16 %v1447
      %v2136 = vunpack.c.l.b16 %v1448
      %v2137 = vunpack.c.h.b16 %v1448
      %v2138 = vunpack.c.l.b16 %v1449
      %v2139 = vunpack.c.h.b16 %v1449
      %v2140 = vunpack.c.l.b16 %v1450
      %v2141 = vunpack.c.h.b16 %v1450
      %v2142 = vunpack.c.l.b16 %v1451
      %v2143 = vunpack.c.h.b16 %v1451
      %v2144 = vunpack.c.l.b16 %v1452
      %v2145 = vunpack.c.h.b16 %v1452
      %v2146 = vunpack.c.l.b16 %v1453
      %v2147 = vunpack.c.h.b16 %v1453
      %v2148 = vunpack.c.l.b16 %v1454
      %v2149 = vunpack.c.h.b16 %v1454
      %v2150 = vunpack.c.l.b16 %v1455
      %v2151 = vunpack.c.h.b16 %v1455
      %v2152 = vunpack.c.l.b16 %v1456
      %v2153 = vunpack.c.h.b16 %v1456
      %v2154 = vunpack.c.l.b16 %v1457
      %v2155 = vunpack.c.h.b16 %v1457
      %v2156 = vunpack.c.l.b16 %v1458
      %v2157 = vunpack.c.h.b16 %v1458
      %v2158 = vunpack.c.l.b16 %v1459
      %v2159 = vunpack.c.h.b16 %v1459
      %v2160 = vunpack.c.l.b16 %v1460
      %v2161 = vunpack.c.h.b16 %v1460
      %v2162 = vunpack.c.l.b16 %v1461
      %v2163 = vunpack.c.h.b16 %v1461
      %v2164 = vunpack.c.l.b16 %v1462
      %v2165 = vunpack.c.h.b16 %v1462
      %v2166 = vunpack.c.l.b16 %v1463
      %v2167 = vunpack.c.h.b16 %v1463
      %v2168 = vunpack.c.l.b16 %v1464
      %v2169 = vunpack.c.h.b16 %v1464
      %v2170 = vunpack.c.l.b16 %v1465
      %v2171 = vunpack.c.h.b16 %v1465
      %v2172 = vunpack.c.l.b16 %v1466
      %v2173 = vunpack.c.h.b16 %v1466
      %v2174 = vunpack.c.l.b16 %v1467
      %v2175 = vunpack.c.h.b16 %v1467
      %v2176 = vunpack.c.l.b16 %v1468
      %v2177 = vunpack.c.h.b16 %v1468
      %v2178 = vunpack.c.l.b16 %v1469
      %v2179 = vunpack.c.h.b16 %v1469
      %v2180 = vunpack.c.l.b16 %v1470
      %v2181 = vunpack.c.h.b16 %v1470
      %v2182 = vunpack.c.l.b16 %v1471
      %v2183 = vunpack.c.h.b16 %v1471
      %v2184 = vunpack.c.l.b16 %v1472
      %v2185 = vunpack.c.h.b16 %v1472
      %v2186 = vunpack.c.l.b16 %v1473
      %v2187 = vunpack.c.h.b16 %v1473
      %v2188 = vunpack.c.l.b16 %v1474
      %v2189 = vunpack.c.h.b16 %v1474
      %v2190 = vunpack.c.l.b16 %v1475
      %v2191 = vunpack.c.h.b16 %v1475
      %v2192 = vunpack.c.l.b16 %v1476
      %v2193 = vunpack.c.h.b16 %v1476
      %v2194 = vunpack.c.l.b16 %v1477
      %v2195 = vunpack.c.h.b16 %v1477
      %v2196 = vunpack.c.l.b16 %v1478
      %v2197 = vunpack.c.h.b16 %v1478
      %v2198 = vunpack.c.l.b16 %v1479
      %v2199 = vunpack.c.h.b16 %v1479
      %v2200 = vunpack.c.l.b16 %v1480
      %v2201 = vunpack.c.h.b16 %v1480
      %v2202 = vunpack.c.l.b16 %v1481
      %v2203 = vunpack.c.h.b16 %v1481
      %v2204 = vunpack.c.l.b16 %v1482
      %v2205 = vunpack.c.h.b16 %v1482
      %v2206 = vunpack.c.l.b16 %v1483
      %v2207 = vunpack.c.h.b16 %v1483
      %v2208 = vunpack.c.l.b16 %v1484
      %v2209 = vunpack.c.h.b16 %v1484
      %v2210 = vunpack.c.l.b16 %v1485
      %v2211 = vunpack.c.h.b16 %v1485
      %v2212 = vunpack.c.l.b16 %v1486
      %v2213 = vunpack.c.h.b16 %v1486
      %v2214 = vunpack.c.l.b16 %v1487
      %v2215 = vunpack.c.h.b16 %v1487
      %v2216 = vunpack.c.l.b16 %v1488
      %v2217 = vunpack.c.h.b16 %v1488
      %v2218 = vunpack.c.l.b16 %v1489
      %v2219 = vunpack.c.h.b16 %v1489
      %v2220 = vunpack.c.l.b16 %v1490
      %v2221 = vunpack.c.h.b16 %v1490
      %v2222 = vunpack.c.l.b16 %v1491
      %v2223 = vunpack.c.h.b16 %v1491
      %v2224 = vunpack.c.l.b16 %v1492
      %v2225 = vunpack.c.h.b16 %v1492
      %v2226 = vunpack.c.l.b16 %v1493
      %v2227 = vunpack.c.h.b16 %v1493
      %v2228 = vunpack.c.l.b16 %v1494
      %v2229 = vunpack.c.h.b16 %v1494
      %v2230 = vunpack.c.l.b16 %v1495
      %v2231 = vunpack.c.h.b16 %v1495
      %v2232 = vunpack.c.l.b16 %v1496
      %v2233 = vunpack.c.h.b16 %v1496
      %v2234 = vunpack.c.l.b16 %v1497
      %v2235 = vunpack.c.h.b16 %v1497
      %v2236 = vunpack.c.l.b16 %v1498
      %v2237 = vunpack.c.h.b16 %v1498
      %v2238 = vunpack.c.l.b16 %v1499
      %v2239 = vunpack.c.h.b16 %v1499
      %v2240 = vunpack.c.l.b16 %v1500
      %v2241 = vunpack.c.h.b16 %v1500
      %v2242 = vunpack.c.l.b16 %v1501
      %v2243 = vunpack.c.h.b16 %v1501
      %v2244 = vunpack.c.l.b16 %v1502
      %v2245 = vunpack.c.h.b16 %v1502
      %v2246 = vunpack.c.l.b16 %v1503
      %v2247 = vunpack.c.h.b16 %v1503
      %v2248 = vunpack.c.l.b16 %v1504
      %v2249 = vunpack.c.h.b16 %v1504
      %v2250 = vunpack.c.l.b16 %v1505
      %v2251 = vunpack.c.h.b16 %v1505
      %v2252 = vunpack.c.l.b16 %v1506
      %v2253 = vunpack.c.h.b16 %v1506
      %v2254 = vunpack.c.l.b16 %v1507
      %v2255 = vunpack.c.h.b16 %v1507
      %v2256 = vunpack.c.l.b16 %v1508
      %v2257 = vunpack.c.h.b16 %v1508
      %v2258 = vunpack.c.l.b16 %v1509
      %v2259 = vunpack.c.h.b16 %v1509
      %v2260 = vunpack.c.l.b16 %v1510
      %v2261 = vunpack.c.h.b16 %v1510
      %v2262 = vunpack.c.l.b16 %v1511
      %v2263 = vunpack.c.h.b16 %v1511
      %v2264 = vunpack.c.l.b16 %v1512
      %v2265 = vunpack.c.h.b16 %v1512
      %v2266 = vunpack.c.l.b16 %v1513
      %v2267 = vunpack.c.h.b16 %v1513
      %v2268 = vunpack.c.l.b16 %v1514
      %v2269 = vunpack.c.h.b16 %v1514
      %v2270 = vunpack.c.l.b16 %v1515
      %v2271 = vunpack.c.h.b16 %v1515
      %v2272 = vunpack.c.l.b16 %v1516
      %v2273 = vunpack.c.h.b16 %v1516
      %v2274 = vunpack.c.l.b16 %v1517
      %v2275 = vunpack.c.h.b16 %v1517
      %v2276 = vunpack.c.l.b16 %v1518
      %v2277 = vunpack.c.h.b16 %v1518
      %v2278 = vunpack.c.l.b16 %v1519
      %v2279 = vunpack.c.h.b16 %v1519
      %v2280 = vunpack.c.l.b16 %v1520
      %v2281 = vunpack.c.h.b16 %v1520
      %v2282 = vunpack.c.l.b16 %v1521
      %v2283 = vunpack.c.h.b16 %v1521
      %v2284 = vunpack.c.l.b16 %v1522
      %v2285 = vunpack.c.h.b16 %v1522
      %v2286 = vunpack.c.l.b16 %v1523
      %v2287 = vunpack.c.h.b16 %v1523
      %v2288 = vunpack.c.l.b16 %v1524
      %v2289 = vunpack.c.h.b16 %v1524
      %v2290 = vunpack.c.l.b16 %v1525
      %v2291 = vunpack.c.h.b16 %v1525
      %v2292 = vunpack.c.l.b16 %v1526
      %v2293 = vunpack.c.h.b16 %v1526
      %v2294 = vunpack.c.l.b16 %v1527
      %v2295 = vunpack.c.h.b16 %v1527
      %v2296 = vunpack.c.l.b16 %v1528
      %v2297 = vunpack.c.h.b16 %v1528
      %v2298 = vunpack.c.l.b16 %v1529
      %v2299 = vunpack.c.h.b16 %v1529
      %v2300 = vunpack.c.l.b16 %v1530
      %v2301 = vunpack.c.h.b16 %v1530
      %v2302 = vunpack.c.l.b16 %v1531
      %v2303 = vunpack.c.h.b16 %v1531
      %v2304 = vunpack.c.l.b16 %v1532
      %v2305 = vunpack.c.h.b16 %v1532
      %v2306 = vunpack.c.l.b16 %v1533
      %v2307 = vunpack.c.h.b16 %v1533
      %v2308 = vunpack.c.l.b16 %v1534
      %v2309 = vunpack.c.h.b16 %v1534
      %v2310 = vunpack.c.l.b16 %v1535
      %v2311 = vunpack.c.h.b16 %v1535
      %v2312 = vunpack.c.l.b16 %v1536
      %v2313 = vunpack.c.h.b16 %v1536
      %v2314 = vunpack.c.l.b16 %v1537
      %v2315 = vunpack.c.h.b16 %v1537
      %v2316 = vunpack.c.l.b16 %v1538
      %v2317 = vunpack.c.h.b16 %v1538
      %v2318 = vunpack.c.l.b16 %v1539
      %v2319 = vunpack.c.h.b16 %v1539
      %v2320 = vunpack.c.l.b16 %v1540
      %v2321 = vunpack.c.h.b16 %v1540
      %v2322 = vunpack.c.l.b16 %v1541
      %v2323 = vunpack.c.h.b16 %v1541
      %v2324 = vunpack.c.l.b16 %v1542
      %v2325 = vunpack.c.h.b16 %v1542
      %v2326 = vunpack.c.l.b16 %v1543
      %v2327 = vunpack.c.h.b16 %v1543
      %v2328 = vunpack.c.l.b16 %v1544
      %v2329 = vunpack.c.h.b16 %v1544
      %v2330 = vunpack.c.l.b16 %v1545
      %v2331 = vunpack.c.h.b16 %v1545
      %v2332 = vunpack.c.l.b16 %v1546
      %v2333 = vunpack.c.h.b16 %v1546
      %v2334 = vunpack.c.l.b16 %v1547
      %v2335 = vunpack.c.h.b16 %v1547
      %v2336 = vunpack.c.l.b16 %v1548
      %v2337 = vunpack.c.h.b16 %v1548
      %v2338 = vunpack.c.l.b16 %v1549
      %v2339 = vunpack.c.h.b16 %v1549
      %v2340 = vunpack.c.l.b16 %v1550
      %v2341 = vunpack.c.h.b16 %v1550
      %v2342 = vunpack.c.l.b16 %v1551
      %v2343 = vunpack.c.h.b16 %v1551
      %v2344 = vunpack.c.l.b16 %v1552
      %v2345 = vunpack.c.h.b16 %v1552
      %v2346 = vunpack.c.l.b16 %v1553
      %v2347 = vunpack.c.h.b16 %v1553
      %v2348 = vunpack.c.l.b16 %v1554
      %v2349 = vunpack.c.h.b16 %v1554
      %v2350 = vunpack.c.l.b16 %v1555
      %v2351 = vunpack.c.h.b16 %v1555
      %v2352 = vunpack.c.l.b16 %v1556
      %v2353 = vunpack.c.h.b16 %v1556
      %v2354 = vunpack.c.l.b16 %v1557
      %v2355 = vunpack.c.h.b16 %v1557
      %v2356 = vunpack.c.l.b16 %v1558
      %v2357 = vunpack.c.h.b16 %v1558
      %v2358 = vunpack.c.l.b16 %v1559
      %v2359 = vunpack.c.h.b16 %v1559
      %v2360 = vpack.c.b16 %v2074, %v2072
      %v2361 = vpack.c.b16 %v2075, %v2073
      %v2362 = vpack.c.b16 %v2078, %v2076
      %v2363 = vpack.c.b16 %v2079, %v2077
      %v2364 = vpack.c.b16 %v2082, %v2080
      %v2365 = vpack.c.b16 %v2083, %v2081
      %v2366 = vpack.c.b16 %v2086, %v2084
      %v2367 = vpack.c.b16 %v2087, %v2085
      %v2368 = vpack.c.b16 %v2090, %v2088
      %v2369 = vpack.c.b16 %v2091, %v2089
      %v2370 = vpack.c.b16 %v2094, %v2092
      %v2371 = vpack.c.b16 %v2095, %v2093
      %v2372 = vpack.c.b16 %v2098, %v2096
      %v2373 = vpack.c.b16 %v2099, %v2097
      %v2374 = vpack.c.b16 %v2102, %v2100
      %v2375 = vpack.c.b16 %v2103, %v2101
      %v2376 = vpack.c.b16 %v2106, %v2104
      %v2377 = vpack.c.b16 %v2107, %v2105
      %v2378 = vpack.c.b16 %v2110, %v2108
      %v2379 = vpack.c.b16 %v2111, %v2109
      %v2380 = vpack.c.b16 %v2114, %v2112
      %v2381 = vpack.c.b16 %v2115, %v2113
      %v2382 = vpack.c.b16 %v2118, %v2116
      %v2383 = vpack.c.b16 %v2119, %v2117
      %v2384 = vpack.c.b16 %v2122, %v2120
      %v2385 = vpack.c.b16 %v2123, %v2121
      %v2386 = vpack.c.b16 %v2126, %v2124
      %v2387 = vpack.c.b16 %v2127, %v2125
      %v2388 = vpack.c.b16 %v2130, %v2128
      %v2389 = vpack.c.b16 %v2131, %v2129
      %v2390 = vpack.c.b16 %v2134, %v2132
      %v2391 = vpack.c.b16 %v2135, %v2133
      %v2392 = vpack.c.b16 %v2138, %v2136
      %v2393 = vpack.c.b16 %v2139, %v2137
      %v2394 = vpack.c.b16 %v2142, %v2140
      %v2395 = vpack.c.b16 %v2143, %v2141
      %v2396 = vpack.c.b16 %v2146, %v2144
      %v2397 = vpack.c.b16 %v2147, %v2145
      %v2398 = vpack.c.b16 %v2150, %v2148
      %v2399 = vpack.c.b16 %v2151, %v2149
      %v2400 = vpack.c.b16 %v2154, %v2152
      %v2401 = vpack.c.b16 %v2155, %v2153
      %v2402 = vpack.c.b16 %v2158, %v2156
      %v2403 = vpack.c.b16 %v2159, %v2157
      %v2404 = vpack.c.b16 %v2162, %v2160
      %v2405 = vpack.c.b16 %v2163, %v2161
      %v2406 = vpack.c.b16 %v2166, %v2164
      %v2407 = vpack.c.b16 %v2167, %v2165
      %v2408 = vpack.c.b16 %v2170, %v2168
      %v2409 = vpack.c.b16 %v2171, %v2169
      %v2410 = vpack.c.b16 %v2174, %v2172
      %v2411 = vpack.c.b16 %v2175, %v2173
      %v2412 = vpack.c.b16 %v2178, %v2176
      %v2413 = vpack.c.b16 %v2179, %v2177
      %v2414 = vpack.c.b16 %v2182, %v2180
      %v2415 = vpack.c.b16 %v2183, %v2181
      %v2416 = vpack.c.b16 %v2186, %v2184
      %v2417 = vpack.c.b16 %v2187, %v2185
      %v2418 = vpack.c.b16 %v2190, %v2188
      %v2419 = vpack.c.b16 %v2191, %v2189
      %v2420 = vpack.c.b16 %v2194, %v2192
      %v2421 = vpack.c.b16 %v2195, %v2193
      %v2422 = vpack.c.b16 %v2198, %v2196
      %v2423 = vpack.c.b16 %v2199, %v2197
      %v2424 = vpack.c.b16 %v2202, %v2200
      %v2425 = vpack.c.b16 %v2203, %v2201
      %v2426 = vpack.c.b16 %v2206, %v2204
      %v2427 = vpack.c.b16 %v2207, %v2205
      %v2428 = vpack.c.b16 %v2210, %v2208
      %v2429 = vpack.c.b16 %v2211, %v2209
      %v2430 = vpack.c.b16 %v2214, %v2212
      %v2431 = vpack.c.b16 %v2215, %v2213
      %v2432 = vpack.c.b16 %v2218, %v2216
      %v2433 = vpack.c.b16 %v2219, %v2217
      %v2434 = vpack.c.b16 %v2222, %v2220
      %v2435 = vpack.c.b16 %v2223, %v2221
      %v2436 = vpack.c.b16 %v2226, %v2224
      %v2437 = vpack.c.b16 %v2227, %v2225
      %v2438 = vpack.c.b16 %v2230, %v2228
      %v2439 = vpack.c.b16 %v2231, %v2229
      %v2440 = vpack.c.b16 %v2234, %v2232
      %v2441 = vpack.c.b16 %v2235, %v2233
      %v2442 = vpack.c.b16 %v2238, %v2236
      %v2443 = vpack.c.b16 %v2239, %v2237
      %v2444 = vpack.c.b16 %v2242, %v2240
      %v2445 = vpack.c.b16 %v2243, %v2241
      %v2446 = vpack.c.b16 %v2246, %v2244
      %v2447 = vpack.c.b16 %v2247, %v2245
      %v2448 = vpack.c.b16 %v2250, %v2248
      %v2449 = vpack.c.b16 %v2251, %v2249
      %v2450 = vpack.c.b16 %v2254, %v2252
      %v2451 = vpack.c.b16 %v2255, %v2253
      %v2452 = vpack.c.b16 %v2258, %v2256
      %v2453 = vpack.c.b16 %v2259, %v2257
      %v2454 = vpack.c.b16 %v2262, %v2260
      %v2455 = vpack.c.b16 %v2263, %v2261
      %v2456 = vpack.c.b16 %v2266, %v2264
      %v2457 = vpack.c.b16 %v2267, %v2265
      %v2458 = vpack.c.b16 %v2270, %v2268
      %v2459 = vpack.c.b16 %v2271, %v2269
      %v2460 = vpack.c.b16 %v2274, %v2272
      %v2461 = vpack.c.b16 %v2275, %v2273
      %v2462 = vpack.c.b16 %v2278, %v2276
      %v2463 = vpack.c.b16 %v2279, %v2277
      %v2464 = vpack.c.b16 %v2282, %v2280
      %v2465 = vpack.c.b16 %v2283, %v2281
      %v2466 = vpack.c.b16 %v2286, %v2284
      %v2467 = vpack.c.b16 %v2287, %v2285
      %v2468 = vpack.c.b16 %v2290, %v2288
      %v2469 = vpack.c.b16 %v2291, %v2289
      %v2470 = vpack.c.b16 %v2294, %v2292
      %v2471 = vpack.c.b16 %v2295, %v2293
      %v2472 = vpack.c.b16 %v2298, %v2296
      %v2473 = vpack.c.b16 %v2299, %v2297
      %v2474 = vpack.c.b16 %v2302, %v2300
      %v2475 = vpack.c.b16 %v2303, %v2301
      %v2476 = vpack.c.b16 %v2306, %v2304
      %v2477 = vpack.c.b16 %v2307, %v2305
      %v2478 = vpack.c.b16 %v2310, %v2308
      %v2479 = vpack.c.b16 %v2311, %v2309
      %v2480 = vpack.c.b16 %v2314, %v2312
      %v2481 = vpack.c.b16 %v2315, %v2313
      %v2482 = vpack.c.b16 %v2318, %v2316
      %v2483 = vpack.c.b16 %v2319, %v2317
      %v2484 = vpack.c.b16 %v2322, %v2320
      %v2485 = vpack.c.b16 %v2323, %v2321
      %v2486 = vpack.c.b16 %v2326, %v2324
      %v2487 = vpack.c.b16 %v2327, %v2325
      %v2488 = vpack.c.b16 %v2330, %v2328
      %v2489 = vpack.c.b16 %v2331, %v2329
      %v2490 = vpack.c.b16 %v2334, %v2332
      %v2491 = vpack.c.b16 %v2335, %v2333
      %v2492 = vpack.c.b16 %v2338, %v2336
      %v2493 = vpack.c.b16 %v2339, %v2337
      %v2494 = vpack.c.b16 %v2342, %v2340
      %v2495 = vpack.c.b16 %v2343, %v2341
      %v2496 = vpack.c.b16 %v2346, %v2344
      %v2497 = vpack.c.b16 %v2347, %v2345
      %v2498 = vpack.c.b16 %v2350, %v2348
      %v2499 = vpack.c.b16 %v2351, %v2349
      %v2500 = vpack.c.b16 %v2354, %v2352
      %v2501 = vpack.c.b16 %v2355, %v2353
      %v2502 = vpack.c.b16 %v2358, %v2356
      %v2503 = vpack.c.b16 %v2359, %v2357
      %2648 = vmatpush.bf16.msra.mxu0 %v2374
      %2649 = vmatpush.bf16.msra.mxu0 %v2372
      %2650 = vmatpush.bf16.msra.mxu0 %v2370
      %2651 = vmatpush.bf16.msra.mxu0 %v2368
      %2652 = vmatpush.bf16.msra.mxu0 %v2366
      %2653 = vmatpush.bf16.msra.mxu0 %v2364
      %2654 = vmatpush.bf16.msra.mxu0 %v2362
      %2655 = vmatpush.bf16.msra.mxu0 %v2360
      %2656 = vmatmul.bf16.gmra.mxu0 %v1784
      %v2657 = vpop.f32.mrf.mxu0
      %v2658 = vadd.f32 0.0, %v2657
      %v2659 = vpop.f32.mrf.mxu0
      %v2660 = vadd.f32 0.0, %v2659
      %2661 = vmatmul.bf16.gmra.mxu0 %v1793
      %v2662 = vpop.f32.mrf.mxu0
      %v2663 = vadd.f32 0.0, %v2662
      %v2664 = vpop.f32.mrf.mxu0
      %v2665 = vadd.f32 0.0, %v2664
      %2666 = vmatmul.bf16.gmra.mxu0 %v1802
      %v2667 = vpop.f32.mrf.mxu0
      %v2668 = vadd.f32 0.0, %v2667
      %v2669 = vpop.f32.mrf.mxu0
      %v2670 = vadd.f32 0.0, %v2669
      %2671 = vmatmul.bf16.gmra.mxu0 %v1811
      %v2672 = vpop.f32.mrf.mxu0
      %v2673 = vadd.f32 0.0, %v2672
      %v2674 = vpop.f32.mrf.mxu0
      %v2675 = vadd.f32 0.0, %v2674
      %2676 = vmatmul.bf16.gmra.mxu0 %v1820
      %v2677 = vpop.f32.mrf.mxu0
      %v2678 = vadd.f32 0.0, %v2677
      %v2679 = vpop.f32.mrf.mxu0
      %v2680 = vadd.f32 0.0, %v2679
      %2681 = vmatmul.bf16.gmra.mxu0 %v1829
      %v2682 = vpop.f32.mrf.mxu0
      %v2683 = vadd.f32 0.0, %v2682
      %v2684 = vpop.f32.mrf.mxu0
      %v2685 = vadd.f32 0.0, %v2684
      %2686 = vmatmul.bf16.gmra.mxu0 %v1838
      %v2687 = vpop.f32.mrf.mxu0
      %v2688 = vadd.f32 0.0, %v2687
      %v2689 = vpop.f32.mrf.mxu0
      %v2690 = vadd.f32 0.0, %v2689
      %2691 = vmatmul.bf16.gmra.mxu0 %v1847
      %v2692 = vpop.f32.mrf.mxu0
      %v2693 = vadd.f32 0.0, %v2692
      %v2694 = vpop.f32.mrf.mxu0
      %v2695 = vadd.f32 0.0, %v2694
      %2696 = vdwg.mxu0
      %2697 = vmatpush.bf16.msra.mxu0 %v2390
      %2698 = vmatpush.bf16.msra.mxu0 %v2388
      %2699 = vmatpush.bf16.msra.mxu0 %v2386
      %2700 = vmatpush.bf16.msra.mxu0 %v2384
      %2701 = vmatpush.bf16.msra.mxu0 %v2382
      %2702 = vmatpush.bf16.msra.mxu0 %v2380
      %2703 = vmatpush.bf16.msra.mxu0 %v2378
      %2704 = vmatpush.bf16.msra.mxu0 %v2376
      %2705 = vmatmul.bf16.gmra.mxu0 %v1785
      %v2706 = vpop.f32.mrf.mxu0
      %v2707 = vadd.f32 %v2658, %v2706
      %v2708 = vpop.f32.mrf.mxu0
      %v2709 = vadd.f32 %v2660, %v2708
      %2710 = vmatmul.bf16.gmra.mxu0 %v1794
      %v2711 = vpop.f32.mrf.mxu0
      %v2712 = vadd.f32 %v2663, %v2711
      %v2713 = vpop.f32.mrf.mxu0
      %v2714 = vadd.f32 %v2665, %v2713
      %2715 = vmatmul.bf16.gmra.mxu0 %v1803
      %v2716 = vpop.f32.mrf.mxu0
      %v2717 = vadd.f32 %v2668, %v2716
      %v2718 = vpop.f32.mrf.mxu0
      %v2719 = vadd.f32 %v2670, %v2718
      %2720 = vmatmul.bf16.gmra.mxu0 %v1812
      %v2721 = vpop.f32.mrf.mxu0
      %v2722 = vadd.f32 %v2673, %v2721
      %v2723 = vpop.f32.mrf.mxu0
      %v2724 = vadd.f32 %v2675, %v2723
      %2725 = vmatmul.bf16.gmra.mxu0 %v1821
      %v2726 = vpop.f32.mrf.mxu0
      %v2727 = vadd.f32 %v2678, %v2726
      %v2728 = vpop.f32.mrf.mxu0
      %v2729 = vadd.f32 %v2680, %v2728
      %2730 = vmatmul.bf16.gmra.mxu0 %v1830
      %v2731 = vpop.f32.mrf.mxu0
      %v2732 = vadd.f32 %v2683, %v2731
      %v2733 = vpop.f32.mrf.mxu0
      %v2734 = vadd.f32 %v2685, %v2733
      %2735 = vmatmul.bf16.gmra.mxu0 %v1839
      %v2736 = vpop.f32.mrf.mxu0
      %v2737 = vadd.f32 %v2688, %v2736
      %v2738 = vpop.f32.mrf.mxu0
      %v2739 = vadd.f32 %v2690, %v2738
      %2740 = vmatmul.bf16.gmra.mxu0 %v1848
      %v2741 = vpop.f32.mrf.mxu0
      %v2742 = vadd.f32 %v2693, %v2741
      %v2743 = vpop.f32.mrf.mxu0
      %v2744 = vadd.f32 %v2695, %v2743
      %2745 = vdwg.mxu0
      %2746 = vmatpush.bf16.msra.mxu0 %v2406
      %2747 = vmatpush.bf16.msra.mxu0 %v2404
      %2748 = vmatpush.bf16.msra.mxu0 %v2402
      %2749 = vmatpush.bf16.msra.mxu0 %v2400
      %2750 = vmatpush.bf16.msra.mxu0 %v2398
      %2751 = vmatpush.bf16.msra.mxu0 %v2396
      %2752 = vmatpush.bf16.msra.mxu0 %v2394
      %2753 = vmatpush.bf16.msra.mxu0 %v2392
      %2754 = vmatmul.bf16.gmra.mxu0 %v1786
      %v2755 = vpop.f32.mrf.mxu0
      %v2756 = vadd.f32 %v2707, %v2755
      %v2757 = vpop.f32.mrf.mxu0
      %v2758 = vadd.f32 %v2709, %v2757
      %2759 = vmatmul.bf16.gmra.mxu0 %v1795
      %v2760 = vpop.f32.mrf.mxu0
      %v2761 = vadd.f32 %v2712, %v2760
      %v2762 = vpop.f32.mrf.mxu0
      %v2763 = vadd.f32 %v2714, %v2762
      %2764 = vmatmul.bf16.gmra.mxu0 %v1804
      %v2765 = vpop.f32.mrf.mxu0
      %v2766 = vadd.f32 %v2717, %v2765
      %v2767 = vpop.f32.mrf.mxu0
      %v2768 = vadd.f32 %v2719, %v2767
      %2769 = vmatmul.bf16.gmra.mxu0 %v1813
      %v2770 = vpop.f32.mrf.mxu0
      %v2771 = vadd.f32 %v2722, %v2770
      %v2772 = vpop.f32.mrf.mxu0
      %v2773 = vadd.f32 %v2724, %v2772
      %2774 = vmatmul.bf16.gmra.mxu0 %v1822
      %v2775 = vpop.f32.mrf.mxu0
      %v2776 = vadd.f32 %v2727, %v2775
      %v2777 = vpop.f32.mrf.mxu0
      %v2778 = vadd.f32 %v2729, %v2777
      %2779 = vmatmul.bf16.gmra.mxu0 %v1831
      %v2780 = vpop.f32.mrf.mxu0
      %v2781 = vadd.f32 %v2732, %v2780
      %v2782 = vpop.f32.mrf.mxu0
      %v2783 = vadd.f32 %v2734, %v2782
      %2784 = vmatmul.bf16.gmra.mxu0 %v1840
      %v2785 = vpop.f32.mrf.mxu0
      %v2786 = vadd.f32 %v2737, %v2785
      %v2787 = vpop.f32.mrf.mxu0
      %v2788 = vadd.f32 %v2739, %v2787
      %2789 = vmatmul.bf16.gmra.mxu0 %v1849
      %v2790 = vpop.f32.mrf.mxu0
      %v2791 = vadd.f32 %v2742, %v2790
      %v2792 = vpop.f32.mrf.mxu0
      %v2793 = vadd.f32 %v2744, %v2792
      %2794 = vdwg.mxu0
      %2795 = vmatpush.bf16.msra.mxu0 %v2422
      %2796 = vmatpush.bf16.msra.mxu0 %v2420
      %2797 = vmatpush.bf16.msra.mxu0 %v2418
      %2798 = vmatpush.bf16.msra.mxu0 %v2416
      %2799 = vmatpush.bf16.msra.mxu0 %v2414
      %2800 = vmatpush.bf16.msra.mxu0 %v2412
      %2801 = vmatpush.bf16.msra.mxu0 %v2410
      %2802 = vmatpush.bf16.msra.mxu0 %v2408
      %2803 = vmatmul.bf16.gmra.mxu0 %v1787
      %v2804 = vpop.f32.mrf.mxu0
      %v2805 = vadd.f32 %v2756, %v2804
      %v2806 = vpop.f32.mrf.mxu0
      %v2807 = vadd.f32 %v2758, %v2806
      %2808 = vmatmul.bf16.gmra.mxu0 %v1796
      %v2809 = vpop.f32.mrf.mxu0
      %v2810 = vadd.f32 %v2761, %v2809
      %v2811 = vpop.f32.mrf.mxu0
      %v2812 = vadd.f32 %v2763, %v2811
      %2813 = vmatmul.bf16.gmra.mxu0 %v1805
      %v2814 = vpop.f32.mrf.mxu0
      %v2815 = vadd.f32 %v2766, %v2814
      %v2816 = vpop.f32.mrf.mxu0
      %v2817 = vadd.f32 %v2768, %v2816
      %2818 = vmatmul.bf16.gmra.mxu0 %v1814
      %v2819 = vpop.f32.mrf.mxu0
      %v2820 = vadd.f32 %v2771, %v2819
      %v2821 = vpop.f32.mrf.mxu0
      %v2822 = vadd.f32 %v2773, %v2821
      %2823 = vmatmul.bf16.gmra.mxu0 %v1823
      %v2824 = vpop.f32.mrf.mxu0
      %v2825 = vadd.f32 %v2776, %v2824
      %v2826 = vpop.f32.mrf.mxu0
      %v2827 = vadd.f32 %v2778, %v2826
      %2828 = vmatmul.bf16.gmra.mxu0 %v1832
      %v2829 = vpop.f32.mrf.mxu0
      %v2830 = vadd.f32 %v2781, %v2829
      %v2831 = vpop.f32.mrf.mxu0
      %v2832 = vadd.f32 %v2783, %v2831
      %2833 = vmatmul.bf16.gmra.mxu0 %v1841
      %v2834 = vpop.f32.mrf.mxu0
      %v2835 = vadd.f32 %v2786, %v2834
      %v2836 = vpop.f32.mrf.mxu0
      %v2837 = vadd.f32 %v2788, %v2836
      %2838 = vmatmul.bf16.gmra.mxu0 %v1850
      %v2839 = vpop.f32.mrf.mxu0
      %v2840 = vadd.f32 %v2791, %v2839
      %v2841 = vpop.f32.mrf.mxu0
      %v2842 = vadd.f32 %v2793, %v2841
      %2843 = vdwg.mxu0
      %2844 = vmatpush.bf16.msra.mxu0 %v2438
      %2845 = vmatpush.bf16.msra.mxu0 %v2436
      %2846 = vmatpush.bf16.msra.mxu0 %v2434
      %2847 = vmatpush.bf16.msra.mxu0 %v2432
      %2848 = vmatpush.bf16.msra.mxu0 %v2430
      %2849 = vmatpush.bf16.msra.mxu0 %v2428
      %2850 = vmatpush.bf16.msra.mxu0 %v2426
      %2851 = vmatpush.bf16.msra.mxu0 %v2424
      %2852 = vmatmul.bf16.gmra.mxu0 %v1788
      %v2853 = vpop.f32.mrf.mxu0
      %v2854 = vadd.f32 %v2805, %v2853
      %v2855 = vpop.f32.mrf.mxu0
      %v2856 = vadd.f32 %v2807, %v2855
      %2857 = vmatmul.bf16.gmra.mxu0 %v1797
      %v2858 = vpop.f32.mrf.mxu0
      %v2859 = vadd.f32 %v2810, %v2858
      %v2860 = vpop.f32.mrf.mxu0
      %v2861 = vadd.f32 %v2812, %v2860
      %2862 = vmatmul.bf16.gmra.mxu0 %v1806
      %v2863 = vpop.f32.mrf.mxu0
      %v2864 = vadd.f32 %v2815, %v2863
      %v2865 = vpop.f32.mrf.mxu0
      %v2866 = vadd.f32 %v2817, %v2865
      %2867 = vmatmul.bf16.gmra.mxu0 %v1815
      %v2868 = vpop.f32.mrf.mxu0
      %v2869 = vadd.f32 %v2820, %v2868
      %v2870 = vpop.f32.mrf.mxu0
      %v2871 = vadd.f32 %v2822, %v2870
      %2872 = vmatmul.bf16.gmra.mxu0 %v1824
      %v2873 = vpop.f32.mrf.mxu0
      %v2874 = vadd.f32 %v2825, %v2873
      %v2875 = vpop.f32.mrf.mxu0
      %v2876 = vadd.f32 %v2827, %v2875
      %2877 = vmatmul.bf16.gmra.mxu0 %v1833
      %v2878 = vpop.f32.mrf.mxu0
      %v2879 = vadd.f32 %v2830, %v2878
      %v2880 = vpop.f32.mrf.mxu0
      %v2881 = vadd.f32 %v2832, %v2880
      %2882 = vmatmul.bf16.gmra.mxu0 %v1842
      %v2883 = vpop.f32.mrf.mxu0
      %v2884 = vadd.f32 %v2835, %v2883
      %v2885 = vpop.f32.mrf.mxu0
      %v2886 = vadd.f32 %v2837, %v2885
      %2887 = vmatmul.bf16.gmra.mxu0 %v1851
      %v2888 = vpop.f32.mrf.mxu0
      %v2889 = vadd.f32 %v2840, %v2888
      %v2890 = vpop.f32.mrf.mxu0
      %v2891 = vadd.f32 %v2842, %v2890
      %2892 = vdwg.mxu0
      %2893 = vmatpush.bf16.msra.mxu0 %v2454
      %2894 = vmatpush.bf16.msra.mxu0 %v2452
      %2895 = vmatpush.bf16.msra.mxu0 %v2450
      %2896 = vmatpush.bf16.msra.mxu0 %v2448
      %2897 = vmatpush.bf16.msra.mxu0 %v2446
      %2898 = vmatpush.bf16.msra.mxu0 %v2444
      %2899 = vmatpush.bf16.msra.mxu0 %v2442
      %2900 = vmatpush.bf16.msra.mxu0 %v2440
      %2901 = vmatmul.bf16.gmra.mxu0 %v1789
      %v2902 = vpop.f32.mrf.mxu0
      %v2903 = vadd.f32 %v2854, %v2902
      %v2904 = vpop.f32.mrf.mxu0
      %v2905 = vadd.f32 %v2856, %v2904
      %2906 = vmatmul.bf16.gmra.mxu0 %v1798
      %v2907 = vpop.f32.mrf.mxu0
      %v2908 = vadd.f32 %v2859, %v2907
      %v2909 = vpop.f32.mrf.mxu0
      %v2910 = vadd.f32 %v2861, %v2909
      %2911 = vmatmul.bf16.gmra.mxu0 %v1807
      %v2912 = vpop.f32.mrf.mxu0
      %v2913 = vadd.f32 %v2864, %v2912
      %v2914 = vpop.f32.mrf.mxu0
      %v2915 = vadd.f32 %v2866, %v2914
      %2916 = vmatmul.bf16.gmra.mxu0 %v1816
      %v2917 = vpop.f32.mrf.mxu0
      %v2918 = vadd.f32 %v2869, %v2917
      %v2919 = vpop.f32.mrf.mxu0
      %v2920 = vadd.f32 %v2871, %v2919
      %2921 = vmatmul.bf16.gmra.mxu0 %v1825
      %v2922 = vpop.f32.mrf.mxu0
      %v2923 = vadd.f32 %v2874, %v2922
      %v2924 = vpop.f32.mrf.mxu0
      %v2925 = vadd.f32 %v2876, %v2924
      %2926 = vmatmul.bf16.gmra.mxu0 %v1834
      %v2927 = vpop.f32.mrf.mxu0
      %v2928 = vadd.f32 %v2879, %v2927
      %v2929 = vpop.f32.mrf.mxu0
      %v2930 = vadd.f32 %v2881, %v2929
      %2931 = vmatmul.bf16.gmra.mxu0 %v1843
      %v2932 = vpop.f32.mrf.mxu0
      %v2933 = vadd.f32 %v2884, %v2932
      %v2934 = vpop.f32.mrf.mxu0
      %v2935 = vadd.f32 %v2886, %v2934
      %2936 = vmatmul.bf16.gmra.mxu0 %v1852
      %v2937 = vpop.f32.mrf.mxu0
      %v2938 = vadd.f32 %v2889, %v2937
      %v2939 = vpop.f32.mrf.mxu0
      %v2940 = vadd.f32 %v2891, %v2939
      %2941 = vdwg.mxu0
      %2942 = vmatpush.bf16.msra.mxu0 %v2470
      %2943 = vmatpush.bf16.msra.mxu0 %v2468
      %2944 = vmatpush.bf16.msra.mxu0 %v2466
      %2945 = vmatpush.bf16.msra.mxu0 %v2464
      %2946 = vmatpush.bf16.msra.mxu0 %v2462
      %2947 = vmatpush.bf16.msra.mxu0 %v2460
      %2948 = vmatpush.bf16.msra.mxu0 %v2458
      %2949 = vmatpush.bf16.msra.mxu0 %v2456
      %2950 = vmatmul.bf16.gmra.mxu0 %v1790
      %v2951 = vpop.f32.mrf.mxu0
      %v2952 = vadd.f32 %v2903, %v2951
      %v2953 = vpop.f32.mrf.mxu0
      %v2954 = vadd.f32 %v2905, %v2953
      %2955 = vmatmul.bf16.gmra.mxu0 %v1799
      %v2956 = vpop.f32.mrf.mxu0
      %v2957 = vadd.f32 %v2908, %v2956
      %v2958 = vpop.f32.mrf.mxu0
      %v2959 = vadd.f32 %v2910, %v2958
      %2960 = vmatmul.bf16.gmra.mxu0 %v1808
      %v2961 = vpop.f32.mrf.mxu0
      %v2962 = vadd.f32 %v2913, %v2961
      %v2963 = vpop.f32.mrf.mxu0
      %v2964 = vadd.f32 %v2915, %v2963
      %2965 = vmatmul.bf16.gmra.mxu0 %v1817
      %v2966 = vpop.f32.mrf.mxu0
      %v2967 = vadd.f32 %v2918, %v2966
      %v2968 = vpop.f32.mrf.mxu0
      %v2969 = vadd.f32 %v2920, %v2968
      %2970 = vmatmul.bf16.gmra.mxu0 %v1826
      %v2971 = vpop.f32.mrf.mxu0
      %v2972 = vadd.f32 %v2923, %v2971
      %v2973 = vpop.f32.mrf.mxu0
      %v2974 = vadd.f32 %v2925, %v2973
      %2975 = vmatmul.bf16.gmra.mxu0 %v1835
      %v2976 = vpop.f32.mrf.mxu0
      %v2977 = vadd.f32 %v2928, %v2976
      %v2978 = vpop.f32.mrf.mxu0
      %v2979 = vadd.f32 %v2930, %v2978
      %2980 = vmatmul.bf16.gmra.mxu0 %v1844
      %v2981 = vpop.f32.mrf.mxu0
      %v2982 = vadd.f32 %v2933, %v2981
      %v2983 = vpop.f32.mrf.mxu0
      %v2984 = vadd.f32 %v2935, %v2983
      %2985 = vmatmul.bf16.gmra.mxu0 %v1853
      %v2986 = vpop.f32.mrf.mxu0
      %v2987 = vadd.f32 %v2938, %v2986
      %v2988 = vpop.f32.mrf.mxu0
      %v2989 = vadd.f32 %v2940, %v2988
      %2990 = vdwg.mxu0
      %2991 = vmatpush.bf16.msra.mxu0 %v2486
      %2992 = vmatpush.bf16.msra.mxu0 %v2484
      %2993 = vmatpush.bf16.msra.mxu0 %v2482
      %2994 = vmatpush.bf16.msra.mxu0 %v2480
      %2995 = vmatpush.bf16.msra.mxu0 %v2478
      %2996 = vmatpush.bf16.msra.mxu0 %v2476
      %2997 = vmatpush.bf16.msra.mxu0 %v2474
      %2998 = vmatpush.bf16.msra.mxu0 %v2472
      %2999 = vmatmul.bf16.gmra.mxu0 %v1791
      %v3000 = vpop.f32.mrf.mxu0
      %v3001 = vadd.f32 %v2952, %v3000
      %v3002 = vpop.f32.mrf.mxu0
      %v3003 = vadd.f32 %v2954, %v3002
      %3004 = vmatmul.bf16.gmra.mxu0 %v1800
      %v3005 = vpop.f32.mrf.mxu0
      %v3006 = vadd.f32 %v2957, %v3005
      %v3007 = vpop.f32.mrf.mxu0
      %v3008 = vadd.f32 %v2959, %v3007
      %3009 = vmatmul.bf16.gmra.mxu0 %v1809
      %v3010 = vpop.f32.mrf.mxu0
      %v3011 = vadd.f32 %v2962, %v3010
      %v3012 = vpop.f32.mrf.mxu0
      %v3013 = vadd.f32 %v2964, %v3012
      %3014 = vmatmul.bf16.gmra.mxu0 %v1818
      %v3015 = vpop.f32.mrf.mxu0
      %v3016 = vadd.f32 %v2967, %v3015
      %v3017 = vpop.f32.mrf.mxu0
      %v3018 = vadd.f32 %v2969, %v3017
      %3019 = vmatmul.bf16.gmra.mxu0 %v1827
      %v3020 = vpop.f32.mrf.mxu0
      %v3021 = vadd.f32 %v2972, %v3020
      %v3022 = vpop.f32.mrf.mxu0
      %v3023 = vadd.f32 %v2974, %v3022
      %3024 = vmatmul.bf16.gmra.mxu0 %v1836
      %v3025 = vpop.f32.mrf.mxu0
      %v3026 = vadd.f32 %v2977, %v3025
      %v3027 = vpop.f32.mrf.mxu0
      %v3028 = vadd.f32 %v2979, %v3027
      %3029 = vmatmul.bf16.gmra.mxu0 %v1845
      %v3030 = vpop.f32.mrf.mxu0
      %v3031 = vadd.f32 %v2982, %v3030
      %v3032 = vpop.f32.mrf.mxu0
      %v3033 = vadd.f32 %v2984, %v3032
      %3034 = vmatmul.bf16.gmra.mxu0 %v1854
      %v3035 = vpop.f32.mrf.mxu0
      %v3036 = vadd.f32 %v2987, %v3035
      %v3037 = vpop.f32.mrf.mxu0
      %v3038 = vadd.f32 %v2989, %v3037
      %3039 = vdwg.mxu0
      %3040 = vmatpush.bf16.msra.mxu0 %v2502
      %3041 = vmatpush.bf16.msra.mxu0 %v2500
      %3042 = vmatpush.bf16.msra.mxu0 %v2498
      %3043 = vmatpush.bf16.msra.mxu0 %v2496
      %3044 = vmatpush.bf16.msra.mxu0 %v2494
      %3045 = vmatpush.bf16.msra.mxu0 %v2492
      %3046 = vmatpush.bf16.msra.mxu0 %v2490
      %3047 = vmatpush.bf16.msra.mxu0 %v2488
      %3048 = vmatmul.bf16.gmra.mxu0 %v1792
      %v3049 = vpop.f32.mrf.mxu0
      %v3050 = vadd.f32 %v3001, %v3049
      %v3051 = vpop.f32.mrf.mxu0
      %v3052 = vadd.f32 %v3003, %v3051
      %3053 = vmatmul.bf16.gmra.mxu0 %v1801
      %v3054 = vpop.f32.mrf.mxu0
      %v3055 = vadd.f32 %v3006, %v3054
      %v3056 = vpop.f32.mrf.mxu0
      %v3057 = vadd.f32 %v3008, %v3056
      %3058 = vmatmul.bf16.gmra.mxu0 %v1810
      %v3059 = vpop.f32.mrf.mxu0
      %v3060 = vadd.f32 %v3011, %v3059
      %v3061 = vpop.f32.mrf.mxu0
      %v3062 = vadd.f32 %v3013, %v3061
      %3063 = vmatmul.bf16.gmra.mxu0 %v1819
      %v3064 = vpop.f32.mrf.mxu0
      %v3065 = vadd.f32 %v3016, %v3064
      %v3066 = vpop.f32.mrf.mxu0
      %v3067 = vadd.f32 %v3018, %v3066
      %3068 = vmatmul.bf16.gmra.mxu0 %v1828
      %v3069 = vpop.f32.mrf.mxu0
      %v3070 = vadd.f32 %v3021, %v3069
      %v3071 = vpop.f32.mrf.mxu0
      %v3072 = vadd.f32 %v3023, %v3071
      %3073 = vmatmul.bf16.gmra.mxu0 %v1837
      %v3074 = vpop.f32.mrf.mxu0
      %v3075 = vadd.f32 %v3026, %v3074
      %v3076 = vpop.f32.mrf.mxu0
      %v3077 = vadd.f32 %v3028, %v3076
      %3078 = vmatmul.bf16.gmra.mxu0 %v1846
      %v3079 = vpop.f32.mrf.mxu0
      %v3080 = vadd.f32 %v3031, %v3079
      %v3081 = vpop.f32.mrf.mxu0
      %v3082 = vadd.f32 %v3033, %v3081
      %3083 = vmatmul.bf16.gmra.mxu0 %v1855
      %v3084 = vpop.f32.mrf.mxu0
      %v3085 = vadd.f32 %v3036, %v3084
      %v3086 = vpop.f32.mrf.mxu0
      %v3087 = vadd.f32 %v3038, %v3086
      %3088 = vdwg.mxu0
      %3089 = vmatpush.bf16.msra.mxu0 %v2375
      %3090 = vmatpush.bf16.msra.mxu0 %v2373
      %3091 = vmatpush.bf16.msra.mxu0 %v2371
      %3092 = vmatpush.bf16.msra.mxu0 %v2369
      %3093 = vmatpush.bf16.msra.mxu0 %v2367
      %3094 = vmatpush.bf16.msra.mxu0 %v2365
      %3095 = vmatpush.bf16.msra.mxu0 %v2363
      %3096 = vmatpush.bf16.msra.mxu0 %v2361
      %3097 = vmatmul.bf16.gmra.mxu0 %v1784
      %v3098 = vpop.f32.mrf.mxu0
      %v3099 = vadd.f32 0.0, %v3098
      %v3100 = vpop.f32.mrf.mxu0
      %v3101 = vadd.f32 0.0, %v3100
      %3102 = vmatmul.bf16.gmra.mxu0 %v1793
      %v3103 = vpop.f32.mrf.mxu0
      %v3104 = vadd.f32 0.0, %v3103
      %v3105 = vpop.f32.mrf.mxu0
      %v3106 = vadd.f32 0.0, %v3105
      %3107 = vmatmul.bf16.gmra.mxu0 %v1802
      %v3108 = vpop.f32.mrf.mxu0
      %v3109 = vadd.f32 0.0, %v3108
      %v3110 = vpop.f32.mrf.mxu0
      %v3111 = vadd.f32 0.0, %v3110
      %3112 = vmatmul.bf16.gmra.mxu0 %v1811
      %v3113 = vpop.f32.mrf.mxu0
      %v3114 = vadd.f32 0.0, %v3113
      %v3115 = vpop.f32.mrf.mxu0
      %v3116 = vadd.f32 0.0, %v3115
      %3117 = vmatmul.bf16.gmra.mxu0 %v1820
      %v3118 = vpop.f32.mrf.mxu0
      %v3119 = vadd.f32 0.0, %v3118
      %v3120 = vpop.f32.mrf.mxu0
      %v3121 = vadd.f32 0.0, %v3120
      %3122 = vmatmul.bf16.gmra.mxu0 %v1829
      %v3123 = vpop.f32.mrf.mxu0
      %v3124 = vadd.f32 0.0, %v3123
      %v3125 = vpop.f32.mrf.mxu0
      %v3126 = vadd.f32 0.0, %v3125
      %3127 = vmatmul.bf16.gmra.mxu0 %v1838
      %v3128 = vpop.f32.mrf.mxu0
      %v3129 = vadd.f32 0.0, %v3128
      %v3130 = vpop.f32.mrf.mxu0
      %v3131 = vadd.f32 0.0, %v3130
      %3132 = vmatmul.bf16.gmra.mxu0 %v1847
      %v3133 = vpop.f32.mrf.mxu0
      %v3134 = vadd.f32 0.0, %v3133
      %v3135 = vpop.f32.mrf.mxu0
      %v3136 = vadd.f32 0.0, %v3135
      %3137 = vdwg.mxu0
      %3138 = vmatpush.bf16.msra.mxu0 %v2391
      %3139 = vmatpush.bf16.msra.mxu0 %v2389
      %3140 = vmatpush.bf16.msra.mxu0 %v2387
      %3141 = vmatpush.bf16.msra.mxu0 %v2385
      %3142 = vmatpush.bf16.msra.mxu0 %v2383
      %3143 = vmatpush.bf16.msra.mxu0 %v2381
      %3144 = vmatpush.bf16.msra.mxu0 %v2379
      %3145 = vmatpush.bf16.msra.mxu0 %v2377
      %3146 = vmatmul.bf16.gmra.mxu0 %v1785
      %v3147 = vpop.f32.mrf.mxu0
      %v3148 = vadd.f32 %v3099, %v3147
      %v3149 = vpop.f32.mrf.mxu0
      %v3150 = vadd.f32 %v3101, %v3149
      %3151 = vmatmul.bf16.gmra.mxu0 %v1794
      %v3152 = vpop.f32.mrf.mxu0
      %v3153 = vadd.f32 %v3104, %v3152
      %v3154 = vpop.f32.mrf.mxu0
      %v3155 = vadd.f32 %v3106, %v3154
      %3156 = vmatmul.bf16.gmra.mxu0 %v1803
      %v3157 = vpop.f32.mrf.mxu0
      %v3158 = vadd.f32 %v3109, %v3157
      %v3159 = vpop.f32.mrf.mxu0
      %v3160 = vadd.f32 %v3111, %v3159
      %3161 = vmatmul.bf16.gmra.mxu0 %v1812
      %v3162 = vpop.f32.mrf.mxu0
      %v3163 = vadd.f32 %v3114, %v3162
      %v3164 = vpop.f32.mrf.mxu0
      %v3165 = vadd.f32 %v3116, %v3164
      %3166 = vmatmul.bf16.gmra.mxu0 %v1821
      %v3167 = vpop.f32.mrf.mxu0
      %v3168 = vadd.f32 %v3119, %v3167
      %v3169 = vpop.f32.mrf.mxu0
      %v3170 = vadd.f32 %v3121, %v3169
      %3171 = vmatmul.bf16.gmra.mxu0 %v1830
      %v3172 = vpop.f32.mrf.mxu0
      %v3173 = vadd.f32 %v3124, %v3172
      %v3174 = vpop.f32.mrf.mxu0
      %v3175 = vadd.f32 %v3126, %v3174
      %3176 = vmatmul.bf16.gmra.mxu0 %v1839
      %v3177 = vpop.f32.mrf.mxu0
      %v3178 = vadd.f32 %v3129, %v3177
      %v3179 = vpop.f32.mrf.mxu0
      %v3180 = vadd.f32 %v3131, %v3179
      %3181 = vmatmul.bf16.gmra.mxu0 %v1848
      %v3182 = vpop.f32.mrf.mxu0
      %v3183 = vadd.f32 %v3134, %v3182
      %v3184 = vpop.f32.mrf.mxu0
      %v3185 = vadd.f32 %v3136, %v3184
      %3186 = vdwg.mxu0
      %3187 = vmatpush.bf16.msra.mxu0 %v2407
      %3188 = vmatpush.bf16.msra.mxu0 %v2405
      %3189 = vmatpush.bf16.msra.mxu0 %v2403
      %3190 = vmatpush.bf16.msra.mxu0 %v2401
      %3191 = vmatpush.bf16.msra.mxu0 %v2399
      %3192 = vmatpush.bf16.msra.mxu0 %v2397
      %3193 = vmatpush.bf16.msra.mxu0 %v2395
      %3194 = vmatpush.bf16.msra.mxu0 %v2393
      %3195 = vmatmul.bf16.gmra.mxu0 %v1786
      %v3196 = vpop.f32.mrf.mxu0
      %v3197 = vadd.f32 %v3148, %v3196
      %v3198 = vpop.f32.mrf.mxu0
      %v3199 = vadd.f32 %v3150, %v3198
      %3200 = vmatmul.bf16.gmra.mxu0 %v1795
      %v3201 = vpop.f32.mrf.mxu0
      %v3202 = vadd.f32 %v3153, %v3201
      %v3203 = vpop.f32.mrf.mxu0
      %v3204 = vadd.f32 %v3155, %v3203
      %3205 = vmatmul.bf16.gmra.mxu0 %v1804
      %v3206 = vpop.f32.mrf.mxu0
      %v3207 = vadd.f32 %v3158, %v3206
      %v3208 = vpop.f32.mrf.mxu0
      %v3209 = vadd.f32 %v3160, %v3208
      %3210 = vmatmul.bf16.gmra.mxu0 %v1813
      %v3211 = vpop.f32.mrf.mxu0
      %v3212 = vadd.f32 %v3163, %v3211
      %v3213 = vpop.f32.mrf.mxu0
      %v3214 = vadd.f32 %v3165, %v3213
      %3215 = vmatmul.bf16.gmra.mxu0 %v1822
      %v3216 = vpop.f32.mrf.mxu0
      %v3217 = vadd.f32 %v3168, %v3216
      %v3218 = vpop.f32.mrf.mxu0
      %v3219 = vadd.f32 %v3170, %v3218
      %3220 = vmatmul.bf16.gmra.mxu0 %v1831
      %v3221 = vpop.f32.mrf.mxu0
      %v3222 = vadd.f32 %v3173, %v3221
      %v3223 = vpop.f32.mrf.mxu0
      %v3224 = vadd.f32 %v3175, %v3223
      %3225 = vmatmul.bf16.gmra.mxu0 %v1840
      %v3226 = vpop.f32.mrf.mxu0
      %v3227 = vadd.f32 %v3178, %v3226
      %v3228 = vpop.f32.mrf.mxu0
      %v3229 = vadd.f32 %v3180, %v3228
      %3230 = vmatmul.bf16.gmra.mxu0 %v1849
      %v3231 = vpop.f32.mrf.mxu0
      %v3232 = vadd.f32 %v3183, %v3231
      %v3233 = vpop.f32.mrf.mxu0
      %v3234 = vadd.f32 %v3185, %v3233
      %3235 = vdwg.mxu0
      %3236 = vmatpush.bf16.msra.mxu0 %v2423
      %3237 = vmatpush.bf16.msra.mxu0 %v2421
      %3238 = vmatpush.bf16.msra.mxu0 %v2419
      %3239 = vmatpush.bf16.msra.mxu0 %v2417
      %3240 = vmatpush.bf16.msra.mxu0 %v2415
      %3241 = vmatpush.bf16.msra.mxu0 %v2413
      %3242 = vmatpush.bf16.msra.mxu0 %v2411
      %3243 = vmatpush.bf16.msra.mxu0 %v2409
      %3244 = vmatmul.bf16.gmra.mxu0 %v1787
      %v3245 = vpop.f32.mrf.mxu0
      %v3246 = vadd.f32 %v3197, %v3245
      %v3247 = vpop.f32.mrf.mxu0
      %v3248 = vadd.f32 %v3199, %v3247
      %3249 = vmatmul.bf16.gmra.mxu0 %v1796
      %v3250 = vpop.f32.mrf.mxu0
      %v3251 = vadd.f32 %v3202, %v3250
      %v3252 = vpop.f32.mrf.mxu0
      %v3253 = vadd.f32 %v3204, %v3252
      %3254 = vmatmul.bf16.gmra.mxu0 %v1805
      %v3255 = vpop.f32.mrf.mxu0
      %v3256 = vadd.f32 %v3207, %v3255
      %v3257 = vpop.f32.mrf.mxu0
      %v3258 = vadd.f32 %v3209, %v3257
      %3259 = vmatmul.bf16.gmra.mxu0 %v1814
      %v3260 = vpop.f32.mrf.mxu0
      %v3261 = vadd.f32 %v3212, %v3260
      %v3262 = vpop.f32.mrf.mxu0
      %v3263 = vadd.f32 %v3214, %v3262
      %3264 = vmatmul.bf16.gmra.mxu0 %v1823
      %v3265 = vpop.f32.mrf.mxu0
      %v3266 = vadd.f32 %v3217, %v3265
      %v3267 = vpop.f32.mrf.mxu0
      %v3268 = vadd.f32 %v3219, %v3267
      %3269 = vmatmul.bf16.gmra.mxu0 %v1832
      %v3270 = vpop.f32.mrf.mxu0
      %v3271 = vadd.f32 %v3222, %v3270
      %v3272 = vpop.f32.mrf.mxu0
      %v3273 = vadd.f32 %v3224, %v3272
      %3274 = vmatmul.bf16.gmra.mxu0 %v1841
      %v3275 = vpop.f32.mrf.mxu0
      %v3276 = vadd.f32 %v3227, %v3275
      %v3277 = vpop.f32.mrf.mxu0
      %v3278 = vadd.f32 %v3229, %v3277
      %3279 = vmatmul.bf16.gmra.mxu0 %v1850
      %v3280 = vpop.f32.mrf.mxu0
      %v3281 = vadd.f32 %v3232, %v3280
      %v3282 = vpop.f32.mrf.mxu0
      %v3283 = vadd.f32 %v3234, %v3282
      %3284 = vdwg.mxu0
      %3285 = vmatpush.bf16.msra.mxu0 %v2439
      %3286 = vmatpush.bf16.msra.mxu0 %v2437
      %3287 = vmatpush.bf16.msra.mxu0 %v2435
      %3288 = vmatpush.bf16.msra.mxu0 %v2433
      %3289 = vmatpush.bf16.msra.mxu0 %v2431
      %3290 = vmatpush.bf16.msra.mxu0 %v2429
      %3291 = vmatpush.bf16.msra.mxu0 %v2427
      %3292 = vmatpush.bf16.msra.mxu0 %v2425
      %3293 = vmatmul.bf16.gmra.mxu0 %v1788
      %v3294 = vpop.f32.mrf.mxu0
      %v3295 = vadd.f32 %v3246, %v3294
      %v3296 = vpop.f32.mrf.mxu0
      %v3297 = vadd.f32 %v3248, %v3296
      %3298 = vmatmul.bf16.gmra.mxu0 %v1797
      %v3299 = vpop.f32.mrf.mxu0
      %v3300 = vadd.f32 %v3251, %v3299
      %v3301 = vpop.f32.mrf.mxu0
      %v3302 = vadd.f32 %v3253, %v3301
      %3303 = vmatmul.bf16.gmra.mxu0 %v1806
      %v3304 = vpop.f32.mrf.mxu0
      %v3305 = vadd.f32 %v3256, %v3304
      %v3306 = vpop.f32.mrf.mxu0
      %v3307 = vadd.f32 %v3258, %v3306
      %3308 = vmatmul.bf16.gmra.mxu0 %v1815
      %v3309 = vpop.f32.mrf.mxu0
      %v3310 = vadd.f32 %v3261, %v3309
      %v3311 = vpop.f32.mrf.mxu0
      %v3312 = vadd.f32 %v3263, %v3311
      %3313 = vmatmul.bf16.gmra.mxu0 %v1824
      %v3314 = vpop.f32.mrf.mxu0
      %v3315 = vadd.f32 %v3266, %v3314
      %v3316 = vpop.f32.mrf.mxu0
      %v3317 = vadd.f32 %v3268, %v3316
      %3318 = vmatmul.bf16.gmra.mxu0 %v1833
      %v3319 = vpop.f32.mrf.mxu0
      %v3320 = vadd.f32 %v3271, %v3319
      %v3321 = vpop.f32.mrf.mxu0
      %v3322 = vadd.f32 %v3273, %v3321
      %3323 = vmatmul.bf16.gmra.mxu0 %v1842
      %v3324 = vpop.f32.mrf.mxu0
      %v3325 = vadd.f32 %v3276, %v3324
      %v3326 = vpop.f32.mrf.mxu0
      %v3327 = vadd.f32 %v3278, %v3326
      %3328 = vmatmul.bf16.gmra.mxu0 %v1851
      %v3329 = vpop.f32.mrf.mxu0
      %v3330 = vadd.f32 %v3281, %v3329
      %v3331 = vpop.f32.mrf.mxu0
      %v3332 = vadd.f32 %v3283, %v3331
      %3333 = vdwg.mxu0
      %3334 = vmatpush.bf16.msra.mxu0 %v2455
      %3335 = vmatpush.bf16.msra.mxu0 %v2453
      %3336 = vmatpush.bf16.msra.mxu0 %v2451
      %3337 = vmatpush.bf16.msra.mxu0 %v2449
      %3338 = vmatpush.bf16.msra.mxu0 %v2447
      %3339 = vmatpush.bf16.msra.mxu0 %v2445
      %3340 = vmatpush.bf16.msra.mxu0 %v2443
      %3341 = vmatpush.bf16.msra.mxu0 %v2441
      %3342 = vmatmul.bf16.gmra.mxu0 %v1789
      %v3343 = vpop.f32.mrf.mxu0
      %v3344 = vadd.f32 %v3295, %v3343
      %v3345 = vpop.f32.mrf.mxu0
      %v3346 = vadd.f32 %v3297, %v3345
      %3347 = vmatmul.bf16.gmra.mxu0 %v1798
      %v3348 = vpop.f32.mrf.mxu0
      %v3349 = vadd.f32 %v3300, %v3348
      %v3350 = vpop.f32.mrf.mxu0
      %v3351 = vadd.f32 %v3302, %v3350
      %3352 = vmatmul.bf16.gmra.mxu0 %v1807
      %v3353 = vpop.f32.mrf.mxu0
      %v3354 = vadd.f32 %v3305, %v3353
      %v3355 = vpop.f32.mrf.mxu0
      %v3356 = vadd.f32 %v3307, %v3355
      %3357 = vmatmul.bf16.gmra.mxu0 %v1816
      %v3358 = vpop.f32.mrf.mxu0
      %v3359 = vadd.f32 %v3310, %v3358
      %v3360 = vpop.f32.mrf.mxu0
      %v3361 = vadd.f32 %v3312, %v3360
      %3362 = vmatmul.bf16.gmra.mxu0 %v1825
      %v3363 = vpop.f32.mrf.mxu0
      %v3364 = vadd.f32 %v3315, %v3363
      %v3365 = vpop.f32.mrf.mxu0
      %v3366 = vadd.f32 %v3317, %v3365
      %3367 = vmatmul.bf16.gmra.mxu0 %v1834
      %v3368 = vpop.f32.mrf.mxu0
      %v3369 = vadd.f32 %v3320, %v3368
      %v3370 = vpop.f32.mrf.mxu0
      %v3371 = vadd.f32 %v3322, %v3370
      %3372 = vmatmul.bf16.gmra.mxu0 %v1843
      %v3373 = vpop.f32.mrf.mxu0
      %v3374 = vadd.f32 %v3325, %v3373
      %v3375 = vpop.f32.mrf.mxu0
      %v3376 = vadd.f32 %v3327, %v3375
      %3377 = vmatmul.bf16.gmra.mxu0 %v1852
      %v3378 = vpop.f32.mrf.mxu0
      %v3379 = vadd.f32 %v3330, %v3378
      %v3380 = vpop.f32.mrf.mxu0
      %v3381 = vadd.f32 %v3332, %v3380
      %3382 = vdwg.mxu0
      %3383 = vmatpush.bf16.msra.mxu0 %v2471
      %3384 = vmatpush.bf16.msra.mxu0 %v2469
      %3385 = vmatpush.bf16.msra.mxu0 %v2467
      %3386 = vmatpush.bf16.msra.mxu0 %v2465
      %3387 = vmatpush.bf16.msra.mxu0 %v2463
      %3388 = vmatpush.bf16.msra.mxu0 %v2461
      %3389 = vmatpush.bf16.msra.mxu0 %v2459
      %3390 = vmatpush.bf16.msra.mxu0 %v2457
      %3391 = vmatmul.bf16.gmra.mxu0 %v1790
      %v3392 = vpop.f32.mrf.mxu0
      %v3393 = vadd.f32 %v3344, %v3392
      %v3394 = vpop.f32.mrf.mxu0
      %v3395 = vadd.f32 %v3346, %v3394
      %3396 = vmatmul.bf16.gmra.mxu0 %v1799
      %v3397 = vpop.f32.mrf.mxu0
      %v3398 = vadd.f32 %v3349, %v3397
      %v3399 = vpop.f32.mrf.mxu0
      %v3400 = vadd.f32 %v3351, %v3399
      %3401 = vmatmul.bf16.gmra.mxu0 %v1808
      %v3402 = vpop.f32.mrf.mxu0
      %v3403 = vadd.f32 %v3354, %v3402
      %v3404 = vpop.f32.mrf.mxu0
      %v3405 = vadd.f32 %v3356, %v3404
      %3406 = vmatmul.bf16.gmra.mxu0 %v1817
      %v3407 = vpop.f32.mrf.mxu0
      %v3408 = vadd.f32 %v3359, %v3407
      %v3409 = vpop.f32.mrf.mxu0
      %v3410 = vadd.f32 %v3361, %v3409
      %3411 = vmatmul.bf16.gmra.mxu0 %v1826
      %v3412 = vpop.f32.mrf.mxu0
      %v3413 = vadd.f32 %v3364, %v3412
      %v3414 = vpop.f32.mrf.mxu0
      %v3415 = vadd.f32 %v3366, %v3414
      %3416 = vmatmul.bf16.gmra.mxu0 %v1835
      %v3417 = vpop.f32.mrf.mxu0
      %v3418 = vadd.f32 %v3369, %v3417
      %v3419 = vpop.f32.mrf.mxu0
      %v3420 = vadd.f32 %v3371, %v3419
      %3421 = vmatmul.bf16.gmra.mxu0 %v1844
      %v3422 = vpop.f32.mrf.mxu0
      %v3423 = vadd.f32 %v3374, %v3422
      %v3424 = vpop.f32.mrf.mxu0
      %v3425 = vadd.f32 %v3376, %v3424
      %3426 = vmatmul.bf16.gmra.mxu0 %v1853
      %v3427 = vpop.f32.mrf.mxu0
      %v3428 = vadd.f32 %v3379, %v3427
      %v3429 = vpop.f32.mrf.mxu0
      %v3430 = vadd.f32 %v3381, %v3429
      %3431 = vdwg.mxu0
      %3432 = vmatpush.bf16.msra.mxu0 %v2487
      %3433 = vmatpush.bf16.msra.mxu0 %v2485
      %3434 = vmatpush.bf16.msra.mxu0 %v2483
      %3435 = vmatpush.bf16.msra.mxu0 %v2481
      %3436 = vmatpush.bf16.msra.mxu0 %v2479
      %3437 = vmatpush.bf16.msra.mxu0 %v2477
      %3438 = vmatpush.bf16.msra.mxu0 %v2475
      %3439 = vmatpush.bf16.msra.mxu0 %v2473
      %3440 = vmatmul.bf16.gmra.mxu0 %v1791
      %v3441 = vpop.f32.mrf.mxu0
      %v3442 = vadd.f32 %v3393, %v3441
      %v3443 = vpop.f32.mrf.mxu0
      %v3444 = vadd.f32 %v3395, %v3443
      %3445 = vmatmul.bf16.gmra.mxu0 %v1800
      %v3446 = vpop.f32.mrf.mxu0
      %v3447 = vadd.f32 %v3398, %v3446
      %v3448 = vpop.f32.mrf.mxu0
      %v3449 = vadd.f32 %v3400, %v3448
      %3450 = vmatmul.bf16.gmra.mxu0 %v1809
      %v3451 = vpop.f32.mrf.mxu0
      %v3452 = vadd.f32 %v3403, %v3451
      %v3453 = vpop.f32.mrf.mxu0
      %v3454 = vadd.f32 %v3405, %v3453
      %3455 = vmatmul.bf16.gmra.mxu0 %v1818
      %v3456 = vpop.f32.mrf.mxu0
      %v3457 = vadd.f32 %v3408, %v3456
      %v3458 = vpop.f32.mrf.mxu0
      %v3459 = vadd.f32 %v3410, %v3458
      %3460 = vmatmul.bf16.gmra.mxu0 %v1827
      %v3461 = vpop.f32.mrf.mxu0
      %v3462 = vadd.f32 %v3413, %v3461
      %v3463 = vpop.f32.mrf.mxu0
      %v3464 = vadd.f32 %v3415, %v3463
      %3465 = vmatmul.bf16.gmra.mxu0 %v1836
      %v3466 = vpop.f32.mrf.mxu0
      %v3467 = vadd.f32 %v3418, %v3466
      %v3468 = vpop.f32.mrf.mxu0
      %v3469 = vadd.f32 %v3420, %v3468
      %3470 = vmatmul.bf16.gmra.mxu0 %v1845
      %v3471 = vpop.f32.mrf.mxu0
      %v3472 = vadd.f32 %v3423, %v3471
      %v3473 = vpop.f32.mrf.mxu0
      %v3474 = vadd.f32 %v3425, %v3473
      %3475 = vmatmul.bf16.gmra.mxu0 %v1854
      %v3476 = vpop.f32.mrf.mxu0
      %v3477 = vadd.f32 %v3428, %v3476
      %v3478 = vpop.f32.mrf.mxu0
      %v3479 = vadd.f32 %v3430, %v3478
      %3480 = vdwg.mxu0
      %3481 = vmatpush.bf16.msra.mxu0 %v2503
      %3482 = vmatpush.bf16.msra.mxu0 %v2501
      %3483 = vmatpush.bf16.msra.mxu0 %v2499
      %3484 = vmatpush.bf16.msra.mxu0 %v2497
      %3485 = vmatpush.bf16.msra.mxu0 %v2495
      %3486 = vmatpush.bf16.msra.mxu0 %v2493
      %3487 = vmatpush.bf16.msra.mxu0 %v2491
      %3488 = vmatpush.bf16.msra.mxu0 %v2489
      %3489 = vmatmul.bf16.gmra.mxu0 %v1792
      %v3490 = vpop.f32.mrf.mxu0
      %v3491 = vadd.f32 %v3442, %v3490
      %v3492 = vpop.f32.mrf.mxu0
      %v3493 = vadd.f32 %v3444, %v3492
      %3494 = vmatmul.bf16.gmra.mxu0 %v1801
      %v3495 = vpop.f32.mrf.mxu0
      %v3496 = vadd.f32 %v3447, %v3495
      %v3497 = vpop.f32.mrf.mxu0
      %v3498 = vadd.f32 %v3449, %v3497
      %3499 = vmatmul.bf16.gmra.mxu0 %v1810
      %v3500 = vpop.f32.mrf.mxu0
      %v3501 = vadd.f32 %v3452, %v3500
      %v3502 = vpop.f32.mrf.mxu0
      %v3503 = vadd.f32 %v3454, %v3502
      %3504 = vmatmul.bf16.gmra.mxu0 %v1819
      %v3505 = vpop.f32.mrf.mxu0
      %v3506 = vadd.f32 %v3457, %v3505
      %v3507 = vpop.f32.mrf.mxu0
      %v3508 = vadd.f32 %v3459, %v3507
      %3509 = vmatmul.bf16.gmra.mxu0 %v1828
      %v3510 = vpop.f32.mrf.mxu0
      %v3511 = vadd.f32 %v3462, %v3510
      %v3512 = vpop.f32.mrf.mxu0
      %v3513 = vadd.f32 %v3464, %v3512
      %3514 = vmatmul.bf16.gmra.mxu0 %v1837
      %v3515 = vpop.f32.mrf.mxu0
      %v3516 = vadd.f32 %v3467, %v3515
      %v3517 = vpop.f32.mrf.mxu0
      %v3518 = vadd.f32 %v3469, %v3517
      %3519 = vmatmul.bf16.gmra.mxu0 %v1846
      %v3520 = vpop.f32.mrf.mxu0
      %v3521 = vadd.f32 %v3472, %v3520
      %v3522 = vpop.f32.mrf.mxu0
      %v3523 = vadd.f32 %v3474, %v3522
      %3524 = vmatmul.bf16.gmra.mxu0 %v1855
      %v3525 = vpop.f32.mrf.mxu0
      %v3526 = vadd.f32 %v3477, %v3525
      %v3527 = vpop.f32.mrf.mxu0
      %v3528 = vadd.f32 %v3479, %v3527
      %3529 = vdwg.mxu0
      %v3530 = vld [vmem:[%s2] sm:$0xff]
      %v3531 = vld [vmem:[%s2 + $0x8] sm:$0xff]
      %v3532 = vld [vmem:[%s2 + $0x10] sm:$0xff]
      %v3533 = vld [vmem:[%s2 + $0x18] sm:$0xff]
      %v3534 = vld [vmem:[%s2 + $0x20] sm:$0xff]
      %v3535 = vld [vmem:[%s2 + $0x28] sm:$0xff]
      %v3536 = vld [vmem:[%s2 + $0x30] sm:$0xff]
      %v3537 = vld [vmem:[%s2 + $0x38] sm:$0xff]
      %v3538 = vld [vmem:[%s2 + $0x40] sm:$0xff]
      %v3539 = vld [vmem:[%s2 + $0x48] sm:$0xff]
      %v3540 = vld [vmem:[%s2 + $0x50] sm:$0xff]
      %v3541 = vld [vmem:[%s2 + $0x58] sm:$0xff]
      %v3542 = vld [vmem:[%s2 + $0x60] sm:$0xff]
      %v3543 = vld [vmem:[%s2 + $0x68] sm:$0xff]
      %v3544 = vld [vmem:[%s2 + $0x70] sm:$0xff]
      %v3545 = vld [vmem:[%s2 + $0x78] sm:$0xff]
      %v3546 = vpack.c.b16 %v551, %v550
      %v3547 = vpack.c.b16 %v553, %v552
      %v3548 = vpack.c.b16 %v555, %v554
      %v3549 = vpack.c.b16 %v557, %v556
      %v3550 = vpack.c.b16 %v559, %v558
      %v3551 = vpack.c.b16 %v561, %v560
      %v3552 = vpack.c.b16 %v563, %v562
      %v3553 = vpack.c.b16 %v565, %v564
      %v3578 = vunpack.c.l.b16 %v3530
      %v3579 = vunpack.c.h.b16 %v3530
      %v3580 = vunpack.c.l.b16 %v3531
      %v3581 = vunpack.c.h.b16 %v3531
      %v3582 = vunpack.c.l.b16 %v3532
      %v3583 = vunpack.c.h.b16 %v3532
      %v3584 = vunpack.c.l.b16 %v3533
      %v3585 = vunpack.c.h.b16 %v3533
      %v3586 = vunpack.c.l.b16 %v3534
      %v3587 = vunpack.c.h.b16 %v3534
      %v3588 = vunpack.c.l.b16 %v3535
      %v3589 = vunpack.c.h.b16 %v3535
      %v3590 = vunpack.c.l.b16 %v3536
      %v3591 = vunpack.c.h.b16 %v3536
      %v3592 = vunpack.c.l.b16 %v3537
      %v3593 = vunpack.c.h.b16 %v3537
      %v3594 = vunpack.c.l.b16 %v3538
      %v3595 = vunpack.c.h.b16 %v3538
      %v3596 = vunpack.c.l.b16 %v3539
      %v3597 = vunpack.c.h.b16 %v3539
      %v3598 = vunpack.c.l.b16 %v3540
      %v3599 = vunpack.c.h.b16 %v3540
      %v3600 = vunpack.c.l.b16 %v3541
      %v3601 = vunpack.c.h.b16 %v3541
      %v3602 = vunpack.c.l.b16 %v3542
      %v3603 = vunpack.c.h.b16 %v3542
      %v3604 = vunpack.c.l.b16 %v3543
      %v3605 = vunpack.c.h.b16 %v3543
      %v3606 = vunpack.c.l.b16 %v3544
      %v3607 = vunpack.c.h.b16 %v3544
      %v3608 = vunpack.c.l.b16 %v3545
      %v3609 = vunpack.c.h.b16 %v3545
      %v3610 = vpack.c.b16 %v3580, %v3578
      %v3611 = vpack.c.b16 %v3581, %v3579
      %v3612 = vpack.c.b16 %v3584, %v3582
      %v3613 = vpack.c.b16 %v3585, %v3583
      %v3614 = vpack.c.b16 %v3588, %v3586
      %v3615 = vpack.c.b16 %v3589, %v3587
      %v3616 = vpack.c.b16 %v3592, %v3590
      %v3617 = vpack.c.b16 %v3593, %v3591
      %v3618 = vpack.c.b16 %v3596, %v3594
      %v3619 = vpack.c.b16 %v3597, %v3595
      %v3620 = vpack.c.b16 %v3600, %v3598
      %v3621 = vpack.c.b16 %v3601, %v3599
      %v3622 = vpack.c.b16 %v3604, %v3602
      %v3623 = vpack.c.b16 %v3605, %v3603
      %v3624 = vpack.c.b16 %v3608, %v3606
      %v3625 = vpack.c.b16 %v3609, %v3607
      %3642 = vmatpush.bf16.msra.mxu0 %v3624
      %3643 = vmatpush.bf16.msra.mxu0 %v3622
      %3644 = vmatpush.bf16.msra.mxu0 %v3620
      %3645 = vmatpush.bf16.msra.mxu0 %v3618
      %3646 = vmatpush.bf16.msra.mxu0 %v3616
      %3647 = vmatpush.bf16.msra.mxu0 %v3614
      %3648 = vmatpush.bf16.msra.mxu0 %v3612
      %3649 = vmatpush.bf16.msra.mxu0 %v3610
      %3650 = vmatmul.bf16.gmra.mxu0 %v3546
      %v3651 = vpop.f32.mrf.mxu0
      %v3652 = vadd.f32 0.0, %v3651
      %v3653 = vpop.f32.mrf.mxu0
      %v3654 = vadd.f32 0.0, %v3653
      %3655 = vmatmul.bf16.gmra.mxu0 %v3547
      %v3656 = vpop.f32.mrf.mxu0
      %v3657 = vadd.f32 0.0, %v3656
      %v3658 = vpop.f32.mrf.mxu0
      %v3659 = vadd.f32 0.0, %v3658
      %3660 = vmatmul.bf16.gmra.mxu0 %v3548
      %v3661 = vpop.f32.mrf.mxu0
      %v3662 = vadd.f32 0.0, %v3661
      %v3663 = vpop.f32.mrf.mxu0
      %v3664 = vadd.f32 0.0, %v3663
      %3665 = vmatmul.bf16.gmra.mxu0 %v3549
      %v3666 = vpop.f32.mrf.mxu0
      %v3667 = vadd.f32 0.0, %v3666
      %v3668 = vpop.f32.mrf.mxu0
      %v3669 = vadd.f32 0.0, %v3668
      %3670 = vmatmul.bf16.gmra.mxu0 %v3550
      %v3671 = vpop.f32.mrf.mxu0
      %v3672 = vadd.f32 0.0, %v3671
      %v3673 = vpop.f32.mrf.mxu0
      %v3674 = vadd.f32 0.0, %v3673
      %3675 = vmatmul.bf16.gmra.mxu0 %v3551
      %v3676 = vpop.f32.mrf.mxu0
      %v3677 = vadd.f32 0.0, %v3676
      %v3678 = vpop.f32.mrf.mxu0
      %v3679 = vadd.f32 0.0, %v3678
      %3680 = vmatmul.bf16.gmra.mxu0 %v3552
      %v3681 = vpop.f32.mrf.mxu0
      %v3682 = vadd.f32 0.0, %v3681
      %v3683 = vpop.f32.mrf.mxu0
      %v3684 = vadd.f32 0.0, %v3683
      %3685 = vmatmul.bf16.gmra.mxu0 %v3553
      %v3686 = vpop.f32.mrf.mxu0
      %v3687 = vadd.f32 0.0, %v3686
      %v3688 = vpop.f32.mrf.mxu0
      %v3689 = vadd.f32 0.0, %v3688
      %3690 = vdwg.mxu0
      %3691 = vmatpush.bf16.msra.mxu0 %v3625
      %3692 = vmatpush.bf16.msra.mxu0 %v3623
      %3693 = vmatpush.bf16.msra.mxu0 %v3621
      %3694 = vmatpush.bf16.msra.mxu0 %v3619
      %3695 = vmatpush.bf16.msra.mxu0 %v3617
      %3696 = vmatpush.bf16.msra.mxu0 %v3615
      %3697 = vmatpush.bf16.msra.mxu0 %v3613
      %3698 = vmatpush.bf16.msra.mxu0 %v3611
      %3699 = vmatmul.bf16.gmra.mxu0 %v3546
      %v3700 = vpop.f32.mrf.mxu0
      %v3701 = vadd.f32 0.0, %v3700
      %v3702 = vpop.f32.mrf.mxu0
      %v3703 = vadd.f32 0.0, %v3702
      %3704 = vmatmul.bf16.gmra.mxu0 %v3547
      %v3705 = vpop.f32.mrf.mxu0
      %v3706 = vadd.f32 0.0, %v3705
      %v3707 = vpop.f32.mrf.mxu0
      %v3708 = vadd.f32 0.0, %v3707
      %3709 = vmatmul.bf16.gmra.mxu0 %v3548
      %v3710 = vpop.f32.mrf.mxu0
      %v3711 = vadd.f32 0.0, %v3710
      %v3712 = vpop.f32.mrf.mxu0
      %v3713 = vadd.f32 0.0, %v3712
      %3714 = vmatmul.bf16.gmra.mxu0 %v3549
      %v3715 = vpop.f32.mrf.mxu0
      %v3716 = vadd.f32 0.0, %v3715
      %v3717 = vpop.f32.mrf.mxu0
      %v3718 = vadd.f32 0.0, %v3717
      %3719 = vmatmul.bf16.gmra.mxu0 %v3550
      %v3720 = vpop.f32.mrf.mxu0
      %v3721 = vadd.f32 0.0, %v3720
      %v3722 = vpop.f32.mrf.mxu0
      %v3723 = vadd.f32 0.0, %v3722
      %3724 = vmatmul.bf16.gmra.mxu0 %v3551
      %v3725 = vpop.f32.mrf.mxu0
      %v3726 = vadd.f32 0.0, %v3725
      %v3727 = vpop.f32.mrf.mxu0
      %v3728 = vadd.f32 0.0, %v3727
      %3729 = vmatmul.bf16.gmra.mxu0 %v3552
      %v3730 = vpop.f32.mrf.mxu0
      %v3731 = vadd.f32 0.0, %v3730
      %v3732 = vpop.f32.mrf.mxu0
      %v3733 = vadd.f32 0.0, %v3732
      %3734 = vmatmul.bf16.gmra.mxu0 %v3553
      %v3735 = vpop.f32.mrf.mxu0
      %v3736 = vadd.f32 0.0, %v3735
      %v3737 = vpop.f32.mrf.mxu0
      %v3738 = vadd.f32 0.0, %v3737
      %3739 = vdwg.mxu0
      %v3740 = vpack.c.bf16 %v3491, %v3050
      %v3741 = vpack.c.bf16 %v3493, %v3052
      %v3742 = vpack.c.bf16 %v3496, %v3055
      %v3743 = vpack.c.bf16 %v3498, %v3057
      %v3744 = vpack.c.bf16 %v3501, %v3060
      %v3745 = vpack.c.bf16 %v3503, %v3062
      %v3746 = vpack.c.bf16 %v3506, %v3065
      %v3747 = vpack.c.bf16 %v3508, %v3067
      %v3748 = vpack.c.bf16 %v3511, %v3070
      %v3749 = vpack.c.bf16 %v3513, %v3072
      %v3750 = vpack.c.bf16 %v3516, %v3075
      %v3751 = vpack.c.bf16 %v3518, %v3077
      %v3752 = vpack.c.bf16 %v3521, %v3080
      %v3753 = vpack.c.bf16 %v3523, %v3082
      %v3754 = vpack.c.bf16 %v3526, %v3085
      %v3755 = vpack.c.bf16 %v3528, %v3087
      %3756 = vst [vmem:[%s237] sm:$0xff] %v3740
      %3757 = vst [vmem:[%s237 + $0x8] sm:$0xff] %v3741
      %3758 = vst [vmem:[%s237 + $0x10] sm:$0xff] %v3742
      %3759 = vst [vmem:[%s237 + $0x18] sm:$0xff] %v3743
      %3760 = vst [vmem:[%s237 + $0x20] sm:$0xff] %v3744
      %3761 = vst [vmem:[%s237 + $0x28] sm:$0xff] %v3745
      %3762 = vst [vmem:[%s237 + $0x30] sm:$0xff] %v3746
      %3763 = vst [vmem:[%s237 + $0x38] sm:$0xff] %v3747
      %3764 = vst [vmem:[%s237 + $0x40] sm:$0xff] %v3748
      %3765 = vst [vmem:[%s237 + $0x48] sm:$0xff] %v3749
      %3766 = vst [vmem:[%s237 + $0x50] sm:$0xff] %v3750
      %3767 = vst [vmem:[%s237 + $0x58] sm:$0xff] %v3751
      %3768 = vst [vmem:[%s237 + $0x60] sm:$0xff] %v3752
      %3769 = vst [vmem:[%s237 + $0x68] sm:$0xff] %v3753
      %3770 = vst [vmem:[%s237 + $0x70] sm:$0xff] %v3754
      %3771 = vst [vmem:[%s237 + $0x78] sm:$0xff] %v3755
      %v3772 = vpack.c.bf16 %v3701, %v3652
      %v3773 = vpack.c.bf16 %v3703, %v3654
      %v3774 = vpack.c.bf16 %v3706, %v3657
      %v3775 = vpack.c.bf16 %v3708, %v3659
      %v3776 = vpack.c.bf16 %v3711, %v3662
      %v3777 = vpack.c.bf16 %v3713, %v3664
      %v3778 = vpack.c.bf16 %v3716, %v3667
      %v3779 = vpack.c.bf16 %v3718, %v3669
      %v3780 = vpack.c.bf16 %v3721, %v3672
      %v3781 = vpack.c.bf16 %v3723, %v3674
      %v3782 = vpack.c.bf16 %v3726, %v3677
      %v3783 = vpack.c.bf16 %v3728, %v3679
      %v3784 = vpack.c.bf16 %v3731, %v3682
      %v3785 = vpack.c.bf16 %v3733, %v3684
      %v3786 = vpack.c.bf16 %v3736, %v3687
      %v3787 = vpack.c.bf16 %v3738, %v3689
      %3788 = vst [vmem:[%s244] sm:$0xff] %v3772
      %3789 = vst [vmem:[%s244 + $0x8] sm:$0xff] %v3773
      %3790 = vst [vmem:[%s244 + $0x10] sm:$0xff] %v3774
      %3791 = vst [vmem:[%s244 + $0x18] sm:$0xff] %v3775
      %3792 = vst [vmem:[%s244 + $0x20] sm:$0xff] %v3776
      %3793 = vst [vmem:[%s244 + $0x28] sm:$0xff] %v3777
      %3794 = vst [vmem:[%s244 + $0x30] sm:$0xff] %v3778
      %3795 = vst [vmem:[%s244 + $0x38] sm:$0xff] %v3779
      %3796 = vst [vmem:[%s244 + $0x40] sm:$0xff] %v3780
      %3797 = vst [vmem:[%s244 + $0x48] sm:$0xff] %v3781
      %3798 = vst [vmem:[%s244 + $0x50] sm:$0xff] %v3782
      %3799 = vst [vmem:[%s244 + $0x58] sm:$0xff] %v3783
      %3800 = vst [vmem:[%s244 + $0x60] sm:$0xff] %v3784
      %3801 = vst [vmem:[%s244 + $0x68] sm:$0xff] %v3785
      %3802 = vst [vmem:[%s244 + $0x70] sm:$0xff] %v3786
      %3803 = vst [vmem:[%s244 + $0x78] sm:$0xff] %v3787
      %v3804 = vld [vmem:[%s5] ss:$8 sm:$0x3]
      %v3805 = vadd.f32 %v3050, %v3052
      %v3806 = vadd.f32 %v3805, %v3055
      %v3807 = vadd.f32 %v3806, %v3057
      %v3808 = vadd.f32 %v3807, %v3060
      %v3809 = vadd.f32 %v3808, %v3062
      %v3810 = vadd.f32 %v3809, %v3065
      %v3811 = vadd.f32 %v3810, %v3067
      %v3812 = vadd.f32 %v3811, %v3070
      %v3813 = vadd.f32 %v3812, %v3072
      %v3814 = vadd.f32 %v3813, %v3075
      %v3815 = vadd.f32 %v3814, %v3077
      %v3816 = vadd.f32 %v3815, %v3080
      %v3817 = vadd.f32 %v3816, %v3082
      %v3818 = vadd.f32 %v3817, %v3085
      %v3819 = vadd.f32 %v3818, %v3087
      %v3820 = vrot.slane %v3819, 4
      %v3821 = vadd.f32 %v3819, %v3820
      %v3822 = vrot.slane %v3821, 2
      %v3823 = vadd.f32 %v3821, %v3822
      %v3824 = vrot.slane %v3823, 1
      %v3825 = vadd.f32 %v3823, %v3824
      %v3826 = vadd.f32 %v3491, %v3493
      %v3827 = vadd.f32 %v3826, %v3496
      %v3828 = vadd.f32 %v3827, %v3498
      %v3829 = vadd.f32 %v3828, %v3501
      %v3830 = vadd.f32 %v3829, %v3503
      %v3831 = vadd.f32 %v3830, %v3506
      %v3832 = vadd.f32 %v3831, %v3508
      %v3833 = vadd.f32 %v3832, %v3511
      %v3834 = vadd.f32 %v3833, %v3513
      %v3835 = vadd.f32 %v3834, %v3516
      %v3836 = vadd.f32 %v3835, %v3518
      %v3837 = vadd.f32 %v3836, %v3521
      %v3838 = vadd.f32 %v3837, %v3523
      %v3839 = vadd.f32 %v3838, %v3526
      %v3840 = vadd.f32 %v3839, %v3528
      %v3841 = vrot.slane %v3840, 4
      %v3842 = vadd.f32 %v3840, %v3841
      %v3843 = vrot.slane %v3842, 2
      %v3844 = vadd.f32 %v3842, %v3843
      %v3845 = vrot.slane %v3844, 1
      %v3846 = vadd.f32 %v3844, %v3845
      %v3849 = vrot.slane %v3846, 7
      %vm3850 = vcmask 1040384
      %v3851 = vsel %vm3850, %v3825, %v3849
      %v3853 = vadd.f32 %v3804, %v3851
      %v3854 = vlaneseq
      %vm3855 = vcmp.ge.s32.totalorder %v3854, 0
      %vm3856 = vcmp.lt.s32.totalorder %v3854, 256
      %vm3857 = vmand %vm3855, %vm3856
      %3858 = vst.msk [vmem:[%s5] ss:$8 sm:$0x3] %vm3857, %v3853
      %3859 = vst.msk [vmem:[%s5] ss:$8 sm:$0x0] %vm3857, %v3853
      %s3860 = scalar_lea.vmem %s5, 1
      %v3861 = vld [vmem:[%s3860] ss:$8 sm:$0x3]
      %v3862 = vmul.f32 %v3050, %v3050
      %v3863 = vmul.f32 %v3491, %v3491
      %v3864 = vmul.f32 %v3052, %v3052
      %v3865 = vmul.f32 %v3493, %v3493
      %v3866 = vmul.f32 %v3055, %v3055
      %v3867 = vmul.f32 %v3496, %v3496
      %v3868 = vmul.f32 %v3057, %v3057
      %v3869 = vmul.f32 %v3498, %v3498
      %v3870 = vmul.f32 %v3060, %v3060
      %v3871 = vmul.f32 %v3501, %v3501
      %v3872 = vmul.f32 %v3062, %v3062
      %v3873 = vmul.f32 %v3503, %v3503
      %v3874 = vmul.f32 %v3065, %v3065
      %v3875 = vmul.f32 %v3506, %v3506
      %v3876 = vmul.f32 %v3067, %v3067
      %v3877 = vmul.f32 %v3508, %v3508
      %v3878 = vmul.f32 %v3070, %v3070
      %v3879 = vmul.f32 %v3511, %v3511
      %v3880 = vmul.f32 %v3072, %v3072
      %v3881 = vmul.f32 %v3513, %v3513
      %v3882 = vmul.f32 %v3075, %v3075
      %v3883 = vmul.f32 %v3516, %v3516
      %v3884 = vmul.f32 %v3077, %v3077
      %v3885 = vmul.f32 %v3518, %v3518
      %v3886 = vmul.f32 %v3080, %v3080
      %v3887 = vmul.f32 %v3521, %v3521
      %v3888 = vmul.f32 %v3082, %v3082
      %v3889 = vmul.f32 %v3523, %v3523
      %v3890 = vmul.f32 %v3085, %v3085
      %v3891 = vmul.f32 %v3526, %v3526
      %v3892 = vmul.f32 %v3087, %v3087
      %v3893 = vmul.f32 %v3528, %v3528
      %v3894 = vadd.f32 %v3862, %v3864
      %v3895 = vadd.f32 %v3894, %v3866
      %v3896 = vadd.f32 %v3895, %v3868
      %v3897 = vadd.f32 %v3896, %v3870
      %v3898 = vadd.f32 %v3897, %v3872
      %v3899 = vadd.f32 %v3898, %v3874
      %v3900 = vadd.f32 %v3899, %v3876
      %v3901 = vadd.f32 %v3900, %v3878
      %v3902 = vadd.f32 %v3901, %v3880
      %v3903 = vadd.f32 %v3902, %v3882
      %v3904 = vadd.f32 %v3903, %v3884
      %v3905 = vadd.f32 %v3904, %v3886
      %v3906 = vadd.f32 %v3905, %v3888
      %v3907 = vadd.f32 %v3906, %v3890
      %v3908 = vadd.f32 %v3907, %v3892
      %v3909 = vrot.slane %v3908, 4
      %v3910 = vadd.f32 %v3908, %v3909
      %v3911 = vrot.slane %v3910, 2
      %v3912 = vadd.f32 %v3910, %v3911
      %v3913 = vrot.slane %v3912, 1
      %v3914 = vadd.f32 %v3912, %v3913
      %v3915 = vadd.f32 %v3863, %v3865
      %v3916 = vadd.f32 %v3915, %v3867
      %v3917 = vadd.f32 %v3916, %v3869
      %v3918 = vadd.f32 %v3917, %v3871
      %v3919 = vadd.f32 %v3918, %v3873
      %v3920 = vadd.f32 %v3919, %v3875
      %v3921 = vadd.f32 %v3920, %v3877
      %v3922 = vadd.f32 %v3921, %v3879
      %v3923 = vadd.f32 %v3922, %v3881
      %v3924 = vadd.f32 %v3923, %v3883
      %v3925 = vadd.f32 %v3924, %v3885
      %v3926 = vadd.f32 %v3925, %v3887
      %v3927 = vadd.f32 %v3926, %v3889
      %v3928 = vadd.f32 %v3927, %v3891
      %v3929 = vadd.f32 %v3928, %v3893
      %v3930 = vrot.slane %v3929, 4
      %v3931 = vadd.f32 %v3929, %v3930
      %v3932 = vrot.slane %v3931, 2
      %v3933 = vadd.f32 %v3931, %v3932
      %v3934 = vrot.slane %v3933, 1
      %v3935 = vadd.f32 %v3933, %v3934
      %v3938 = vrot.slane %v3935, 7
      %v3939 = vsel %vm3850, %v3914, %v3938
      %v3941 = vadd.f32 %v3861, %v3939
      %3942 = vst.msk [vmem:[%s3860] ss:$8 sm:$0x3] %vm3857, %v3941
      %3943 = vst.msk [vmem:[%s3860] ss:$8 sm:$0x0] %vm3857, %v3941
      %s3944 = scalar_lea.vmem %s5, 2
      %v3945 = vld [vmem:[%s3944] ss:$8 sm:$0x3]
      %v3946 = vadd.f32 %v3652, %v3654
      %v3947 = vadd.f32 %v3946, %v3657
      %v3948 = vadd.f32 %v3947, %v3659
      %v3949 = vadd.f32 %v3948, %v3662
      %v3950 = vadd.f32 %v3949, %v3664
      %v3951 = vadd.f32 %v3950, %v3667
      %v3952 = vadd.f32 %v3951, %v3669
      %v3953 = vadd.f32 %v3952, %v3672
      %v3954 = vadd.f32 %v3953, %v3674
      %v3955 = vadd.f32 %v3954, %v3677
      %v3956 = vadd.f32 %v3955, %v3679
      %v3957 = vadd.f32 %v3956, %v3682
      %v3958 = vadd.f32 %v3957, %v3684
      %v3959 = vadd.f32 %v3958, %v3687
      %v3960 = vadd.f32 %v3959, %v3689
      %v3961 = vrot.slane %v3960, 4
      %v3962 = vadd.f32 %v3960, %v3961
      %v3963 = vrot.slane %v3962, 2
      %v3964 = vadd.f32 %v3962, %v3963
      %v3965 = vrot.slane %v3964, 1
      %v3966 = vadd.f32 %v3964, %v3965
      %v3967 = vadd.f32 %v3701, %v3703
      %v3968 = vadd.f32 %v3967, %v3706
      %v3969 = vadd.f32 %v3968, %v3708
      %v3970 = vadd.f32 %v3969, %v3711
      %v3971 = vadd.f32 %v3970, %v3713
      %v3972 = vadd.f32 %v3971, %v3716
      %v3973 = vadd.f32 %v3972, %v3718
      %v3974 = vadd.f32 %v3973, %v3721
      %v3975 = vadd.f32 %v3974, %v3723
      %v3976 = vadd.f32 %v3975, %v3726
      %v3977 = vadd.f32 %v3976, %v3728
      %v3978 = vadd.f32 %v3977, %v3731
      %v3979 = vadd.f32 %v3978, %v3733
      %v3980 = vadd.f32 %v3979, %v3736
      %v3981 = vadd.f32 %v3980, %v3738
      %v3982 = vrot.slane %v3981, 4
      %v3983 = vadd.f32 %v3981, %v3982
      %v3984 = vrot.slane %v3983, 2
      %v3985 = vadd.f32 %v3983, %v3984
      %v3986 = vrot.slane %v3985, 1
      %v3987 = vadd.f32 %v3985, %v3986
      %v3990 = vrot.slane %v3987, 7
      %v3991 = vsel %vm3850, %v3966, %v3990
      %v3993 = vadd.f32 %v3945, %v3991
      %3994 = vst.msk [vmem:[%s3944] ss:$8 sm:$0x3] %vm3857, %v3993
      %3995 = vst.msk [vmem:[%s3944] ss:$8 sm:$0x0] %vm3857, %v3993
      %s3996 = scalar_lea.vmem %s5, 3
      %v3997 = vld [vmem:[%s3996] ss:$8 sm:$0x3]
      %v3998 = vmul.f32 %v3652, %v3652
      %v3999 = vmul.f32 %v3701, %v3701
      %v4000 = vmul.f32 %v3654, %v3654
      %v4001 = vmul.f32 %v3703, %v3703
      %v4002 = vmul.f32 %v3657, %v3657
      %v4003 = vmul.f32 %v3706, %v3706
      %v4004 = vmul.f32 %v3659, %v3659
      %v4005 = vmul.f32 %v3708, %v3708
      %v4006 = vmul.f32 %v3662, %v3662
      %v4007 = vmul.f32 %v3711, %v3711
      %v4008 = vmul.f32 %v3664, %v3664
      %v4009 = vmul.f32 %v3713, %v3713
      %v4010 = vmul.f32 %v3667, %v3667
      %v4011 = vmul.f32 %v3716, %v3716
      %v4012 = vmul.f32 %v3669, %v3669
      %v4013 = vmul.f32 %v3718, %v3718
      %v4014 = vmul.f32 %v3672, %v3672
      %v4015 = vmul.f32 %v3721, %v3721
      %v4016 = vmul.f32 %v3674, %v3674
      %v4017 = vmul.f32 %v3723, %v3723
      %v4018 = vmul.f32 %v3677, %v3677
      %v4019 = vmul.f32 %v3726, %v3726
      %v4020 = vmul.f32 %v3679, %v3679
      %v4021 = vmul.f32 %v3728, %v3728
      %v4022 = vmul.f32 %v3682, %v3682
      %v4023 = vmul.f32 %v3731, %v3731
      %v4024 = vmul.f32 %v3684, %v3684
      %v4025 = vmul.f32 %v3733, %v3733
      %v4026 = vmul.f32 %v3687, %v3687
      %v4027 = vmul.f32 %v3736, %v3736
      %v4028 = vmul.f32 %v3689, %v3689
      %v4029 = vmul.f32 %v3738, %v3738
      %v4030 = vadd.f32 %v3998, %v4000
      %v4031 = vadd.f32 %v4030, %v4002
      %v4032 = vadd.f32 %v4031, %v4004
      %v4033 = vadd.f32 %v4032, %v4006
      %v4034 = vadd.f32 %v4033, %v4008
      %v4035 = vadd.f32 %v4034, %v4010
      %v4036 = vadd.f32 %v4035, %v4012
      %v4037 = vadd.f32 %v4036, %v4014
      %v4038 = vadd.f32 %v4037, %v4016
      %v4039 = vadd.f32 %v4038, %v4018
      %v4040 = vadd.f32 %v4039, %v4020
      %v4041 = vadd.f32 %v4040, %v4022
      %v4042 = vadd.f32 %v4041, %v4024
      %v4043 = vadd.f32 %v4042, %v4026
      %v4044 = vadd.f32 %v4043, %v4028
      %v4045 = vrot.slane %v4044, 4
      %v4046 = vadd.f32 %v4044, %v4045
      %v4047 = vrot.slane %v4046, 2
      %v4048 = vadd.f32 %v4046, %v4047
      %v4049 = vrot.slane %v4048, 1
      %v4050 = vadd.f32 %v4048, %v4049
      %v4051 = vadd.f32 %v3999, %v4001
      %v4052 = vadd.f32 %v4051, %v4003
      %v4053 = vadd.f32 %v4052, %v4005
      %v4054 = vadd.f32 %v4053, %v4007
      %v4055 = vadd.f32 %v4054, %v4009
      %v4056 = vadd.f32 %v4055, %v4011
      %v4057 = vadd.f32 %v4056, %v4013
      %v4058 = vadd.f32 %v4057, %v4015
      %v4059 = vadd.f32 %v4058, %v4017
      %v4060 = vadd.f32 %v4059, %v4019
      %v4061 = vadd.f32 %v4060, %v4021
      %v4062 = vadd.f32 %v4061, %v4023
      %v4063 = vadd.f32 %v4062, %v4025
      %v4064 = vadd.f32 %v4063, %v4027
      %v4065 = vadd.f32 %v4064, %v4029
      %v4066 = vrot.slane %v4065, 4
      %v4067 = vadd.f32 %v4065, %v4066
      %v4068 = vrot.slane %v4067, 2
      %v4069 = vadd.f32 %v4067, %v4068
      %v4070 = vrot.slane %v4069, 1
      %v4071 = vadd.f32 %v4069, %v4070
      %v4074 = vrot.slane %v4071, 7
      %v4075 = vsel %vm3850, %v4050, %v4074
      %v4077 = vadd.f32 %v3997, %v4075
      %4078 = vst.msk [vmem:[%s3996] ss:$8 sm:$0x3] %vm3857, %v4077
      %4079 = vst.msk [vmem:[%s3996] ss:$8 sm:$0x0] %vm3857, %v4077
      %s4080 = smul.u32 2, %s17
      %p4081 = scmp.lt.s32.totalorder %s4080, 3
      %s4082 = scalar_select %p4081, %s4080, 3
      %s4083 = smul.addr %s4082, 16
      %s4084 = smul.addr %s4083, 4
      %s4085 = scalar_lea.vmem %s3, %s4084
      %s4086 = smul.u32 2, %s17
      %p4087 = scmp.lt.s32.totalorder %s4086, 3
      %s4088 = scalar_select %p4087, %s4086, 3
      %s4089 = smul.addr %s4088, 16
      %s4090 = smul.addr %s4089, 4
      %s4091 = scalar_lea.vmem %s4, %s4090
      // Predicated region
      $region37: #{_lambda_.3} parent=31 // pred_check
        %p4092 = pneg %p103
      $region38: #{_lambda_.3} parent=31 // pred_check_branch
        %4094 = sbr.rel (%p4092) target = $region40
      $region39: #{_lambda_.3} parent=31 // pred_region
        %s4095 = smul.u32 2, %s17
      $region40: #{_lambda_.3} parent=31 // pred_fallthru
        _
      // Predicated region
      $region41: #{_lambda_.3} parent=31 // pred_check
        %p4096 = pneg %p129
      $region42: #{_lambda_.3} parent=31 // pred_check_branch
        %4098 = sbr.rel (%p4096) target = $region44
      $region43: #{_lambda_.3} parent=31 // pred_region
        %s4099 = smul.u32 2, %s17
      $region44: #{_lambda_.3} parent=31 // pred_fallthru
        _
      // Predicated region
      $region45: #{_lambda_.3} parent=31 // pred_check
        %p4100 = pneg %p150
      $region46: #{_lambda_.3} parent=31 // pred_check_branch
        %4102 = sbr.rel (%p4100) target = $region48
      $region47: #{_lambda_.3} parent=31 // pred_region
        _
      $region48: #{_lambda_.3} parent=31 // pred_fallthru
        _
      // Predicated region
      $region49: #{_lambda_.3} parent=31 // pred_check
        %p4103 = pneg %p150
      $region50: #{_lambda_.3} parent=31 // pred_check_branch
        %4105 = sbr.rel (%p4103) target = $region52
      $region51: #{_lambda_.3} parent=31 // pred_region
        _
      $region52: #{_lambda_.3} parent=31 // pred_fallthru
        _
    $region32: #{_lambda_.3} parent=5 // pred_fallthru
      _
    %p4106 = scmp.le.s32.totalorder 2, %s12
    // Predicated region
    $region53: #{_lambda_.3} parent=5 // pred_check
      %p4107 = pneg %p4106
    $region54: #{_lambda_.3} parent=5 // pred_check_branch
      %4109 = sbr.rel (%p4107) target = $region56
    $region55: #{_lambda_.3} parent=5 // pred_region
      %s4110 = ssub.s32 %s12, 2
      // Predicated region
      $region57: #{_lambda_.3} parent=55 // pred_check
        %p4111 = pneg %p109
      $region58: #{_lambda_.3} parent=55 // pred_check_branch
        %4113 = sbr.rel (%p4111) target = $region60
      $region59: #{_lambda_.3} parent=55 // pred_region
        %s4114 = smul.u32 2, %s18
        %p4115 = scmp.lt.s32.totalorder %s4114, 3
        %s4116 = scalar_select %p4115, %s4114, 3
        %s4117 = smul.addr %s4116, 16
        %s4118 = smul.addr %s4117, 4
        %s4119 = scalar_lea.vmem %s3, %s4118
      $region60: #{_lambda_.3} parent=55 // pred_fallthru
        _
      // Predicated region
      $region61: #{_lambda_.3} parent=55 // pred_check
        %p4120 = pneg %p135
      $region62: #{_lambda_.3} parent=55 // pred_check_branch
        %4122 = sbr.rel (%p4120) target = $region64
      $region63: #{_lambda_.3} parent=55 // pred_region
        %s4123 = smul.u32 2, %s18
        %p4124 = scmp.lt.s32.totalorder %s4123, 3
        %s4125 = scalar_select %p4124, %s4123, 3
        %s4126 = smul.addr %s4125, 16
        %s4127 = smul.addr %s4126, 4
        %s4128 = scalar_lea.vmem %s4, %s4127
      $region64: #{_lambda_.3} parent=55 // pred_fallthru
        _
    $region56: #{_lambda_.3} parent=5 // pred_fallthru
      _
  $region6: #{_lambda_.3} parent=0 // loop_footer
    %s16 = sadd.s32 1, %s12
  $region7: #{_lambda_.3} parent=0 // loop_footer_branch
    %11 = sbr.rel target = $region3
  $region8: #{_lambda_.3} parent=0 // loop_exit
    _

// kernel: _lambda_.4
$region0: #{_lambda_.4}
  #allocation0 [shape = 'u32[]', space=smem, size = 0x4, offset = 0x4, fixed_abs, tag = 'smem constant byte address 0x4 - core index']
  #allocation1 [shape = 'u32[72,128]{1,0:T(1,128)}', space=vmem, size = 0x9000, scoped, tag = 'internal scratch']
  #allocation2 [shape = 'bf16[128,2304]{1,0:T(8,128)(2,1)}', space=vmem, size = 0x90000, scoped, tag = 'scratch operand']
  %s0 = inlined_call_operand.vmem [shape: bf16[4,8,8,256], index: 0, kind: input, shape index: {}]
  %s1 = inlined_call_operand.vmem [shape: f32[1,256], index: 1, kind: input, shape index: {}]
  %s2 = inlined_call_operand.vmem [shape: f32[1,256], index: 2, kind: input, shape index: {}]
  %s3 = inlined_call_operand.vmem [shape: bf16[2304,256], index: 3, kind: input, shape index: {}]
  %s4 = inlined_call_operand.vmem [shape: bf16[4,8,8,256], index: 4, kind: output, shape index: {0}]
  %s5 = inlined_call_operand.vmem [shape: f32[8,256], index: 5, kind: output, shape index: {1}]
  %6 = xla_tuple %s4, %s5
  %s7 = sld [smem:[#allocation0]]
  $region61: #{_lambda_.4} parent=0
    _
  %s9 = ssub.s32 1, %s7
  %s10 = scalar_select 0, %s9, %s7
  loop: start=0, step=1, limit=4
  $region2: #{_lambda_.4} parent=0 // loop_pre_header
    _
  $region3: #{_lambda_.4} parent=0 // loop_header
    %s12 = sphi 0, %s16
    %p13 = scmp.ge.s32.totalorder %s12, 4
    %s22 = sphi 0, %s24
    %s25 = sphi 0, %s22
    %s26 = sphi 0, %s25
    %s42 = sphi 0, %s26
    %s46 = sphi 0, %s46
    %s48 = sphi 0, %s46
    %s49 = sphi 0, %s48
    %s63 = sphi 0, %s49
    %s67 = sphi 0, %s67
    %s69 = sphi 0, %s67
    %s70 = sphi 0, %s69
    %s84 = sphi 0, %s70
    %s88 = sphi 0, %s88
    %s90 = sphi 0, %s88
    %s91 = sphi 0, %s90
    %s105 = sphi 0, %s91
    %s111 = sphi 0, %s113
    %s114 = sphi 0, %s111
    %s115 = sphi 0, %s114
    %s131 = sphi 0, %s115
    %s135 = sphi 0, %s135
    %s137 = sphi 0, %s135
    %s138 = sphi 0, %s137
    %s152 = sphi 0, %s138
  $region4: #{_lambda_.4} parent=0 // loop_header_branch
    %15 = sbr.rel (%p13) target = $region8
  $region5: #{_lambda_.4} parent=0 // loop_body
    %s17 = ssub.s32 %s12, 1
    %s18 = ssub.s32 %s12, 2
    %s19 = sadd.s32 %s12, 1
    %s20 = ssub.s32 %s12, %s19
    %p21 = scmp.eq.s32.totalorder %s20, 0
    %s23 = sadd.s32 %s22, 1
    %s24 = scalar_select %p21, %s22, %s23
    %p27 = pneg %p21
    %p28 = scmp.eq.s32.totalorder %s12, 1
    %p29 = por %p27, %p28
    %p30 = scmp.ne.s32.totalorder %s22, %s25
    %p31 = scmp.eq.s32.totalorder %s12, 0
    %p32 = por %p30, %p31
    %p33 = scmp.ne.s32.totalorder %s22, %s25
    %p34 = scmp.eq.s32.totalorder %s17, 1
    %p35 = por %p33, %p34
    %p36 = scmp.ne.s32.totalorder %s25, %s26
    %p37 = scmp.eq.s32.totalorder %s17, 0
    %p38 = por %p36, %p37
    %p39 = scmp.ne.s32.totalorder %s25, %s26
    %p40 = scmp.eq.s32.totalorder %s18, 1
    %p41 = por %p39, %p40
    %p43 = scmp.ne.s32.totalorder %s26, %s42
    %p44 = scmp.eq.s32.totalorder %s18, 0
    %p45 = por %p43, %p44
    %s47 = sadd.s32 %s46, 1
    %p50 = scmp.eq.s32.totalorder %s12, 1
    %p51 = scmp.ne.s32.totalorder %s46, %s48
    %p52 = scmp.eq.s32.totalorder %s12, 0
    %p53 = por %p51, %p52
    %p54 = scmp.ne.s32.totalorder %s46, %s48
    %p55 = scmp.eq.s32.totalorder %s17, 1
    %p56 = por %p54, %p55
    %p57 = scmp.ne.s32.totalorder %s48, %s49
    %p58 = scmp.eq.s32.totalorder %s17, 0
    %p59 = por %p57, %p58
    %p60 = scmp.ne.s32.totalorder %s48, %s49
    %p61 = scmp.eq.s32.totalorder %s18, 1
    %p62 = por %p60, %p61
    %p64 = scmp.ne.s32.totalorder %s49, %s63
    %p65 = scmp.eq.s32.totalorder %s18, 0
    %p66 = por %p64, %p65
    %s68 = sadd.s32 %s67, 1
    %p71 = scmp.eq.s32.totalorder %s12, 1
    %p72 = scmp.ne.s32.totalorder %s67, %s69
    %p73 = scmp.eq.s32.totalorder %s12, 0
    %p74 = por %p72, %p73
    %p75 = scmp.ne.s32.totalorder %s67, %s69
    %p76 = scmp.eq.s32.totalorder %s17, 1
    %p77 = por %p75, %p76
    %p78 = scmp.ne.s32.totalorder %s69, %s70
    %p79 = scmp.eq.s32.totalorder %s17, 0
    %p80 = por %p78, %p79
    %p81 = scmp.ne.s32.totalorder %s69, %s70
    %p82 = scmp.eq.s32.totalorder %s18, 1
    %p83 = por %p81, %p82
    %p85 = scmp.ne.s32.totalorder %s70, %s84
    %p86 = scmp.eq.s32.totalorder %s18, 0
    %p87 = por %p85, %p86
    %s89 = sadd.s32 %s88, 1
    %p92 = scmp.eq.s32.totalorder %s12, 1
    %p93 = scmp.ne.s32.totalorder %s88, %s90
    %p94 = scmp.eq.s32.totalorder %s12, 0
    %p95 = por %p93, %p94
    %p96 = scmp.ne.s32.totalorder %s88, %s90
    %p97 = scmp.eq.s32.totalorder %s17, 1
    %p98 = por %p96, %p97
    %p99 = scmp.ne.s32.totalorder %s90, %s91
    %p100 = scmp.eq.s32.totalorder %s17, 0
    %p101 = por %p99, %p100
    %p102 = scmp.ne.s32.totalorder %s90, %s91
    %p103 = scmp.eq.s32.totalorder %s18, 1
    %p104 = por %p102, %p103
    %p106 = scmp.ne.s32.totalorder %s91, %s105
    %p107 = scmp.eq.s32.totalorder %s18, 0
    %p108 = por %p106, %p107
    %s109 = ssub.s32 %s12, %s19
    %p110 = scmp.eq.s32.totalorder %s109, 0
    %s112 = sadd.s32 %s111, 1
    %s113 = scalar_select %p110, %s111, %s112
    %p116 = pneg %p110
    %p117 = scmp.eq.s32.totalorder %s12, 1
    %p118 = por %p116, %p117
    %p119 = scmp.ne.s32.totalorder %s111, %s114
    %p120 = scmp.eq.s32.totalorder %s12, 0
    %p121 = por %p119, %p120
    %p122 = scmp.ne.s32.totalorder %s111, %s114
    %p123 = scmp.eq.s32.totalorder %s17, 1
    %p124 = por %p122, %p123
    %p125 = scmp.ne.s32.totalorder %s114, %s115
    %p126 = scmp.eq.s32.totalorder %s17, 0
    %p127 = por %p125, %p126
    %p128 = scmp.ne.s32.totalorder %s114, %s115
    %p129 = scmp.eq.s32.totalorder %s18, 1
    %p130 = por %p128, %p129
    %p132 = scmp.ne.s32.totalorder %s115, %s131
    %p133 = scmp.eq.s32.totalorder %s18, 0
    %p134 = por %p132, %p133
    %s136 = sadd.s32 %s135, 1
    %p139 = scmp.eq.s32.totalorder %s12, 1
    %p140 = scmp.ne.s32.totalorder %s135, %s137
    %p141 = scmp.eq.s32.totalorder %s12, 0
    %p142 = por %p140, %p141
    %p143 = scmp.ne.s32.totalorder %s135, %s137
    %p144 = scmp.eq.s32.totalorder %s17, 1
    %p145 = por %p143, %p144
    %p146 = scmp.ne.s32.totalorder %s137, %s138
    %p147 = scmp.eq.s32.totalorder %s17, 0
    %p148 = por %p146, %p147
    %p149 = scmp.ne.s32.totalorder %s137, %s138
    %p150 = scmp.eq.s32.totalorder %s18, 1
    %p151 = por %p149, %p150
    %p153 = scmp.ne.s32.totalorder %s138, %s152
    %p154 = scmp.eq.s32.totalorder %s18, 0
    %p155 = por %p153, %p154
    %p156 = scmp.le.s32.totalorder 1, %s12
    %p157 = scmp.lt.s32.totalorder %s12, 3
    %p158 = pnand %p156, %p157
    %p159 = pneg %p158
    // Predicated region
    $region9: #{_lambda_.4} parent=5 // pred_check
      _
    $region10: #{_lambda_.4} parent=5 // pred_check_branch
      %161 = sbr.rel (%p158) target = $region12
    $region11: #{_lambda_.4} parent=5 // pred_region
      %s162 = ssub.s32 %s12, 1
      // Predicated region
      $region13: #{_lambda_.4} parent=11 // pred_check
        %p163 = pneg %p59
      $region14: #{_lambda_.4} parent=11 // pred_check_branch
        %165 = sbr.rel (%p163) target = $region16
      $region15: #{_lambda_.4} parent=11 // pred_region
        _
      $region16: #{_lambda_.4} parent=11 // pred_fallthru
        _
      // Predicated region
      $region17: #{_lambda_.4} parent=11 // pred_check
        %p166 = pneg %p80
      $region18: #{_lambda_.4} parent=11 // pred_check_branch
        %168 = sbr.rel (%p166) target = $region20
      $region19: #{_lambda_.4} parent=11 // pred_region
        _
      $region20: #{_lambda_.4} parent=11 // pred_fallthru
        _
      // Predicated region
      $region21: #{_lambda_.4} parent=11 // pred_check
        %p169 = pneg %p101
      $region22: #{_lambda_.4} parent=11 // pred_check_branch
        %171 = sbr.rel (%p169) target = $region24
      $region23: #{_lambda_.4} parent=11 // pred_region
        _
      $region24: #{_lambda_.4} parent=11 // pred_fallthru
        _
    $region12: #{_lambda_.4} parent=5 // pred_fallthru
      _
    %p172 = scmp.lt.s32.totalorder %s12, 2
    // Predicated region
    $region25: #{_lambda_.4} parent=5 // pred_check
      %p173 = pneg %p172
    $region26: #{_lambda_.4} parent=5 // pred_check_branch
      %175 = sbr.rel (%p173) target = $region28
    $region27: #{_lambda_.4} parent=5 // pred_region
      // Predicated region
      $region29: #{_lambda_.4} parent=27 // pred_check
        %p176 = pneg %p32
      $region30: #{_lambda_.4} parent=27 // pred_check_branch
        %178 = sbr.rel (%p176) target = $region32
      $region31: #{_lambda_.4} parent=27 // pred_region
        %s179 = smul.u32 2, %s12
        %p180 = scmp.lt.s32.totalorder %s179, 3
        %s181 = scalar_select %p180, %s179, 3
        %s182 = smul.addr %s181, 16
        %s183 = smul.addr %s182, 4
        %s184 = scalar_lea.vmem %s0, %s183
        %s185 = smul.u32 2, %s12
      $region32: #{_lambda_.4} parent=27 // pred_fallthru
        _
    $region28: #{_lambda_.4} parent=5 // pred_fallthru
      _
    %p186 = scmp.le.s32.totalorder 1, %s12
    %p187 = scmp.lt.s32.totalorder %s12, 3
    %p188 = pnand %p186, %p187
    %p189 = pneg %p188
    // Predicated region
    $region33: #{_lambda_.4} parent=5 // pred_check
      _
    $region34: #{_lambda_.4} parent=5 // pred_check_branch
      %191 = sbr.rel (%p188) target = $region36
    $region35: #{_lambda_.4} parent=5 // pred_region
      %s192 = ssub.s32 %s12, 1
      %s193 = smul.u32 2, %s17
      %p194 = scmp.lt.s32.totalorder %s193, 3
      %s195 = scalar_select %p194, %s193, 3
      %s196 = smul.addr %s195, 16
      %s197 = smul.addr %s196, 4
      %s198 = scalar_lea.vmem %s0, %s197
      %p199 = pneg %p38
      %p200 = pneg %p35
      %p201 = pneg %p59
      %p202 = pneg %p56
      %p203 = pneg %p80
      %p204 = pneg %p77
      %p205 = pneg %p101
      %p206 = pneg %p98
      %p207 = pneg %p127
      %p208 = pneg %p124
      %s209 = smul.u32 2, %s17
      %p210 = scmp.lt.s32.totalorder %s209, 3
      %s211 = scalar_select %p210, %s209, 3
      %s212 = smul.addr %s211, 16
      %s213 = smul.addr %s212, 4
      %s214 = scalar_lea.vmem %s4, %s213
      %p215 = pneg %p148
      %p216 = pneg %p145
      %s217 = smul.u32 2, %s17
      %p218 = scmp.lt.s32.totalorder %s217, 3
      %s219 = scalar_select %p218, %s217, 3
      %s220 = smul.addr %s219, 16
      %s221 = smul.addr %s220, 4
      %s222 = scalar_lea.vmem %s0, %s221
      %s223 = smul.u32 2, %s17
      %s224 = smul.u32 2, %s17
      %p225 = scmp.lt.s32.totalorder %s224, 3
      %s226 = scalar_select %p225, %s224, 3
      %s227 = smul.addr %s226, 16
      %s228 = smul.addr %s227, 4
      %s229 = scalar_lea.vmem %s4, %s228
      %s230 = smul.u32 2, %s17
      %p234 = scmp.eq.s32.totalorder %s17, 0
      // Predicated region
      $region37: #{_lambda_.4} parent=35 // pred_check
        %p235 = pneg %p234
      $region38: #{_lambda_.4} parent=35 // pred_check_branch
        %237 = sbr.rel (%p235) target = $region40
      $region39: #{_lambda_.4} parent=35 // pred_region
        %238 = vst [vmem:[%s5] sm:$0xff] 0.0
        %239 = vst [vmem:[%s5 + $0x8] sm:$0xff] 0.0
      $region40: #{_lambda_.4} parent=35 // pred_fallthru
        _
      %v240 = vld [vmem:[%s222] sm:$0xff]
      %v241 = vld [vmem:[%s222 + $0x8] sm:$0xff]
      %v242 = vld [vmem:[%s222 + $0x10] sm:$0xff]
      %v243 = vld [vmem:[%s222 + $0x18] sm:$0xff]
      %v244 = vld [vmem:[%s222 + $0x20] sm:$0xff]
      %v245 = vld [vmem:[%s222 + $0x28] sm:$0xff]
      %v246 = vld [vmem:[%s222 + $0x30] sm:$0xff]
      %v247 = vld [vmem:[%s222 + $0x38] sm:$0xff]
      %v248 = vld [vmem:[%s222 + $0x40] sm:$0xff]
      %v249 = vld [vmem:[%s222 + $0x48] sm:$0xff]
      %v250 = vld [vmem:[%s222 + $0x50] sm:$0xff]
      %v251 = vld [vmem:[%s222 + $0x58] sm:$0xff]
      %v252 = vld [vmem:[%s222 + $0x60] sm:$0xff]
      %v253 = vld [vmem:[%s222 + $0x68] sm:$0xff]
      %v254 = vld [vmem:[%s222 + $0x70] sm:$0xff]
      %v255 = vld [vmem:[%s222 + $0x78] sm:$0xff]
      %v256 = vunpack.c.l.bf16 %v240
      %v257 = vunpack.c.h.bf16 %v240
      %v258 = vunpack.c.l.bf16 %v241
      %v259 = vunpack.c.h.bf16 %v241
      %v260 = vunpack.c.l.bf16 %v242
      %v261 = vunpack.c.h.bf16 %v242
      %v262 = vunpack.c.l.bf16 %v243
      %v263 = vunpack.c.h.bf16 %v243
      %v264 = vunpack.c.l.bf16 %v244
      %v265 = vunpack.c.h.bf16 %v244
      %v266 = vunpack.c.l.bf16 %v245
      %v267 = vunpack.c.h.bf16 %v245
      %v268 = vunpack.c.l.bf16 %v246
      %v269 = vunpack.c.h.bf16 %v246
      %v270 = vunpack.c.l.bf16 %v247
      %v271 = vunpack.c.h.bf16 %v247
      %v272 = vunpack.c.l.bf16 %v248
      %v273 = vunpack.c.h.bf16 %v248
      %v274 = vunpack.c.l.bf16 %v249
      %v275 = vunpack.c.h.bf16 %v249
      %v276 = vunpack.c.l.bf16 %v250
      %v277 = vunpack.c.h.bf16 %v250
      %v278 = vunpack.c.l.bf16 %v251
      %v279 = vunpack.c.h.bf16 %v251
      %v280 = vunpack.c.l.bf16 %v252
      %v281 = vunpack.c.h.bf16 %v252
      %v282 = vunpack.c.l.bf16 %v253
      %v283 = vunpack.c.h.bf16 %v253
      %v284 = vunpack.c.l.bf16 %v254
      %v285 = vunpack.c.h.bf16 %v254
      %v286 = vunpack.c.l.bf16 %v255
      %v287 = vunpack.c.h.bf16 %v255
      %v288 = vld [vmem:[%s1] sm:$0x3]
      %v290 = vperm.slane %v288, 0
      %v291 = vperm.slane %v288, 1
      %v294 = vmul.f32 %v256, %v290
      %v295 = vmul.f32 %v257, %v291
      %v296 = vmul.f32 %v258, %v290
      %v297 = vmul.f32 %v259, %v291
      %v298 = vmul.f32 %v260, %v290
      %v299 = vmul.f32 %v261, %v291
      %v300 = vmul.f32 %v262, %v290
      %v301 = vmul.f32 %v263, %v291
      %v302 = vmul.f32 %v264, %v290
      %v303 = vmul.f32 %v265, %v291
      %v304 = vmul.f32 %v266, %v290
      %v305 = vmul.f32 %v267, %v291
      %v306 = vmul.f32 %v268, %v290
      %v307 = vmul.f32 %v269, %v291
      %v308 = vmul.f32 %v270, %v290
      %v309 = vmul.f32 %v271, %v291
      %v310 = vmul.f32 %v272, %v290
      %v311 = vmul.f32 %v273, %v291
      %v312 = vmul.f32 %v274, %v290
      %v313 = vmul.f32 %v275, %v291
      %v314 = vmul.f32 %v276, %v290
      %v315 = vmul.f32 %v277, %v291
      %v316 = vmul.f32 %v278, %v290
      %v317 = vmul.f32 %v279, %v291
      %v318 = vmul.f32 %v280, %v290
      %v319 = vmul.f32 %v281, %v291
      %v320 = vmul.f32 %v282, %v290
      %v321 = vmul.f32 %v283, %v291
      %v322 = vmul.f32 %v284, %v290
      %v323 = vmul.f32 %v285, %v291
      %v324 = vmul.f32 %v286, %v290
      %v325 = vmul.f32 %v287, %v291
      %v326 = vld [vmem:[%s2] sm:$0x3]
      %v328 = vperm.slane %v326, 0
      %v329 = vperm.slane %v326, 1
      %v332 = vadd.f32 %v294, %v328
      %v333 = vadd.f32 %v295, %v329
      %v334 = vadd.f32 %v296, %v328
      %v335 = vadd.f32 %v297, %v329
      %v336 = vadd.f32 %v298, %v328
      %v337 = vadd.f32 %v299, %v329
      %v338 = vadd.f32 %v300, %v328
      %v339 = vadd.f32 %v301, %v329
      %v340 = vadd.f32 %v302, %v328
      %v341 = vadd.f32 %v303, %v329
      %v342 = vadd.f32 %v304, %v328
      %v343 = vadd.f32 %v305, %v329
      %v344 = vadd.f32 %v306, %v328
      %v345 = vadd.f32 %v307, %v329
      %v346 = vadd.f32 %v308, %v328
      %v347 = vadd.f32 %v309, %v329
      %v348 = vadd.f32 %v310, %v328
      %v349 = vadd.f32 %v311, %v329
      %v350 = vadd.f32 %v312, %v328
      %v351 = vadd.f32 %v313, %v329
      %v352 = vadd.f32 %v314, %v328
      %v353 = vadd.f32 %v315, %v329
      %v354 = vadd.f32 %v316, %v328
      %v355 = vadd.f32 %v317, %v329
      %v356 = vadd.f32 %v318, %v328
      %v357 = vadd.f32 %v319, %v329
      %v358 = vadd.f32 %v320, %v328
      %v359 = vadd.f32 %v321, %v329
      %v360 = vadd.f32 %v322, %v328
      %v361 = vadd.f32 %v323, %v329
      %v362 = vadd.f32 %v324, %v328
      %v363 = vadd.f32 %v325, %v329
      %v364 = vmax.f32 %v332, 0.0
      %v365 = vmax.f32 %v333, 0.0
      %v366 = vmax.f32 %v334, 0.0
      %v367 = vmax.f32 %v335, 0.0
      %v368 = vmax.f32 %v336, 0.0
      %v369 = vmax.f32 %v337, 0.0
      %v370 = vmax.f32 %v338, 0.0
      %v371 = vmax.f32 %v339, 0.0
      %v372 = vmax.f32 %v340, 0.0
      %v373 = vmax.f32 %v341, 0.0
      %v374 = vmax.f32 %v342, 0.0
      %v375 = vmax.f32 %v343, 0.0
      %v376 = vmax.f32 %v344, 0.0
      %v377 = vmax.f32 %v345, 0.0
      %v378 = vmax.f32 %v346, 0.0
      %v379 = vmax.f32 %v347, 0.0
      %v380 = vmax.f32 %v348, 0.0
      %v381 = vmax.f32 %v349, 0.0
      %v382 = vmax.f32 %v350, 0.0
      %v383 = vmax.f32 %v351, 0.0
      %v384 = vmax.f32 %v352, 0.0
      %v385 = vmax.f32 %v353, 0.0
      %v386 = vmax.f32 %v354, 0.0
      %v387 = vmax.f32 %v355, 0.0
      %v388 = vmax.f32 %v356, 0.0
      %v389 = vmax.f32 %v357, 0.0
      %v390 = vmax.f32 %v358, 0.0
      %v391 = vmax.f32 %v359, 0.0
      %v392 = vmax.f32 %v360, 0.0
      %v393 = vmax.f32 %v361, 0.0
      %v394 = vmax.f32 %v362, 0.0
      %v395 = vmax.f32 %v363, 0.0
      %v396 = vpack.c.bf16 %v365, %v364
      %v397 = vpack.c.bf16 %v367, %v366
      %v398 = vpack.c.bf16 %v369, %v368
      %v399 = vpack.c.bf16 %v371, %v370
      %v400 = vpack.c.bf16 %v373, %v372
      %v401 = vpack.c.bf16 %v375, %v374
      %v402 = vpack.c.bf16 %v377, %v376
      %v403 = vpack.c.bf16 %v379, %v378
      %v404 = vpack.c.bf16 %v381, %v380
      %v405 = vpack.c.bf16 %v383, %v382
      %v406 = vpack.c.bf16 %v385, %v384
      %v407 = vpack.c.bf16 %v387, %v386
      %v408 = vpack.c.bf16 %v389, %v388
      %v409 = vpack.c.bf16 %v391, %v390
      %v410 = vpack.c.bf16 %v393, %v392
      %v411 = vpack.c.bf16 %v395, %v394
      %v428 = vunpack.c.l.b16 %v396
      %v429 = vunpack.c.h.b16 %v396
      %v430 = vunpack.c.l.b16 %v397
      %v431 = vunpack.c.h.b16 %v397
      %v432 = vunpack.c.l.b16 %v398
      %v433 = vunpack.c.h.b16 %v398
      %v434 = vunpack.c.l.b16 %v399
      %v435 = vunpack.c.h.b16 %v399
      %v436 = vunpack.c.l.b16 %v400
      %v437 = vunpack.c.h.b16 %v400
      %v438 = vunpack.c.l.b16 %v401
      %v439 = vunpack.c.h.b16 %v401
      %v440 = vunpack.c.l.b16 %v402
      %v441 = vunpack.c.h.b16 %v402
      %v442 = vunpack.c.l.b16 %v403
      %v443 = vunpack.c.h.b16 %v403
      %v444 = vunpack.c.l.b16 %v404
      %v445 = vunpack.c.h.b16 %v404
      %v446 = vunpack.c.l.b16 %v405
      %v447 = vunpack.c.h.b16 %v405
      %v448 = vunpack.c.l.b16 %v406
      %v449 = vunpack.c.h.b16 %v406
      %v450 = vunpack.c.l.b16 %v407
      %v451 = vunpack.c.h.b16 %v407
      %v452 = vunpack.c.l.b16 %v408
      %v453 = vunpack.c.h.b16 %v408
      %v454 = vunpack.c.l.b16 %v409
      %v455 = vunpack.c.h.b16 %v409
      %v456 = vunpack.c.l.b16 %v410
      %v457 = vunpack.c.h.b16 %v410
      %v458 = vunpack.c.l.b16 %v411
      %v459 = vunpack.c.h.b16 %v411
      %v461 = vunpack.c.l.b16 0
      %v462 = vlaneseq
      %v463 = vshrl.u32 %v462, 7
      %v464 = vadd.s32 %v463, 8
      %v465 = vadd.s32 %v463, 16
      %v466 = vadd.s32 %v463, 24
      %v467 = vadd.s32 %v463, 32
      %v468 = vadd.s32 %v463, 40
      %v469 = vadd.s32 %v463, 48
      %v470 = vadd.s32 %v463, 56
      %v471 = vadd.s32 %v463, 64
      %v472 = vadd.s32 %v463, 72
      %v473 = vadd.s32 %v463, 80
      %v474 = vadd.s32 %v463, 88
      %v475 = vadd.s32 %v463, 96
      %v476 = vadd.s32 %v463, 104
      %v477 = vadd.s32 %v463, 112
      %v478 = vadd.s32 %v463, 120
      %v479 = vadd.s32 %v463, 128
      %v480 = vadd.s32 %v463, 136
      %v481 = vadd.s32 %v463, 144
      %v482 = vadd.s32 %v463, 152
      %vm483 = vcmp.lt.s32.totalorder %v463, 0
      %v484 = vsub.s32 0, %v463
      %v485 = vsel %vm483, %v484, %v463
      %v486 = vshrl.u32 %v485, 3
      %v487 = vand.u32 %v485, 7
      %v488 = vsub.s32 0, %v487
      %v489 = vsel %vm483, %v488, %v487
      %vm490 = vcmp.lt.s32.totalorder %v464, 0
      %v491 = vsub.s32 0, %v464
      %v492 = vsel %vm490, %v491, %v464
      %v493 = vshrl.u32 %v492, 3
      %v494 = vand.u32 %v492, 7
      %v495 = vsub.s32 0, %v494
      %v496 = vsel %vm490, %v495, %v494
      %vm497 = vcmp.lt.s32.totalorder %v465, 0
      %v498 = vsub.s32 0, %v465
      %v499 = vsel %vm497, %v498, %v465
      %v500 = vshrl.u32 %v499, 3
      %v501 = vand.u32 %v499, 7
      %v502 = vsub.s32 0, %v501
      %v503 = vsel %vm497, %v502, %v501
      %vm504 = vcmp.lt.s32.totalorder %v466, 0
      %v505 = vsub.s32 0, %v466
      %v506 = vsel %vm504, %v505, %v466
      %v507 = vshrl.u32 %v506, 3
      %v508 = vand.u32 %v506, 7
      %v509 = vsub.s32 0, %v508
      %v510 = vsel %vm504, %v509, %v508
      %vm511 = vcmp.lt.s32.totalorder %v467, 0
      %v512 = vsub.s32 0, %v467
      %v513 = vsel %vm511, %v512, %v467
      %v514 = vshrl.u32 %v513, 3
      %v515 = vand.u32 %v513, 7
      %v516 = vsub.s32 0, %v515
      %v517 = vsel %vm511, %v516, %v515
      %vm518 = vcmp.lt.s32.totalorder %v468, 0
      %v519 = vsub.s32 0, %v468
      %v520 = vsel %vm518, %v519, %v468
      %v521 = vshrl.u32 %v520, 3
      %v522 = vand.u32 %v520, 7
      %v523 = vsub.s32 0, %v522
      %v524 = vsel %vm518, %v523, %v522
      %vm525 = vcmp.lt.s32.totalorder %v469, 0
      %v526 = vsub.s32 0, %v469
      %v527 = vsel %vm525, %v526, %v469
      %v528 = vshrl.u32 %v527, 3
      %v529 = vand.u32 %v527, 7
      %v530 = vsub.s32 0, %v529
      %v531 = vsel %vm525, %v530, %v529
      %vm532 = vcmp.lt.s32.totalorder %v470, 0
      %v533 = vsub.s32 0, %v470
      %v534 = vsel %vm532, %v533, %v470
      %v535 = vshrl.u32 %v534, 3
      %v536 = vand.u32 %v534, 7
      %v537 = vsub.s32 0, %v536
      %v538 = vsel %vm532, %v537, %v536
      %vm539 = vcmp.lt.s32.totalorder %v471, 0
      %v540 = vsub.s32 0, %v471
      %v541 = vsel %vm539, %v540, %v471
      %v542 = vshrl.u32 %v541, 3
      %v543 = vand.u32 %v541, 7
      %v544 = vsub.s32 0, %v543
      %v545 = vsel %vm539, %v544, %v543
      %vm546 = vcmp.lt.s32.totalorder %v472, 0
      %v547 = vsub.s32 0, %v472
      %v548 = vsel %vm546, %v547, %v472
      %v549 = vshrl.u32 %v548, 3
      %v550 = vand.u32 %v548, 7
      %v551 = vsub.s32 0, %v550
      %v552 = vsel %vm546, %v551, %v550
      %vm553 = vcmp.lt.s32.totalorder %v473, 0
      %v554 = vsub.s32 0, %v473
      %v555 = vsel %vm553, %v554, %v473
      %v556 = vshrl.u32 %v555, 3
      %v557 = vand.u32 %v555, 7
      %v558 = vsub.s32 0, %v557
      %v559 = vsel %vm553, %v558, %v557
      %vm560 = vcmp.lt.s32.totalorder %v474, 0
      %v561 = vsub.s32 0, %v474
      %v562 = vsel %vm560, %v561, %v474
      %v563 = vshrl.u32 %v562, 3
      %v564 = vand.u32 %v562, 7
      %v565 = vsub.s32 0, %v564
      %v566 = vsel %vm560, %v565, %v564
      %vm567 = vcmp.lt.s32.totalorder %v475, 0
      %v568 = vsub.s32 0, %v475
      %v569 = vsel %vm567, %v568, %v475
      %v570 = vshrl.u32 %v569, 3
      %v571 = vand.u32 %v569, 7
      %v572 = vsub.s32 0, %v571
      %v573 = vsel %vm567, %v572, %v571
      %vm574 = vcmp.lt.s32.totalorder %v476, 0
      %v575 = vsub.s32 0, %v476
      %v576 = vsel %vm574, %v575, %v476
      %v577 = vshrl.u32 %v576, 3
      %v578 = vand.u32 %v576, 7
      %v579 = vsub.s32 0, %v578
      %v580 = vsel %vm574, %v579, %v578
      %vm581 = vcmp.lt.s32.totalorder %v477, 0
      %v582 = vsub.s32 0, %v477
      %v583 = vsel %vm581, %v582, %v477
      %v584 = vshrl.u32 %v583, 3
      %v585 = vand.u32 %v583, 7
      %v586 = vsub.s32 0, %v585
      %v587 = vsel %vm581, %v586, %v585
      %vm588 = vcmp.lt.s32.totalorder %v478, 0
      %v589 = vsub.s32 0, %v478
      %v590 = vsel %vm588, %v589, %v478
      %v591 = vshrl.u32 %v590, 3
      %v592 = vand.u32 %v590, 7
      %v593 = vsub.s32 0, %v592
      %v594 = vsel %vm588, %v593, %v592
      %vm595 = vcmp.lt.s32.totalorder %v479, 0
      %v596 = vsub.s32 0, %v479
      %v597 = vsel %vm595, %v596, %v479
      %v598 = vshrl.u32 %v597, 3
      %v599 = vand.u32 %v597, 7
      %v600 = vsub.s32 0, %v599
      %v601 = vsel %vm595, %v600, %v599
      %vm602 = vcmp.lt.s32.totalorder %v480, 0
      %v603 = vsub.s32 0, %v480
      %v604 = vsel %vm602, %v603, %v480
      %v605 = vshrl.u32 %v604, 3
      %v606 = vand.u32 %v604, 7
      %v607 = vsub.s32 0, %v606
      %v608 = vsel %vm602, %v607, %v606
      %vm609 = vcmp.lt.s32.totalorder %v481, 0
      %v610 = vsub.s32 0, %v481
      %v611 = vsel %vm609, %v610, %v481
      %v612 = vshrl.u32 %v611, 3
      %v613 = vand.u32 %v611, 7
      %v614 = vsub.s32 0, %v613
      %v615 = vsel %vm609, %v614, %v613
      %vm616 = vcmp.lt.s32.totalorder %v482, 0
      %v617 = vsub.s32 0, %v482
      %v618 = vsel %vm616, %v617, %v482
      %v619 = vshrl.u32 %v618, 3
      %v620 = vand.u32 %v618, 7
      %v621 = vsub.s32 0, %v620
      %v622 = vsel %vm616, %v621, %v620
      %vm623 = vcmp.ne.s32.totalorder %v489, 0
      %vm624 = vcmp.ne.s32.totalorder %v496, 0
      %vm625 = vcmp.ne.s32.totalorder %v503, 0
      %vm626 = vcmp.ne.s32.totalorder %v510, 0
      %vm627 = vcmp.ne.s32.totalorder %v517, 0
      %vm628 = vcmp.ne.s32.totalorder %v524, 0
      %vm629 = vcmp.ne.s32.totalorder %v531, 0
      %vm630 = vcmp.ne.s32.totalorder %v538, 0
      %vm631 = vcmp.ne.s32.totalorder %v545, 0
      %vm632 = vcmp.ne.s32.totalorder %v552, 0
      %vm633 = vcmp.ne.s32.totalorder %v559, 0
      %vm634 = vcmp.ne.s32.totalorder %v566, 0
      %vm635 = vcmp.ne.s32.totalorder %v573, 0
      %vm636 = vcmp.ne.s32.totalorder %v580, 0
      %vm637 = vcmp.ne.s32.totalorder %v587, 0
      %vm638 = vcmp.ne.s32.totalorder %v594, 0
      %vm639 = vcmp.ne.s32.totalorder %v601, 0
      %vm640 = vcmp.ne.s32.totalorder %v608, 0
      %vm641 = vcmp.ne.s32.totalorder %v615, 0
      %vm642 = vcmp.ne.s32.totalorder %v622, 0
      %vm643 = vcmp.lt.s32.totalorder %v489, 0
      %vm644 = vcmp.lt.s32.totalorder %v496, 0
      %vm645 = vcmp.lt.s32.totalorder %v503, 0
      %vm646 = vcmp.lt.s32.totalorder %v510, 0
      %vm647 = vcmp.lt.s32.totalorder %v517, 0
      %vm648 = vcmp.lt.s32.totalorder %v524, 0
      %vm649 = vcmp.lt.s32.totalorder %v531, 0
      %vm650 = vcmp.lt.s32.totalorder %v538, 0
      %vm651 = vcmp.lt.s32.totalorder %v545, 0
      %vm652 = vcmp.lt.s32.totalorder %v552, 0
      %vm653 = vcmp.lt.s32.totalorder %v559, 0
      %vm654 = vcmp.lt.s32.totalorder %v566, 0
      %vm655 = vcmp.lt.s32.totalorder %v573, 0
      %vm656 = vcmp.lt.s32.totalorder %v580, 0
      %vm657 = vcmp.lt.s32.totalorder %v587, 0
      %vm658 = vcmp.lt.s32.totalorder %v594, 0
      %vm659 = vcmp.lt.s32.totalorder %v601, 0
      %vm660 = vcmp.lt.s32.totalorder %v608, 0
      %vm661 = vcmp.lt.s32.totalorder %v615, 0
      %vm662 = vcmp.lt.s32.totalorder %v622, 0
      %vm663 = vmand %vm643, %vm623
      %vm664 = vmand %vm644, %vm624
      %vm665 = vmand %vm645, %vm625
      %vm666 = vmand %vm646, %vm626
      %vm667 = vmand %vm647, %vm627
      %vm668 = vmand %vm648, %vm628
      %vm669 = vmand %vm649, %vm629
      %vm670 = vmand %vm650, %vm630
      %vm671 = vmand %vm651, %vm631
      %vm672 = vmand %vm652, %vm632
      %vm673 = vmand %vm653, %vm633
      %vm674 = vmand %vm654, %vm634
      %vm675 = vmand %vm655, %vm635
      %vm676 = vmand %vm656, %vm636
      %vm677 = vmand %vm657, %vm637
      %vm678 = vmand %vm658, %vm638
      %vm679 = vmand %vm659, %vm639
      %vm680 = vmand %vm660, %vm640
      %vm681 = vmand %vm661, %vm641
      %vm682 = vmand %vm662, %vm642
      %v683 = vadd.s32 %v489, 8
      %v684 = vadd.s32 %v496, 8
      %v685 = vadd.s32 %v503, 8
      %v686 = vadd.s32 %v510, 8
      %v687 = vadd.s32 %v517, 8
      %v688 = vadd.s32 %v524, 8
      %v689 = vadd.s32 %v531, 8
      %v690 = vadd.s32 %v538, 8
      %v691 = vadd.s32 %v545, 8
      %v692 = vadd.s32 %v552, 8
      %v693 = vadd.s32 %v559, 8
      %v694 = vadd.s32 %v566, 8
      %v695 = vadd.s32 %v573, 8
      %v696 = vadd.s32 %v580, 8
      %v697 = vadd.s32 %v587, 8
      %v698 = vadd.s32 %v594, 8
      %v699 = vadd.s32 %v601, 8
      %v700 = vadd.s32 %v608, 8
      %v701 = vadd.s32 %v615, 8
      %v702 = vadd.s32 %v622, 8
      %v703 = vsel %vm663, %v683, %v489
      %v704 = vsel %vm664, %v684, %v496
      %v705 = vsel %vm665, %v685, %v503
      %v706 = vsel %vm666, %v686, %v510
      %v707 = vsel %vm667, %v687, %v517
      %v708 = vsel %vm668, %v688, %v524
      %v709 = vsel %vm669, %v689, %v531
      %v710 = vsel %vm670, %v690, %v538
      %v711 = vsel %vm671, %v691, %v545
      %v712 = vsel %vm672, %v692, %v552
      %v713 = vsel %vm673, %v693, %v559
      %v714 = vsel %vm674, %v694, %v566
      %v715 = vsel %vm675, %v695, %v573
      %v716 = vsel %vm676, %v696, %v580
      %v717 = vsel %vm677, %v697, %v587
      %v718 = vsel %vm678, %v698, %v594
      %v719 = vsel %vm679, %v699, %v601
      %v720 = vsel %vm680, %v700, %v608
      %v721 = vsel %vm681, %v701, %v615
      %v722 = vsel %vm682, %v702, %v622
      %v723 = vpack.c.b16 %v428, %v461
      %v724 = vpack.c.b16 %v429, %v461
      %v725 = vpack.c.b16 %v432, %v430
      %v726 = vpack.c.b16 %v433, %v431
      %v727 = vpack.c.b16 %v436, %v434
      %v728 = vpack.c.b16 %v437, %v435
      %v729 = vpack.c.b16 %v440, %v438
      %v730 = vpack.c.b16 %v441, %v439
      %v731 = vpack.c.b16 %v461, %v442
      %v732 = vpack.c.b16 %v461, %v443
      %v733 = vpack.c.b16 %v444, %v461
      %v734 = vpack.c.b16 %v445, %v461
      %v735 = vpack.c.b16 %v448, %v446
      %v736 = vpack.c.b16 %v449, %v447
      %v737 = vpack.c.b16 %v452, %v450
      %v738 = vpack.c.b16 %v453, %v451
      %v739 = vpack.c.b16 %v456, %v454
      %v740 = vpack.c.b16 %v457, %v455
      %v741 = vpack.c.b16 %v461, %v458
      %v742 = vpack.c.b16 %v461, %v459
      %vm743 = vsmask.f32 256
      %v745 = vshrl.u32 %v723, 16
      %v747 = vrot.slane %v745, 7
      %v748 = vshll.u32 %v723, 16
      %v750 = vor.u32 %v747, %v748
      %v752 = vshrl.u32 %v724, 16
      %v754 = vrot.slane %v752, 7
      %v755 = vshll.u32 %v724, 16
      %v757 = vor.u32 %v754, %v755
      %v759 = vshrl.u32 %v725, 16
      %v761 = vrot.slane %v759, 7
      %v762 = vshll.u32 %v725, 16
      %v764 = vor.u32 %v761, %v762
      %v765 = vsel %vm743, %v747, %v764
      %v767 = vshrl.u32 %v726, 16
      %v769 = vrot.slane %v767, 7
      %v770 = vshll.u32 %v726, 16
      %v772 = vor.u32 %v769, %v770
      %v773 = vsel %vm743, %v754, %v772
      %v775 = vshrl.u32 %v727, 16
      %v777 = vrot.slane %v775, 7
      %v778 = vshll.u32 %v727, 16
      %v780 = vor.u32 %v777, %v778
      %v781 = vsel %vm743, %v761, %v780
      %v783 = vshrl.u32 %v728, 16
      %v785 = vrot.slane %v783, 7
      %v786 = vshll.u32 %v728, 16
      %v788 = vor.u32 %v785, %v786
      %v789 = vsel %vm743, %v769, %v788
      %v791 = vshrl.u32 %v729, 16
      %v793 = vrot.slane %v791, 7
      %v794 = vshll.u32 %v729, 16
      %v796 = vor.u32 %v793, %v794
      %v797 = vsel %vm743, %v777, %v796
      %v799 = vshrl.u32 %v730, 16
      %v801 = vrot.slane %v799, 7
      %v802 = vshll.u32 %v730, 16
      %v804 = vor.u32 %v801, %v802
      %v805 = vsel %vm743, %v785, %v804
      %v807 = vshrl.u32 %v731, 16
      %v809 = vrot.slane %v807, 7
      %v810 = vshll.u32 %v731, 16
      %v812 = vor.u32 %v809, %v810
      %v813 = vsel %vm743, %v793, %v812
      %v815 = vshrl.u32 %v732, 16
      %v817 = vrot.slane %v815, 7
      %v818 = vshll.u32 %v732, 16
      %v820 = vor.u32 %v817, %v818
      %v821 = vsel %vm743, %v801, %v820
      %v823 = vshrl.u32 %v733, 16
      %v825 = vrot.slane %v823, 7
      %v826 = vshll.u32 %v733, 16
      %v828 = vor.u32 %v825, %v826
      %v829 = vsel %vm743, %v809, %v828
      %v831 = vshrl.u32 %v734, 16
      %v833 = vrot.slane %v831, 7
      %v834 = vshll.u32 %v734, 16
      %v836 = vor.u32 %v833, %v834
      %v837 = vsel %vm743, %v817, %v836
      %v839 = vshrl.u32 %v735, 16
      %v841 = vrot.slane %v839, 7
      %v842 = vshll.u32 %v735, 16
      %v844 = vor.u32 %v841, %v842
      %v845 = vsel %vm743, %v825, %v844
      %v847 = vshrl.u32 %v736, 16
      %v849 = vrot.slane %v847, 7
      %v850 = vshll.u32 %v736, 16
      %v852 = vor.u32 %v849, %v850
      %v853 = vsel %vm743, %v833, %v852
      %v855 = vshrl.u32 %v737, 16
      %v857 = vrot.slane %v855, 7
      %v858 = vshll.u32 %v737, 16
      %v860 = vor.u32 %v857, %v858
      %v861 = vsel %vm743, %v841, %v860
      %v863 = vshrl.u32 %v738, 16
      %v865 = vrot.slane %v863, 7
      %v866 = vshll.u32 %v738, 16
      %v868 = vor.u32 %v865, %v866
      %v869 = vsel %vm743, %v849, %v868
      %v871 = vshrl.u32 %v739, 16
      %v873 = vrot.slane %v871, 7
      %v874 = vshll.u32 %v739, 16
      %v876 = vor.u32 %v873, %v874
      %v877 = vsel %vm743, %v857, %v876
      %v879 = vshrl.u32 %v740, 16
      %v881 = vrot.slane %v879, 7
      %v882 = vshll.u32 %v740, 16
      %v884 = vor.u32 %v881, %v882
      %v885 = vsel %vm743, %v865, %v884
      %v887 = vshrl.u32 %v741, 16
      %v889 = vrot.slane %v887, 7
      %v890 = vshll.u32 %v741, 16
      %v892 = vor.u32 %v889, %v890
      %v893 = vsel %vm743, %v873, %v892
      %v895 = vshrl.u32 %v742, 16
      %v897 = vrot.slane %v895, 7
      %v898 = vshll.u32 %v742, 16
      %v900 = vor.u32 %v897, %v898
      %v901 = vsel %vm743, %v881, %v900
      %vm922 = vcmask 1040384
      %vm923 = vmand %vm922, %vm743
      %v924 = vsel %vm923, 0, %v750
      %v925 = vsel %vm923, 0, %v757
      %vm926 = vcmp.eq.s32.totalorder %v703, 0
      %vm927 = vcmp.eq.s32.totalorder %v704, 0
      %vm928 = vcmp.eq.s32.totalorder %v705, 0
      %vm929 = vcmp.eq.s32.totalorder %v706, 0
      %vm930 = vcmp.eq.s32.totalorder %v707, 0
      %vm931 = vcmp.eq.s32.totalorder %v708, 0
      %vm932 = vcmp.eq.s32.totalorder %v709, 0
      %vm933 = vcmp.eq.s32.totalorder %v710, 0
      %vm934 = vcmp.eq.s32.totalorder %v711, 0
      %vm935 = vcmp.eq.s32.totalorder %v712, 0
      %vm936 = vcmp.eq.s32.totalorder %v713, 0
      %vm937 = vcmp.eq.s32.totalorder %v714, 0
      %vm938 = vcmp.eq.s32.totalorder %v715, 0
      %vm939 = vcmp.eq.s32.totalorder %v716, 0
      %vm940 = vcmp.eq.s32.totalorder %v717, 0
      %vm941 = vcmp.eq.s32.totalorder %v718, 0
      %vm942 = vcmp.eq.s32.totalorder %v719, 0
      %vm943 = vcmp.eq.s32.totalorder %v720, 0
      %vm944 = vcmp.eq.s32.totalorder %v721, 0
      %vm945 = vcmp.eq.s32.totalorder %v722, 0
      %vm946 = vmpackc.low %vm926, %vm926
      %vm947 = vmpackc.low %vm927, %vm927
      %vm948 = vmpackc.low %vm928, %vm928
      %vm949 = vmpackc.low %vm929, %vm929
      %vm950 = vmpackc.low %vm930, %vm930
      %vm951 = vmpackc.low %vm931, %vm931
      %vm952 = vmpackc.low %vm932, %vm932
      %vm953 = vmpackc.low %vm933, %vm933
      %vm954 = vmpackc.low %vm934, %vm934
      %vm955 = vmpackc.low %vm935, %vm935
      %vm956 = vmpackc.low %vm936, %vm936
      %vm957 = vmpackc.low %vm937, %vm937
      %vm958 = vmpackc.low %vm938, %vm938
      %vm959 = vmpackc.low %vm939, %vm939
      %vm960 = vmpackc.low %vm940, %vm940
      %vm961 = vmpackc.low %vm941, %vm941
      %vm962 = vmpackc.low %vm942, %vm942
      %vm963 = vmpackc.low %vm943, %vm943
      %vm964 = vmpackc.low %vm944, %vm944
      %vm965 = vmpackc.low %vm945, %vm945
      %v966 = vsel %vm946, 65537, 0
      %v967 = vsel %vm947, 65537, 0
      %v968 = vsel %vm948, 65537, 0
      %v969 = vsel %vm949, 65537, 0
      %v970 = vsel %vm950, 65537, 0
      %v971 = vsel %vm951, 65537, 0
      %v972 = vsel %vm952, 65537, 0
      %v973 = vsel %vm953, 65537, 0
      %v974 = vsel %vm954, 65537, 0
      %v975 = vsel %vm955, 65537, 0
      %v976 = vsel %vm956, 65537, 0
      %v977 = vsel %vm957, 65537, 0
      %v978 = vsel %vm958, 65537, 0
      %v979 = vsel %vm959, 65537, 0
      %v980 = vsel %vm960, 65537, 0
      %v981 = vsel %vm961, 65537, 0
      %v982 = vsel %vm962, 65537, 0
      %v983 = vsel %vm963, 65537, 0
      %v984 = vsel %vm964, 65537, 0
      %v985 = vsel %vm965, 65537, 0
      %v986 = vunpack.c.l.b16 %v966
      %v987 = vunpack.c.l.b16 %v967
      %v988 = vunpack.c.l.b16 %v968
      %v989 = vunpack.c.l.b16 %v969
      %v990 = vunpack.c.l.b16 %v970
      %v991 = vunpack.c.l.b16 %v971
      %v992 = vunpack.c.l.b16 %v972
      %v993 = vunpack.c.l.b16 %v973
      %v994 = vunpack.c.l.b16 %v974
      %v995 = vunpack.c.l.b16 %v975
      %v996 = vunpack.c.l.b16 %v976
      %v997 = vunpack.c.l.b16 %v977
      %v998 = vunpack.c.l.b16 %v978
      %v999 = vunpack.c.l.b16 %v979
      %v1000 = vunpack.c.l.b16 %v980
      %v1001 = vunpack.c.l.b16 %v981
      %v1002 = vunpack.c.l.b16 %v982
      %v1003 = vunpack.c.l.b16 %v983
      %v1004 = vunpack.c.l.b16 %v984
      %v1005 = vunpack.c.l.b16 %v985
      %v1006 = vpack.c.b16 %v987, %v986
      %v1007 = vpack.c.b16 %v989, %v988
      %v1008 = vpack.c.b16 %v991, %v990
      %v1009 = vpack.c.b16 %v993, %v992
      %v1010 = vpack.c.b16 %v995, %v994
      %v1011 = vpack.c.b16 %v997, %v996
      %v1012 = vpack.c.b16 %v999, %v998
      %v1013 = vpack.c.b16 %v1001, %v1000
      %v1014 = vpack.c.b16 %v1003, %v1002
      %v1015 = vpack.c.b16 %v1005, %v1004
      %v1016 = vunpack.c.l.b16 %v1006
      %v1017 = vunpack.c.h.b16 %v1006
      %v1018 = vunpack.c.l.b16 0
      %v1019 = vunpack.c.h.b16 0
      %vm1020 = vcmp.ne.s32.totalorder %v1016, %v1018
      %vm1021 = vcmp.ne.s32.totalorder %v1017, %v1019
      %vm1022 = vmpackc.low %vm1021, %vm1020
      %v1023 = vunpack.c.l.b16 %v1007
      %v1024 = vunpack.c.h.b16 %v1007
      %v1025 = vunpack.c.l.b16 0
      %v1026 = vunpack.c.h.b16 0
      %vm1027 = vcmp.ne.s32.totalorder %v1023, %v1025
      %vm1028 = vcmp.ne.s32.totalorder %v1024, %v1026
      %vm1029 = vmpackc.low %vm1028, %vm1027
      %v1030 = vunpack.c.l.b16 %v1008
      %v1031 = vunpack.c.h.b16 %v1008
      %v1032 = vunpack.c.l.b16 0
      %v1033 = vunpack.c.h.b16 0
      %vm1034 = vcmp.ne.s32.totalorder %v1030, %v1032
      %vm1035 = vcmp.ne.s32.totalorder %v1031, %v1033
      %vm1036 = vmpackc.low %vm1035, %vm1034
      %v1037 = vunpack.c.l.b16 %v1009
      %v1038 = vunpack.c.h.b16 %v1009
      %v1039 = vunpack.c.l.b16 0
      %v1040 = vunpack.c.h.b16 0
      %vm1041 = vcmp.ne.s32.totalorder %v1037, %v1039
      %vm1042 = vcmp.ne.s32.totalorder %v1038, %v1040
      %vm1043 = vmpackc.low %vm1042, %vm1041
      %v1044 = vunpack.c.l.b16 %v1010
      %v1045 = vunpack.c.h.b16 %v1010
      %v1046 = vunpack.c.l.b16 0
      %v1047 = vunpack.c.h.b16 0
      %vm1048 = vcmp.ne.s32.totalorder %v1044, %v1046
      %vm1049 = vcmp.ne.s32.totalorder %v1045, %v1047
      %vm1050 = vmpackc.low %vm1049, %vm1048
      %v1051 = vunpack.c.l.b16 %v1011
      %v1052 = vunpack.c.h.b16 %v1011
      %v1053 = vunpack.c.l.b16 0
      %v1054 = vunpack.c.h.b16 0
      %vm1055 = vcmp.ne.s32.totalorder %v1051, %v1053
      %vm1056 = vcmp.ne.s32.totalorder %v1052, %v1054
      %vm1057 = vmpackc.low %vm1056, %vm1055
      %v1058 = vunpack.c.l.b16 %v1012
      %v1059 = vunpack.c.h.b16 %v1012
      %v1060 = vunpack.c.l.b16 0
      %v1061 = vunpack.c.h.b16 0
      %vm1062 = vcmp.ne.s32.totalorder %v1058, %v1060
      %vm1063 = vcmp.ne.s32.totalorder %v1059, %v1061
      %vm1064 = vmpackc.low %vm1063, %vm1062
      %v1065 = vunpack.c.l.b16 %v1013
      %v1066 = vunpack.c.h.b16 %v1013
      %v1067 = vunpack.c.l.b16 0
      %v1068 = vunpack.c.h.b16 0
      %vm1069 = vcmp.ne.s32.totalorder %v1065, %v1067
      %vm1070 = vcmp.ne.s32.totalorder %v1066, %v1068
      %vm1071 = vmpackc.low %vm1070, %vm1069
      %v1072 = vunpack.c.l.b16 %v1014
      %v1073 = vunpack.c.h.b16 %v1014
      %v1074 = vunpack.c.l.b16 0
      %v1075 = vunpack.c.h.b16 0
      %vm1076 = vcmp.ne.s32.totalorder %v1072, %v1074
      %vm1077 = vcmp.ne.s32.totalorder %v1073, %v1075
      %vm1078 = vmpackc.low %vm1077, %vm1076
      %v1079 = vunpack.c.l.b16 %v1015
      %v1080 = vunpack.c.h.b16 %v1015
      %v1081 = vunpack.c.l.b16 0
      %v1082 = vunpack.c.h.b16 0
      %vm1083 = vcmp.ne.s32.totalorder %v1079, %v1081
      %vm1084 = vcmp.ne.s32.totalorder %v1080, %v1082
      %vm1085 = vmpackc.low %vm1084, %vm1083
      %v1086 = vsel %vm1022, 0, %v924
      %v1087 = vsel %vm1022, 0, %v925
      %v1088 = vsel %vm1029, 0, %v765
      %v1089 = vsel %vm1029, 0, %v773
      %v1090 = vsel %vm1036, 0, %v781
      %v1091 = vsel %vm1036, 0, %v789
      %v1092 = vsel %vm1043, 0, %v797
      %v1093 = vsel %vm1043, 0, %v805
      %v1094 = vsel %vm1050, 0, %v813
      %v1095 = vsel %vm1050, 0, %v821
      %v1096 = vsel %vm1057, 0, %v829
      %v1097 = vsel %vm1057, 0, %v837
      %v1098 = vsel %vm1064, 0, %v845
      %v1099 = vsel %vm1064, 0, %v853
      %v1100 = vsel %vm1071, 0, %v861
      %v1101 = vsel %vm1071, 0, %v869
      %v1102 = vsel %vm1078, 0, %v877
      %v1103 = vsel %vm1078, 0, %v885
      %v1104 = vsel %vm1085, 0, %v893
      %v1105 = vsel %vm1085, 0, %v901
      %vm1106 = vsmask.f32 7424
      %v1107 = vrot.slane %v748, 1
      %v1108 = vor.u32 %v745, %v1107
      %v1109 = vrot.slane %v762, 1
      %v1110 = vsel %vm1106, %v1108, %v1109
      %v1111 = vrot.slane %v755, 1
      %v1112 = vor.u32 %v752, %v1111
      %v1113 = vrot.slane %v770, 1
      %v1114 = vsel %vm1106, %v1112, %v1113
      %v1115 = vor.u32 %v759, %v1109
      %v1116 = vrot.slane %v778, 1
      %v1117 = vsel %vm1106, %v1115, %v1116
      %v1118 = vor.u32 %v767, %v1113
      %v1119 = vrot.slane %v786, 1
      %v1120 = vsel %vm1106, %v1118, %v1119
      %v1121 = vor.u32 %v775, %v1116
      %v1122 = vrot.slane %v794, 1
      %v1123 = vsel %vm1106, %v1121, %v1122
      %v1124 = vor.u32 %v783, %v1119
      %v1125 = vrot.slane %v802, 1
      %v1126 = vsel %vm1106, %v1124, %v1125
      %v1127 = vor.u32 %v791, %v1122
      %v1128 = vrot.slane %v810, 1
      %v1129 = vsel %vm1106, %v1127, %v1128
      %v1130 = vor.u32 %v799, %v1125
      %v1131 = vrot.slane %v818, 1
      %v1132 = vsel %vm1106, %v1130, %v1131
      %v1133 = vor.u32 %v807, %v1128
      %v1134 = vrot.slane %v826, 1
      %v1135 = vsel %vm1106, %v1133, %v1134
      %v1136 = vor.u32 %v815, %v1131
      %v1137 = vrot.slane %v834, 1
      %v1138 = vsel %vm1106, %v1136, %v1137
      %v1139 = vor.u32 %v823, %v1134
      %v1140 = vrot.slane %v842, 1
      %v1141 = vsel %vm1106, %v1139, %v1140
      %v1142 = vor.u32 %v831, %v1137
      %v1143 = vrot.slane %v850, 1
      %v1144 = vsel %vm1106, %v1142, %v1143
      %v1145 = vor.u32 %v839, %v1140
      %v1146 = vrot.slane %v858, 1
      %v1147 = vsel %vm1106, %v1145, %v1146
      %v1148 = vor.u32 %v847, %v1143
      %v1149 = vrot.slane %v866, 1
      %v1150 = vsel %vm1106, %v1148, %v1149
      %v1151 = vor.u32 %v855, %v1146
      %v1152 = vrot.slane %v874, 1
      %v1153 = vsel %vm1106, %v1151, %v1152
      %v1154 = vor.u32 %v863, %v1149
      %v1155 = vrot.slane %v882, 1
      %v1156 = vsel %vm1106, %v1154, %v1155
      %v1157 = vor.u32 %v871, %v1152
      %v1158 = vrot.slane %v890, 1
      %v1159 = vsel %vm1106, %v1157, %v1158
      %v1160 = vor.u32 %v879, %v1155
      %v1161 = vrot.slane %v898, 1
      %v1162 = vsel %vm1106, %v1160, %v1161
      %v1163 = vor.u32 %v887, %v1158
      %v1164 = vor.u32 %v895, %v1161
      %vm1185 = vcmask 1047552
      %vm1186 = vmand %vm1185, %vm1106
      %v1187 = vsel %vm1186, %v1163, 0
      %v1188 = vsel %vm1186, %v1164, 0
      %vm1189 = vcmp.eq.s32.totalorder %v703, 7
      %vm1190 = vcmp.eq.s32.totalorder %v704, 7
      %vm1191 = vcmp.eq.s32.totalorder %v705, 7
      %vm1192 = vcmp.eq.s32.totalorder %v706, 7
      %vm1193 = vcmp.eq.s32.totalorder %v707, 7
      %vm1194 = vcmp.eq.s32.totalorder %v708, 7
      %vm1195 = vcmp.eq.s32.totalorder %v709, 7
      %vm1196 = vcmp.eq.s32.totalorder %v710, 7
      %vm1197 = vcmp.eq.s32.totalorder %v711, 7
      %vm1198 = vcmp.eq.s32.totalorder %v712, 7
      %vm1199 = vcmp.eq.s32.totalorder %v713, 7
      %vm1200 = vcmp.eq.s32.totalorder %v714, 7
      %vm1201 = vcmp.eq.s32.totalorder %v715, 7
      %vm1202 = vcmp.eq.s32.totalorder %v716, 7
      %vm1203 = vcmp.eq.s32.totalorder %v717, 7
      %vm1204 = vcmp.eq.s32.totalorder %v718, 7
      %vm1205 = vcmp.eq.s32.totalorder %v719, 7
      %vm1206 = vcmp.eq.s32.totalorder %v720, 7
      %vm1207 = vcmp.eq.s32.totalorder %v721, 7
      %vm1208 = vcmp.eq.s32.totalorder %v722, 7
      %vm1209 = vmpackc.low %vm1189, %vm1189
      %vm1210 = vmpackc.low %vm1190, %vm1190
      %vm1211 = vmpackc.low %vm1191, %vm1191
      %vm1212 = vmpackc.low %vm1192, %vm1192
      %vm1213 = vmpackc.low %vm1193, %vm1193
      %vm1214 = vmpackc.low %vm1194, %vm1194
      %vm1215 = vmpackc.low %vm1195, %vm1195
      %vm1216 = vmpackc.low %vm1196, %vm1196
      %vm1217 = vmpackc.low %vm1197, %vm1197
      %vm1218 = vmpackc.low %vm1198, %vm1198
      %vm1219 = vmpackc.low %vm1199, %vm1199
      %vm1220 = vmpackc.low %vm1200, %vm1200
      %vm1221 = vmpackc.low %vm1201, %vm1201
      %vm1222 = vmpackc.low %vm1202, %vm1202
      %vm1223 = vmpackc.low %vm1203, %vm1203
      %vm1224 = vmpackc.low %vm1204, %vm1204
      %vm1225 = vmpackc.low %vm1205, %vm1205
      %vm1226 = vmpackc.low %vm1206, %vm1206
      %vm1227 = vmpackc.low %vm1207, %vm1207
      %vm1228 = vmpackc.low %vm1208, %vm1208
      %v1229 = vsel %vm1209, 65537, 0
      %v1230 = vsel %vm1210, 65537, 0
      %v1231 = vsel %vm1211, 65537, 0
      %v1232 = vsel %vm1212, 65537, 0
      %v1233 = vsel %vm1213, 65537, 0
      %v1234 = vsel %vm1214, 65537, 0
      %v1235 = vsel %vm1215, 65537, 0
      %v1236 = vsel %vm1216, 65537, 0
      %v1237 = vsel %vm1217, 65537, 0
      %v1238 = vsel %vm1218, 65537, 0
      %v1239 = vsel %vm1219, 65537, 0
      %v1240 = vsel %vm1220, 65537, 0
      %v1241 = vsel %vm1221, 65537, 0
      %v1242 = vsel %vm1222, 65537, 0
      %v1243 = vsel %vm1223, 65537, 0
      %v1244 = vsel %vm1224, 65537, 0
      %v1245 = vsel %vm1225, 65537, 0
      %v1246 = vsel %vm1226, 65537, 0
      %v1247 = vsel %vm1227, 65537, 0
      %v1248 = vsel %vm1228, 65537, 0
      %v1249 = vunpack.c.l.b16 %v1229
      %v1250 = vunpack.c.l.b16 %v1230
      %v1251 = vunpack.c.l.b16 %v1231
      %v1252 = vunpack.c.l.b16 %v1232
      %v1253 = vunpack.c.l.b16 %v1233
      %v1254 = vunpack.c.l.b16 %v1234
      %v1255 = vunpack.c.l.b16 %v1235
      %v1256 = vunpack.c.l.b16 %v1236
      %v1257 = vunpack.c.l.b16 %v1237
      %v1258 = vunpack.c.l.b16 %v1238
      %v1259 = vunpack.c.l.b16 %v1239
      %v1260 = vunpack.c.l.b16 %v1240
      %v1261 = vunpack.c.l.b16 %v1241
      %v1262 = vunpack.c.l.b16 %v1242
      %v1263 = vunpack.c.l.b16 %v1243
      %v1264 = vunpack.c.l.b16 %v1244
      %v1265 = vunpack.c.l.b16 %v1245
      %v1266 = vunpack.c.l.b16 %v1246
      %v1267 = vunpack.c.l.b16 %v1247
      %v1268 = vunpack.c.l.b16 %v1248
      %v1269 = vpack.c.b16 %v1250, %v1249
      %v1270 = vpack.c.b16 %v1252, %v1251
      %v1271 = vpack.c.b16 %v1254, %v1253
      %v1272 = vpack.c.b16 %v1256, %v1255
      %v1273 = vpack.c.b16 %v1258, %v1257
      %v1274 = vpack.c.b16 %v1260, %v1259
      %v1275 = vpack.c.b16 %v1262, %v1261
      %v1276 = vpack.c.b16 %v1264, %v1263
      %v1277 = vpack.c.b16 %v1266, %v1265
      %v1278 = vpack.c.b16 %v1268, %v1267
      %v1279 = vunpack.c.l.b16 %v1269
      %v1280 = vunpack.c.h.b16 %v1269
      %v1281 = vunpack.c.l.b16 0
      %v1282 = vunpack.c.h.b16 0
      %vm1283 = vcmp.ne.s32.totalorder %v1279, %v1281
      %vm1284 = vcmp.ne.s32.totalorder %v1280, %v1282
      %vm1285 = vmpackc.low %vm1284, %vm1283
      %v1286 = vunpack.c.l.b16 %v1270
      %v1287 = vunpack.c.h.b16 %v1270
      %v1288 = vunpack.c.l.b16 0
      %v1289 = vunpack.c.h.b16 0
      %vm1290 = vcmp.ne.s32.totalorder %v1286, %v1288
      %vm1291 = vcmp.ne.s32.totalorder %v1287, %v1289
      %vm1292 = vmpackc.low %vm1291, %vm1290
      %v1293 = vunpack.c.l.b16 %v1271
      %v1294 = vunpack.c.h.b16 %v1271
      %v1295 = vunpack.c.l.b16 0
      %v1296 = vunpack.c.h.b16 0
      %vm1297 = vcmp.ne.s32.totalorder %v1293, %v1295
      %vm1298 = vcmp.ne.s32.totalorder %v1294, %v1296
      %vm1299 = vmpackc.low %vm1298, %vm1297
      %v1300 = vunpack.c.l.b16 %v1272
      %v1301 = vunpack.c.h.b16 %v1272
      %v1302 = vunpack.c.l.b16 0
      %v1303 = vunpack.c.h.b16 0
      %vm1304 = vcmp.ne.s32.totalorder %v1300, %v1302
      %vm1305 = vcmp.ne.s32.totalorder %v1301, %v1303
      %vm1306 = vmpackc.low %vm1305, %vm1304
      %v1307 = vunpack.c.l.b16 %v1273
      %v1308 = vunpack.c.h.b16 %v1273
      %v1309 = vunpack.c.l.b16 0
      %v1310 = vunpack.c.h.b16 0
      %vm1311 = vcmp.ne.s32.totalorder %v1307, %v1309
      %vm1312 = vcmp.ne.s32.totalorder %v1308, %v1310
      %vm1313 = vmpackc.low %vm1312, %vm1311
      %v1314 = vunpack.c.l.b16 %v1274
      %v1315 = vunpack.c.h.b16 %v1274
      %v1316 = vunpack.c.l.b16 0
      %v1317 = vunpack.c.h.b16 0
      %vm1318 = vcmp.ne.s32.totalorder %v1314, %v1316
      %vm1319 = vcmp.ne.s32.totalorder %v1315, %v1317
      %vm1320 = vmpackc.low %vm1319, %vm1318
      %v1321 = vunpack.c.l.b16 %v1275
      %v1322 = vunpack.c.h.b16 %v1275
      %v1323 = vunpack.c.l.b16 0
      %v1324 = vunpack.c.h.b16 0
      %vm1325 = vcmp.ne.s32.totalorder %v1321, %v1323
      %vm1326 = vcmp.ne.s32.totalorder %v1322, %v1324
      %vm1327 = vmpackc.low %vm1326, %vm1325
      %v1328 = vunpack.c.l.b16 %v1276
      %v1329 = vunpack.c.h.b16 %v1276
      %v1330 = vunpack.c.l.b16 0
      %v1331 = vunpack.c.h.b16 0
      %vm1332 = vcmp.ne.s32.totalorder %v1328, %v1330
      %vm1333 = vcmp.ne.s32.totalorder %v1329, %v1331
      %vm1334 = vmpackc.low %vm1333, %vm1332
      %v1335 = vunpack.c.l.b16 %v1277
      %v1336 = vunpack.c.h.b16 %v1277
      %v1337 = vunpack.c.l.b16 0
      %v1338 = vunpack.c.h.b16 0
      %vm1339 = vcmp.ne.s32.totalorder %v1335, %v1337
      %vm1340 = vcmp.ne.s32.totalorder %v1336, %v1338
      %vm1341 = vmpackc.low %vm1340, %vm1339
      %v1342 = vunpack.c.l.b16 %v1278
      %v1343 = vunpack.c.h.b16 %v1278
      %v1344 = vunpack.c.l.b16 0
      %v1345 = vunpack.c.h.b16 0
      %vm1346 = vcmp.ne.s32.totalorder %v1342, %v1344
      %vm1347 = vcmp.ne.s32.totalorder %v1343, %v1345
      %vm1348 = vmpackc.low %vm1347, %vm1346
      %v1349 = vsel %vm1285, 0, %v1110
      %v1350 = vsel %vm1285, 0, %v1114
      %v1351 = vsel %vm1292, 0, %v1117
      %v1352 = vsel %vm1292, 0, %v1120
      %v1353 = vsel %vm1299, 0, %v1123
      %v1354 = vsel %vm1299, 0, %v1126
      %v1355 = vsel %vm1306, 0, %v1129
      %v1356 = vsel %vm1306, 0, %v1132
      %v1357 = vsel %vm1313, 0, %v1135
      %v1358 = vsel %vm1313, 0, %v1138
      %v1359 = vsel %vm1320, 0, %v1141
      %v1360 = vsel %vm1320, 0, %v1144
      %v1361 = vsel %vm1327, 0, %v1147
      %v1362 = vsel %vm1327, 0, %v1150
      %v1363 = vsel %vm1334, 0, %v1153
      %v1364 = vsel %vm1334, 0, %v1156
      %v1365 = vsel %vm1341, 0, %v1159
      %v1366 = vsel %vm1341, 0, %v1162
      %v1367 = vsel %vm1348, 0, %v1187
      %v1368 = vsel %vm1348, 0, %v1188
      %v1389 = vunpack.c.l.b16 %v1086
      %v1390 = vunpack.c.l.b16 %v1087
      %v1391 = vunpack.c.h.b16 %v1086
      %v1392 = vunpack.c.h.b16 %v1087
      %v1393 = vunpack.c.l.b16 %v1088
      %v1394 = vunpack.c.l.b16 %v1089
      %v1395 = vunpack.c.h.b16 %v1088
      %v1396 = vunpack.c.h.b16 %v1089
      %v1397 = vunpack.c.l.b16 %v1090
      %v1398 = vunpack.c.l.b16 %v1091
      %v1399 = vunpack.c.h.b16 %v1090
      %v1400 = vunpack.c.h.b16 %v1091
      %v1401 = vunpack.c.l.b16 %v1092
      %v1402 = vunpack.c.l.b16 %v1093
      %v1403 = vunpack.c.h.b16 %v1092
      %v1404 = vunpack.c.h.b16 %v1093
      %v1405 = vunpack.c.l.b16 %v1094
      %v1406 = vunpack.c.l.b16 %v1095
      %v1407 = vunpack.c.h.b16 %v1094
      %v1408 = vunpack.c.h.b16 %v1095
      %v1409 = vunpack.c.l.b16 %v1096
      %v1410 = vunpack.c.l.b16 %v1097
      %v1411 = vunpack.c.h.b16 %v1096
      %v1412 = vunpack.c.h.b16 %v1097
      %v1413 = vunpack.c.l.b16 %v1098
      %v1414 = vunpack.c.l.b16 %v1099
      %v1415 = vunpack.c.h.b16 %v1098
      %v1416 = vunpack.c.h.b16 %v1099
      %v1417 = vunpack.c.l.b16 %v1100
      %v1418 = vunpack.c.l.b16 %v1101
      %v1419 = vunpack.c.h.b16 %v1100
      %v1420 = vunpack.c.h.b16 %v1101
      %v1421 = vunpack.c.l.b16 %v1102
      %v1422 = vunpack.c.l.b16 %v1103
      %v1423 = vunpack.c.h.b16 %v1102
      %v1424 = vunpack.c.h.b16 %v1103
      %v1425 = vunpack.c.l.b16 %v1104
      %v1426 = vunpack.c.l.b16 %v1105
      %v1427 = vunpack.c.h.b16 %v1104
      %v1428 = vunpack.c.h.b16 %v1105
      %v1429 = vpack.c.b16 %v1390, %v1389
      %v1430 = vpack.c.b16 %v1392, %v1391
      %v1431 = vpack.c.b16 %v1394, %v1393
      %v1432 = vpack.c.b16 %v1396, %v1395
      %v1433 = vpack.c.b16 %v1398, %v1397
      %v1434 = vpack.c.b16 %v1400, %v1399
      %v1435 = vpack.c.b16 %v1402, %v1401
      %v1436 = vpack.c.b16 %v1404, %v1403
      %v1437 = vpack.c.b16 %v1406, %v1405
      %v1438 = vpack.c.b16 %v1408, %v1407
      %v1439 = vpack.c.b16 %v1410, %v1409
      %v1440 = vpack.c.b16 %v1412, %v1411
      %v1441 = vpack.c.b16 %v1414, %v1413
      %v1442 = vpack.c.b16 %v1416, %v1415
      %v1443 = vpack.c.b16 %v1418, %v1417
      %v1444 = vpack.c.b16 %v1420, %v1419
      %v1445 = vpack.c.b16 %v1422, %v1421
      %v1446 = vpack.c.b16 %v1424, %v1423
      %v1447 = vpack.c.b16 %v1426, %v1425
      %v1448 = vpack.c.b16 %v1428, %v1427
      %v1489 = vunpack.c.l.b16 %v1349
      %v1490 = vunpack.c.l.b16 %v1350
      %v1491 = vunpack.c.h.b16 %v1349
      %v1492 = vunpack.c.h.b16 %v1350
      %v1493 = vunpack.c.l.b16 %v1351
      %v1494 = vunpack.c.l.b16 %v1352
      %v1495 = vunpack.c.h.b16 %v1351
      %v1496 = vunpack.c.h.b16 %v1352
      %v1497 = vunpack.c.l.b16 %v1353
      %v1498 = vunpack.c.l.b16 %v1354
      %v1499 = vunpack.c.h.b16 %v1353
      %v1500 = vunpack.c.h.b16 %v1354
      %v1501 = vunpack.c.l.b16 %v1355
      %v1502 = vunpack.c.l.b16 %v1356
      %v1503 = vunpack.c.h.b16 %v1355
      %v1504 = vunpack.c.h.b16 %v1356
      %v1505 = vunpack.c.l.b16 %v1357
      %v1506 = vunpack.c.l.b16 %v1358
      %v1507 = vunpack.c.h.b16 %v1357
      %v1508 = vunpack.c.h.b16 %v1358
      %v1509 = vunpack.c.l.b16 %v1359
      %v1510 = vunpack.c.l.b16 %v1360
      %v1511 = vunpack.c.h.b16 %v1359
      %v1512 = vunpack.c.h.b16 %v1360
      %v1513 = vunpack.c.l.b16 %v1361
      %v1514 = vunpack.c.l.b16 %v1362
      %v1515 = vunpack.c.h.b16 %v1361
      %v1516 = vunpack.c.h.b16 %v1362
      %v1517 = vunpack.c.l.b16 %v1363
      %v1518 = vunpack.c.l.b16 %v1364
      %v1519 = vunpack.c.h.b16 %v1363
      %v1520 = vunpack.c.h.b16 %v1364
      %v1521 = vunpack.c.l.b16 %v1365
      %v1522 = vunpack.c.l.b16 %v1366
      %v1523 = vunpack.c.h.b16 %v1365
      %v1524 = vunpack.c.h.b16 %v1366
      %v1525 = vunpack.c.l.b16 %v1367
      %v1526 = vunpack.c.l.b16 %v1368
      %v1527 = vunpack.c.h.b16 %v1367
      %v1528 = vunpack.c.h.b16 %v1368
      %v1529 = vpack.c.b16 %v1490, %v1489
      %v1530 = vpack.c.b16 %v1492, %v1491
      %v1531 = vpack.c.b16 %v1494, %v1493
      %v1532 = vpack.c.b16 %v1496, %v1495
      %v1533 = vpack.c.b16 %v1498, %v1497
      %v1534 = vpack.c.b16 %v1500, %v1499
      %v1535 = vpack.c.b16 %v1502, %v1501
      %v1536 = vpack.c.b16 %v1504, %v1503
      %v1537 = vpack.c.b16 %v1506, %v1505
      %v1538 = vpack.c.b16 %v1508, %v1507
      %v1539 = vpack.c.b16 %v1510, %v1509
      %v1540 = vpack.c.b16 %v1512, %v1511
      %v1541 = vpack.c.b16 %v1514, %v1513
      %v1542 = vpack.c.b16 %v1516, %v1515
      %v1543 = vpack.c.b16 %v1518, %v1517
      %v1544 = vpack.c.b16 %v1520, %v1519
      %v1545 = vpack.c.b16 %v1522, %v1521
      %v1546 = vpack.c.b16 %v1524, %v1523
      %v1547 = vpack.c.b16 %v1526, %v1525
      %v1548 = vpack.c.b16 %v1528, %v1527
      %1569 = vst [vmem:[#allocation2] sm:$0xff] %v1429
      %1570 = vst [vmem:[#allocation2 + $0x48] sm:$0xff] %v1430
      %1571 = vst [vmem:[#allocation2 + $0x90] sm:$0xff] %v1431
      %1572 = vst [vmem:[#allocation2 + $0xd8] sm:$0xff] %v1432
      %1573 = vst [vmem:[#allocation2 + $0x120] sm:$0xff] %v1433
      %1574 = vst [vmem:[#allocation2 + $0x168] sm:$0xff] %v1434
      %1575 = vst [vmem:[#allocation2 + $0x1b0] sm:$0xff] %v1435
      %1576 = vst [vmem:[#allocation2 + $0x1f8] sm:$0xff] %v1436
      %1577 = vst [vmem:[#allocation2 + $0x240] sm:$0xff] %v1439
      %1578 = vst [vmem:[#allocation2 + $0x288] sm:$0xff] %v1440
      %1579 = vst [vmem:[#allocation2 + $0x2d0] sm:$0xff] %v1441
      %1580 = vst [vmem:[#allocation2 + $0x318] sm:$0xff] %v1442
      %1581 = vst [vmem:[#allocation2 + $0x360] sm:$0xff] %v1443
      %1582 = vst [vmem:[#allocation2 + $0x3a8] sm:$0xff] %v1444
      %1583 = vst [vmem:[#allocation2 + $0x3f0] sm:$0xff] %v1445
      %1584 = vst [vmem:[#allocation2 + $0x438] sm:$0xff] %v1446
      %v1585 = vpack.c.b16 %v461, %v461
      %v1586 = vpack.c.b16 %v429, %v428
      %v1587 = vpack.c.b16 %v431, %v430
      %v1588 = vpack.c.b16 %v433, %v432
      %v1589 = vpack.c.b16 %v435, %v434
      %v1590 = vpack.c.b16 %v437, %v436
      %v1591 = vpack.c.b16 %v439, %v438
      %v1592 = vpack.c.b16 %v441, %v440
      %v1593 = vpack.c.b16 %v445, %v444
      %v1594 = vpack.c.b16 %v447, %v446
      %v1595 = vpack.c.b16 %v449, %v448
      %v1596 = vpack.c.b16 %v451, %v450
      %v1597 = vpack.c.b16 %v453, %v452
      %v1598 = vpack.c.b16 %v455, %v454
      %v1599 = vpack.c.b16 %v457, %v456
      %1615 = vst [vmem:[#allocation2 + $0x8] sm:$0xff] %v1585
      %1616 = vst [vmem:[#allocation2 + $0x50] sm:$0xff] %v1586
      %1617 = vst [vmem:[#allocation2 + $0x98] sm:$0xff] %v1587
      %1618 = vst [vmem:[#allocation2 + $0xe0] sm:$0xff] %v1588
      %1619 = vst [vmem:[#allocation2 + $0x128] sm:$0xff] %v1589
      %1620 = vst [vmem:[#allocation2 + $0x170] sm:$0xff] %v1590
      %1621 = vst [vmem:[#allocation2 + $0x1b8] sm:$0xff] %v1591
      %1622 = vst [vmem:[#allocation2 + $0x200] sm:$0xff] %v1592
      %1623 = vst [vmem:[#allocation2 + $0x248] sm:$0xff] %v1585
      %1624 = vst [vmem:[#allocation2 + $0x290] sm:$0xff] %v1593
      %1625 = vst [vmem:[#allocation2 + $0x2d8] sm:$0xff] %v1594
      %1626 = vst [vmem:[#allocation2 + $0x320] sm:$0xff] %v1595
      %1627 = vst [vmem:[#allocation2 + $0x368] sm:$0xff] %v1596
      %1628 = vst [vmem:[#allocation2 + $0x3b0] sm:$0xff] %v1597
      %1629 = vst [vmem:[#allocation2 + $0x3f8] sm:$0xff] %v1598
      %1630 = vst [vmem:[#allocation2 + $0x440] sm:$0xff] %v1599
      %1631 = vst [vmem:[#allocation2 + $0x10] sm:$0xff] %v1529
      %1632 = vst [vmem:[#allocation2 + $0x58] sm:$0xff] %v1530
      %1633 = vst [vmem:[#allocation2 + $0xa0] sm:$0xff] %v1531
      %1634 = vst [vmem:[#allocation2 + $0xe8] sm:$0xff] %v1532
      %1635 = vst [vmem:[#allocation2 + $0x130] sm:$0xff] %v1533
      %1636 = vst [vmem:[#allocation2 + $0x178] sm:$0xff] %v1534
      %1637 = vst [vmem:[#allocation2 + $0x1c0] sm:$0xff] %v1535
      %1638 = vst [vmem:[#allocation2 + $0x208] sm:$0xff] %v1536
      %1639 = vst [vmem:[#allocation2 + $0x250] sm:$0xff] %v1539
      %1640 = vst [vmem:[#allocation2 + $0x298] sm:$0xff] %v1540
      %1641 = vst [vmem:[#allocation2 + $0x2e0] sm:$0xff] %v1541
      %1642 = vst [vmem:[#allocation2 + $0x328] sm:$0xff] %v1542
      %1643 = vst [vmem:[#allocation2 + $0x370] sm:$0xff] %v1543
      %1644 = vst [vmem:[#allocation2 + $0x3b8] sm:$0xff] %v1544
      %1645 = vst [vmem:[#allocation2 + $0x400] sm:$0xff] %v1545
      %1646 = vst [vmem:[#allocation2 + $0x448] sm:$0xff] %v1546
      %1647 = vst [vmem:[#allocation2 + $0x18] sm:$0xff] %v1430
      %1648 = vst [vmem:[#allocation2 + $0x60] sm:$0xff] %v1431
      %1649 = vst [vmem:[#allocation2 + $0xa8] sm:$0xff] %v1432
      %1650 = vst [vmem:[#allocation2 + $0xf0] sm:$0xff] %v1433
      %1651 = vst [vmem:[#allocation2 + $0x138] sm:$0xff] %v1434
      %1652 = vst [vmem:[#allocation2 + $0x180] sm:$0xff] %v1435
      %1653 = vst [vmem:[#allocation2 + $0x1c8] sm:$0xff] %v1436
      %1654 = vst [vmem:[#allocation2 + $0x210] sm:$0xff] %v1437
      %1655 = vst [vmem:[#allocation2 + $0x258] sm:$0xff] %v1440
      %1656 = vst [vmem:[#allocation2 + $0x2a0] sm:$0xff] %v1441
      %1657 = vst [vmem:[#allocation2 + $0x2e8] sm:$0xff] %v1442
      %1658 = vst [vmem:[#allocation2 + $0x330] sm:$0xff] %v1443
      %1659 = vst [vmem:[#allocation2 + $0x378] sm:$0xff] %v1444
      %1660 = vst [vmem:[#allocation2 + $0x3c0] sm:$0xff] %v1445
      %1661 = vst [vmem:[#allocation2 + $0x408] sm:$0xff] %v1446
      %1662 = vst [vmem:[#allocation2 + $0x450] sm:$0xff] %v1447
      %v1663 = vpack.c.b16 %v443, %v442
      %v1664 = vpack.c.b16 %v459, %v458
      %1667 = vst [vmem:[#allocation2 + $0x20] sm:$0xff] %v1586
      %1668 = vst [vmem:[#allocation2 + $0x68] sm:$0xff] %v1587
      %1669 = vst [vmem:[#allocation2 + $0xb0] sm:$0xff] %v1588
      %1670 = vst [vmem:[#allocation2 + $0xf8] sm:$0xff] %v1589
      %1671 = vst [vmem:[#allocation2 + $0x140] sm:$0xff] %v1590
      %1672 = vst [vmem:[#allocation2 + $0x188] sm:$0xff] %v1591
      %1673 = vst [vmem:[#allocation2 + $0x1d0] sm:$0xff] %v1592
      %1674 = vst [vmem:[#allocation2 + $0x218] sm:$0xff] %v1663
      %1675 = vst [vmem:[#allocation2 + $0x260] sm:$0xff] %v1593
      %1676 = vst [vmem:[#allocation2 + $0x2a8] sm:$0xff] %v1594
      %1677 = vst [vmem:[#allocation2 + $0x2f0] sm:$0xff] %v1595
      %1678 = vst [vmem:[#allocation2 + $0x338] sm:$0xff] %v1596
      %1679 = vst [vmem:[#allocation2 + $0x380] sm:$0xff] %v1597
      %1680 = vst [vmem:[#allocation2 + $0x3c8] sm:$0xff] %v1598
      %1681 = vst [vmem:[#allocation2 + $0x410] sm:$0xff] %v1599
      %1682 = vst [vmem:[#allocation2 + $0x458] sm:$0xff] %v1664
      %1683 = vst [vmem:[#allocation2 + $0x28] sm:$0xff] %v1530
      %1684 = vst [vmem:[#allocation2 + $0x70] sm:$0xff] %v1531
      %1685 = vst [vmem:[#allocation2 + $0xb8] sm:$0xff] %v1532
      %1686 = vst [vmem:[#allocation2 + $0x100] sm:$0xff] %v1533
      %1687 = vst [vmem:[#allocation2 + $0x148] sm:$0xff] %v1534
      %1688 = vst [vmem:[#allocation2 + $0x190] sm:$0xff] %v1535
      %1689 = vst [vmem:[#allocation2 + $0x1d8] sm:$0xff] %v1536
      %1690 = vst [vmem:[#allocation2 + $0x220] sm:$0xff] %v1537
      %1691 = vst [vmem:[#allocation2 + $0x268] sm:$0xff] %v1540
      %1692 = vst [vmem:[#allocation2 + $0x2b0] sm:$0xff] %v1541
      %1693 = vst [vmem:[#allocation2 + $0x2f8] sm:$0xff] %v1542
      %1694 = vst [vmem:[#allocation2 + $0x340] sm:$0xff] %v1543
      %1695 = vst [vmem:[#allocation2 + $0x388] sm:$0xff] %v1544
      %1696 = vst [vmem:[#allocation2 + $0x3d0] sm:$0xff] %v1545
      %1697 = vst [vmem:[#allocation2 + $0x418] sm:$0xff] %v1546
      %1698 = vst [vmem:[#allocation2 + $0x460] sm:$0xff] %v1547
      %1699 = vst [vmem:[#allocation2 + $0x30] sm:$0xff] %v1431
      %1700 = vst [vmem:[#allocation2 + $0x78] sm:$0xff] %v1432
      %1701 = vst [vmem:[#allocation2 + $0xc0] sm:$0xff] %v1433
      %1702 = vst [vmem:[#allocation2 + $0x108] sm:$0xff] %v1434
      %1703 = vst [vmem:[#allocation2 + $0x150] sm:$0xff] %v1435
      %1704 = vst [vmem:[#allocation2 + $0x198] sm:$0xff] %v1436
      %1705 = vst [vmem:[#allocation2 + $0x1e0] sm:$0xff] %v1437
      %1706 = vst [vmem:[#allocation2 + $0x228] sm:$0xff] %v1438
      %1707 = vst [vmem:[#allocation2 + $0x270] sm:$0xff] %v1441
      %1708 = vst [vmem:[#allocation2 + $0x2b8] sm:$0xff] %v1442
      %1709 = vst [vmem:[#allocation2 + $0x300] sm:$0xff] %v1443
      %1710 = vst [vmem:[#allocation2 + $0x348] sm:$0xff] %v1444
      %1711 = vst [vmem:[#allocation2 + $0x390] sm:$0xff] %v1445
      %1712 = vst [vmem:[#allocation2 + $0x3d8] sm:$0xff] %v1446
      %1713 = vst [vmem:[#allocation2 + $0x420] sm:$0xff] %v1447
      %1714 = vst [vmem:[#allocation2 + $0x468] sm:$0xff] %v1448
      %1715 = vst [vmem:[#allocation2 + $0x38] sm:$0xff] %v1587
      %1716 = vst [vmem:[#allocation2 + $0x80] sm:$0xff] %v1588
      %1717 = vst [vmem:[#allocation2 + $0xc8] sm:$0xff] %v1589
      %1718 = vst [vmem:[#allocation2 + $0x110] sm:$0xff] %v1590
      %1719 = vst [vmem:[#allocation2 + $0x158] sm:$0xff] %v1591
      %1720 = vst [vmem:[#allocation2 + $0x1a0] sm:$0xff] %v1592
      %1721 = vst [vmem:[#allocation2 + $0x1e8] sm:$0xff] %v1663
      %1722 = vst [vmem:[#allocation2 + $0x230] sm:$0xff] %v1585
      %1723 = vst [vmem:[#allocation2 + $0x278] sm:$0xff] %v1594
      %1724 = vst [vmem:[#allocation2 + $0x2c0] sm:$0xff] %v1595
      %1725 = vst [vmem:[#allocation2 + $0x308] sm:$0xff] %v1596
      %1726 = vst [vmem:[#allocation2 + $0x350] sm:$0xff] %v1597
      %1727 = vst [vmem:[#allocation2 + $0x398] sm:$0xff] %v1598
      %1728 = vst [vmem:[#allocation2 + $0x3e0] sm:$0xff] %v1599
      %1729 = vst [vmem:[#allocation2 + $0x428] sm:$0xff] %v1664
      %1730 = vst [vmem:[#allocation2 + $0x470] sm:$0xff] %v1585
      %1731 = vst [vmem:[#allocation2 + $0x40] sm:$0xff] %v1531
      %1732 = vst [vmem:[#allocation2 + $0x88] sm:$0xff] %v1532
      %1733 = vst [vmem:[#allocation2 + $0xd0] sm:$0xff] %v1533
      %1734 = vst [vmem:[#allocation2 + $0x118] sm:$0xff] %v1534
      %1735 = vst [vmem:[#allocation2 + $0x160] sm:$0xff] %v1535
      %1736 = vst [vmem:[#allocation2 + $0x1a8] sm:$0xff] %v1536
      %1737 = vst [vmem:[#allocation2 + $0x1f0] sm:$0xff] %v1537
      %1738 = vst [vmem:[#allocation2 + $0x238] sm:$0xff] %v1538
      %1739 = vst [vmem:[#allocation2 + $0x280] sm:$0xff] %v1541
      %1740 = vst [vmem:[#allocation2 + $0x2c8] sm:$0xff] %v1542
      %1741 = vst [vmem:[#allocation2 + $0x310] sm:$0xff] %v1543
      %1742 = vst [vmem:[#allocation2 + $0x358] sm:$0xff] %v1544
      %1743 = vst [vmem:[#allocation2 + $0x3a0] sm:$0xff] %v1545
      %1744 = vst [vmem:[#allocation2 + $0x3e8] sm:$0xff] %v1546
      %1745 = vst [vmem:[#allocation2 + $0x430] sm:$0xff] %v1547
      %1746 = vst [vmem:[#allocation2 + $0x478] sm:$0xff] %v1548
      %v1747 = vld [vmem:[#allocation2] sm:$0xff]
      %v1748 = vld [vmem:[#allocation2 + $0x8] sm:$0xff]
      %v1749 = vld [vmem:[#allocation2 + $0x10] sm:$0xff]
      %v1750 = vld [vmem:[#allocation2 + $0x18] sm:$0xff]
      %v1751 = vld [vmem:[#allocation2 + $0x20] sm:$0xff]
      %v1752 = vld [vmem:[#allocation2 + $0x28] sm:$0xff]
      %v1753 = vld [vmem:[#allocation2 + $0x30] sm:$0xff]
      %v1754 = vld [vmem:[#allocation2 + $0x38] sm:$0xff]
      %v1755 = vld [vmem:[#allocation2 + $0x40] sm:$0xff]
      %v1756 = vld [vmem:[#allocation2 + $0x48] sm:$0xff]
      %v1757 = vld [vmem:[#allocation2 + $0x50] sm:$0xff]
      %v1758 = vld [vmem:[#allocation2 + $0x58] sm:$0xff]
      %v1759 = vld [vmem:[#allocation2 + $0x60] sm:$0xff]
      %v1760 = vld [vmem:[#allocation2 + $0x68] sm:$0xff]
      %v1761 = vld [vmem:[#allocation2 + $0x70] sm:$0xff]
      %v1762 = vld [vmem:[#allocation2 + $0x78] sm:$0xff]
      %v1763 = vld [vmem:[#allocation2 + $0x80] sm:$0xff]
      %v1764 = vld [vmem:[#allocation2 + $0x88] sm:$0xff]
      %v1765 = vld [vmem:[#allocation2 + $0x90] sm:$0xff]
      %v1766 = vld [vmem:[#allocation2 + $0x98] sm:$0xff]
      %v1767 = vld [vmem:[#allocation2 + $0xa0] sm:$0xff]
      %v1768 = vld [vmem:[#allocation2 + $0xa8] sm:$0xff]
      %v1769 = vld [vmem:[#allocation2 + $0xb0] sm:$0xff]
      %v1770 = vld [vmem:[#allocation2 + $0xb8] sm:$0xff]
      %v1771 = vld [vmem:[#allocation2 + $0xc0] sm:$0xff]
      %v1772 = vld [vmem:[#allocation2 + $0xc8] sm:$0xff]
      %v1773 = vld [vmem:[#allocation2 + $0xd0] sm:$0xff]
      %v1774 = vld [vmem:[#allocation2 + $0xd8] sm:$0xff]
      %v1775 = vld [vmem:[#allocation2 + $0xe0] sm:$0xff]
      %v1776 = vld [vmem:[#allocation2 + $0xe8] sm:$0xff]
      %v1777 = vld [vmem:[#allocation2 + $0xf0] sm:$0xff]
      %v1778 = vld [vmem:[#allocation2 + $0xf8] sm:$0xff]
      %v1779 = vld [vmem:[#allocation2 + $0x100] sm:$0xff]
      %v1780 = vld [vmem:[#allocation2 + $0x108] sm:$0xff]
      %v1781 = vld [vmem:[#allocation2 + $0x110] sm:$0xff]
      %v1782 = vld [vmem:[#allocation2 + $0x118] sm:$0xff]
      %v1783 = vld [vmem:[#allocation2 + $0x120] sm:$0xff]
      %v1784 = vld [vmem:[#allocation2 + $0x128] sm:$0xff]
      %v1785 = vld [vmem:[#allocation2 + $0x130] sm:$0xff]
      %v1786 = vld [vmem:[#allocation2 + $0x138] sm:$0xff]
      %v1787 = vld [vmem:[#allocation2 + $0x140] sm:$0xff]
      %v1788 = vld [vmem:[#allocation2 + $0x148] sm:$0xff]
      %v1789 = vld [vmem:[#allocation2 + $0x150] sm:$0xff]
      %v1790 = vld [vmem:[#allocation2 + $0x158] sm:$0xff]
      %v1791 = vld [vmem:[#allocation2 + $0x160] sm:$0xff]
      %v1792 = vld [vmem:[#allocation2 + $0x168] sm:$0xff]
      %v1793 = vld [vmem:[#allocation2 + $0x170] sm:$0xff]
      %v1794 = vld [vmem:[#allocation2 + $0x178] sm:$0xff]
      %v1795 = vld [vmem:[#allocation2 + $0x180] sm:$0xff]
      %v1796 = vld [vmem:[#allocation2 + $0x188] sm:$0xff]
      %v1797 = vld [vmem:[#allocation2 + $0x190] sm:$0xff]
      %v1798 = vld [vmem:[#allocation2 + $0x198] sm:$0xff]
      %v1799 = vld [vmem:[#allocation2 + $0x1a0] sm:$0xff]
      %v1800 = vld [vmem:[#allocation2 + $0x1a8] sm:$0xff]
      %v1801 = vld [vmem:[#allocation2 + $0x1b0] sm:$0xff]
      %v1802 = vld [vmem:[#allocation2 + $0x1b8] sm:$0xff]
      %v1803 = vld [vmem:[#allocation2 + $0x1c0] sm:$0xff]
      %v1804 = vld [vmem:[#allocation2 + $0x1c8] sm:$0xff]
      %v1805 = vld [vmem:[#allocation2 + $0x1d0] sm:$0xff]
      %v1806 = vld [vmem:[#allocation2 + $0x1d8] sm:$0xff]
      %v1807 = vld [vmem:[#allocation2 + $0x1e0] sm:$0xff]
      %v1808 = vld [vmem:[#allocation2 + $0x1e8] sm:$0xff]
      %v1809 = vld [vmem:[#allocation2 + $0x1f0] sm:$0xff]
      %v1810 = vld [vmem:[#allocation2 + $0x1f8] sm:$0xff]
      %v1811 = vld [vmem:[#allocation2 + $0x200] sm:$0xff]
      %v1812 = vld [vmem:[#allocation2 + $0x208] sm:$0xff]
      %v1813 = vld [vmem:[#allocation2 + $0x210] sm:$0xff]
      %v1814 = vld [vmem:[#allocation2 + $0x218] sm:$0xff]
      %v1815 = vld [vmem:[#allocation2 + $0x220] sm:$0xff]
      %v1816 = vld [vmem:[#allocation2 + $0x228] sm:$0xff]
      %v1817 = vld [vmem:[#allocation2 + $0x230] sm:$0xff]
      %v1818 = vld [vmem:[#allocation2 + $0x238] sm:$0xff]
      %v1819 = vld [vmem:[#allocation2 + $0x240] sm:$0xff]
      %v1820 = vld [vmem:[#allocation2 + $0x248] sm:$0xff]
      %v1821 = vld [vmem:[#allocation2 + $0x250] sm:$0xff]
      %v1822 = vld [vmem:[#allocation2 + $0x258] sm:$0xff]
      %v1823 = vld [vmem:[#allocation2 + $0x260] sm:$0xff]
      %v1824 = vld [vmem:[#allocation2 + $0x268] sm:$0xff]
      %v1825 = vld [vmem:[#allocation2 + $0x270] sm:$0xff]
      %v1826 = vld [vmem:[#allocation2 + $0x278] sm:$0xff]
      %v1827 = vld [vmem:[#allocation2 + $0x280] sm:$0xff]
      %v1828 = vld [vmem:[#allocation2 + $0x288] sm:$0xff]
      %v1829 = vld [vmem:[#allocation2 + $0x290] sm:$0xff]
      %v1830 = vld [vmem:[#allocation2 + $0x298] sm:$0xff]
      %v1831 = vld [vmem:[#allocation2 + $0x2a0] sm:$0xff]
      %v1832 = vld [vmem:[#allocation2 + $0x2a8] sm:$0xff]
      %v1833 = vld [vmem:[#allocation2 + $0x2b0] sm:$0xff]
      %v1834 = vld [vmem:[#allocation2 + $0x2b8] sm:$0xff]
      %v1835 = vld [vmem:[#allocation2 + $0x2c0] sm:$0xff]
      %v1836 = vld [vmem:[#allocation2 + $0x2c8] sm:$0xff]
      %v1837 = vld [vmem:[#allocation2 + $0x2d0] sm:$0xff]
      %v1838 = vld [vmem:[#allocation2 + $0x2d8] sm:$0xff]
      %v1839 = vld [vmem:[#allocation2 + $0x2e0] sm:$0xff]
      %v1840 = vld [vmem:[#allocation2 + $0x2e8] sm:$0xff]
      %v1841 = vld [vmem:[#allocation2 + $0x2f0] sm:$0xff]
      %v1842 = vld [vmem:[#allocation2 + $0x2f8] sm:$0xff]
      %v1843 = vld [vmem:[#allocation2 + $0x300] sm:$0xff]
      %v1844 = vld [vmem:[#allocation2 + $0x308] sm:$0xff]
      %v1845 = vld [vmem:[#allocation2 + $0x310] sm:$0xff]
      %v1846 = vld [vmem:[#allocation2 + $0x318] sm:$0xff]
      %v1847 = vld [vmem:[#allocation2 + $0x320] sm:$0xff]
      %v1848 = vld [vmem:[#allocation2 + $0x328] sm:$0xff]
      %v1849 = vld [vmem:[#allocation2 + $0x330] sm:$0xff]
      %v1850 = vld [vmem:[#allocation2 + $0x338] sm:$0xff]
      %v1851 = vld [vmem:[#allocation2 + $0x340] sm:$0xff]
      %v1852 = vld [vmem:[#allocation2 + $0x348] sm:$0xff]
      %v1853 = vld [vmem:[#allocation2 + $0x350] sm:$0xff]
      %v1854 = vld [vmem:[#allocation2 + $0x358] sm:$0xff]
      %v1855 = vld [vmem:[#allocation2 + $0x360] sm:$0xff]
      %v1856 = vld [vmem:[#allocation2 + $0x368] sm:$0xff]
      %v1857 = vld [vmem:[#allocation2 + $0x370] sm:$0xff]
      %v1858 = vld [vmem:[#allocation2 + $0x378] sm:$0xff]
      %v1859 = vld [vmem:[#allocation2 + $0x380] sm:$0xff]
      %v1860 = vld [vmem:[#allocation2 + $0x388] sm:$0xff]
      %v1861 = vld [vmem:[#allocation2 + $0x390] sm:$0xff]
      %v1862 = vld [vmem:[#allocation2 + $0x398] sm:$0xff]
      %v1863 = vld [vmem:[#allocation2 + $0x3a0] sm:$0xff]
      %v1864 = vld [vmem:[#allocation2 + $0x3a8] sm:$0xff]
      %v1865 = vld [vmem:[#allocation2 + $0x3b0] sm:$0xff]
      %v1866 = vld [vmem:[#allocation2 + $0x3b8] sm:$0xff]
      %v1867 = vld [vmem:[#allocation2 + $0x3c0] sm:$0xff]
      %v1868 = vld [vmem:[#allocation2 + $0x3c8] sm:$0xff]
      %v1869 = vld [vmem:[#allocation2 + $0x3d0] sm:$0xff]
      %v1870 = vld [vmem:[#allocation2 + $0x3d8] sm:$0xff]
      %v1871 = vld [vmem:[#allocation2 + $0x3e0] sm:$0xff]
      %v1872 = vld [vmem:[#allocation2 + $0x3e8] sm:$0xff]
      %v1873 = vld [vmem:[#allocation2 + $0x3f0] sm:$0xff]
      %v1874 = vld [vmem:[#allocation2 + $0x3f8] sm:$0xff]
      %v1875 = vld [vmem:[#allocation2 + $0x400] sm:$0xff]
      %v1876 = vld [vmem:[#allocation2 + $0x408] sm:$0xff]
      %v1877 = vld [vmem:[#allocation2 + $0x410] sm:$0xff]
      %v1878 = vld [vmem:[#allocation2 + $0x418] sm:$0xff]
      %v1879 = vld [vmem:[#allocation2 + $0x420] sm:$0xff]
      %v1880 = vld [vmem:[#allocation2 + $0x428] sm:$0xff]
      %v1881 = vld [vmem:[#allocation2 + $0x430] sm:$0xff]
      %v1882 = vld [vmem:[#allocation2 + $0x438] sm:$0xff]
      %v1883 = vld [vmem:[#allocation2 + $0x440] sm:$0xff]
      %v1884 = vld [vmem:[#allocation2 + $0x448] sm:$0xff]
      %v1885 = vld [vmem:[#allocation2 + $0x450] sm:$0xff]
      %v1886 = vld [vmem:[#allocation2 + $0x458] sm:$0xff]
      %v1887 = vld [vmem:[#allocation2 + $0x460] sm:$0xff]
      %v1888 = vld [vmem:[#allocation2 + $0x468] sm:$0xff]
      %v1889 = vld [vmem:[#allocation2 + $0x470] sm:$0xff]
      %v1890 = vld [vmem:[#allocation2 + $0x478] sm:$0xff]
      %v1891 = vld [vmem:[%s3] sm:$0xff]
      %v1892 = vld [vmem:[%s3 + $0x8] sm:$0xff]
      %v1893 = vld [vmem:[%s3 + $0x10] sm:$0xff]
      %v1894 = vld [vmem:[%s3 + $0x18] sm:$0xff]
      %v1895 = vld [vmem:[%s3 + $0x20] sm:$0xff]
      %v1896 = vld [vmem:[%s3 + $0x28] sm:$0xff]
      %v1897 = vld [vmem:[%s3 + $0x30] sm:$0xff]
      %v1898 = vld [vmem:[%s3 + $0x38] sm:$0xff]
      %v1899 = vld [vmem:[%s3 + $0x40] sm:$0xff]
      %v1900 = vld [vmem:[%s3 + $0x48] sm:$0xff]
      %v1901 = vld [vmem:[%s3 + $0x50] sm:$0xff]
      %v1902 = vld [vmem:[%s3 + $0x58] sm:$0xff]
      %v1903 = vld [vmem:[%s3 + $0x60] sm:$0xff]
      %v1904 = vld [vmem:[%s3 + $0x68] sm:$0xff]
      %v1905 = vld [vmem:[%s3 + $0x70] sm:$0xff]
      %v1906 = vld [vmem:[%s3 + $0x78] sm:$0xff]
      %v1907 = vld [vmem:[%s3 + $0x80] sm:$0xff]
      %v1908 = vld [vmem:[%s3 + $0x88] sm:$0xff]
      %v1909 = vld [vmem:[%s3 + $0x90] sm:$0xff]
      %v1910 = vld [vmem:[%s3 + $0x98] sm:$0xff]
      %v1911 = vld [vmem:[%s3 + $0xa0] sm:$0xff]
      %v1912 = vld [vmem:[%s3 + $0xa8] sm:$0xff]
      %v1913 = vld [vmem:[%s3 + $0xb0] sm:$0xff]
      %v1914 = vld [vmem:[%s3 + $0xb8] sm:$0xff]
      %v1915 = vld [vmem:[%s3 + $0xc0] sm:$0xff]
      %v1916 = vld [vmem:[%s3 + $0xc8] sm:$0xff]
      %v1917 = vld [vmem:[%s3 + $0xd0] sm:$0xff]
      %v1918 = vld [vmem:[%s3 + $0xd8] sm:$0xff]
      %v1919 = vld [vmem:[%s3 + $0xe0] sm:$0xff]
      %v1920 = vld [vmem:[%s3 + $0xe8] sm:$0xff]
      %v1921 = vld [vmem:[%s3 + $0xf0] sm:$0xff]
      %v1922 = vld [vmem:[%s3 + $0xf8] sm:$0xff]
      %v1923 = vld [vmem:[%s3 + $0x100] sm:$0xff]
      %v1924 = vld [vmem:[%s3 + $0x108] sm:$0xff]
      %v1925 = vld [vmem:[%s3 + $0x110] sm:$0xff]
      %v1926 = vld [vmem:[%s3 + $0x118] sm:$0xff]
      %v1927 = vld [vmem:[%s3 + $0x120] sm:$0xff]
      %v1928 = vld [vmem:[%s3 + $0x128] sm:$0xff]
      %v1929 = vld [vmem:[%s3 + $0x130] sm:$0xff]
      %v1930 = vld [vmem:[%s3 + $0x138] sm:$0xff]
      %v1931 = vld [vmem:[%s3 + $0x140] sm:$0xff]
      %v1932 = vld [vmem:[%s3 + $0x148] sm:$0xff]
      %v1933 = vld [vmem:[%s3 + $0x150] sm:$0xff]
      %v1934 = vld [vmem:[%s3 + $0x158] sm:$0xff]
      %v1935 = vld [vmem:[%s3 + $0x160] sm:$0xff]
      %v1936 = vld [vmem:[%s3 + $0x168] sm:$0xff]
      %v1937 = vld [vmem:[%s3 + $0x170] sm:$0xff]
      %v1938 = vld [vmem:[%s3 + $0x178] sm:$0xff]
      %v1939 = vld [vmem:[%s3 + $0x180] sm:$0xff]
      %v1940 = vld [vmem:[%s3 + $0x188] sm:$0xff]
      %v1941 = vld [vmem:[%s3 + $0x190] sm:$0xff]
      %v1942 = vld [vmem:[%s3 + $0x198] sm:$0xff]
      %v1943 = vld [vmem:[%s3 + $0x1a0] sm:$0xff]
      %v1944 = vld [vmem:[%s3 + $0x1a8] sm:$0xff]
      %v1945 = vld [vmem:[%s3 + $0x1b0] sm:$0xff]
      %v1946 = vld [vmem:[%s3 + $0x1b8] sm:$0xff]
      %v1947 = vld [vmem:[%s3 + $0x1c0] sm:$0xff]
      %v1948 = vld [vmem:[%s3 + $0x1c8] sm:$0xff]
      %v1949 = vld [vmem:[%s3 + $0x1d0] sm:$0xff]
      %v1950 = vld [vmem:[%s3 + $0x1d8] sm:$0xff]
      %v1951 = vld [vmem:[%s3 + $0x1e0] sm:$0xff]
      %v1952 = vld [vmem:[%s3 + $0x1e8] sm:$0xff]
      %v1953 = vld [vmem:[%s3 + $0x1f0] sm:$0xff]
      %v1954 = vld [vmem:[%s3 + $0x1f8] sm:$0xff]
      %v1955 = vld [vmem:[%s3 + $0x200] sm:$0xff]
      %v1956 = vld [vmem:[%s3 + $0x208] sm:$0xff]
      %v1957 = vld [vmem:[%s3 + $0x210] sm:$0xff]
      %v1958 = vld [vmem:[%s3 + $0x218] sm:$0xff]
      %v1959 = vld [vmem:[%s3 + $0x220] sm:$0xff]
      %v1960 = vld [vmem:[%s3 + $0x228] sm:$0xff]
      %v1961 = vld [vmem:[%s3 + $0x230] sm:$0xff]
      %v1962 = vld [vmem:[%s3 + $0x238] sm:$0xff]
      %v1963 = vld [vmem:[%s3 + $0x240] sm:$0xff]
      %v1964 = vld [vmem:[%s3 + $0x248] sm:$0xff]
      %v1965 = vld [vmem:[%s3 + $0x250] sm:$0xff]
      %v1966 = vld [vmem:[%s3 + $0x258] sm:$0xff]
      %v1967 = vld [vmem:[%s3 + $0x260] sm:$0xff]
      %v1968 = vld [vmem:[%s3 + $0x268] sm:$0xff]
      %v1969 = vld [vmem:[%s3 + $0x270] sm:$0xff]
      %v1970 = vld [vmem:[%s3 + $0x278] sm:$0xff]
      %v1971 = vld [vmem:[%s3 + $0x280] sm:$0xff]
      %v1972 = vld [vmem:[%s3 + $0x288] sm:$0xff]
      %v1973 = vld [vmem:[%s3 + $0x290] sm:$0xff]
      %v1974 = vld [vmem:[%s3 + $0x298] sm:$0xff]
      %v1975 = vld [vmem:[%s3 + $0x2a0] sm:$0xff]
      %v1976 = vld [vmem:[%s3 + $0x2a8] sm:$0xff]
      %v1977 = vld [vmem:[%s3 + $0x2b0] sm:$0xff]
      %v1978 = vld [vmem:[%s3 + $0x2b8] sm:$0xff]
      %v1979 = vld [vmem:[%s3 + $0x2c0] sm:$0xff]
      %v1980 = vld [vmem:[%s3 + $0x2c8] sm:$0xff]
      %v1981 = vld [vmem:[%s3 + $0x2d0] sm:$0xff]
      %v1982 = vld [vmem:[%s3 + $0x2d8] sm:$0xff]
      %v1983 = vld [vmem:[%s3 + $0x2e0] sm:$0xff]
      %v1984 = vld [vmem:[%s3 + $0x2e8] sm:$0xff]
      %v1985 = vld [vmem:[%s3 + $0x2f0] sm:$0xff]
      %v1986 = vld [vmem:[%s3 + $0x2f8] sm:$0xff]
      %v1987 = vld [vmem:[%s3 + $0x300] sm:$0xff]
      %v1988 = vld [vmem:[%s3 + $0x308] sm:$0xff]
      %v1989 = vld [vmem:[%s3 + $0x310] sm:$0xff]
      %v1990 = vld [vmem:[%s3 + $0x318] sm:$0xff]
      %v1991 = vld [vmem:[%s3 + $0x320] sm:$0xff]
      %v1992 = vld [vmem:[%s3 + $0x328] sm:$0xff]
      %v1993 = vld [vmem:[%s3 + $0x330] sm:$0xff]
      %v1994 = vld [vmem:[%s3 + $0x338] sm:$0xff]
      %v1995 = vld [vmem:[%s3 + $0x340] sm:$0xff]
      %v1996 = vld [vmem:[%s3 + $0x348] sm:$0xff]
      %v1997 = vld [vmem:[%s3 + $0x350] sm:$0xff]
      %v1998 = vld [vmem:[%s3 + $0x358] sm:$0xff]
      %v1999 = vld [vmem:[%s3 + $0x360] sm:$0xff]
      %v2000 = vld [vmem:[%s3 + $0x368] sm:$0xff]
      %v2001 = vld [vmem:[%s3 + $0x370] sm:$0xff]
      %v2002 = vld [vmem:[%s3 + $0x378] sm:$0xff]
      %v2003 = vld [vmem:[%s3 + $0x380] sm:$0xff]
      %v2004 = vld [vmem:[%s3 + $0x388] sm:$0xff]
      %v2005 = vld [vmem:[%s3 + $0x390] sm:$0xff]
      %v2006 = vld [vmem:[%s3 + $0x398] sm:$0xff]
      %v2007 = vld [vmem:[%s3 + $0x3a0] sm:$0xff]
      %v2008 = vld [vmem:[%s3 + $0x3a8] sm:$0xff]
      %v2009 = vld [vmem:[%s3 + $0x3b0] sm:$0xff]
      %v2010 = vld [vmem:[%s3 + $0x3b8] sm:$0xff]
      %v2011 = vld [vmem:[%s3 + $0x3c0] sm:$0xff]
      %v2012 = vld [vmem:[%s3 + $0x3c8] sm:$0xff]
      %v2013 = vld [vmem:[%s3 + $0x3d0] sm:$0xff]
      %v2014 = vld [vmem:[%s3 + $0x3d8] sm:$0xff]
      %v2015 = vld [vmem:[%s3 + $0x3e0] sm:$0xff]
      %v2016 = vld [vmem:[%s3 + $0x3e8] sm:$0xff]
      %v2017 = vld [vmem:[%s3 + $0x3f0] sm:$0xff]
      %v2018 = vld [vmem:[%s3 + $0x3f8] sm:$0xff]
      %v2019 = vld [vmem:[%s3 + $0x400] sm:$0xff]
      %v2020 = vld [vmem:[%s3 + $0x408] sm:$0xff]
      %v2021 = vld [vmem:[%s3 + $0x410] sm:$0xff]
      %v2022 = vld [vmem:[%s3 + $0x418] sm:$0xff]
      %v2023 = vld [vmem:[%s3 + $0x420] sm:$0xff]
      %v2024 = vld [vmem:[%s3 + $0x428] sm:$0xff]
      %v2025 = vld [vmem:[%s3 + $0x430] sm:$0xff]
      %v2026 = vld [vmem:[%s3 + $0x438] sm:$0xff]
      %v2027 = vld [vmem:[%s3 + $0x440] sm:$0xff]
      %v2028 = vld [vmem:[%s3 + $0x448] sm:$0xff]
      %v2029 = vld [vmem:[%s3 + $0x450] sm:$0xff]
      %v2030 = vld [vmem:[%s3 + $0x458] sm:$0xff]
      %v2031 = vld [vmem:[%s3 + $0x460] sm:$0xff]
      %v2032 = vld [vmem:[%s3 + $0x468] sm:$0xff]
      %v2033 = vld [vmem:[%s3 + $0x470] sm:$0xff]
      %v2034 = vld [vmem:[%s3 + $0x478] sm:$0xff]
      %v2035 = vld [vmem:[%s3 + $0x480] sm:$0xff]
      %v2036 = vld [vmem:[%s3 + $0x488] sm:$0xff]
      %v2037 = vld [vmem:[%s3 + $0x490] sm:$0xff]
      %v2038 = vld [vmem:[%s3 + $0x498] sm:$0xff]
      %v2039 = vld [vmem:[%s3 + $0x4a0] sm:$0xff]
      %v2040 = vld [vmem:[%s3 + $0x4a8] sm:$0xff]
      %v2041 = vld [vmem:[%s3 + $0x4b0] sm:$0xff]
      %v2042 = vld [vmem:[%s3 + $0x4b8] sm:$0xff]
      %v2043 = vld [vmem:[%s3 + $0x4c0] sm:$0xff]
      %v2044 = vld [vmem:[%s3 + $0x4c8] sm:$0xff]
      %v2045 = vld [vmem:[%s3 + $0x4d0] sm:$0xff]
      %v2046 = vld [vmem:[%s3 + $0x4d8] sm:$0xff]
      %v2047 = vld [vmem:[%s3 + $0x4e0] sm:$0xff]
      %v2048 = vld [vmem:[%s3 + $0x4e8] sm:$0xff]
      %v2049 = vld [vmem:[%s3 + $0x4f0] sm:$0xff]
      %v2050 = vld [vmem:[%s3 + $0x4f8] sm:$0xff]
      %v2051 = vld [vmem:[%s3 + $0x500] sm:$0xff]
      %v2052 = vld [vmem:[%s3 + $0x508] sm:$0xff]
      %v2053 = vld [vmem:[%s3 + $0x510] sm:$0xff]
      %v2054 = vld [vmem:[%s3 + $0x518] sm:$0xff]
      %v2055 = vld [vmem:[%s3 + $0x520] sm:$0xff]
      %v2056 = vld [vmem:[%s3 + $0x528] sm:$0xff]
      %v2057 = vld [vmem:[%s3 + $0x530] sm:$0xff]
      %v2058 = vld [vmem:[%s3 + $0x538] sm:$0xff]
      %v2059 = vld [vmem:[%s3 + $0x540] sm:$0xff]
      %v2060 = vld [vmem:[%s3 + $0x548] sm:$0xff]
      %v2061 = vld [vmem:[%s3 + $0x550] sm:$0xff]
      %v2062 = vld [vmem:[%s3 + $0x558] sm:$0xff]
      %v2063 = vld [vmem:[%s3 + $0x560] sm:$0xff]
      %v2064 = vld [vmem:[%s3 + $0x568] sm:$0xff]
      %v2065 = vld [vmem:[%s3 + $0x570] sm:$0xff]
      %v2066 = vld [vmem:[%s3 + $0x578] sm:$0xff]
      %v2067 = vld [vmem:[%s3 + $0x580] sm:$0xff]
      %v2068 = vld [vmem:[%s3 + $0x588] sm:$0xff]
      %v2069 = vld [vmem:[%s3 + $0x590] sm:$0xff]
      %v2070 = vld [vmem:[%s3 + $0x598] sm:$0xff]
      %v2071 = vld [vmem:[%s3 + $0x5a0] sm:$0xff]
      %v2072 = vld [vmem:[%s3 + $0x5a8] sm:$0xff]
      %v2073 = vld [vmem:[%s3 + $0x5b0] sm:$0xff]
      %v2074 = vld [vmem:[%s3 + $0x5b8] sm:$0xff]
      %v2075 = vld [vmem:[%s3 + $0x5c0] sm:$0xff]
      %v2076 = vld [vmem:[%s3 + $0x5c8] sm:$0xff]
      %v2077 = vld [vmem:[%s3 + $0x5d0] sm:$0xff]
      %v2078 = vld [vmem:[%s3 + $0x5d8] sm:$0xff]
      %v2079 = vld [vmem:[%s3 + $0x5e0] sm:$0xff]
      %v2080 = vld [vmem:[%s3 + $0x5e8] sm:$0xff]
      %v2081 = vld [vmem:[%s3 + $0x5f0] sm:$0xff]
      %v2082 = vld [vmem:[%s3 + $0x5f8] sm:$0xff]
      %v2083 = vld [vmem:[%s3 + $0x600] sm:$0xff]
      %v2084 = vld [vmem:[%s3 + $0x608] sm:$0xff]
      %v2085 = vld [vmem:[%s3 + $0x610] sm:$0xff]
      %v2086 = vld [vmem:[%s3 + $0x618] sm:$0xff]
      %v2087 = vld [vmem:[%s3 + $0x620] sm:$0xff]
      %v2088 = vld [vmem:[%s3 + $0x628] sm:$0xff]
      %v2089 = vld [vmem:[%s3 + $0x630] sm:$0xff]
      %v2090 = vld [vmem:[%s3 + $0x638] sm:$0xff]
      %v2091 = vld [vmem:[%s3 + $0x640] sm:$0xff]
      %v2092 = vld [vmem:[%s3 + $0x648] sm:$0xff]
      %v2093 = vld [vmem:[%s3 + $0x650] sm:$0xff]
      %v2094 = vld [vmem:[%s3 + $0x658] sm:$0xff]
      %v2095 = vld [vmem:[%s3 + $0x660] sm:$0xff]
      %v2096 = vld [vmem:[%s3 + $0x668] sm:$0xff]
      %v2097 = vld [vmem:[%s3 + $0x670] sm:$0xff]
      %v2098 = vld [vmem:[%s3 + $0x678] sm:$0xff]
      %v2099 = vld [vmem:[%s3 + $0x680] sm:$0xff]
      %v2100 = vld [vmem:[%s3 + $0x688] sm:$0xff]
      %v2101 = vld [vmem:[%s3 + $0x690] sm:$0xff]
      %v2102 = vld [vmem:[%s3 + $0x698] sm:$0xff]
      %v2103 = vld [vmem:[%s3 + $0x6a0] sm:$0xff]
      %v2104 = vld [vmem:[%s3 + $0x6a8] sm:$0xff]
      %v2105 = vld [vmem:[%s3 + $0x6b0] sm:$0xff]
      %v2106 = vld [vmem:[%s3 + $0x6b8] sm:$0xff]
      %v2107 = vld [vmem:[%s3 + $0x6c0] sm:$0xff]
      %v2108 = vld [vmem:[%s3 + $0x6c8] sm:$0xff]
      %v2109 = vld [vmem:[%s3 + $0x6d0] sm:$0xff]
      %v2110 = vld [vmem:[%s3 + $0x6d8] sm:$0xff]
      %v2111 = vld [vmem:[%s3 + $0x6e0] sm:$0xff]
      %v2112 = vld [vmem:[%s3 + $0x6e8] sm:$0xff]
      %v2113 = vld [vmem:[%s3 + $0x6f0] sm:$0xff]
      %v2114 = vld [vmem:[%s3 + $0x6f8] sm:$0xff]
      %v2115 = vld [vmem:[%s3 + $0x700] sm:$0xff]
      %v2116 = vld [vmem:[%s3 + $0x708] sm:$0xff]
      %v2117 = vld [vmem:[%s3 + $0x710] sm:$0xff]
      %v2118 = vld [vmem:[%s3 + $0x718] sm:$0xff]
      %v2119 = vld [vmem:[%s3 + $0x720] sm:$0xff]
      %v2120 = vld [vmem:[%s3 + $0x728] sm:$0xff]
      %v2121 = vld [vmem:[%s3 + $0x730] sm:$0xff]
      %v2122 = vld [vmem:[%s3 + $0x738] sm:$0xff]
      %v2123 = vld [vmem:[%s3 + $0x740] sm:$0xff]
      %v2124 = vld [vmem:[%s3 + $0x748] sm:$0xff]
      %v2125 = vld [vmem:[%s3 + $0x750] sm:$0xff]
      %v2126 = vld [vmem:[%s3 + $0x758] sm:$0xff]
      %v2127 = vld [vmem:[%s3 + $0x760] sm:$0xff]
      %v2128 = vld [vmem:[%s3 + $0x768] sm:$0xff]
      %v2129 = vld [vmem:[%s3 + $0x770] sm:$0xff]
      %v2130 = vld [vmem:[%s3 + $0x778] sm:$0xff]
      %v2131 = vld [vmem:[%s3 + $0x780] sm:$0xff]
      %v2132 = vld [vmem:[%s3 + $0x788] sm:$0xff]
      %v2133 = vld [vmem:[%s3 + $0x790] sm:$0xff]
      %v2134 = vld [vmem:[%s3 + $0x798] sm:$0xff]
      %v2135 = vld [vmem:[%s3 + $0x7a0] sm:$0xff]
      %v2136 = vld [vmem:[%s3 + $0x7a8] sm:$0xff]
      %v2137 = vld [vmem:[%s3 + $0x7b0] sm:$0xff]
      %v2138 = vld [vmem:[%s3 + $0x7b8] sm:$0xff]
      %v2139 = vld [vmem:[%s3 + $0x7c0] sm:$0xff]
      %v2140 = vld [vmem:[%s3 + $0x7c8] sm:$0xff]
      %v2141 = vld [vmem:[%s3 + $0x7d0] sm:$0xff]
      %v2142 = vld [vmem:[%s3 + $0x7d8] sm:$0xff]
      %v2143 = vld [vmem:[%s3 + $0x7e0] sm:$0xff]
      %v2144 = vld [vmem:[%s3 + $0x7e8] sm:$0xff]
      %v2145 = vld [vmem:[%s3 + $0x7f0] sm:$0xff]
      %v2146 = vld [vmem:[%s3 + $0x7f8] sm:$0xff]
      %v2147 = vld [vmem:[%s3 + $0x800] sm:$0xff]
      %v2148 = vld [vmem:[%s3 + $0x808] sm:$0xff]
      %v2149 = vld [vmem:[%s3 + $0x810] sm:$0xff]
      %v2150 = vld [vmem:[%s3 + $0x818] sm:$0xff]
      %v2151 = vld [vmem:[%s3 + $0x820] sm:$0xff]
      %v2152 = vld [vmem:[%s3 + $0x828] sm:$0xff]
      %v2153 = vld [vmem:[%s3 + $0x830] sm:$0xff]
      %v2154 = vld [vmem:[%s3 + $0x838] sm:$0xff]
      %v2155 = vld [vmem:[%s3 + $0x840] sm:$0xff]
      %v2156 = vld [vmem:[%s3 + $0x848] sm:$0xff]
      %v2157 = vld [vmem:[%s3 + $0x850] sm:$0xff]
      %v2158 = vld [vmem:[%s3 + $0x858] sm:$0xff]
      %v2159 = vld [vmem:[%s3 + $0x860] sm:$0xff]
      %v2160 = vld [vmem:[%s3 + $0x868] sm:$0xff]
      %v2161 = vld [vmem:[%s3 + $0x870] sm:$0xff]
      %v2162 = vld [vmem:[%s3 + $0x878] sm:$0xff]
      %v2163 = vld [vmem:[%s3 + $0x880] sm:$0xff]
      %v2164 = vld [vmem:[%s3 + $0x888] sm:$0xff]
      %v2165 = vld [vmem:[%s3 + $0x890] sm:$0xff]
      %v2166 = vld [vmem:[%s3 + $0x898] sm:$0xff]
      %v2167 = vld [vmem:[%s3 + $0x8a0] sm:$0xff]
      %v2168 = vld [vmem:[%s3 + $0x8a8] sm:$0xff]
      %v2169 = vld [vmem:[%s3 + $0x8b0] sm:$0xff]
      %v2170 = vld [vmem:[%s3 + $0x8b8] sm:$0xff]
      %v2171 = vld [vmem:[%s3 + $0x8c0] sm:$0xff]
      %v2172 = vld [vmem:[%s3 + $0x8c8] sm:$0xff]
      %v2173 = vld [vmem:[%s3 + $0x8d0] sm:$0xff]
      %v2174 = vld [vmem:[%s3 + $0x8d8] sm:$0xff]
      %v2175 = vld [vmem:[%s3 + $0x8e0] sm:$0xff]
      %v2176 = vld [vmem:[%s3 + $0x8e8] sm:$0xff]
      %v2177 = vld [vmem:[%s3 + $0x8f0] sm:$0xff]
      %v2178 = vld [vmem:[%s3 + $0x8f8] sm:$0xff]
      %v2323 = vunpack.c.l.b16 %v1747
      %v2324 = vunpack.c.h.b16 %v1747
      %v2325 = vunpack.c.l.b16 %v1748
      %v2326 = vunpack.c.h.b16 %v1748
      %v2327 = vunpack.c.l.b16 %v1749
      %v2328 = vunpack.c.h.b16 %v1749
      %v2329 = vunpack.c.l.b16 %v1750
      %v2330 = vunpack.c.h.b16 %v1750
      %v2331 = vunpack.c.l.b16 %v1751
      %v2332 = vunpack.c.h.b16 %v1751
      %v2333 = vunpack.c.l.b16 %v1752
      %v2334 = vunpack.c.h.b16 %v1752
      %v2335 = vunpack.c.l.b16 %v1753
      %v2336 = vunpack.c.h.b16 %v1753
      %v2337 = vunpack.c.l.b16 %v1754
      %v2338 = vunpack.c.h.b16 %v1754
      %v2339 = vunpack.c.l.b16 %v1755
      %v2340 = vunpack.c.h.b16 %v1755
      %v2341 = vunpack.c.l.b16 %v1756
      %v2342 = vunpack.c.h.b16 %v1756
      %v2343 = vunpack.c.l.b16 %v1757
      %v2344 = vunpack.c.h.b16 %v1757
      %v2345 = vunpack.c.l.b16 %v1758
      %v2346 = vunpack.c.h.b16 %v1758
      %v2347 = vunpack.c.l.b16 %v1759
      %v2348 = vunpack.c.h.b16 %v1759
      %v2349 = vunpack.c.l.b16 %v1760
      %v2350 = vunpack.c.h.b16 %v1760
      %v2351 = vunpack.c.l.b16 %v1761
      %v2352 = vunpack.c.h.b16 %v1761
      %v2353 = vunpack.c.l.b16 %v1762
      %v2354 = vunpack.c.h.b16 %v1762
      %v2355 = vunpack.c.l.b16 %v1763
      %v2356 = vunpack.c.h.b16 %v1763
      %v2357 = vunpack.c.l.b16 %v1764
      %v2358 = vunpack.c.h.b16 %v1764
      %v2359 = vunpack.c.l.b16 %v1765
      %v2360 = vunpack.c.h.b16 %v1765
      %v2361 = vunpack.c.l.b16 %v1766
      %v2362 = vunpack.c.h.b16 %v1766
      %v2363 = vunpack.c.l.b16 %v1767
      %v2364 = vunpack.c.h.b16 %v1767
      %v2365 = vunpack.c.l.b16 %v1768
      %v2366 = vunpack.c.h.b16 %v1768
      %v2367 = vunpack.c.l.b16 %v1769
      %v2368 = vunpack.c.h.b16 %v1769
      %v2369 = vunpack.c.l.b16 %v1770
      %v2370 = vunpack.c.h.b16 %v1770
      %v2371 = vunpack.c.l.b16 %v1771
      %v2372 = vunpack.c.h.b16 %v1771
      %v2373 = vunpack.c.l.b16 %v1772
      %v2374 = vunpack.c.h.b16 %v1772
      %v2375 = vunpack.c.l.b16 %v1773
      %v2376 = vunpack.c.h.b16 %v1773
      %v2377 = vunpack.c.l.b16 %v1774
      %v2378 = vunpack.c.h.b16 %v1774
      %v2379 = vunpack.c.l.b16 %v1775
      %v2380 = vunpack.c.h.b16 %v1775
      %v2381 = vunpack.c.l.b16 %v1776
      %v2382 = vunpack.c.h.b16 %v1776
      %v2383 = vunpack.c.l.b16 %v1777
      %v2384 = vunpack.c.h.b16 %v1777
      %v2385 = vunpack.c.l.b16 %v1778
      %v2386 = vunpack.c.h.b16 %v1778
      %v2387 = vunpack.c.l.b16 %v1779
      %v2388 = vunpack.c.h.b16 %v1779
      %v2389 = vunpack.c.l.b16 %v1780
      %v2390 = vunpack.c.h.b16 %v1780
      %v2391 = vunpack.c.l.b16 %v1781
      %v2392 = vunpack.c.h.b16 %v1781
      %v2393 = vunpack.c.l.b16 %v1782
      %v2394 = vunpack.c.h.b16 %v1782
      %v2395 = vunpack.c.l.b16 %v1783
      %v2396 = vunpack.c.h.b16 %v1783
      %v2397 = vunpack.c.l.b16 %v1784
      %v2398 = vunpack.c.h.b16 %v1784
      %v2399 = vunpack.c.l.b16 %v1785
      %v2400 = vunpack.c.h.b16 %v1785
      %v2401 = vunpack.c.l.b16 %v1786
      %v2402 = vunpack.c.h.b16 %v1786
      %v2403 = vunpack.c.l.b16 %v1787
      %v2404 = vunpack.c.h.b16 %v1787
      %v2405 = vunpack.c.l.b16 %v1788
      %v2406 = vunpack.c.h.b16 %v1788
      %v2407 = vunpack.c.l.b16 %v1789
      %v2408 = vunpack.c.h.b16 %v1789
      %v2409 = vunpack.c.l.b16 %v1790
      %v2410 = vunpack.c.h.b16 %v1790
      %v2411 = vunpack.c.l.b16 %v1791
      %v2412 = vunpack.c.h.b16 %v1791
      %v2413 = vunpack.c.l.b16 %v1792
      %v2414 = vunpack.c.h.b16 %v1792
      %v2415 = vunpack.c.l.b16 %v1793
      %v2416 = vunpack.c.h.b16 %v1793
      %v2417 = vunpack.c.l.b16 %v1794
      %v2418 = vunpack.c.h.b16 %v1794
      %v2419 = vunpack.c.l.b16 %v1795
      %v2420 = vunpack.c.h.b16 %v1795
      %v2421 = vunpack.c.l.b16 %v1796
      %v2422 = vunpack.c.h.b16 %v1796
      %v2423 = vunpack.c.l.b16 %v1797
      %v2424 = vunpack.c.h.b16 %v1797
      %v2425 = vunpack.c.l.b16 %v1798
      %v2426 = vunpack.c.h.b16 %v1798
      %v2427 = vunpack.c.l.b16 %v1799
      %v2428 = vunpack.c.h.b16 %v1799
      %v2429 = vunpack.c.l.b16 %v1800
      %v2430 = vunpack.c.h.b16 %v1800
      %v2431 = vunpack.c.l.b16 %v1801
      %v2432 = vunpack.c.h.b16 %v1801
      %v2433 = vunpack.c.l.b16 %v1802
      %v2434 = vunpack.c.h.b16 %v1802
      %v2435 = vunpack.c.l.b16 %v1803
      %v2436 = vunpack.c.h.b16 %v1803
      %v2437 = vunpack.c.l.b16 %v1804
      %v2438 = vunpack.c.h.b16 %v1804
      %v2439 = vunpack.c.l.b16 %v1805
      %v2440 = vunpack.c.h.b16 %v1805
      %v2441 = vunpack.c.l.b16 %v1806
      %v2442 = vunpack.c.h.b16 %v1806
      %v2443 = vunpack.c.l.b16 %v1807
      %v2444 = vunpack.c.h.b16 %v1807
      %v2445 = vunpack.c.l.b16 %v1808
      %v2446 = vunpack.c.h.b16 %v1808
      %v2447 = vunpack.c.l.b16 %v1809
      %v2448 = vunpack.c.h.b16 %v1809
      %v2449 = vunpack.c.l.b16 %v1810
      %v2450 = vunpack.c.h.b16 %v1810
      %v2451 = vunpack.c.l.b16 %v1811
      %v2452 = vunpack.c.h.b16 %v1811
      %v2453 = vunpack.c.l.b16 %v1812
      %v2454 = vunpack.c.h.b16 %v1812
      %v2455 = vunpack.c.l.b16 %v1813
      %v2456 = vunpack.c.h.b16 %v1813
      %v2457 = vunpack.c.l.b16 %v1814
      %v2458 = vunpack.c.h.b16 %v1814
      %v2459 = vunpack.c.l.b16 %v1815
      %v2460 = vunpack.c.h.b16 %v1815
      %v2461 = vunpack.c.l.b16 %v1816
      %v2462 = vunpack.c.h.b16 %v1816
      %v2463 = vunpack.c.l.b16 %v1817
      %v2464 = vunpack.c.h.b16 %v1817
      %v2465 = vunpack.c.l.b16 %v1818
      %v2466 = vunpack.c.h.b16 %v1818
      %v2467 = vunpack.c.l.b16 %v1819
      %v2468 = vunpack.c.h.b16 %v1819
      %v2469 = vunpack.c.l.b16 %v1820
      %v2470 = vunpack.c.h.b16 %v1820
      %v2471 = vunpack.c.l.b16 %v1821
      %v2472 = vunpack.c.h.b16 %v1821
      %v2473 = vunpack.c.l.b16 %v1822
      %v2474 = vunpack.c.h.b16 %v1822
      %v2475 = vunpack.c.l.b16 %v1823
      %v2476 = vunpack.c.h.b16 %v1823
      %v2477 = vunpack.c.l.b16 %v1824
      %v2478 = vunpack.c.h.b16 %v1824
      %v2479 = vunpack.c.l.b16 %v1825
      %v2480 = vunpack.c.h.b16 %v1825
      %v2481 = vunpack.c.l.b16 %v1826
      %v2482 = vunpack.c.h.b16 %v1826
      %v2483 = vunpack.c.l.b16 %v1827
      %v2484 = vunpack.c.h.b16 %v1827
      %v2485 = vunpack.c.l.b16 %v1828
      %v2486 = vunpack.c.h.b16 %v1828
      %v2487 = vunpack.c.l.b16 %v1829
      %v2488 = vunpack.c.h.b16 %v1829
      %v2489 = vunpack.c.l.b16 %v1830
      %v2490 = vunpack.c.h.b16 %v1830
      %v2491 = vunpack.c.l.b16 %v1831
      %v2492 = vunpack.c.h.b16 %v1831
      %v2493 = vunpack.c.l.b16 %v1832
      %v2494 = vunpack.c.h.b16 %v1832
      %v2495 = vunpack.c.l.b16 %v1833
      %v2496 = vunpack.c.h.b16 %v1833
      %v2497 = vunpack.c.l.b16 %v1834
      %v2498 = vunpack.c.h.b16 %v1834
      %v2499 = vunpack.c.l.b16 %v1835
      %v2500 = vunpack.c.h.b16 %v1835
      %v2501 = vunpack.c.l.b16 %v1836
      %v2502 = vunpack.c.h.b16 %v1836
      %v2503 = vunpack.c.l.b16 %v1837
      %v2504 = vunpack.c.h.b16 %v1837
      %v2505 = vunpack.c.l.b16 %v1838
      %v2506 = vunpack.c.h.b16 %v1838
      %v2507 = vunpack.c.l.b16 %v1839
      %v2508 = vunpack.c.h.b16 %v1839
      %v2509 = vunpack.c.l.b16 %v1840
      %v2510 = vunpack.c.h.b16 %v1840
      %v2511 = vunpack.c.l.b16 %v1841
      %v2512 = vunpack.c.h.b16 %v1841
      %v2513 = vunpack.c.l.b16 %v1842
      %v2514 = vunpack.c.h.b16 %v1842
      %v2515 = vunpack.c.l.b16 %v1843
      %v2516 = vunpack.c.h.b16 %v1843
      %v2517 = vunpack.c.l.b16 %v1844
      %v2518 = vunpack.c.h.b16 %v1844
      %v2519 = vunpack.c.l.b16 %v1845
      %v2520 = vunpack.c.h.b16 %v1845
      %v2521 = vunpack.c.l.b16 %v1846
      %v2522 = vunpack.c.h.b16 %v1846
      %v2523 = vunpack.c.l.b16 %v1847
      %v2524 = vunpack.c.h.b16 %v1847
      %v2525 = vunpack.c.l.b16 %v1848
      %v2526 = vunpack.c.h.b16 %v1848
      %v2527 = vunpack.c.l.b16 %v1849
      %v2528 = vunpack.c.h.b16 %v1849
      %v2529 = vunpack.c.l.b16 %v1850
      %v2530 = vunpack.c.h.b16 %v1850
      %v2531 = vunpack.c.l.b16 %v1851
      %v2532 = vunpack.c.h.b16 %v1851
      %v2533 = vunpack.c.l.b16 %v1852
      %v2534 = vunpack.c.h.b16 %v1852
      %v2535 = vunpack.c.l.b16 %v1853
      %v2536 = vunpack.c.h.b16 %v1853
      %v2537 = vunpack.c.l.b16 %v1854
      %v2538 = vunpack.c.h.b16 %v1854
      %v2539 = vunpack.c.l.b16 %v1855
      %v2540 = vunpack.c.h.b16 %v1855
      %v2541 = vunpack.c.l.b16 %v1856
      %v2542 = vunpack.c.h.b16 %v1856
      %v2543 = vunpack.c.l.b16 %v1857
      %v2544 = vunpack.c.h.b16 %v1857
      %v2545 = vunpack.c.l.b16 %v1858
      %v2546 = vunpack.c.h.b16 %v1858
      %v2547 = vunpack.c.l.b16 %v1859
      %v2548 = vunpack.c.h.b16 %v1859
      %v2549 = vunpack.c.l.b16 %v1860
      %v2550 = vunpack.c.h.b16 %v1860
      %v2551 = vunpack.c.l.b16 %v1861
      %v2552 = vunpack.c.h.b16 %v1861
      %v2553 = vunpack.c.l.b16 %v1862
      %v2554 = vunpack.c.h.b16 %v1862
      %v2555 = vunpack.c.l.b16 %v1863
      %v2556 = vunpack.c.h.b16 %v1863
      %v2557 = vunpack.c.l.b16 %v1864
      %v2558 = vunpack.c.h.b16 %v1864
      %v2559 = vunpack.c.l.b16 %v1865
      %v2560 = vunpack.c.h.b16 %v1865
      %v2561 = vunpack.c.l.b16 %v1866
      %v2562 = vunpack.c.h.b16 %v1866
      %v2563 = vunpack.c.l.b16 %v1867
      %v2564 = vunpack.c.h.b16 %v1867
      %v2565 = vunpack.c.l.b16 %v1868
      %v2566 = vunpack.c.h.b16 %v1868
      %v2567 = vunpack.c.l.b16 %v1869
      %v2568 = vunpack.c.h.b16 %v1869
      %v2569 = vunpack.c.l.b16 %v1870
      %v2570 = vunpack.c.h.b16 %v1870
      %v2571 = vunpack.c.l.b16 %v1871
      %v2572 = vunpack.c.h.b16 %v1871
      %v2573 = vunpack.c.l.b16 %v1872
      %v2574 = vunpack.c.h.b16 %v1872
      %v2575 = vunpack.c.l.b16 %v1873
      %v2576 = vunpack.c.h.b16 %v1873
      %v2577 = vunpack.c.l.b16 %v1874
      %v2578 = vunpack.c.h.b16 %v1874
      %v2579 = vunpack.c.l.b16 %v1875
      %v2580 = vunpack.c.h.b16 %v1875
      %v2581 = vunpack.c.l.b16 %v1876
      %v2582 = vunpack.c.h.b16 %v1876
      %v2583 = vunpack.c.l.b16 %v1877
      %v2584 = vunpack.c.h.b16 %v1877
      %v2585 = vunpack.c.l.b16 %v1878
      %v2586 = vunpack.c.h.b16 %v1878
      %v2587 = vunpack.c.l.b16 %v1879
      %v2588 = vunpack.c.h.b16 %v1879
      %v2589 = vunpack.c.l.b16 %v1880
      %v2590 = vunpack.c.h.b16 %v1880
      %v2591 = vunpack.c.l.b16 %v1881
      %v2592 = vunpack.c.h.b16 %v1881
      %v2593 = vunpack.c.l.b16 %v1882
      %v2594 = vunpack.c.h.b16 %v1882
      %v2595 = vunpack.c.l.b16 %v1883
      %v2596 = vunpack.c.h.b16 %v1883
      %v2597 = vunpack.c.l.b16 %v1884
      %v2598 = vunpack.c.h.b16 %v1884
      %v2599 = vunpack.c.l.b16 %v1885
      %v2600 = vunpack.c.h.b16 %v1885
      %v2601 = vunpack.c.l.b16 %v1886
      %v2602 = vunpack.c.h.b16 %v1886
      %v2603 = vunpack.c.l.b16 %v1887
      %v2604 = vunpack.c.h.b16 %v1887
      %v2605 = vunpack.c.l.b16 %v1888
      %v2606 = vunpack.c.h.b16 %v1888
      %v2607 = vunpack.c.l.b16 %v1889
      %v2608 = vunpack.c.h.b16 %v1889
      %v2609 = vunpack.c.l.b16 %v1890
      %v2610 = vunpack.c.h.b16 %v1890
      %v2611 = vpack.c.b16 %v2341, %v2323
      %v2612 = vpack.c.b16 %v2342, %v2324
      %v2613 = vpack.c.b16 %v2343, %v2325
      %v2614 = vpack.c.b16 %v2344, %v2326
      %v2615 = vpack.c.b16 %v2345, %v2327
      %v2616 = vpack.c.b16 %v2346, %v2328
      %v2617 = vpack.c.b16 %v2347, %v2329
      %v2618 = vpack.c.b16 %v2348, %v2330
      %v2619 = vpack.c.b16 %v2349, %v2331
      %v2620 = vpack.c.b16 %v2350, %v2332
      %v2621 = vpack.c.b16 %v2351, %v2333
      %v2622 = vpack.c.b16 %v2352, %v2334
      %v2623 = vpack.c.b16 %v2353, %v2335
      %v2624 = vpack.c.b16 %v2354, %v2336
      %v2625 = vpack.c.b16 %v2355, %v2337
      %v2626 = vpack.c.b16 %v2356, %v2338
      %v2627 = vpack.c.b16 %v2357, %v2339
      %v2628 = vpack.c.b16 %v2358, %v2340
      %v2629 = vpack.c.b16 %v2377, %v2359
      %v2630 = vpack.c.b16 %v2378, %v2360
      %v2631 = vpack.c.b16 %v2379, %v2361
      %v2632 = vpack.c.b16 %v2380, %v2362
      %v2633 = vpack.c.b16 %v2381, %v2363
      %v2634 = vpack.c.b16 %v2382, %v2364
      %v2635 = vpack.c.b16 %v2383, %v2365
      %v2636 = vpack.c.b16 %v2384, %v2366
      %v2637 = vpack.c.b16 %v2385, %v2367
      %v2638 = vpack.c.b16 %v2386, %v2368
      %v2639 = vpack.c.b16 %v2387, %v2369
      %v2640 = vpack.c.b16 %v2388, %v2370
      %v2641 = vpack.c.b16 %v2389, %v2371
      %v2642 = vpack.c.b16 %v2390, %v2372
      %v2643 = vpack.c.b16 %v2391, %v2373
      %v2644 = vpack.c.b16 %v2392, %v2374
      %v2645 = vpack.c.b16 %v2393, %v2375
      %v2646 = vpack.c.b16 %v2394, %v2376
      %v2647 = vpack.c.b16 %v2413, %v2395
      %v2648 = vpack.c.b16 %v2414, %v2396
      %v2649 = vpack.c.b16 %v2415, %v2397
      %v2650 = vpack.c.b16 %v2416, %v2398
      %v2651 = vpack.c.b16 %v2417, %v2399
      %v2652 = vpack.c.b16 %v2418, %v2400
      %v2653 = vpack.c.b16 %v2419, %v2401
      %v2654 = vpack.c.b16 %v2420, %v2402
      %v2655 = vpack.c.b16 %v2421, %v2403
      %v2656 = vpack.c.b16 %v2422, %v2404
      %v2657 = vpack.c.b16 %v2423, %v2405
      %v2658 = vpack.c.b16 %v2424, %v2406
      %v2659 = vpack.c.b16 %v2425, %v2407
      %v2660 = vpack.c.b16 %v2426, %v2408
      %v2661 = vpack.c.b16 %v2427, %v2409
      %v2662 = vpack.c.b16 %v2428, %v2410
      %v2663 = vpack.c.b16 %v2429, %v2411
      %v2664 = vpack.c.b16 %v2430, %v2412
      %v2665 = vpack.c.b16 %v2449, %v2431
      %v2666 = vpack.c.b16 %v2450, %v2432
      %v2667 = vpack.c.b16 %v2451, %v2433
      %v2668 = vpack.c.b16 %v2452, %v2434
      %v2669 = vpack.c.b16 %v2453, %v2435
      %v2670 = vpack.c.b16 %v2454, %v2436
      %v2671 = vpack.c.b16 %v2455, %v2437
      %v2672 = vpack.c.b16 %v2456, %v2438
      %v2673 = vpack.c.b16 %v2457, %v2439
      %v2674 = vpack.c.b16 %v2458, %v2440
      %v2675 = vpack.c.b16 %v2459, %v2441
      %v2676 = vpack.c.b16 %v2460, %v2442
      %v2677 = vpack.c.b16 %v2461, %v2443
      %v2678 = vpack.c.b16 %v2462, %v2444
      %v2679 = vpack.c.b16 %v2463, %v2445
      %v2680 = vpack.c.b16 %v2464, %v2446
      %v2681 = vpack.c.b16 %v2465, %v2447
      %v2682 = vpack.c.b16 %v2466, %v2448
      %v2683 = vpack.c.b16 %v2485, %v2467
      %v2684 = vpack.c.b16 %v2486, %v2468
      %v2685 = vpack.c.b16 %v2487, %v2469
      %v2686 = vpack.c.b16 %v2488, %v2470
      %v2687 = vpack.c.b16 %v2489, %v2471
      %v2688 = vpack.c.b16 %v2490, %v2472
      %v2689 = vpack.c.b16 %v2491, %v2473
      %v2690 = vpack.c.b16 %v2492, %v2474
      %v2691 = vpack.c.b16 %v2493, %v2475
      %v2692 = vpack.c.b16 %v2494, %v2476
      %v2693 = vpack.c.b16 %v2495, %v2477
      %v2694 = vpack.c.b16 %v2496, %v2478
      %v2695 = vpack.c.b16 %v2497, %v2479
      %v2696 = vpack.c.b16 %v2498, %v2480
      %v2697 = vpack.c.b16 %v2499, %v2481
      %v2698 = vpack.c.b16 %v2500, %v2482
      %v2699 = vpack.c.b16 %v2501, %v2483
      %v2700 = vpack.c.b16 %v2502, %v2484
      %v2701 = vpack.c.b16 %v2521, %v2503
      %v2702 = vpack.c.b16 %v2522, %v2504
      %v2703 = vpack.c.b16 %v2523, %v2505
      %v2704 = vpack.c.b16 %v2524, %v2506
      %v2705 = vpack.c.b16 %v2525, %v2507
      %v2706 = vpack.c.b16 %v2526, %v2508
      %v2707 = vpack.c.b16 %v2527, %v2509
      %v2708 = vpack.c.b16 %v2528, %v2510
      %v2709 = vpack.c.b16 %v2529, %v2511
      %v2710 = vpack.c.b16 %v2530, %v2512
      %v2711 = vpack.c.b16 %v2531, %v2513
      %v2712 = vpack.c.b16 %v2532, %v2514
      %v2713 = vpack.c.b16 %v2533, %v2515
      %v2714 = vpack.c.b16 %v2534, %v2516
      %v2715 = vpack.c.b16 %v2535, %v2517
      %v2716 = vpack.c.b16 %v2536, %v2518
      %v2717 = vpack.c.b16 %v2537, %v2519
      %v2718 = vpack.c.b16 %v2538, %v2520
      %v2719 = vpack.c.b16 %v2557, %v2539
      %v2720 = vpack.c.b16 %v2558, %v2540
      %v2721 = vpack.c.b16 %v2559, %v2541
      %v2722 = vpack.c.b16 %v2560, %v2542
      %v2723 = vpack.c.b16 %v2561, %v2543
      %v2724 = vpack.c.b16 %v2562, %v2544
      %v2725 = vpack.c.b16 %v2563, %v2545
      %v2726 = vpack.c.b16 %v2564, %v2546
      %v2727 = vpack.c.b16 %v2565, %v2547
      %v2728 = vpack.c.b16 %v2566, %v2548
      %v2729 = vpack.c.b16 %v2567, %v2549
      %v2730 = vpack.c.b16 %v2568, %v2550
      %v2731 = vpack.c.b16 %v2569, %v2551
      %v2732 = vpack.c.b16 %v2570, %v2552
      %v2733 = vpack.c.b16 %v2571, %v2553
      %v2734 = vpack.c.b16 %v2572, %v2554
      %v2735 = vpack.c.b16 %v2573, %v2555
      %v2736 = vpack.c.b16 %v2574, %v2556
      %v2737 = vpack.c.b16 %v2593, %v2575
      %v2738 = vpack.c.b16 %v2594, %v2576
      %v2739 = vpack.c.b16 %v2595, %v2577
      %v2740 = vpack.c.b16 %v2596, %v2578
      %v2741 = vpack.c.b16 %v2597, %v2579
      %v2742 = vpack.c.b16 %v2598, %v2580
      %v2743 = vpack.c.b16 %v2599, %v2581
      %v2744 = vpack.c.b16 %v2600, %v2582
      %v2745 = vpack.c.b16 %v2601, %v2583
      %v2746 = vpack.c.b16 %v2602, %v2584
      %v2747 = vpack.c.b16 %v2603, %v2585
      %v2748 = vpack.c.b16 %v2604, %v2586
      %v2749 = vpack.c.b16 %v2605, %v2587
      %v2750 = vpack.c.b16 %v2606, %v2588
      %v2751 = vpack.c.b16 %v2607, %v2589
      %v2752 = vpack.c.b16 %v2608, %v2590
      %v2753 = vpack.c.b16 %v2609, %v2591
      %v2754 = vpack.c.b16 %v2610, %v2592
      %v3187 = vunpack.c.l.b16 %v1891
      %v3188 = vunpack.c.h.b16 %v1891
      %v3189 = vunpack.c.l.b16 %v1892
      %v3190 = vunpack.c.h.b16 %v1892
      %v3191 = vunpack.c.l.b16 %v1893
      %v3192 = vunpack.c.h.b16 %v1893
      %v3193 = vunpack.c.l.b16 %v1894
      %v3194 = vunpack.c.h.b16 %v1894
      %v3195 = vunpack.c.l.b16 %v1895
      %v3196 = vunpack.c.h.b16 %v1895
      %v3197 = vunpack.c.l.b16 %v1896
      %v3198 = vunpack.c.h.b16 %v1896
      %v3199 = vunpack.c.l.b16 %v1897
      %v3200 = vunpack.c.h.b16 %v1897
      %v3201 = vunpack.c.l.b16 %v1898
      %v3202 = vunpack.c.h.b16 %v1898
      %v3203 = vunpack.c.l.b16 %v1899
      %v3204 = vunpack.c.h.b16 %v1899
      %v3205 = vunpack.c.l.b16 %v1900
      %v3206 = vunpack.c.h.b16 %v1900
      %v3207 = vunpack.c.l.b16 %v1901
      %v3208 = vunpack.c.h.b16 %v1901
      %v3209 = vunpack.c.l.b16 %v1902
      %v3210 = vunpack.c.h.b16 %v1902
      %v3211 = vunpack.c.l.b16 %v1903
      %v3212 = vunpack.c.h.b16 %v1903
      %v3213 = vunpack.c.l.b16 %v1904
      %v3214 = vunpack.c.h.b16 %v1904
      %v3215 = vunpack.c.l.b16 %v1905
      %v3216 = vunpack.c.h.b16 %v1905
      %v3217 = vunpack.c.l.b16 %v1906
      %v3218 = vunpack.c.h.b16 %v1906
      %v3219 = vunpack.c.l.b16 %v1907
      %v3220 = vunpack.c.h.b16 %v1907
      %v3221 = vunpack.c.l.b16 %v1908
      %v3222 = vunpack.c.h.b16 %v1908
      %v3223 = vunpack.c.l.b16 %v1909
      %v3224 = vunpack.c.h.b16 %v1909
      %v3225 = vunpack.c.l.b16 %v1910
      %v3226 = vunpack.c.h.b16 %v1910
      %v3227 = vunpack.c.l.b16 %v1911
      %v3228 = vunpack.c.h.b16 %v1911
      %v3229 = vunpack.c.l.b16 %v1912
      %v3230 = vunpack.c.h.b16 %v1912
      %v3231 = vunpack.c.l.b16 %v1913
      %v3232 = vunpack.c.h.b16 %v1913
      %v3233 = vunpack.c.l.b16 %v1914
      %v3234 = vunpack.c.h.b16 %v1914
      %v3235 = vunpack.c.l.b16 %v1915
      %v3236 = vunpack.c.h.b16 %v1915
      %v3237 = vunpack.c.l.b16 %v1916
      %v3238 = vunpack.c.h.b16 %v1916
      %v3239 = vunpack.c.l.b16 %v1917
      %v3240 = vunpack.c.h.b16 %v1917
      %v3241 = vunpack.c.l.b16 %v1918
      %v3242 = vunpack.c.h.b16 %v1918
      %v3243 = vunpack.c.l.b16 %v1919
      %v3244 = vunpack.c.h.b16 %v1919
      %v3245 = vunpack.c.l.b16 %v1920
      %v3246 = vunpack.c.h.b16 %v1920
      %v3247 = vunpack.c.l.b16 %v1921
      %v3248 = vunpack.c.h.b16 %v1921
      %v3249 = vunpack.c.l.b16 %v1922
      %v3250 = vunpack.c.h.b16 %v1922
      %v3251 = vunpack.c.l.b16 %v1923
      %v3252 = vunpack.c.h.b16 %v1923
      %v3253 = vunpack.c.l.b16 %v1924
      %v3254 = vunpack.c.h.b16 %v1924
      %v3255 = vunpack.c.l.b16 %v1925
      %v3256 = vunpack.c.h.b16 %v1925
      %v3257 = vunpack.c.l.b16 %v1926
      %v3258 = vunpack.c.h.b16 %v1926
      %v3259 = vunpack.c.l.b16 %v1927
      %v3260 = vunpack.c.h.b16 %v1927
      %v3261 = vunpack.c.l.b16 %v1928
      %v3262 = vunpack.c.h.b16 %v1928
      %v3263 = vunpack.c.l.b16 %v1929
      %v3264 = vunpack.c.h.b16 %v1929
      %v3265 = vunpack.c.l.b16 %v1930
      %v3266 = vunpack.c.h.b16 %v1930
      %v3267 = vunpack.c.l.b16 %v1931
      %v3268 = vunpack.c.h.b16 %v1931
      %v3269 = vunpack.c.l.b16 %v1932
      %v3270 = vunpack.c.h.b16 %v1932
      %v3271 = vunpack.c.l.b16 %v1933
      %v3272 = vunpack.c.h.b16 %v1933
      %v3273 = vunpack.c.l.b16 %v1934
      %v3274 = vunpack.c.h.b16 %v1934
      %v3275 = vunpack.c.l.b16 %v1935
      %v3276 = vunpack.c.h.b16 %v1935
      %v3277 = vunpack.c.l.b16 %v1936
      %v3278 = vunpack.c.h.b16 %v1936
      %v3279 = vunpack.c.l.b16 %v1937
      %v3280 = vunpack.c.h.b16 %v1937
      %v3281 = vunpack.c.l.b16 %v1938
      %v3282 = vunpack.c.h.b16 %v1938
      %v3283 = vunpack.c.l.b16 %v1939
      %v3284 = vunpack.c.h.b16 %v1939
      %v3285 = vunpack.c.l.b16 %v1940
      %v3286 = vunpack.c.h.b16 %v1940
      %v3287 = vunpack.c.l.b16 %v1941
      %v3288 = vunpack.c.h.b16 %v1941
      %v3289 = vunpack.c.l.b16 %v1942
      %v3290 = vunpack.c.h.b16 %v1942
      %v3291 = vunpack.c.l.b16 %v1943
      %v3292 = vunpack.c.h.b16 %v1943
      %v3293 = vunpack.c.l.b16 %v1944
      %v3294 = vunpack.c.h.b16 %v1944
      %v3295 = vunpack.c.l.b16 %v1945
      %v3296 = vunpack.c.h.b16 %v1945
      %v3297 = vunpack.c.l.b16 %v1946
      %v3298 = vunpack.c.h.b16 %v1946
      %v3299 = vunpack.c.l.b16 %v1947
      %v3300 = vunpack.c.h.b16 %v1947
      %v3301 = vunpack.c.l.b16 %v1948
      %v3302 = vunpack.c.h.b16 %v1948
      %v3303 = vunpack.c.l.b16 %v1949
      %v3304 = vunpack.c.h.b16 %v1949
      %v3305 = vunpack.c.l.b16 %v1950
      %v3306 = vunpack.c.h.b16 %v1950
      %v3307 = vunpack.c.l.b16 %v1951
      %v3308 = vunpack.c.h.b16 %v1951
      %v3309 = vunpack.c.l.b16 %v1952
      %v3310 = vunpack.c.h.b16 %v1952
      %v3311 = vunpack.c.l.b16 %v1953
      %v3312 = vunpack.c.h.b16 %v1953
      %v3313 = vunpack.c.l.b16 %v1954
      %v3314 = vunpack.c.h.b16 %v1954
      %v3315 = vunpack.c.l.b16 %v1955
      %v3316 = vunpack.c.h.b16 %v1955
      %v3317 = vunpack.c.l.b16 %v1956
      %v3318 = vunpack.c.h.b16 %v1956
      %v3319 = vunpack.c.l.b16 %v1957
      %v3320 = vunpack.c.h.b16 %v1957
      %v3321 = vunpack.c.l.b16 %v1958
      %v3322 = vunpack.c.h.b16 %v1958
      %v3323 = vunpack.c.l.b16 %v1959
      %v3324 = vunpack.c.h.b16 %v1959
      %v3325 = vunpack.c.l.b16 %v1960
      %v3326 = vunpack.c.h.b16 %v1960
      %v3327 = vunpack.c.l.b16 %v1961
      %v3328 = vunpack.c.h.b16 %v1961
      %v3329 = vunpack.c.l.b16 %v1962
      %v3330 = vunpack.c.h.b16 %v1962
      %v3331 = vunpack.c.l.b16 %v1963
      %v3332 = vunpack.c.h.b16 %v1963
      %v3333 = vunpack.c.l.b16 %v1964
      %v3334 = vunpack.c.h.b16 %v1964
      %v3335 = vunpack.c.l.b16 %v1965
      %v3336 = vunpack.c.h.b16 %v1965
      %v3337 = vunpack.c.l.b16 %v1966
      %v3338 = vunpack.c.h.b16 %v1966
      %v3339 = vunpack.c.l.b16 %v1967
      %v3340 = vunpack.c.h.b16 %v1967
      %v3341 = vunpack.c.l.b16 %v1968
      %v3342 = vunpack.c.h.b16 %v1968
      %v3343 = vunpack.c.l.b16 %v1969
      %v3344 = vunpack.c.h.b16 %v1969
      %v3345 = vunpack.c.l.b16 %v1970
      %v3346 = vunpack.c.h.b16 %v1970
      %v3347 = vunpack.c.l.b16 %v1971
      %v3348 = vunpack.c.h.b16 %v1971
      %v3349 = vunpack.c.l.b16 %v1972
      %v3350 = vunpack.c.h.b16 %v1972
      %v3351 = vunpack.c.l.b16 %v1973
      %v3352 = vunpack.c.h.b16 %v1973
      %v3353 = vunpack.c.l.b16 %v1974
      %v3354 = vunpack.c.h.b16 %v1974
      %v3355 = vunpack.c.l.b16 %v1975
      %v3356 = vunpack.c.h.b16 %v1975
      %v3357 = vunpack.c.l.b16 %v1976
      %v3358 = vunpack.c.h.b16 %v1976
      %v3359 = vunpack.c.l.b16 %v1977
      %v3360 = vunpack.c.h.b16 %v1977
      %v3361 = vunpack.c.l.b16 %v1978
      %v3362 = vunpack.c.h.b16 %v1978
      %v3363 = vunpack.c.l.b16 %v1979
      %v3364 = vunpack.c.h.b16 %v1979
      %v3365 = vunpack.c.l.b16 %v1980
      %v3366 = vunpack.c.h.b16 %v1980
      %v3367 = vunpack.c.l.b16 %v1981
      %v3368 = vunpack.c.h.b16 %v1981
      %v3369 = vunpack.c.l.b16 %v1982
      %v3370 = vunpack.c.h.b16 %v1982
      %v3371 = vunpack.c.l.b16 %v1983
      %v3372 = vunpack.c.h.b16 %v1983
      %v3373 = vunpack.c.l.b16 %v1984
      %v3374 = vunpack.c.h.b16 %v1984
      %v3375 = vunpack.c.l.b16 %v1985
      %v3376 = vunpack.c.h.b16 %v1985
      %v3377 = vunpack.c.l.b16 %v1986
      %v3378 = vunpack.c.h.b16 %v1986
      %v3379 = vunpack.c.l.b16 %v1987
      %v3380 = vunpack.c.h.b16 %v1987
      %v3381 = vunpack.c.l.b16 %v1988
      %v3382 = vunpack.c.h.b16 %v1988
      %v3383 = vunpack.c.l.b16 %v1989
      %v3384 = vunpack.c.h.b16 %v1989
      %v3385 = vunpack.c.l.b16 %v1990
      %v3386 = vunpack.c.h.b16 %v1990
      %v3387 = vunpack.c.l.b16 %v1991
      %v3388 = vunpack.c.h.b16 %v1991
      %v3389 = vunpack.c.l.b16 %v1992
      %v3390 = vunpack.c.h.b16 %v1992
      %v3391 = vunpack.c.l.b16 %v1993
      %v3392 = vunpack.c.h.b16 %v1993
      %v3393 = vunpack.c.l.b16 %v1994
      %v3394 = vunpack.c.h.b16 %v1994
      %v3395 = vunpack.c.l.b16 %v1995
      %v3396 = vunpack.c.h.b16 %v1995
      %v3397 = vunpack.c.l.b16 %v1996
      %v3398 = vunpack.c.h.b16 %v1996
      %v3399 = vunpack.c.l.b16 %v1997
      %v3400 = vunpack.c.h.b16 %v1997
      %v3401 = vunpack.c.l.b16 %v1998
      %v3402 = vunpack.c.h.b16 %v1998
      %v3403 = vunpack.c.l.b16 %v1999
      %v3404 = vunpack.c.h.b16 %v1999
      %v3405 = vunpack.c.l.b16 %v2000
      %v3406 = vunpack.c.h.b16 %v2000
      %v3407 = vunpack.c.l.b16 %v2001
      %v3408 = vunpack.c.h.b16 %v2001
      %v3409 = vunpack.c.l.b16 %v2002
      %v3410 = vunpack.c.h.b16 %v2002
      %v3411 = vunpack.c.l.b16 %v2003
      %v3412 = vunpack.c.h.b16 %v2003
      %v3413 = vunpack.c.l.b16 %v2004
      %v3414 = vunpack.c.h.b16 %v2004
      %v3415 = vunpack.c.l.b16 %v2005
      %v3416 = vunpack.c.h.b16 %v2005
      %v3417 = vunpack.c.l.b16 %v2006
      %v3418 = vunpack.c.h.b16 %v2006
      %v3419 = vunpack.c.l.b16 %v2007
      %v3420 = vunpack.c.h.b16 %v2007
      %v3421 = vunpack.c.l.b16 %v2008
      %v3422 = vunpack.c.h.b16 %v2008
      %v3423 = vunpack.c.l.b16 %v2009
      %v3424 = vunpack.c.h.b16 %v2009
      %v3425 = vunpack.c.l.b16 %v2010
      %v3426 = vunpack.c.h.b16 %v2010
      %v3427 = vunpack.c.l.b16 %v2011
      %v3428 = vunpack.c.h.b16 %v2011
      %v3429 = vunpack.c.l.b16 %v2012
      %v3430 = vunpack.c.h.b16 %v2012
      %v3431 = vunpack.c.l.b16 %v2013
      %v3432 = vunpack.c.h.b16 %v2013
      %v3433 = vunpack.c.l.b16 %v2014
      %v3434 = vunpack.c.h.b16 %v2014
      %v3435 = vunpack.c.l.b16 %v2015
      %v3436 = vunpack.c.h.b16 %v2015
      %v3437 = vunpack.c.l.b16 %v2016
      %v3438 = vunpack.c.h.b16 %v2016
      %v3439 = vunpack.c.l.b16 %v2017
      %v3440 = vunpack.c.h.b16 %v2017
      %v3441 = vunpack.c.l.b16 %v2018
      %v3442 = vunpack.c.h.b16 %v2018
      %v3443 = vunpack.c.l.b16 %v2019
      %v3444 = vunpack.c.h.b16 %v2019
      %v3445 = vunpack.c.l.b16 %v2020
      %v3446 = vunpack.c.h.b16 %v2020
      %v3447 = vunpack.c.l.b16 %v2021
      %v3448 = vunpack.c.h.b16 %v2021
      %v3449 = vunpack.c.l.b16 %v2022
      %v3450 = vunpack.c.h.b16 %v2022
      %v3451 = vunpack.c.l.b16 %v2023
      %v3452 = vunpack.c.h.b16 %v2023
      %v3453 = vunpack.c.l.b16 %v2024
      %v3454 = vunpack.c.h.b16 %v2024
      %v3455 = vunpack.c.l.b16 %v2025
      %v3456 = vunpack.c.h.b16 %v2025
      %v3457 = vunpack.c.l.b16 %v2026
      %v3458 = vunpack.c.h.b16 %v2026
      %v3459 = vunpack.c.l.b16 %v2027
      %v3460 = vunpack.c.h.b16 %v2027
      %v3461 = vunpack.c.l.b16 %v2028
      %v3462 = vunpack.c.h.b16 %v2028
      %v3463 = vunpack.c.l.b16 %v2029
      %v3464 = vunpack.c.h.b16 %v2029
      %v3465 = vunpack.c.l.b16 %v2030
      %v3466 = vunpack.c.h.b16 %v2030
      %v3467 = vunpack.c.l.b16 %v2031
      %v3468 = vunpack.c.h.b16 %v2031
      %v3469 = vunpack.c.l.b16 %v2032
      %v3470 = vunpack.c.h.b16 %v2032
      %v3471 = vunpack.c.l.b16 %v2033
      %v3472 = vunpack.c.h.b16 %v2033
      %v3473 = vunpack.c.l.b16 %v2034
      %v3474 = vunpack.c.h.b16 %v2034
      %v3475 = vunpack.c.l.b16 %v2035
      %v3476 = vunpack.c.h.b16 %v2035
      %v3477 = vunpack.c.l.b16 %v2036
      %v3478 = vunpack.c.h.b16 %v2036
      %v3479 = vunpack.c.l.b16 %v2037
      %v3480 = vunpack.c.h.b16 %v2037
      %v3481 = vunpack.c.l.b16 %v2038
      %v3482 = vunpack.c.h.b16 %v2038
      %v3483 = vunpack.c.l.b16 %v2039
      %v3484 = vunpack.c.h.b16 %v2039
      %v3485 = vunpack.c.l.b16 %v2040
      %v3486 = vunpack.c.h.b16 %v2040
      %v3487 = vunpack.c.l.b16 %v2041
      %v3488 = vunpack.c.h.b16 %v2041
      %v3489 = vunpack.c.l.b16 %v2042
      %v3490 = vunpack.c.h.b16 %v2042
      %v3491 = vunpack.c.l.b16 %v2043
      %v3492 = vunpack.c.h.b16 %v2043
      %v3493 = vunpack.c.l.b16 %v2044
      %v3494 = vunpack.c.h.b16 %v2044
      %v3495 = vunpack.c.l.b16 %v2045
      %v3496 = vunpack.c.h.b16 %v2045
      %v3497 = vunpack.c.l.b16 %v2046
      %v3498 = vunpack.c.h.b16 %v2046
      %v3499 = vunpack.c.l.b16 %v2047
      %v3500 = vunpack.c.h.b16 %v2047
      %v3501 = vunpack.c.l.b16 %v2048
      %v3502 = vunpack.c.h.b16 %v2048
      %v3503 = vunpack.c.l.b16 %v2049
      %v3504 = vunpack.c.h.b16 %v2049
      %v3505 = vunpack.c.l.b16 %v2050
      %v3506 = vunpack.c.h.b16 %v2050
      %v3507 = vunpack.c.l.b16 %v2051
      %v3508 = vunpack.c.h.b16 %v2051
      %v3509 = vunpack.c.l.b16 %v2052
      %v3510 = vunpack.c.h.b16 %v2052
      %v3511 = vunpack.c.l.b16 %v2053
      %v3512 = vunpack.c.h.b16 %v2053
      %v3513 = vunpack.c.l.b16 %v2054
      %v3514 = vunpack.c.h.b16 %v2054
      %v3515 = vunpack.c.l.b16 %v2055
      %v3516 = vunpack.c.h.b16 %v2055
      %v3517 = vunpack.c.l.b16 %v2056
      %v3518 = vunpack.c.h.b16 %v2056
      %v3519 = vunpack.c.l.b16 %v2057
      %v3520 = vunpack.c.h.b16 %v2057
      %v3521 = vunpack.c.l.b16 %v2058
      %v3522 = vunpack.c.h.b16 %v2058
      %v3523 = vunpack.c.l.b16 %v2059
      %v3524 = vunpack.c.h.b16 %v2059
      %v3525 = vunpack.c.l.b16 %v2060
      %v3526 = vunpack.c.h.b16 %v2060
      %v3527 = vunpack.c.l.b16 %v2061
      %v3528 = vunpack.c.h.b16 %v2061
      %v3529 = vunpack.c.l.b16 %v2062
      %v3530 = vunpack.c.h.b16 %v2062
      %v3531 = vunpack.c.l.b16 %v2063
      %v3532 = vunpack.c.h.b16 %v2063
      %v3533 = vunpack.c.l.b16 %v2064
      %v3534 = vunpack.c.h.b16 %v2064
      %v3535 = vunpack.c.l.b16 %v2065
      %v3536 = vunpack.c.h.b16 %v2065
      %v3537 = vunpack.c.l.b16 %v2066
      %v3538 = vunpack.c.h.b16 %v2066
      %v3539 = vunpack.c.l.b16 %v2067
      %v3540 = vunpack.c.h.b16 %v2067
      %v3541 = vunpack.c.l.b16 %v2068
      %v3542 = vunpack.c.h.b16 %v2068
      %v3543 = vunpack.c.l.b16 %v2069
      %v3544 = vunpack.c.h.b16 %v2069
      %v3545 = vunpack.c.l.b16 %v2070
      %v3546 = vunpack.c.h.b16 %v2070
      %v3547 = vunpack.c.l.b16 %v2071
      %v3548 = vunpack.c.h.b16 %v2071
      %v3549 = vunpack.c.l.b16 %v2072
      %v3550 = vunpack.c.h.b16 %v2072
      %v3551 = vunpack.c.l.b16 %v2073
      %v3552 = vunpack.c.h.b16 %v2073
      %v3553 = vunpack.c.l.b16 %v2074
      %v3554 = vunpack.c.h.b16 %v2074
      %v3555 = vunpack.c.l.b16 %v2075
      %v3556 = vunpack.c.h.b16 %v2075
      %v3557 = vunpack.c.l.b16 %v2076
      %v3558 = vunpack.c.h.b16 %v2076
      %v3559 = vunpack.c.l.b16 %v2077
      %v3560 = vunpack.c.h.b16 %v2077
      %v3561 = vunpack.c.l.b16 %v2078
      %v3562 = vunpack.c.h.b16 %v2078
      %v3563 = vunpack.c.l.b16 %v2079
      %v3564 = vunpack.c.h.b16 %v2079
      %v3565 = vunpack.c.l.b16 %v2080
      %v3566 = vunpack.c.h.b16 %v2080
      %v3567 = vunpack.c.l.b16 %v2081
      %v3568 = vunpack.c.h.b16 %v2081
      %v3569 = vunpack.c.l.b16 %v2082
      %v3570 = vunpack.c.h.b16 %v2082
      %v3571 = vunpack.c.l.b16 %v2083
      %v3572 = vunpack.c.h.b16 %v2083
      %v3573 = vunpack.c.l.b16 %v2084
      %v3574 = vunpack.c.h.b16 %v2084
      %v3575 = vunpack.c.l.b16 %v2085
      %v3576 = vunpack.c.h.b16 %v2085
      %v3577 = vunpack.c.l.b16 %v2086
      %v3578 = vunpack.c.h.b16 %v2086
      %v3579 = vunpack.c.l.b16 %v2087
      %v3580 = vunpack.c.h.b16 %v2087
      %v3581 = vunpack.c.l.b16 %v2088
      %v3582 = vunpack.c.h.b16 %v2088
      %v3583 = vunpack.c.l.b16 %v2089
      %v3584 = vunpack.c.h.b16 %v2089
      %v3585 = vunpack.c.l.b16 %v2090
      %v3586 = vunpack.c.h.b16 %v2090
      %v3587 = vunpack.c.l.b16 %v2091
      %v3588 = vunpack.c.h.b16 %v2091
      %v3589 = vunpack.c.l.b16 %v2092
      %v3590 = vunpack.c.h.b16 %v2092
      %v3591 = vunpack.c.l.b16 %v2093
      %v3592 = vunpack.c.h.b16 %v2093
      %v3593 = vunpack.c.l.b16 %v2094
      %v3594 = vunpack.c.h.b16 %v2094
      %v3595 = vunpack.c.l.b16 %v2095
      %v3596 = vunpack.c.h.b16 %v2095
      %v3597 = vunpack.c.l.b16 %v2096
      %v3598 = vunpack.c.h.b16 %v2096
      %v3599 = vunpack.c.l.b16 %v2097
      %v3600 = vunpack.c.h.b16 %v2097
      %v3601 = vunpack.c.l.b16 %v2098
      %v3602 = vunpack.c.h.b16 %v2098
      %v3603 = vunpack.c.l.b16 %v2099
      %v3604 = vunpack.c.h.b16 %v2099
      %v3605 = vunpack.c.l.b16 %v2100
      %v3606 = vunpack.c.h.b16 %v2100
      %v3607 = vunpack.c.l.b16 %v2101
      %v3608 = vunpack.c.h.b16 %v2101
      %v3609 = vunpack.c.l.b16 %v2102
      %v3610 = vunpack.c.h.b16 %v2102
      %v3611 = vunpack.c.l.b16 %v2103
      %v3612 = vunpack.c.h.b16 %v2103
      %v3613 = vunpack.c.l.b16 %v2104
      %v3614 = vunpack.c.h.b16 %v2104
      %v3615 = vunpack.c.l.b16 %v2105
      %v3616 = vunpack.c.h.b16 %v2105
      %v3617 = vunpack.c.l.b16 %v2106
      %v3618 = vunpack.c.h.b16 %v2106
      %v3619 = vunpack.c.l.b16 %v2107
      %v3620 = vunpack.c.h.b16 %v2107
      %v3621 = vunpack.c.l.b16 %v2108
      %v3622 = vunpack.c.h.b16 %v2108
      %v3623 = vunpack.c.l.b16 %v2109
      %v3624 = vunpack.c.h.b16 %v2109
      %v3625 = vunpack.c.l.b16 %v2110
      %v3626 = vunpack.c.h.b16 %v2110
      %v3627 = vunpack.c.l.b16 %v2111
      %v3628 = vunpack.c.h.b16 %v2111
      %v3629 = vunpack.c.l.b16 %v2112
      %v3630 = vunpack.c.h.b16 %v2112
      %v3631 = vunpack.c.l.b16 %v2113
      %v3632 = vunpack.c.h.b16 %v2113
      %v3633 = vunpack.c.l.b16 %v2114
      %v3634 = vunpack.c.h.b16 %v2114
      %v3635 = vunpack.c.l.b16 %v2115
      %v3636 = vunpack.c.h.b16 %v2115
      %v3637 = vunpack.c.l.b16 %v2116
      %v3638 = vunpack.c.h.b16 %v2116
      %v3639 = vunpack.c.l.b16 %v2117
      %v3640 = vunpack.c.h.b16 %v2117
      %v3641 = vunpack.c.l.b16 %v2118
      %v3642 = vunpack.c.h.b16 %v2118
      %v3643 = vunpack.c.l.b16 %v2119
      %v3644 = vunpack.c.h.b16 %v2119
      %v3645 = vunpack.c.l.b16 %v2120
      %v3646 = vunpack.c.h.b16 %v2120
      %v3647 = vunpack.c.l.b16 %v2121
      %v3648 = vunpack.c.h.b16 %v2121
      %v3649 = vunpack.c.l.b16 %v2122
      %v3650 = vunpack.c.h.b16 %v2122
      %v3651 = vunpack.c.l.b16 %v2123
      %v3652 = vunpack.c.h.b16 %v2123
      %v3653 = vunpack.c.l.b16 %v2124
      %v3654 = vunpack.c.h.b16 %v2124
      %v3655 = vunpack.c.l.b16 %v2125
      %v3656 = vunpack.c.h.b16 %v2125
      %v3657 = vunpack.c.l.b16 %v2126
      %v3658 = vunpack.c.h.b16 %v2126
      %v3659 = vunpack.c.l.b16 %v2127
      %v3660 = vunpack.c.h.b16 %v2127
      %v3661 = vunpack.c.l.b16 %v2128
      %v3662 = vunpack.c.h.b16 %v2128
      %v3663 = vunpack.c.l.b16 %v2129
      %v3664 = vunpack.c.h.b16 %v2129
      %v3665 = vunpack.c.l.b16 %v2130
      %v3666 = vunpack.c.h.b16 %v2130
      %v3667 = vunpack.c.l.b16 %v2131
      %v3668 = vunpack.c.h.b16 %v2131
      %v3669 = vunpack.c.l.b16 %v2132
      %v3670 = vunpack.c.h.b16 %v2132
      %v3671 = vunpack.c.l.b16 %v2133
      %v3672 = vunpack.c.h.b16 %v2133
      %v3673 = vunpack.c.l.b16 %v2134
      %v3674 = vunpack.c.h.b16 %v2134
      %v3675 = vunpack.c.l.b16 %v2135
      %v3676 = vunpack.c.h.b16 %v2135
      %v3677 = vunpack.c.l.b16 %v2136
      %v3678 = vunpack.c.h.b16 %v2136
      %v3679 = vunpack.c.l.b16 %v2137
      %v3680 = vunpack.c.h.b16 %v2137
      %v3681 = vunpack.c.l.b16 %v2138
      %v3682 = vunpack.c.h.b16 %v2138
      %v3683 = vunpack.c.l.b16 %v2139
      %v3684 = vunpack.c.h.b16 %v2139
      %v3685 = vunpack.c.l.b16 %v2140
      %v3686 = vunpack.c.h.b16 %v2140
      %v3687 = vunpack.c.l.b16 %v2141
      %v3688 = vunpack.c.h.b16 %v2141
      %v3689 = vunpack.c.l.b16 %v2142
      %v3690 = vunpack.c.h.b16 %v2142
      %v3691 = vunpack.c.l.b16 %v2143
      %v3692 = vunpack.c.h.b16 %v2143
      %v3693 = vunpack.c.l.b16 %v2144
      %v3694 = vunpack.c.h.b16 %v2144
      %v3695 = vunpack.c.l.b16 %v2145
      %v3696 = vunpack.c.h.b16 %v2145
      %v3697 = vunpack.c.l.b16 %v2146
      %v3698 = vunpack.c.h.b16 %v2146
      %v3699 = vunpack.c.l.b16 %v2147
      %v3700 = vunpack.c.h.b16 %v2147
      %v3701 = vunpack.c.l.b16 %v2148
      %v3702 = vunpack.c.h.b16 %v2148
      %v3703 = vunpack.c.l.b16 %v2149
      %v3704 = vunpack.c.h.b16 %v2149
      %v3705 = vunpack.c.l.b16 %v2150
      %v3706 = vunpack.c.h.b16 %v2150
      %v3707 = vunpack.c.l.b16 %v2151
      %v3708 = vunpack.c.h.b16 %v2151
      %v3709 = vunpack.c.l.b16 %v2152
      %v3710 = vunpack.c.h.b16 %v2152
      %v3711 = vunpack.c.l.b16 %v2153
      %v3712 = vunpack.c.h.b16 %v2153
      %v3713 = vunpack.c.l.b16 %v2154
      %v3714 = vunpack.c.h.b16 %v2154
      %v3715 = vunpack.c.l.b16 %v2155
      %v3716 = vunpack.c.h.b16 %v2155
      %v3717 = vunpack.c.l.b16 %v2156
      %v3718 = vunpack.c.h.b16 %v2156
      %v3719 = vunpack.c.l.b16 %v2157
      %v3720 = vunpack.c.h.b16 %v2157
      %v3721 = vunpack.c.l.b16 %v2158
      %v3722 = vunpack.c.h.b16 %v2158
      %v3723 = vunpack.c.l.b16 %v2159
      %v3724 = vunpack.c.h.b16 %v2159
      %v3725 = vunpack.c.l.b16 %v2160
      %v3726 = vunpack.c.h.b16 %v2160
      %v3727 = vunpack.c.l.b16 %v2161
      %v3728 = vunpack.c.h.b16 %v2161
      %v3729 = vunpack.c.l.b16 %v2162
      %v3730 = vunpack.c.h.b16 %v2162
      %v3731 = vunpack.c.l.b16 %v2163
      %v3732 = vunpack.c.h.b16 %v2163
      %v3733 = vunpack.c.l.b16 %v2164
      %v3734 = vunpack.c.h.b16 %v2164
      %v3735 = vunpack.c.l.b16 %v2165
      %v3736 = vunpack.c.h.b16 %v2165
      %v3737 = vunpack.c.l.b16 %v2166
      %v3738 = vunpack.c.h.b16 %v2166
      %v3739 = vunpack.c.l.b16 %v2167
      %v3740 = vunpack.c.h.b16 %v2167
      %v3741 = vunpack.c.l.b16 %v2168
      %v3742 = vunpack.c.h.b16 %v2168
      %v3743 = vunpack.c.l.b16 %v2169
      %v3744 = vunpack.c.h.b16 %v2169
      %v3745 = vunpack.c.l.b16 %v2170
      %v3746 = vunpack.c.h.b16 %v2170
      %v3747 = vunpack.c.l.b16 %v2171
      %v3748 = vunpack.c.h.b16 %v2171
      %v3749 = vunpack.c.l.b16 %v2172
      %v3750 = vunpack.c.h.b16 %v2172
      %v3751 = vunpack.c.l.b16 %v2173
      %v3752 = vunpack.c.h.b16 %v2173
      %v3753 = vunpack.c.l.b16 %v2174
      %v3754 = vunpack.c.h.b16 %v2174
      %v3755 = vunpack.c.l.b16 %v2175
      %v3756 = vunpack.c.h.b16 %v2175
      %v3757 = vunpack.c.l.b16 %v2176
      %v3758 = vunpack.c.h.b16 %v2176
      %v3759 = vunpack.c.l.b16 %v2177
      %v3760 = vunpack.c.h.b16 %v2177
      %v3761 = vunpack.c.l.b16 %v2178
      %v3762 = vunpack.c.h.b16 %v2178
      %v3763 = vpack.c.b16 %v3189, %v3187
      %v3764 = vpack.c.b16 %v3190, %v3188
      %v3765 = vpack.c.b16 %v3193, %v3191
      %v3766 = vpack.c.b16 %v3194, %v3192
      %v3767 = vpack.c.b16 %v3197, %v3195
      %v3768 = vpack.c.b16 %v3198, %v3196
      %v3769 = vpack.c.b16 %v3201, %v3199
      %v3770 = vpack.c.b16 %v3202, %v3200
      %v3771 = vpack.c.b16 %v3205, %v3203
      %v3772 = vpack.c.b16 %v3206, %v3204
      %v3773 = vpack.c.b16 %v3209, %v3207
      %v3774 = vpack.c.b16 %v3210, %v3208
      %v3775 = vpack.c.b16 %v3213, %v3211
      %v3776 = vpack.c.b16 %v3214, %v3212
      %v3777 = vpack.c.b16 %v3217, %v3215
      %v3778 = vpack.c.b16 %v3218, %v3216
      %v3779 = vpack.c.b16 %v3221, %v3219
      %v3780 = vpack.c.b16 %v3222, %v3220
      %v3781 = vpack.c.b16 %v3225, %v3223
      %v3782 = vpack.c.b16 %v3226, %v3224
      %v3783 = vpack.c.b16 %v3229, %v3227
      %v3784 = vpack.c.b16 %v3230, %v3228
      %v3785 = vpack.c.b16 %v3233, %v3231
      %v3786 = vpack.c.b16 %v3234, %v3232
      %v3787 = vpack.c.b16 %v3237, %v3235
      %v3788 = vpack.c.b16 %v3238, %v3236
      %v3789 = vpack.c.b16 %v3241, %v3239
      %v3790 = vpack.c.b16 %v3242, %v3240
      %v3791 = vpack.c.b16 %v3245, %v3243
      %v3792 = vpack.c.b16 %v3246, %v3244
      %v3793 = vpack.c.b16 %v3249, %v3247
      %v3794 = vpack.c.b16 %v3250, %v3248
      %v3795 = vpack.c.b16 %v3253, %v3251
      %v3796 = vpack.c.b16 %v3254, %v3252
      %v3797 = vpack.c.b16 %v3257, %v3255
      %v3798 = vpack.c.b16 %v3258, %v3256
      %v3799 = vpack.c.b16 %v3261, %v3259
      %v3800 = vpack.c.b16 %v3262, %v3260
      %v3801 = vpack.c.b16 %v3265, %v3263
      %v3802 = vpack.c.b16 %v3266, %v3264
      %v3803 = vpack.c.b16 %v3269, %v3267
      %v3804 = vpack.c.b16 %v3270, %v3268
      %v3805 = vpack.c.b16 %v3273, %v3271
      %v3806 = vpack.c.b16 %v3274, %v3272
      %v3807 = vpack.c.b16 %v3277, %v3275
      %v3808 = vpack.c.b16 %v3278, %v3276
      %v3809 = vpack.c.b16 %v3281, %v3279
      %v3810 = vpack.c.b16 %v3282, %v3280
      %v3811 = vpack.c.b16 %v3285, %v3283
      %v3812 = vpack.c.b16 %v3286, %v3284
      %v3813 = vpack.c.b16 %v3289, %v3287
      %v3814 = vpack.c.b16 %v3290, %v3288
      %v3815 = vpack.c.b16 %v3293, %v3291
      %v3816 = vpack.c.b16 %v3294, %v3292
      %v3817 = vpack.c.b16 %v3297, %v3295
      %v3818 = vpack.c.b16 %v3298, %v3296
      %v3819 = vpack.c.b16 %v3301, %v3299
      %v3820 = vpack.c.b16 %v3302, %v3300
      %v3821 = vpack.c.b16 %v3305, %v3303
      %v3822 = vpack.c.b16 %v3306, %v3304
      %v3823 = vpack.c.b16 %v3309, %v3307
      %v3824 = vpack.c.b16 %v3310, %v3308
      %v3825 = vpack.c.b16 %v3313, %v3311
      %v3826 = vpack.c.b16 %v3314, %v3312
      %v3827 = vpack.c.b16 %v3317, %v3315
      %v3828 = vpack.c.b16 %v3318, %v3316
      %v3829 = vpack.c.b16 %v3321, %v3319
      %v3830 = vpack.c.b16 %v3322, %v3320
      %v3831 = vpack.c.b16 %v3325, %v3323
      %v3832 = vpack.c.b16 %v3326, %v3324
      %v3833 = vpack.c.b16 %v3329, %v3327
      %v3834 = vpack.c.b16 %v3330, %v3328
      %v3835 = vpack.c.b16 %v3333, %v3331
      %v3836 = vpack.c.b16 %v3334, %v3332
      %v3837 = vpack.c.b16 %v3337, %v3335
      %v3838 = vpack.c.b16 %v3338, %v3336
      %v3839 = vpack.c.b16 %v3341, %v3339
      %v3840 = vpack.c.b16 %v3342, %v3340
      %v3841 = vpack.c.b16 %v3345, %v3343
      %v3842 = vpack.c.b16 %v3346, %v3344
      %v3843 = vpack.c.b16 %v3349, %v3347
      %v3844 = vpack.c.b16 %v3350, %v3348
      %v3845 = vpack.c.b16 %v3353, %v3351
      %v3846 = vpack.c.b16 %v3354, %v3352
      %v3847 = vpack.c.b16 %v3357, %v3355
      %v3848 = vpack.c.b16 %v3358, %v3356
      %v3849 = vpack.c.b16 %v3361, %v3359
      %v3850 = vpack.c.b16 %v3362, %v3360
      %v3851 = vpack.c.b16 %v3365, %v3363
      %v3852 = vpack.c.b16 %v3366, %v3364
      %v3853 = vpack.c.b16 %v3369, %v3367
      %v3854 = vpack.c.b16 %v3370, %v3368
      %v3855 = vpack.c.b16 %v3373, %v3371
      %v3856 = vpack.c.b16 %v3374, %v3372
      %v3857 = vpack.c.b16 %v3377, %v3375
      %v3858 = vpack.c.b16 %v3378, %v3376
      %v3859 = vpack.c.b16 %v3381, %v3379
      %v3860 = vpack.c.b16 %v3382, %v3380
      %v3861 = vpack.c.b16 %v3385, %v3383
      %v3862 = vpack.c.b16 %v3386, %v3384
      %v3863 = vpack.c.b16 %v3389, %v3387
      %v3864 = vpack.c.b16 %v3390, %v3388
      %v3865 = vpack.c.b16 %v3393, %v3391
      %v3866 = vpack.c.b16 %v3394, %v3392
      %v3867 = vpack.c.b16 %v3397, %v3395
      %v3868 = vpack.c.b16 %v3398, %v3396
      %v3869 = vpack.c.b16 %v3401, %v3399
      %v3870 = vpack.c.b16 %v3402, %v3400
      %v3871 = vpack.c.b16 %v3405, %v3403
      %v3872 = vpack.c.b16 %v3406, %v3404
      %v3873 = vpack.c.b16 %v3409, %v3407
      %v3874 = vpack.c.b16 %v3410, %v3408
      %v3875 = vpack.c.b16 %v3413, %v3411
      %v3876 = vpack.c.b16 %v3414, %v3412
      %v3877 = vpack.c.b16 %v3417, %v3415
      %v3878 = vpack.c.b16 %v3418, %v3416
      %v3879 = vpack.c.b16 %v3421, %v3419
      %v3880 = vpack.c.b16 %v3422, %v3420
      %v3881 = vpack.c.b16 %v3425, %v3423
      %v3882 = vpack.c.b16 %v3426, %v3424
      %v3883 = vpack.c.b16 %v3429, %v3427
      %v3884 = vpack.c.b16 %v3430, %v3428
      %v3885 = vpack.c.b16 %v3433, %v3431
      %v3886 = vpack.c.b16 %v3434, %v3432
      %v3887 = vpack.c.b16 %v3437, %v3435
      %v3888 = vpack.c.b16 %v3438, %v3436
      %v3889 = vpack.c.b16 %v3441, %v3439
      %v3890 = vpack.c.b16 %v3442, %v3440
      %v3891 = vpack.c.b16 %v3445, %v3443
      %v3892 = vpack.c.b16 %v3446, %v3444
      %v3893 = vpack.c.b16 %v3449, %v3447
      %v3894 = vpack.c.b16 %v3450, %v3448
      %v3895 = vpack.c.b16 %v3453, %v3451
      %v3896 = vpack.c.b16 %v3454, %v3452
      %v3897 = vpack.c.b16 %v3457, %v3455
      %v3898 = vpack.c.b16 %v3458, %v3456
      %v3899 = vpack.c.b16 %v3461, %v3459
      %v3900 = vpack.c.b16 %v3462, %v3460
      %v3901 = vpack.c.b16 %v3465, %v3463
      %v3902 = vpack.c.b16 %v3466, %v3464
      %v3903 = vpack.c.b16 %v3469, %v3467
      %v3904 = vpack.c.b16 %v3470, %v3468
      %v3905 = vpack.c.b16 %v3473, %v3471
      %v3906 = vpack.c.b16 %v3474, %v3472
      %v3907 = vpack.c.b16 %v3477, %v3475
      %v3908 = vpack.c.b16 %v3478, %v3476
      %v3909 = vpack.c.b16 %v3481, %v3479
      %v3910 = vpack.c.b16 %v3482, %v3480
      %v3911 = vpack.c.b16 %v3485, %v3483
      %v3912 = vpack.c.b16 %v3486, %v3484
      %v3913 = vpack.c.b16 %v3489, %v3487
      %v3914 = vpack.c.b16 %v3490, %v3488
      %v3915 = vpack.c.b16 %v3493, %v3491
      %v3916 = vpack.c.b16 %v3494, %v3492
      %v3917 = vpack.c.b16 %v3497, %v3495
      %v3918 = vpack.c.b16 %v3498, %v3496
      %v3919 = vpack.c.b16 %v3501, %v3499
      %v3920 = vpack.c.b16 %v3502, %v3500
      %v3921 = vpack.c.b16 %v3505, %v3503
      %v3922 = vpack.c.b16 %v3506, %v3504
      %v3923 = vpack.c.b16 %v3509, %v3507
      %v3924 = vpack.c.b16 %v3510, %v3508
      %v3925 = vpack.c.b16 %v3513, %v3511
      %v3926 = vpack.c.b16 %v3514, %v3512
      %v3927 = vpack.c.b16 %v3517, %v3515
      %v3928 = vpack.c.b16 %v3518, %v3516
      %v3929 = vpack.c.b16 %v3521, %v3519
      %v3930 = vpack.c.b16 %v3522, %v3520
      %v3931 = vpack.c.b16 %v3525, %v3523
      %v3932 = vpack.c.b16 %v3526, %v3524
      %v3933 = vpack.c.b16 %v3529, %v3527
      %v3934 = vpack.c.b16 %v3530, %v3528
      %v3935 = vpack.c.b16 %v3533, %v3531
      %v3936 = vpack.c.b16 %v3534, %v3532
      %v3937 = vpack.c.b16 %v3537, %v3535
      %v3938 = vpack.c.b16 %v3538, %v3536
      %v3939 = vpack.c.b16 %v3541, %v3539
      %v3940 = vpack.c.b16 %v3542, %v3540
      %v3941 = vpack.c.b16 %v3545, %v3543
      %v3942 = vpack.c.b16 %v3546, %v3544
      %v3943 = vpack.c.b16 %v3549, %v3547
      %v3944 = vpack.c.b16 %v3550, %v3548
      %v3945 = vpack.c.b16 %v3553, %v3551
      %v3946 = vpack.c.b16 %v3554, %v3552
      %v3947 = vpack.c.b16 %v3557, %v3555
      %v3948 = vpack.c.b16 %v3558, %v3556
      %v3949 = vpack.c.b16 %v3561, %v3559
      %v3950 = vpack.c.b16 %v3562, %v3560
      %v3951 = vpack.c.b16 %v3565, %v3563
      %v3952 = vpack.c.b16 %v3566, %v3564
      %v3953 = vpack.c.b16 %v3569, %v3567
      %v3954 = vpack.c.b16 %v3570, %v3568
      %v3955 = vpack.c.b16 %v3573, %v3571
      %v3956 = vpack.c.b16 %v3574, %v3572
      %v3957 = vpack.c.b16 %v3577, %v3575
      %v3958 = vpack.c.b16 %v3578, %v3576
      %v3959 = vpack.c.b16 %v3581, %v3579
      %v3960 = vpack.c.b16 %v3582, %v3580
      %v3961 = vpack.c.b16 %v3585, %v3583
      %v3962 = vpack.c.b16 %v3586, %v3584
      %v3963 = vpack.c.b16 %v3589, %v3587
      %v3964 = vpack.c.b16 %v3590, %v3588
      %v3965 = vpack.c.b16 %v3593, %v3591
      %v3966 = vpack.c.b16 %v3594, %v3592
      %v3967 = vpack.c.b16 %v3597, %v3595
      %v3968 = vpack.c.b16 %v3598, %v3596
      %v3969 = vpack.c.b16 %v3601, %v3599
      %v3970 = vpack.c.b16 %v3602, %v3600
      %v3971 = vpack.c.b16 %v3605, %v3603
      %v3972 = vpack.c.b16 %v3606, %v3604
      %v3973 = vpack.c.b16 %v3609, %v3607
      %v3974 = vpack.c.b16 %v3610, %v3608
      %v3975 = vpack.c.b16 %v3613, %v3611
      %v3976 = vpack.c.b16 %v3614, %v3612
      %v3977 = vpack.c.b16 %v3617, %v3615
      %v3978 = vpack.c.b16 %v3618, %v3616
      %v3979 = vpack.c.b16 %v3621, %v3619
      %v3980 = vpack.c.b16 %v3622, %v3620
      %v3981 = vpack.c.b16 %v3625, %v3623
      %v3982 = vpack.c.b16 %v3626, %v3624
      %v3983 = vpack.c.b16 %v3629, %v3627
      %v3984 = vpack.c.b16 %v3630, %v3628
      %v3985 = vpack.c.b16 %v3633, %v3631
      %v3986 = vpack.c.b16 %v3634, %v3632
      %v3987 = vpack.c.b16 %v3637, %v3635
      %v3988 = vpack.c.b16 %v3638, %v3636
      %v3989 = vpack.c.b16 %v3641, %v3639
      %v3990 = vpack.c.b16 %v3642, %v3640
      %v3991 = vpack.c.b16 %v3645, %v3643
      %v3992 = vpack.c.b16 %v3646, %v3644
      %v3993 = vpack.c.b16 %v3649, %v3647
      %v3994 = vpack.c.b16 %v3650, %v3648
      %v3995 = vpack.c.b16 %v3653, %v3651
      %v3996 = vpack.c.b16 %v3654, %v3652
      %v3997 = vpack.c.b16 %v3657, %v3655
      %v3998 = vpack.c.b16 %v3658, %v3656
      %v3999 = vpack.c.b16 %v3661, %v3659
      %v4000 = vpack.c.b16 %v3662, %v3660
      %v4001 = vpack.c.b16 %v3665, %v3663
      %v4002 = vpack.c.b16 %v3666, %v3664
      %v4003 = vpack.c.b16 %v3669, %v3667
      %v4004 = vpack.c.b16 %v3670, %v3668
      %v4005 = vpack.c.b16 %v3673, %v3671
      %v4006 = vpack.c.b16 %v3674, %v3672
      %v4007 = vpack.c.b16 %v3677, %v3675
      %v4008 = vpack.c.b16 %v3678, %v3676
      %v4009 = vpack.c.b16 %v3681, %v3679
      %v4010 = vpack.c.b16 %v3682, %v3680
      %v4011 = vpack.c.b16 %v3685, %v3683
      %v4012 = vpack.c.b16 %v3686, %v3684
      %v4013 = vpack.c.b16 %v3689, %v3687
      %v4014 = vpack.c.b16 %v3690, %v3688
      %v4015 = vpack.c.b16 %v3693, %v3691
      %v4016 = vpack.c.b16 %v3694, %v3692
      %v4017 = vpack.c.b16 %v3697, %v3695
      %v4018 = vpack.c.b16 %v3698, %v3696
      %v4019 = vpack.c.b16 %v3701, %v3699
      %v4020 = vpack.c.b16 %v3702, %v3700
      %v4021 = vpack.c.b16 %v3705, %v3703
      %v4022 = vpack.c.b16 %v3706, %v3704
      %v4023 = vpack.c.b16 %v3709, %v3707
      %v4024 = vpack.c.b16 %v3710, %v3708
      %v4025 = vpack.c.b16 %v3713, %v3711
      %v4026 = vpack.c.b16 %v3714, %v3712
      %v4027 = vpack.c.b16 %v3717, %v3715
      %v4028 = vpack.c.b16 %v3718, %v3716
      %v4029 = vpack.c.b16 %v3721, %v3719
      %v4030 = vpack.c.b16 %v3722, %v3720
      %v4031 = vpack.c.b16 %v3725, %v3723
      %v4032 = vpack.c.b16 %v3726, %v3724
      %v4033 = vpack.c.b16 %v3729, %v3727
      %v4034 = vpack.c.b16 %v3730, %v3728
      %v4035 = vpack.c.b16 %v3733, %v3731
      %v4036 = vpack.c.b16 %v3734, %v3732
      %v4037 = vpack.c.b16 %v3737, %v3735
      %v4038 = vpack.c.b16 %v3738, %v3736
      %v4039 = vpack.c.b16 %v3741, %v3739
      %v4040 = vpack.c.b16 %v3742, %v3740
      %v4041 = vpack.c.b16 %v3745, %v3743
      %v4042 = vpack.c.b16 %v3746, %v3744
      %v4043 = vpack.c.b16 %v3749, %v3747
      %v4044 = vpack.c.b16 %v3750, %v3748
      %v4045 = vpack.c.b16 %v3753, %v3751
      %v4046 = vpack.c.b16 %v3754, %v3752
      %v4047 = vpack.c.b16 %v3757, %v3755
      %v4048 = vpack.c.b16 %v3758, %v3756
      %v4049 = vpack.c.b16 %v3761, %v3759
      %v4050 = vpack.c.b16 %v3762, %v3760
      %4339 = vmatpush.bf16.msra.mxu0 %v3777
      %4340 = vmatpush.bf16.msra.mxu0 %v3775
      %4341 = vmatpush.bf16.msra.mxu0 %v3773
      %4342 = vmatpush.bf16.msra.mxu0 %v3771
      %4343 = vmatpush.bf16.msra.mxu0 %v3769
      %4344 = vmatpush.bf16.msra.mxu0 %v3767
      %4345 = vmatpush.bf16.msra.mxu0 %v3765
      %4346 = vmatpush.bf16.msra.mxu0 %v3763
      %4347 = vmatmul.bf16.gmra.mxu0 %v2611
      %v4348 = vpop.f32.mrf.mxu0
      %v4349 = vadd.f32 0.0, %v4348
      %v4350 = vpop.f32.mrf.mxu0
      %v4351 = vadd.f32 0.0, %v4350
      %4352 = vmatmul.bf16.gmra.mxu0 %v2629
      %v4353 = vpop.f32.mrf.mxu0
      %v4354 = vadd.f32 0.0, %v4353
      %v4355 = vpop.f32.mrf.mxu0
      %v4356 = vadd.f32 0.0, %v4355
      %4357 = vmatmul.bf16.gmra.mxu0 %v2647
      %v4358 = vpop.f32.mrf.mxu0
      %v4359 = vadd.f32 0.0, %v4358
      %v4360 = vpop.f32.mrf.mxu0
      %v4361 = vadd.f32 0.0, %v4360
      %4362 = vmatmul.bf16.gmra.mxu0 %v2665
      %v4363 = vpop.f32.mrf.mxu0
      %v4364 = vadd.f32 0.0, %v4363
      %v4365 = vpop.f32.mrf.mxu0
      %v4366 = vadd.f32 0.0, %v4365
      %4367 = vmatmul.bf16.gmra.mxu0 %v2683
      %v4368 = vpop.f32.mrf.mxu0
      %v4369 = vadd.f32 0.0, %v4368
      %v4370 = vpop.f32.mrf.mxu0
      %v4371 = vadd.f32 0.0, %v4370
      %4372 = vmatmul.bf16.gmra.mxu0 %v2701
      %v4373 = vpop.f32.mrf.mxu0
      %v4374 = vadd.f32 0.0, %v4373
      %v4375 = vpop.f32.mrf.mxu0
      %v4376 = vadd.f32 0.0, %v4375
      %4377 = vmatmul.bf16.gmra.mxu0 %v2719
      %v4378 = vpop.f32.mrf.mxu0
      %v4379 = vadd.f32 0.0, %v4378
      %v4380 = vpop.f32.mrf.mxu0
      %v4381 = vadd.f32 0.0, %v4380
      %4382 = vmatmul.bf16.gmra.mxu0 %v2737
      %v4383 = vpop.f32.mrf.mxu0
      %v4384 = vadd.f32 0.0, %v4383
      %v4385 = vpop.f32.mrf.mxu0
      %v4386 = vadd.f32 0.0, %v4385
      %4387 = vdwg.mxu0
      %4388 = vmatpush.bf16.msra.mxu0 %v3793
      %4389 = vmatpush.bf16.msra.mxu0 %v3791
      %4390 = vmatpush.bf16.msra.mxu0 %v3789
      %4391 = vmatpush.bf16.msra.mxu0 %v3787
      %4392 = vmatpush.bf16.msra.mxu0 %v3785
      %4393 = vmatpush.bf16.msra.mxu0 %v3783
      %4394 = vmatpush.bf16.msra.mxu0 %v3781
      %4395 = vmatpush.bf16.msra.mxu0 %v3779
      %4396 = vmatmul.bf16.gmra.mxu0 %v2612
      %v4397 = vpop.f32.mrf.mxu0
      %v4398 = vadd.f32 %v4349, %v4397
      %v4399 = vpop.f32.mrf.mxu0
      %v4400 = vadd.f32 %v4351, %v4399
      %4401 = vmatmul.bf16.gmra.mxu0 %v2630
      %v4402 = vpop.f32.mrf.mxu0
      %v4403 = vadd.f32 %v4354, %v4402
      %v4404 = vpop.f32.mrf.mxu0
      %v4405 = vadd.f32 %v4356, %v4404
      %4406 = vmatmul.bf16.gmra.mxu0 %v2648
      %v4407 = vpop.f32.mrf.mxu0
      %v4408 = vadd.f32 %v4359, %v4407
      %v4409 = vpop.f32.mrf.mxu0
      %v4410 = vadd.f32 %v4361, %v4409
      %4411 = vmatmul.bf16.gmra.mxu0 %v2666
      %v4412 = vpop.f32.mrf.mxu0
      %v4413 = vadd.f32 %v4364, %v4412
      %v4414 = vpop.f32.mrf.mxu0
      %v4415 = vadd.f32 %v4366, %v4414
      %4416 = vmatmul.bf16.gmra.mxu0 %v2684
      %v4417 = vpop.f32.mrf.mxu0
      %v4418 = vadd.f32 %v4369, %v4417
      %v4419 = vpop.f32.mrf.mxu0
      %v4420 = vadd.f32 %v4371, %v4419
      %4421 = vmatmul.bf16.gmra.mxu0 %v2702
      %v4422 = vpop.f32.mrf.mxu0
      %v4423 = vadd.f32 %v4374, %v4422
      %v4424 = vpop.f32.mrf.mxu0
      %v4425 = vadd.f32 %v4376, %v4424
      %4426 = vmatmul.bf16.gmra.mxu0 %v2720
      %v4427 = vpop.f32.mrf.mxu0
      %v4428 = vadd.f32 %v4379, %v4427
      %v4429 = vpop.f32.mrf.mxu0
      %v4430 = vadd.f32 %v4381, %v4429
      %4431 = vmatmul.bf16.gmra.mxu0 %v2738
      %v4432 = vpop.f32.mrf.mxu0
      %v4433 = vadd.f32 %v4384, %v4432
      %v4434 = vpop.f32.mrf.mxu0
      %v4435 = vadd.f32 %v4386, %v4434
      %4436 = vdwg.mxu0
      %4437 = vmatpush.bf16.msra.mxu0 %v3809
      %4438 = vmatpush.bf16.msra.mxu0 %v3807
      %4439 = vmatpush.bf16.msra.mxu0 %v3805
      %4440 = vmatpush.bf16.msra.mxu0 %v3803
      %4441 = vmatpush.bf16.msra.mxu0 %v3801
      %4442 = vmatpush.bf16.msra.mxu0 %v3799
      %4443 = vmatpush.bf16.msra.mxu0 %v3797
      %4444 = vmatpush.bf16.msra.mxu0 %v3795
      %4445 = vmatmul.bf16.gmra.mxu0 %v2613
      %v4446 = vpop.f32.mrf.mxu0
      %v4447 = vadd.f32 %v4398, %v4446
      %v4448 = vpop.f32.mrf.mxu0
      %v4449 = vadd.f32 %v4400, %v4448
      %4450 = vmatmul.bf16.gmra.mxu0 %v2631
      %v4451 = vpop.f32.mrf.mxu0
      %v4452 = vadd.f32 %v4403, %v4451
      %v4453 = vpop.f32.mrf.mxu0
      %v4454 = vadd.f32 %v4405, %v4453
      %4455 = vmatmul.bf16.gmra.mxu0 %v2649
      %v4456 = vpop.f32.mrf.mxu0
      %v4457 = vadd.f32 %v4408, %v4456
      %v4458 = vpop.f32.mrf.mxu0
      %v4459 = vadd.f32 %v4410, %v4458
      %4460 = vmatmul.bf16.gmra.mxu0 %v2667
      %v4461 = vpop.f32.mrf.mxu0
      %v4462 = vadd.f32 %v4413, %v4461
      %v4463 = vpop.f32.mrf.mxu0
      %v4464 = vadd.f32 %v4415, %v4463
      %4465 = vmatmul.bf16.gmra.mxu0 %v2685
      %v4466 = vpop.f32.mrf.mxu0
      %v4467 = vadd.f32 %v4418, %v4466
      %v4468 = vpop.f32.mrf.mxu0
      %v4469 = vadd.f32 %v4420, %v4468
      %4470 = vmatmul.bf16.gmra.mxu0 %v2703
      %v4471 = vpop.f32.mrf.mxu0
      %v4472 = vadd.f32 %v4423, %v4471
      %v4473 = vpop.f32.mrf.mxu0
      %v4474 = vadd.f32 %v4425, %v4473
      %4475 = vmatmul.bf16.gmra.mxu0 %v2721
      %v4476 = vpop.f32.mrf.mxu0
      %v4477 = vadd.f32 %v4428, %v4476
      %v4478 = vpop.f32.mrf.mxu0
      %v4479 = vadd.f32 %v4430, %v4478
      %4480 = vmatmul.bf16.gmra.mxu0 %v2739
      %v4481 = vpop.f32.mrf.mxu0
      %v4482 = vadd.f32 %v4433, %v4481
      %v4483 = vpop.f32.mrf.mxu0
      %v4484 = vadd.f32 %v4435, %v4483
      %4485 = vdwg.mxu0
      %4486 = vmatpush.bf16.msra.mxu0 %v3825
      %4487 = vmatpush.bf16.msra.mxu0 %v3823
      %4488 = vmatpush.bf16.msra.mxu0 %v3821
      %4489 = vmatpush.bf16.msra.mxu0 %v3819
      %4490 = vmatpush.bf16.msra.mxu0 %v3817
      %4491 = vmatpush.bf16.msra.mxu0 %v3815
      %4492 = vmatpush.bf16.msra.mxu0 %v3813
      %4493 = vmatpush.bf16.msra.mxu0 %v3811
      %4494 = vmatmul.bf16.gmra.mxu0 %v2614
      %v4495 = vpop.f32.mrf.mxu0
      %v4496 = vadd.f32 %v4447, %v4495
      %v4497 = vpop.f32.mrf.mxu0
      %v4498 = vadd.f32 %v4449, %v4497
      %4499 = vmatmul.bf16.gmra.mxu0 %v2632
      %v4500 = vpop.f32.mrf.mxu0
      %v4501 = vadd.f32 %v4452, %v4500
      %v4502 = vpop.f32.mrf.mxu0
      %v4503 = vadd.f32 %v4454, %v4502
      %4504 = vmatmul.bf16.gmra.mxu0 %v2650
      %v4505 = vpop.f32.mrf.mxu0
      %v4506 = vadd.f32 %v4457, %v4505
      %v4507 = vpop.f32.mrf.mxu0
      %v4508 = vadd.f32 %v4459, %v4507
      %4509 = vmatmul.bf16.gmra.mxu0 %v2668
      %v4510 = vpop.f32.mrf.mxu0
      %v4511 = vadd.f32 %v4462, %v4510
      %v4512 = vpop.f32.mrf.mxu0
      %v4513 = vadd.f32 %v4464, %v4512
      %4514 = vmatmul.bf16.gmra.mxu0 %v2686
      %v4515 = vpop.f32.mrf.mxu0
      %v4516 = vadd.f32 %v4467, %v4515
      %v4517 = vpop.f32.mrf.mxu0
      %v4518 = vadd.f32 %v4469, %v4517
      %4519 = vmatmul.bf16.gmra.mxu0 %v2704
      %v4520 = vpop.f32.mrf.mxu0
      %v4521 = vadd.f32 %v4472, %v4520
      %v4522 = vpop.f32.mrf.mxu0
      %v4523 = vadd.f32 %v4474, %v4522
      %4524 = vmatmul.bf16.gmra.mxu0 %v2722
      %v4525 = vpop.f32.mrf.mxu0
      %v4526 = vadd.f32 %v4477, %v4525
      %v4527 = vpop.f32.mrf.mxu0
      %v4528 = vadd.f32 %v4479, %v4527
      %4529 = vmatmul.bf16.gmra.mxu0 %v2740
      %v4530 = vpop.f32.mrf.mxu0
      %v4531 = vadd.f32 %v4482, %v4530
      %v4532 = vpop.f32.mrf.mxu0
      %v4533 = vadd.f32 %v4484, %v4532
      %4534 = vdwg.mxu0
      %4535 = vmatpush.bf16.msra.mxu0 %v3841
      %4536 = vmatpush.bf16.msra.mxu0 %v3839
      %4537 = vmatpush.bf16.msra.mxu0 %v3837
      %4538 = vmatpush.bf16.msra.mxu0 %v3835
      %4539 = vmatpush.bf16.msra.mxu0 %v3833
      %4540 = vmatpush.bf16.msra.mxu0 %v3831
      %4541 = vmatpush.bf16.msra.mxu0 %v3829
      %4542 = vmatpush.bf16.msra.mxu0 %v3827
      %4543 = vmatmul.bf16.gmra.mxu0 %v2615
      %v4544 = vpop.f32.mrf.mxu0
      %v4545 = vadd.f32 %v4496, %v4544
      %v4546 = vpop.f32.mrf.mxu0
      %v4547 = vadd.f32 %v4498, %v4546
      %4548 = vmatmul.bf16.gmra.mxu0 %v2633
      %v4549 = vpop.f32.mrf.mxu0
      %v4550 = vadd.f32 %v4501, %v4549
      %v4551 = vpop.f32.mrf.mxu0
      %v4552 = vadd.f32 %v4503, %v4551
      %4553 = vmatmul.bf16.gmra.mxu0 %v2651
      %v4554 = vpop.f32.mrf.mxu0
      %v4555 = vadd.f32 %v4506, %v4554
      %v4556 = vpop.f32.mrf.mxu0
      %v4557 = vadd.f32 %v4508, %v4556
      %4558 = vmatmul.bf16.gmra.mxu0 %v2669
      %v4559 = vpop.f32.mrf.mxu0
      %v4560 = vadd.f32 %v4511, %v4559
      %v4561 = vpop.f32.mrf.mxu0
      %v4562 = vadd.f32 %v4513, %v4561
      %4563 = vmatmul.bf16.gmra.mxu0 %v2687
      %v4564 = vpop.f32.mrf.mxu0
      %v4565 = vadd.f32 %v4516, %v4564
      %v4566 = vpop.f32.mrf.mxu0
      %v4567 = vadd.f32 %v4518, %v4566
      %4568 = vmatmul.bf16.gmra.mxu0 %v2705
      %v4569 = vpop.f32.mrf.mxu0
      %v4570 = vadd.f32 %v4521, %v4569
      %v4571 = vpop.f32.mrf.mxu0
      %v4572 = vadd.f32 %v4523, %v4571
      %4573 = vmatmul.bf16.gmra.mxu0 %v2723
      %v4574 = vpop.f32.mrf.mxu0
      %v4575 = vadd.f32 %v4526, %v4574
      %v4576 = vpop.f32.mrf.mxu0
      %v4577 = vadd.f32 %v4528, %v4576
      %4578 = vmatmul.bf16.gmra.mxu0 %v2741
      %v4579 = vpop.f32.mrf.mxu0
      %v4580 = vadd.f32 %v4531, %v4579
      %v4581 = vpop.f32.mrf.mxu0
      %v4582 = vadd.f32 %v4533, %v4581
      %4583 = vdwg.mxu0
      %4584 = vmatpush.bf16.msra.mxu0 %v3857
      %4585 = vmatpush.bf16.msra.mxu0 %v3855
      %4586 = vmatpush.bf16.msra.mxu0 %v3853
      %4587 = vmatpush.bf16.msra.mxu0 %v3851
      %4588 = vmatpush.bf16.msra.mxu0 %v3849
      %4589 = vmatpush.bf16.msra.mxu0 %v3847
      %4590 = vmatpush.bf16.msra.mxu0 %v3845
      %4591 = vmatpush.bf16.msra.mxu0 %v3843
      %4592 = vmatmul.bf16.gmra.mxu0 %v2616
      %v4593 = vpop.f32.mrf.mxu0
      %v4594 = vadd.f32 %v4545, %v4593
      %v4595 = vpop.f32.mrf.mxu0
      %v4596 = vadd.f32 %v4547, %v4595
      %4597 = vmatmul.bf16.gmra.mxu0 %v2634
      %v4598 = vpop.f32.mrf.mxu0
      %v4599 = vadd.f32 %v4550, %v4598
      %v4600 = vpop.f32.mrf.mxu0
      %v4601 = vadd.f32 %v4552, %v4600
      %4602 = vmatmul.bf16.gmra.mxu0 %v2652
      %v4603 = vpop.f32.mrf.mxu0
      %v4604 = vadd.f32 %v4555, %v4603
      %v4605 = vpop.f32.mrf.mxu0
      %v4606 = vadd.f32 %v4557, %v4605
      %4607 = vmatmul.bf16.gmra.mxu0 %v2670
      %v4608 = vpop.f32.mrf.mxu0
      %v4609 = vadd.f32 %v4560, %v4608
      %v4610 = vpop.f32.mrf.mxu0
      %v4611 = vadd.f32 %v4562, %v4610
      %4612 = vmatmul.bf16.gmra.mxu0 %v2688
      %v4613 = vpop.f32.mrf.mxu0
      %v4614 = vadd.f32 %v4565, %v4613
      %v4615 = vpop.f32.mrf.mxu0
      %v4616 = vadd.f32 %v4567, %v4615
      %4617 = vmatmul.bf16.gmra.mxu0 %v2706
      %v4618 = vpop.f32.mrf.mxu0
      %v4619 = vadd.f32 %v4570, %v4618
      %v4620 = vpop.f32.mrf.mxu0
      %v4621 = vadd.f32 %v4572, %v4620
      %4622 = vmatmul.bf16.gmra.mxu0 %v2724
      %v4623 = vpop.f32.mrf.mxu0
      %v4624 = vadd.f32 %v4575, %v4623
      %v4625 = vpop.f32.mrf.mxu0
      %v4626 = vadd.f32 %v4577, %v4625
      %4627 = vmatmul.bf16.gmra.mxu0 %v2742
      %v4628 = vpop.f32.mrf.mxu0
      %v4629 = vadd.f32 %v4580, %v4628
      %v4630 = vpop.f32.mrf.mxu0
      %v4631 = vadd.f32 %v4582, %v4630
      %4632 = vdwg.mxu0
      %4633 = vmatpush.bf16.msra.mxu0 %v3873
      %4634 = vmatpush.bf16.msra.mxu0 %v3871
      %4635 = vmatpush.bf16.msra.mxu0 %v3869
      %4636 = vmatpush.bf16.msra.mxu0 %v3867
      %4637 = vmatpush.bf16.msra.mxu0 %v3865
      %4638 = vmatpush.bf16.msra.mxu0 %v3863
      %4639 = vmatpush.bf16.msra.mxu0 %v3861
      %4640 = vmatpush.bf16.msra.mxu0 %v3859
      %4641 = vmatmul.bf16.gmra.mxu0 %v2617
      %v4642 = vpop.f32.mrf.mxu0
      %v4643 = vadd.f32 %v4594, %v4642
      %v4644 = vpop.f32.mrf.mxu0
      %v4645 = vadd.f32 %v4596, %v4644
      %4646 = vmatmul.bf16.gmra.mxu0 %v2635
      %v4647 = vpop.f32.mrf.mxu0
      %v4648 = vadd.f32 %v4599, %v4647
      %v4649 = vpop.f32.mrf.mxu0
      %v4650 = vadd.f32 %v4601, %v4649
      %4651 = vmatmul.bf16.gmra.mxu0 %v2653
      %v4652 = vpop.f32.mrf.mxu0
      %v4653 = vadd.f32 %v4604, %v4652
      %v4654 = vpop.f32.mrf.mxu0
      %v4655 = vadd.f32 %v4606, %v4654
      %4656 = vmatmul.bf16.gmra.mxu0 %v2671
      %v4657 = vpop.f32.mrf.mxu0
      %v4658 = vadd.f32 %v4609, %v4657
      %v4659 = vpop.f32.mrf.mxu0
      %v4660 = vadd.f32 %v4611, %v4659
      %4661 = vmatmul.bf16.gmra.mxu0 %v2689
      %v4662 = vpop.f32.mrf.mxu0
      %v4663 = vadd.f32 %v4614, %v4662
      %v4664 = vpop.f32.mrf.mxu0
      %v4665 = vadd.f32 %v4616, %v4664
      %4666 = vmatmul.bf16.gmra.mxu0 %v2707
      %v4667 = vpop.f32.mrf.mxu0
      %v4668 = vadd.f32 %v4619, %v4667
      %v4669 = vpop.f32.mrf.mxu0
      %v4670 = vadd.f32 %v4621, %v4669
      %4671 = vmatmul.bf16.gmra.mxu0 %v2725
      %v4672 = vpop.f32.mrf.mxu0
      %v4673 = vadd.f32 %v4624, %v4672
      %v4674 = vpop.f32.mrf.mxu0
      %v4675 = vadd.f32 %v4626, %v4674
      %4676 = vmatmul.bf16.gmra.mxu0 %v2743
      %v4677 = vpop.f32.mrf.mxu0
      %v4678 = vadd.f32 %v4629, %v4677
      %v4679 = vpop.f32.mrf.mxu0
      %v4680 = vadd.f32 %v4631, %v4679
      %4681 = vdwg.mxu0
      %4682 = vmatpush.bf16.msra.mxu0 %v3889
      %4683 = vmatpush.bf16.msra.mxu0 %v3887
      %4684 = vmatpush.bf16.msra.mxu0 %v3885
      %4685 = vmatpush.bf16.msra.mxu0 %v3883
      %4686 = vmatpush.bf16.msra.mxu0 %v3881
      %4687 = vmatpush.bf16.msra.mxu0 %v3879
      %4688 = vmatpush.bf16.msra.mxu0 %v3877
      %4689 = vmatpush.bf16.msra.mxu0 %v3875
      %4690 = vmatmul.bf16.gmra.mxu0 %v2618
      %v4691 = vpop.f32.mrf.mxu0
      %v4692 = vadd.f32 %v4643, %v4691
      %v4693 = vpop.f32.mrf.mxu0
      %v4694 = vadd.f32 %v4645, %v4693
      %4695 = vmatmul.bf16.gmra.mxu0 %v2636
      %v4696 = vpop.f32.mrf.mxu0
      %v4697 = vadd.f32 %v4648, %v4696
      %v4698 = vpop.f32.mrf.mxu0
      %v4699 = vadd.f32 %v4650, %v4698
      %4700 = vmatmul.bf16.gmra.mxu0 %v2654
      %v4701 = vpop.f32.mrf.mxu0
      %v4702 = vadd.f32 %v4653, %v4701
      %v4703 = vpop.f32.mrf.mxu0
      %v4704 = vadd.f32 %v4655, %v4703
      %4705 = vmatmul.bf16.gmra.mxu0 %v2672
      %v4706 = vpop.f32.mrf.mxu0
      %v4707 = vadd.f32 %v4658, %v4706
      %v4708 = vpop.f32.mrf.mxu0
      %v4709 = vadd.f32 %v4660, %v4708
      %4710 = vmatmul.bf16.gmra.mxu0 %v2690
      %v4711 = vpop.f32.mrf.mxu0
      %v4712 = vadd.f32 %v4663, %v4711
      %v4713 = vpop.f32.mrf.mxu0
      %v4714 = vadd.f32 %v4665, %v4713
      %4715 = vmatmul.bf16.gmra.mxu0 %v2708
      %v4716 = vpop.f32.mrf.mxu0
      %v4717 = vadd.f32 %v4668, %v4716
      %v4718 = vpop.f32.mrf.mxu0
      %v4719 = vadd.f32 %v4670, %v4718
      %4720 = vmatmul.bf16.gmra.mxu0 %v2726
      %v4721 = vpop.f32.mrf.mxu0
      %v4722 = vadd.f32 %v4673, %v4721
      %v4723 = vpop.f32.mrf.mxu0
      %v4724 = vadd.f32 %v4675, %v4723
      %4725 = vmatmul.bf16.gmra.mxu0 %v2744
      %v4726 = vpop.f32.mrf.mxu0
      %v4727 = vadd.f32 %v4678, %v4726
      %v4728 = vpop.f32.mrf.mxu0
      %v4729 = vadd.f32 %v4680, %v4728
      %4730 = vdwg.mxu0
      %4731 = vmatpush.bf16.msra.mxu0 %v3905
      %4732 = vmatpush.bf16.msra.mxu0 %v3903
      %4733 = vmatpush.bf16.msra.mxu0 %v3901
      %4734 = vmatpush.bf16.msra.mxu0 %v3899
      %4735 = vmatpush.bf16.msra.mxu0 %v3897
      %4736 = vmatpush.bf16.msra.mxu0 %v3895
      %4737 = vmatpush.bf16.msra.mxu0 %v3893
      %4738 = vmatpush.bf16.msra.mxu0 %v3891
      %4739 = vmatmul.bf16.gmra.mxu0 %v2619
      %v4740 = vpop.f32.mrf.mxu0
      %v4741 = vadd.f32 %v4692, %v4740
      %v4742 = vpop.f32.mrf.mxu0
      %v4743 = vadd.f32 %v4694, %v4742
      %4744 = vmatmul.bf16.gmra.mxu0 %v2637
      %v4745 = vpop.f32.mrf.mxu0
      %v4746 = vadd.f32 %v4697, %v4745
      %v4747 = vpop.f32.mrf.mxu0
      %v4748 = vadd.f32 %v4699, %v4747
      %4749 = vmatmul.bf16.gmra.mxu0 %v2655
      %v4750 = vpop.f32.mrf.mxu0
      %v4751 = vadd.f32 %v4702, %v4750
      %v4752 = vpop.f32.mrf.mxu0
      %v4753 = vadd.f32 %v4704, %v4752
      %4754 = vmatmul.bf16.gmra.mxu0 %v2673
      %v4755 = vpop.f32.mrf.mxu0
      %v4756 = vadd.f32 %v4707, %v4755
      %v4757 = vpop.f32.mrf.mxu0
      %v4758 = vadd.f32 %v4709, %v4757
      %4759 = vmatmul.bf16.gmra.mxu0 %v2691
      %v4760 = vpop.f32.mrf.mxu0
      %v4761 = vadd.f32 %v4712, %v4760
      %v4762 = vpop.f32.mrf.mxu0
      %v4763 = vadd.f32 %v4714, %v4762
      %4764 = vmatmul.bf16.gmra.mxu0 %v2709
      %v4765 = vpop.f32.mrf.mxu0
      %v4766 = vadd.f32 %v4717, %v4765
      %v4767 = vpop.f32.mrf.mxu0
      %v4768 = vadd.f32 %v4719, %v4767
      %4769 = vmatmul.bf16.gmra.mxu0 %v2727
      %v4770 = vpop.f32.mrf.mxu0
      %v4771 = vadd.f32 %v4722, %v4770
      %v4772 = vpop.f32.mrf.mxu0
      %v4773 = vadd.f32 %v4724, %v4772
      %4774 = vmatmul.bf16.gmra.mxu0 %v2745
      %v4775 = vpop.f32.mrf.mxu0
      %v4776 = vadd.f32 %v4727, %v4775
      %v4777 = vpop.f32.mrf.mxu0
      %v4778 = vadd.f32 %v4729, %v4777
      %4779 = vdwg.mxu0
      %4780 = vmatpush.bf16.msra.mxu0 %v3921
      %4781 = vmatpush.bf16.msra.mxu0 %v3919
      %4782 = vmatpush.bf16.msra.mxu0 %v3917
      %4783 = vmatpush.bf16.msra.mxu0 %v3915
      %4784 = vmatpush.bf16.msra.mxu0 %v3913
      %4785 = vmatpush.bf16.msra.mxu0 %v3911
      %4786 = vmatpush.bf16.msra.mxu0 %v3909
      %4787 = vmatpush.bf16.msra.mxu0 %v3907
      %4788 = vmatmul.bf16.gmra.mxu0 %v2620
      %v4789 = vpop.f32.mrf.mxu0
      %v4790 = vadd.f32 %v4741, %v4789
      %v4791 = vpop.f32.mrf.mxu0
      %v4792 = vadd.f32 %v4743, %v4791
      %4793 = vmatmul.bf16.gmra.mxu0 %v2638
      %v4794 = vpop.f32.mrf.mxu0
      %v4795 = vadd.f32 %v4746, %v4794
      %v4796 = vpop.f32.mrf.mxu0
      %v4797 = vadd.f32 %v4748, %v4796
      %4798 = vmatmul.bf16.gmra.mxu0 %v2656
      %v4799 = vpop.f32.mrf.mxu0
      %v4800 = vadd.f32 %v4751, %v4799
      %v4801 = vpop.f32.mrf.mxu0
      %v4802 = vadd.f32 %v4753, %v4801
      %4803 = vmatmul.bf16.gmra.mxu0 %v2674
      %v4804 = vpop.f32.mrf.mxu0
      %v4805 = vadd.f32 %v4756, %v4804
      %v4806 = vpop.f32.mrf.mxu0
      %v4807 = vadd.f32 %v4758, %v4806
      %4808 = vmatmul.bf16.gmra.mxu0 %v2692
      %v4809 = vpop.f32.mrf.mxu0
      %v4810 = vadd.f32 %v4761, %v4809
      %v4811 = vpop.f32.mrf.mxu0
      %v4812 = vadd.f32 %v4763, %v4811
      %4813 = vmatmul.bf16.gmra.mxu0 %v2710
      %v4814 = vpop.f32.mrf.mxu0
      %v4815 = vadd.f32 %v4766, %v4814
      %v4816 = vpop.f32.mrf.mxu0
      %v4817 = vadd.f32 %v4768, %v4816
      %4818 = vmatmul.bf16.gmra.mxu0 %v2728
      %v4819 = vpop.f32.mrf.mxu0
      %v4820 = vadd.f32 %v4771, %v4819
      %v4821 = vpop.f32.mrf.mxu0
      %v4822 = vadd.f32 %v4773, %v4821
      %4823 = vmatmul.bf16.gmra.mxu0 %v2746
      %v4824 = vpop.f32.mrf.mxu0
      %v4825 = vadd.f32 %v4776, %v4824
      %v4826 = vpop.f32.mrf.mxu0
      %v4827 = vadd.f32 %v4778, %v4826
      %4828 = vdwg.mxu0
      %4829 = vmatpush.bf16.msra.mxu0 %v3937
      %4830 = vmatpush.bf16.msra.mxu0 %v3935
      %4831 = vmatpush.bf16.msra.mxu0 %v3933
      %4832 = vmatpush.bf16.msra.mxu0 %v3931
      %4833 = vmatpush.bf16.msra.mxu0 %v3929
      %4834 = vmatpush.bf16.msra.mxu0 %v3927
      %4835 = vmatpush.bf16.msra.mxu0 %v3925
      %4836 = vmatpush.bf16.msra.mxu0 %v3923
      %4837 = vmatmul.bf16.gmra.mxu0 %v2621
      %v4838 = vpop.f32.mrf.mxu0
      %v4839 = vadd.f32 %v4790, %v4838
      %v4840 = vpop.f32.mrf.mxu0
      %v4841 = vadd.f32 %v4792, %v4840
      %4842 = vmatmul.bf16.gmra.mxu0 %v2639
      %v4843 = vpop.f32.mrf.mxu0
      %v4844 = vadd.f32 %v4795, %v4843
      %v4845 = vpop.f32.mrf.mxu0
      %v4846 = vadd.f32 %v4797, %v4845
      %4847 = vmatmul.bf16.gmra.mxu0 %v2657
      %v4848 = vpop.f32.mrf.mxu0
      %v4849 = vadd.f32 %v4800, %v4848
      %v4850 = vpop.f32.mrf.mxu0
      %v4851 = vadd.f32 %v4802, %v4850
      %4852 = vmatmul.bf16.gmra.mxu0 %v2675
      %v4853 = vpop.f32.mrf.mxu0
      %v4854 = vadd.f32 %v4805, %v4853
      %v4855 = vpop.f32.mrf.mxu0
      %v4856 = vadd.f32 %v4807, %v4855
      %4857 = vmatmul.bf16.gmra.mxu0 %v2693
      %v4858 = vpop.f32.mrf.mxu0
      %v4859 = vadd.f32 %v4810, %v4858
      %v4860 = vpop.f32.mrf.mxu0
      %v4861 = vadd.f32 %v4812, %v4860
      %4862 = vmatmul.bf16.gmra.mxu0 %v2711
      %v4863 = vpop.f32.mrf.mxu0
      %v4864 = vadd.f32 %v4815, %v4863
      %v4865 = vpop.f32.mrf.mxu0
      %v4866 = vadd.f32 %v4817, %v4865
      %4867 = vmatmul.bf16.gmra.mxu0 %v2729
      %v4868 = vpop.f32.mrf.mxu0
      %v4869 = vadd.f32 %v4820, %v4868
      %v4870 = vpop.f32.mrf.mxu0
      %v4871 = vadd.f32 %v4822, %v4870
      %4872 = vmatmul.bf16.gmra.mxu0 %v2747
      %v4873 = vpop.f32.mrf.mxu0
      %v4874 = vadd.f32 %v4825, %v4873
      %v4875 = vpop.f32.mrf.mxu0
      %v4876 = vadd.f32 %v4827, %v4875
      %4877 = vdwg.mxu0
      %4878 = vmatpush.bf16.msra.mxu0 %v3953
      %4879 = vmatpush.bf16.msra.mxu0 %v3951
      %4880 = vmatpush.bf16.msra.mxu0 %v3949
      %4881 = vmatpush.bf16.msra.mxu0 %v3947
      %4882 = vmatpush.bf16.msra.mxu0 %v3945
      %4883 = vmatpush.bf16.msra.mxu0 %v3943
      %4884 = vmatpush.bf16.msra.mxu0 %v3941
      %4885 = vmatpush.bf16.msra.mxu0 %v3939
      %4886 = vmatmul.bf16.gmra.mxu0 %v2622
      %v4887 = vpop.f32.mrf.mxu0
      %v4888 = vadd.f32 %v4839, %v4887
      %v4889 = vpop.f32.mrf.mxu0
      %v4890 = vadd.f32 %v4841, %v4889
      %4891 = vmatmul.bf16.gmra.mxu0 %v2640
      %v4892 = vpop.f32.mrf.mxu0
      %v4893 = vadd.f32 %v4844, %v4892
      %v4894 = vpop.f32.mrf.mxu0
      %v4895 = vadd.f32 %v4846, %v4894
      %4896 = vmatmul.bf16.gmra.mxu0 %v2658
      %v4897 = vpop.f32.mrf.mxu0
      %v4898 = vadd.f32 %v4849, %v4897
      %v4899 = vpop.f32.mrf.mxu0
      %v4900 = vadd.f32 %v4851, %v4899
      %4901 = vmatmul.bf16.gmra.mxu0 %v2676
      %v4902 = vpop.f32.mrf.mxu0
      %v4903 = vadd.f32 %v4854, %v4902
      %v4904 = vpop.f32.mrf.mxu0
      %v4905 = vadd.f32 %v4856, %v4904
      %4906 = vmatmul.bf16.gmra.mxu0 %v2694
      %v4907 = vpop.f32.mrf.mxu0
      %v4908 = vadd.f32 %v4859, %v4907
      %v4909 = vpop.f32.mrf.mxu0
      %v4910 = vadd.f32 %v4861, %v4909
      %4911 = vmatmul.bf16.gmra.mxu0 %v2712
      %v4912 = vpop.f32.mrf.mxu0
      %v4913 = vadd.f32 %v4864, %v4912
      %v4914 = vpop.f32.mrf.mxu0
      %v4915 = vadd.f32 %v4866, %v4914
      %4916 = vmatmul.bf16.gmra.mxu0 %v2730
      %v4917 = vpop.f32.mrf.mxu0
      %v4918 = vadd.f32 %v4869, %v4917
      %v4919 = vpop.f32.mrf.mxu0
      %v4920 = vadd.f32 %v4871, %v4919
      %4921 = vmatmul.bf16.gmra.mxu0 %v2748
      %v4922 = vpop.f32.mrf.mxu0
      %v4923 = vadd.f32 %v4874, %v4922
      %v4924 = vpop.f32.mrf.mxu0
      %v4925 = vadd.f32 %v4876, %v4924
      %4926 = vdwg.mxu0
      %4927 = vmatpush.bf16.msra.mxu0 %v3969
      %4928 = vmatpush.bf16.msra.mxu0 %v3967
      %4929 = vmatpush.bf16.msra.mxu0 %v3965
      %4930 = vmatpush.bf16.msra.mxu0 %v3963
      %4931 = vmatpush.bf16.msra.mxu0 %v3961
      %4932 = vmatpush.bf16.msra.mxu0 %v3959
      %4933 = vmatpush.bf16.msra.mxu0 %v3957
      %4934 = vmatpush.bf16.msra.mxu0 %v3955
      %4935 = vmatmul.bf16.gmra.mxu0 %v2623
      %v4936 = vpop.f32.mrf.mxu0
      %v4937 = vadd.f32 %v4888, %v4936
      %v4938 = vpop.f32.mrf.mxu0
      %v4939 = vadd.f32 %v4890, %v4938
      %4940 = vmatmul.bf16.gmra.mxu0 %v2641
      %v4941 = vpop.f32.mrf.mxu0
      %v4942 = vadd.f32 %v4893, %v4941
      %v4943 = vpop.f32.mrf.mxu0
      %v4944 = vadd.f32 %v4895, %v4943
      %4945 = vmatmul.bf16.gmra.mxu0 %v2659
      %v4946 = vpop.f32.mrf.mxu0
      %v4947 = vadd.f32 %v4898, %v4946
      %v4948 = vpop.f32.mrf.mxu0
      %v4949 = vadd.f32 %v4900, %v4948
      %4950 = vmatmul.bf16.gmra.mxu0 %v2677
      %v4951 = vpop.f32.mrf.mxu0
      %v4952 = vadd.f32 %v4903, %v4951
      %v4953 = vpop.f32.mrf.mxu0
      %v4954 = vadd.f32 %v4905, %v4953
      %4955 = vmatmul.bf16.gmra.mxu0 %v2695
      %v4956 = vpop.f32.mrf.mxu0
      %v4957 = vadd.f32 %v4908, %v4956
      %v4958 = vpop.f32.mrf.mxu0
      %v4959 = vadd.f32 %v4910, %v4958
      %4960 = vmatmul.bf16.gmra.mxu0 %v2713
      %v4961 = vpop.f32.mrf.mxu0
      %v4962 = vadd.f32 %v4913, %v4961
      %v4963 = vpop.f32.mrf.mxu0
      %v4964 = vadd.f32 %v4915, %v4963
      %4965 = vmatmul.bf16.gmra.mxu0 %v2731
      %v4966 = vpop.f32.mrf.mxu0
      %v4967 = vadd.f32 %v4918, %v4966
      %v4968 = vpop.f32.mrf.mxu0
      %v4969 = vadd.f32 %v4920, %v4968
      %4970 = vmatmul.bf16.gmra.mxu0 %v2749
      %v4971 = vpop.f32.mrf.mxu0
      %v4972 = vadd.f32 %v4923, %v4971
      %v4973 = vpop.f32.mrf.mxu0
      %v4974 = vadd.f32 %v4925, %v4973
      %4975 = vdwg.mxu0
      %4976 = vmatpush.bf16.msra.mxu0 %v3985
      %4977 = vmatpush.bf16.msra.mxu0 %v3983
      %4978 = vmatpush.bf16.msra.mxu0 %v3981
      %4979 = vmatpush.bf16.msra.mxu0 %v3979
      %4980 = vmatpush.bf16.msra.mxu0 %v3977
      %4981 = vmatpush.bf16.msra.mxu0 %v3975
      %4982 = vmatpush.bf16.msra.mxu0 %v3973
      %4983 = vmatpush.bf16.msra.mxu0 %v3971
      %4984 = vmatmul.bf16.gmra.mxu0 %v2624
      %v4985 = vpop.f32.mrf.mxu0
      %v4986 = vadd.f32 %v4937, %v4985
      %v4987 = vpop.f32.mrf.mxu0
      %v4988 = vadd.f32 %v4939, %v4987
      %4989 = vmatmul.bf16.gmra.mxu0 %v2642
      %v4990 = vpop.f32.mrf.mxu0
      %v4991 = vadd.f32 %v4942, %v4990
      %v4992 = vpop.f32.mrf.mxu0
      %v4993 = vadd.f32 %v4944, %v4992
      %4994 = vmatmul.bf16.gmra.mxu0 %v2660
      %v4995 = vpop.f32.mrf.mxu0
      %v4996 = vadd.f32 %v4947, %v4995
      %v4997 = vpop.f32.mrf.mxu0
      %v4998 = vadd.f32 %v4949, %v4997
      %4999 = vmatmul.bf16.gmra.mxu0 %v2678
      %v5000 = vpop.f32.mrf.mxu0
      %v5001 = vadd.f32 %v4952, %v5000
      %v5002 = vpop.f32.mrf.mxu0
      %v5003 = vadd.f32 %v4954, %v5002
      %5004 = vmatmul.bf16.gmra.mxu0 %v2696
      %v5005 = vpop.f32.mrf.mxu0
      %v5006 = vadd.f32 %v4957, %v5005
      %v5007 = vpop.f32.mrf.mxu0
      %v5008 = vadd.f32 %v4959, %v5007
      %5009 = vmatmul.bf16.gmra.mxu0 %v2714
      %v5010 = vpop.f32.mrf.mxu0
      %v5011 = vadd.f32 %v4962, %v5010
      %v5012 = vpop.f32.mrf.mxu0
      %v5013 = vadd.f32 %v4964, %v5012
      %5014 = vmatmul.bf16.gmra.mxu0 %v2732
      %v5015 = vpop.f32.mrf.mxu0
      %v5016 = vadd.f32 %v4967, %v5015
      %v5017 = vpop.f32.mrf.mxu0
      %v5018 = vadd.f32 %v4969, %v5017
      %5019 = vmatmul.bf16.gmra.mxu0 %v2750
      %v5020 = vpop.f32.mrf.mxu0
      %v5021 = vadd.f32 %v4972, %v5020
      %v5022 = vpop.f32.mrf.mxu0
      %v5023 = vadd.f32 %v4974, %v5022
      %5024 = vdwg.mxu0
      %5025 = vmatpush.bf16.msra.mxu0 %v4001
      %5026 = vmatpush.bf16.msra.mxu0 %v3999
      %5027 = vmatpush.bf16.msra.mxu0 %v3997
      %5028 = vmatpush.bf16.msra.mxu0 %v3995
      %5029 = vmatpush.bf16.msra.mxu0 %v3993
      %5030 = vmatpush.bf16.msra.mxu0 %v3991
      %5031 = vmatpush.bf16.msra.mxu0 %v3989
      %5032 = vmatpush.bf16.msra.mxu0 %v3987
      %5033 = vmatmul.bf16.gmra.mxu0 %v2625
      %v5034 = vpop.f32.mrf.mxu0
      %v5035 = vadd.f32 %v4986, %v5034
      %v5036 = vpop.f32.mrf.mxu0
      %v5037 = vadd.f32 %v4988, %v5036
      %5038 = vmatmul.bf16.gmra.mxu0 %v2643
      %v5039 = vpop.f32.mrf.mxu0
      %v5040 = vadd.f32 %v4991, %v5039
      %v5041 = vpop.f32.mrf.mxu0
      %v5042 = vadd.f32 %v4993, %v5041
      %5043 = vmatmul.bf16.gmra.mxu0 %v2661
      %v5044 = vpop.f32.mrf.mxu0
      %v5045 = vadd.f32 %v4996, %v5044
      %v5046 = vpop.f32.mrf.mxu0
      %v5047 = vadd.f32 %v4998, %v5046
      %5048 = vmatmul.bf16.gmra.mxu0 %v2679
      %v5049 = vpop.f32.mrf.mxu0
      %v5050 = vadd.f32 %v5001, %v5049
      %v5051 = vpop.f32.mrf.mxu0
      %v5052 = vadd.f32 %v5003, %v5051
      %5053 = vmatmul.bf16.gmra.mxu0 %v2697
      %v5054 = vpop.f32.mrf.mxu0
      %v5055 = vadd.f32 %v5006, %v5054
      %v5056 = vpop.f32.mrf.mxu0
      %v5057 = vadd.f32 %v5008, %v5056
      %5058 = vmatmul.bf16.gmra.mxu0 %v2715
      %v5059 = vpop.f32.mrf.mxu0
      %v5060 = vadd.f32 %v5011, %v5059
      %v5061 = vpop.f32.mrf.mxu0
      %v5062 = vadd.f32 %v5013, %v5061
      %5063 = vmatmul.bf16.gmra.mxu0 %v2733
      %v5064 = vpop.f32.mrf.mxu0
      %v5065 = vadd.f32 %v5016, %v5064
      %v5066 = vpop.f32.mrf.mxu0
      %v5067 = vadd.f32 %v5018, %v5066
      %5068 = vmatmul.bf16.gmra.mxu0 %v2751
      %v5069 = vpop.f32.mrf.mxu0
      %v5070 = vadd.f32 %v5021, %v5069
      %v5071 = vpop.f32.mrf.mxu0
      %v5072 = vadd.f32 %v5023, %v5071
      %5073 = vdwg.mxu0
      %5074 = vmatpush.bf16.msra.mxu0 %v4017
      %5075 = vmatpush.bf16.msra.mxu0 %v4015
      %5076 = vmatpush.bf16.msra.mxu0 %v4013
      %5077 = vmatpush.bf16.msra.mxu0 %v4011
      %5078 = vmatpush.bf16.msra.mxu0 %v4009
      %5079 = vmatpush.bf16.msra.mxu0 %v4007
      %5080 = vmatpush.bf16.msra.mxu0 %v4005
      %5081 = vmatpush.bf16.msra.mxu0 %v4003
      %5082 = vmatmul.bf16.gmra.mxu0 %v2626
      %v5083 = vpop.f32.mrf.mxu0
      %v5084 = vadd.f32 %v5035, %v5083
      %v5085 = vpop.f32.mrf.mxu0
      %v5086 = vadd.f32 %v5037, %v5085
      %5087 = vmatmul.bf16.gmra.mxu0 %v2644
      %v5088 = vpop.f32.mrf.mxu0
      %v5089 = vadd.f32 %v5040, %v5088
      %v5090 = vpop.f32.mrf.mxu0
      %v5091 = vadd.f32 %v5042, %v5090
      %5092 = vmatmul.bf16.gmra.mxu0 %v2662
      %v5093 = vpop.f32.mrf.mxu0
      %v5094 = vadd.f32 %v5045, %v5093
      %v5095 = vpop.f32.mrf.mxu0
      %v5096 = vadd.f32 %v5047, %v5095
      %5097 = vmatmul.bf16.gmra.mxu0 %v2680
      %v5098 = vpop.f32.mrf.mxu0
      %v5099 = vadd.f32 %v5050, %v5098
      %v5100 = vpop.f32.mrf.mxu0
      %v5101 = vadd.f32 %v5052, %v5100
      %5102 = vmatmul.bf16.gmra.mxu0 %v2698
      %v5103 = vpop.f32.mrf.mxu0
      %v5104 = vadd.f32 %v5055, %v5103
      %v5105 = vpop.f32.mrf.mxu0
      %v5106 = vadd.f32 %v5057, %v5105
      %5107 = vmatmul.bf16.gmra.mxu0 %v2716
      %v5108 = vpop.f32.mrf.mxu0
      %v5109 = vadd.f32 %v5060, %v5108
      %v5110 = vpop.f32.mrf.mxu0
      %v5111 = vadd.f32 %v5062, %v5110
      %5112 = vmatmul.bf16.gmra.mxu0 %v2734
      %v5113 = vpop.f32.mrf.mxu0
      %v5114 = vadd.f32 %v5065, %v5113
      %v5115 = vpop.f32.mrf.mxu0
      %v5116 = vadd.f32 %v5067, %v5115
      %5117 = vmatmul.bf16.gmra.mxu0 %v2752
      %v5118 = vpop.f32.mrf.mxu0
      %v5119 = vadd.f32 %v5070, %v5118
      %v5120 = vpop.f32.mrf.mxu0
      %v5121 = vadd.f32 %v5072, %v5120
      %5122 = vdwg.mxu0
      %5123 = vmatpush.bf16.msra.mxu0 %v4033
      %5124 = vmatpush.bf16.msra.mxu0 %v4031
      %5125 = vmatpush.bf16.msra.mxu0 %v4029
      %5126 = vmatpush.bf16.msra.mxu0 %v4027
      %5127 = vmatpush.bf16.msra.mxu0 %v4025
      %5128 = vmatpush.bf16.msra.mxu0 %v4023
      %5129 = vmatpush.bf16.msra.mxu0 %v4021
      %5130 = vmatpush.bf16.msra.mxu0 %v4019
      %5131 = vmatmul.bf16.gmra.mxu0 %v2627
      %v5132 = vpop.f32.mrf.mxu0
      %v5133 = vadd.f32 %v5084, %v5132
      %v5134 = vpop.f32.mrf.mxu0
      %v5135 = vadd.f32 %v5086, %v5134
      %5136 = vmatmul.bf16.gmra.mxu0 %v2645
      %v5137 = vpop.f32.mrf.mxu0
      %v5138 = vadd.f32 %v5089, %v5137
      %v5139 = vpop.f32.mrf.mxu0
      %v5140 = vadd.f32 %v5091, %v5139
      %5141 = vmatmul.bf16.gmra.mxu0 %v2663
      %v5142 = vpop.f32.mrf.mxu0
      %v5143 = vadd.f32 %v5094, %v5142
      %v5144 = vpop.f32.mrf.mxu0
      %v5145 = vadd.f32 %v5096, %v5144
      %5146 = vmatmul.bf16.gmra.mxu0 %v2681
      %v5147 = vpop.f32.mrf.mxu0
      %v5148 = vadd.f32 %v5099, %v5147
      %v5149 = vpop.f32.mrf.mxu0
      %v5150 = vadd.f32 %v5101, %v5149
      %5151 = vmatmul.bf16.gmra.mxu0 %v2699
      %v5152 = vpop.f32.mrf.mxu0
      %v5153 = vadd.f32 %v5104, %v5152
      %v5154 = vpop.f32.mrf.mxu0
      %v5155 = vadd.f32 %v5106, %v5154
      %5156 = vmatmul.bf16.gmra.mxu0 %v2717
      %v5157 = vpop.f32.mrf.mxu0
      %v5158 = vadd.f32 %v5109, %v5157
      %v5159 = vpop.f32.mrf.mxu0
      %v5160 = vadd.f32 %v5111, %v5159
      %5161 = vmatmul.bf16.gmra.mxu0 %v2735
      %v5162 = vpop.f32.mrf.mxu0
      %v5163 = vadd.f32 %v5114, %v5162
      %v5164 = vpop.f32.mrf.mxu0
      %v5165 = vadd.f32 %v5116, %v5164
      %5166 = vmatmul.bf16.gmra.mxu0 %v2753
      %v5167 = vpop.f32.mrf.mxu0
      %v5168 = vadd.f32 %v5119, %v5167
      %v5169 = vpop.f32.mrf.mxu0
      %v5170 = vadd.f32 %v5121, %v5169
      %5171 = vdwg.mxu0
      %5172 = vmatpush.bf16.msra.mxu0 %v4049
      %5173 = vmatpush.bf16.msra.mxu0 %v4047
      %5174 = vmatpush.bf16.msra.mxu0 %v4045
      %5175 = vmatpush.bf16.msra.mxu0 %v4043
      %5176 = vmatpush.bf16.msra.mxu0 %v4041
      %5177 = vmatpush.bf16.msra.mxu0 %v4039
      %5178 = vmatpush.bf16.msra.mxu0 %v4037
      %5179 = vmatpush.bf16.msra.mxu0 %v4035
      %5180 = vmatmul.bf16.gmra.mxu0 %v2628
      %v5181 = vpop.f32.mrf.mxu0
      %v5182 = vadd.f32 %v5133, %v5181
      %v5183 = vpop.f32.mrf.mxu0
      %v5184 = vadd.f32 %v5135, %v5183
      %5185 = vmatmul.bf16.gmra.mxu0 %v2646
      %v5186 = vpop.f32.mrf.mxu0
      %v5187 = vadd.f32 %v5138, %v5186
      %v5188 = vpop.f32.mrf.mxu0
      %v5189 = vadd.f32 %v5140, %v5188
      %5190 = vmatmul.bf16.gmra.mxu0 %v2664
      %v5191 = vpop.f32.mrf.mxu0
      %v5192 = vadd.f32 %v5143, %v5191
      %v5193 = vpop.f32.mrf.mxu0
      %v5194 = vadd.f32 %v5145, %v5193
      %5195 = vmatmul.bf16.gmra.mxu0 %v2682
      %v5196 = vpop.f32.mrf.mxu0
      %v5197 = vadd.f32 %v5148, %v5196
      %v5198 = vpop.f32.mrf.mxu0
      %v5199 = vadd.f32 %v5150, %v5198
      %5200 = vmatmul.bf16.gmra.mxu0 %v2700
      %v5201 = vpop.f32.mrf.mxu0
      %v5202 = vadd.f32 %v5153, %v5201
      %v5203 = vpop.f32.mrf.mxu0
      %v5204 = vadd.f32 %v5155, %v5203
      %5205 = vmatmul.bf16.gmra.mxu0 %v2718
      %v5206 = vpop.f32.mrf.mxu0
      %v5207 = vadd.f32 %v5158, %v5206
      %v5208 = vpop.f32.mrf.mxu0
      %v5209 = vadd.f32 %v5160, %v5208
      %5210 = vmatmul.bf16.gmra.mxu0 %v2736
      %v5211 = vpop.f32.mrf.mxu0
      %v5212 = vadd.f32 %v5163, %v5211
      %v5213 = vpop.f32.mrf.mxu0
      %v5214 = vadd.f32 %v5165, %v5213
      %5215 = vmatmul.bf16.gmra.mxu0 %v2754
      %v5216 = vpop.f32.mrf.mxu0
      %v5217 = vadd.f32 %v5168, %v5216
      %v5218 = vpop.f32.mrf.mxu0
      %v5219 = vadd.f32 %v5170, %v5218
      %5220 = vdwg.mxu0
      %5221 = vmatpush.bf16.msra.mxu0 %v3778
      %5222 = vmatpush.bf16.msra.mxu0 %v3776
      %5223 = vmatpush.bf16.msra.mxu0 %v3774
      %5224 = vmatpush.bf16.msra.mxu0 %v3772
      %5225 = vmatpush.bf16.msra.mxu0 %v3770
      %5226 = vmatpush.bf16.msra.mxu0 %v3768
      %5227 = vmatpush.bf16.msra.mxu0 %v3766
      %5228 = vmatpush.bf16.msra.mxu0 %v3764
      %5229 = vmatmul.bf16.gmra.mxu0 %v2611
      %v5230 = vpop.f32.mrf.mxu0
      %v5231 = vadd.f32 0.0, %v5230
      %v5232 = vpop.f32.mrf.mxu0
      %v5233 = vadd.f32 0.0, %v5232
      %5234 = vmatmul.bf16.gmra.mxu0 %v2629
      %v5235 = vpop.f32.mrf.mxu0
      %v5236 = vadd.f32 0.0, %v5235
      %v5237 = vpop.f32.mrf.mxu0
      %v5238 = vadd.f32 0.0, %v5237
      %5239 = vmatmul.bf16.gmra.mxu0 %v2647
      %v5240 = vpop.f32.mrf.mxu0
      %v5241 = vadd.f32 0.0, %v5240
      %v5242 = vpop.f32.mrf.mxu0
      %v5243 = vadd.f32 0.0, %v5242
      %5244 = vmatmul.bf16.gmra.mxu0 %v2665
      %v5245 = vpop.f32.mrf.mxu0
      %v5246 = vadd.f32 0.0, %v5245
      %v5247 = vpop.f32.mrf.mxu0
      %v5248 = vadd.f32 0.0, %v5247
      %5249 = vmatmul.bf16.gmra.mxu0 %v2683
      %v5250 = vpop.f32.mrf.mxu0
      %v5251 = vadd.f32 0.0, %v5250
      %v5252 = vpop.f32.mrf.mxu0
      %v5253 = vadd.f32 0.0, %v5252
      %5254 = vmatmul.bf16.gmra.mxu0 %v2701
      %v5255 = vpop.f32.mrf.mxu0
      %v5256 = vadd.f32 0.0, %v5255
      %v5257 = vpop.f32.mrf.mxu0
      %v5258 = vadd.f32 0.0, %v5257
      %5259 = vmatmul.bf16.gmra.mxu0 %v2719
      %v5260 = vpop.f32.mrf.mxu0
      %v5261 = vadd.f32 0.0, %v5260
      %v5262 = vpop.f32.mrf.mxu0
      %v5263 = vadd.f32 0.0, %v5262
      %5264 = vmatmul.bf16.gmra.mxu0 %v2737
      %v5265 = vpop.f32.mrf.mxu0
      %v5266 = vadd.f32 0.0, %v5265
      %v5267 = vpop.f32.mrf.mxu0
      %v5268 = vadd.f32 0.0, %v5267
      %5269 = vdwg.mxu0
      %5270 = vmatpush.bf16.msra.mxu0 %v3794
      %5271 = vmatpush.bf16.msra.mxu0 %v3792
      %5272 = vmatpush.bf16.msra.mxu0 %v3790
      %5273 = vmatpush.bf16.msra.mxu0 %v3788
      %5274 = vmatpush.bf16.msra.mxu0 %v3786
      %5275 = vmatpush.bf16.msra.mxu0 %v3784
      %5276 = vmatpush.bf16.msra.mxu0 %v3782
      %5277 = vmatpush.bf16.msra.mxu0 %v3780
      %5278 = vmatmul.bf16.gmra.mxu0 %v2612
      %v5279 = vpop.f32.mrf.mxu0
      %v5280 = vadd.f32 %v5231, %v5279
      %v5281 = vpop.f32.mrf.mxu0
      %v5282 = vadd.f32 %v5233, %v5281
      %5283 = vmatmul.bf16.gmra.mxu0 %v2630
      %v5284 = vpop.f32.mrf.mxu0
      %v5285 = vadd.f32 %v5236, %v5284
      %v5286 = vpop.f32.mrf.mxu0
      %v5287 = vadd.f32 %v5238, %v5286
      %5288 = vmatmul.bf16.gmra.mxu0 %v2648
      %v5289 = vpop.f32.mrf.mxu0
      %v5290 = vadd.f32 %v5241, %v5289
      %v5291 = vpop.f32.mrf.mxu0
      %v5292 = vadd.f32 %v5243, %v5291
      %5293 = vmatmul.bf16.gmra.mxu0 %v2666
      %v5294 = vpop.f32.mrf.mxu0
      %v5295 = vadd.f32 %v5246, %v5294
      %v5296 = vpop.f32.mrf.mxu0
      %v5297 = vadd.f32 %v5248, %v5296
      %5298 = vmatmul.bf16.gmra.mxu0 %v2684
      %v5299 = vpop.f32.mrf.mxu0
      %v5300 = vadd.f32 %v5251, %v5299
      %v5301 = vpop.f32.mrf.mxu0
      %v5302 = vadd.f32 %v5253, %v5301
      %5303 = vmatmul.bf16.gmra.mxu0 %v2702
      %v5304 = vpop.f32.mrf.mxu0
      %v5305 = vadd.f32 %v5256, %v5304
      %v5306 = vpop.f32.mrf.mxu0
      %v5307 = vadd.f32 %v5258, %v5306
      %5308 = vmatmul.bf16.gmra.mxu0 %v2720
      %v5309 = vpop.f32.mrf.mxu0
      %v5310 = vadd.f32 %v5261, %v5309
      %v5311 = vpop.f32.mrf.mxu0
      %v5312 = vadd.f32 %v5263, %v5311
      %5313 = vmatmul.bf16.gmra.mxu0 %v2738
      %v5314 = vpop.f32.mrf.mxu0
      %v5315 = vadd.f32 %v5266, %v5314
      %v5316 = vpop.f32.mrf.mxu0
      %v5317 = vadd.f32 %v5268, %v5316
      %5318 = vdwg.mxu0
      %5319 = vmatpush.bf16.msra.mxu0 %v3810
      %5320 = vmatpush.bf16.msra.mxu0 %v3808
      %5321 = vmatpush.bf16.msra.mxu0 %v3806
      %5322 = vmatpush.bf16.msra.mxu0 %v3804
      %5323 = vmatpush.bf16.msra.mxu0 %v3802
      %5324 = vmatpush.bf16.msra.mxu0 %v3800
      %5325 = vmatpush.bf16.msra.mxu0 %v3798
      %5326 = vmatpush.bf16.msra.mxu0 %v3796
      %5327 = vmatmul.bf16.gmra.mxu0 %v2613
      %v5328 = vpop.f32.mrf.mxu0
      %v5329 = vadd.f32 %v5280, %v5328
      %v5330 = vpop.f32.mrf.mxu0
      %v5331 = vadd.f32 %v5282, %v5330
      %5332 = vmatmul.bf16.gmra.mxu0 %v2631
      %v5333 = vpop.f32.mrf.mxu0
      %v5334 = vadd.f32 %v5285, %v5333
      %v5335 = vpop.f32.mrf.mxu0
      %v5336 = vadd.f32 %v5287, %v5335
      %5337 = vmatmul.bf16.gmra.mxu0 %v2649
      %v5338 = vpop.f32.mrf.mxu0
      %v5339 = vadd.f32 %v5290, %v5338
      %v5340 = vpop.f32.mrf.mxu0
      %v5341 = vadd.f32 %v5292, %v5340
      %5342 = vmatmul.bf16.gmra.mxu0 %v2667
      %v5343 = vpop.f32.mrf.mxu0
      %v5344 = vadd.f32 %v5295, %v5343
      %v5345 = vpop.f32.mrf.mxu0
      %v5346 = vadd.f32 %v5297, %v5345
      %5347 = vmatmul.bf16.gmra.mxu0 %v2685
      %v5348 = vpop.f32.mrf.mxu0
      %v5349 = vadd.f32 %v5300, %v5348
      %v5350 = vpop.f32.mrf.mxu0
      %v5351 = vadd.f32 %v5302, %v5350
      %5352 = vmatmul.bf16.gmra.mxu0 %v2703
      %v5353 = vpop.f32.mrf.mxu0
      %v5354 = vadd.f32 %v5305, %v5353
      %v5355 = vpop.f32.mrf.mxu0
      %v5356 = vadd.f32 %v5307, %v5355
      %5357 = vmatmul.bf16.gmra.mxu0 %v2721
      %v5358 = vpop.f32.mrf.mxu0
      %v5359 = vadd.f32 %v5310, %v5358
      %v5360 = vpop.f32.mrf.mxu0
      %v5361 = vadd.f32 %v5312, %v5360
      %5362 = vmatmul.bf16.gmra.mxu0 %v2739
      %v5363 = vpop.f32.mrf.mxu0
      %v5364 = vadd.f32 %v5315, %v5363
      %v5365 = vpop.f32.mrf.mxu0
      %v5366 = vadd.f32 %v5317, %v5365
      %5367 = vdwg.mxu0
      %5368 = vmatpush.bf16.msra.mxu0 %v3826
      %5369 = vmatpush.bf16.msra.mxu0 %v3824
      %5370 = vmatpush.bf16.msra.mxu0 %v3822
      %5371 = vmatpush.bf16.msra.mxu0 %v3820
      %5372 = vmatpush.bf16.msra.mxu0 %v3818
      %5373 = vmatpush.bf16.msra.mxu0 %v3816
      %5374 = vmatpush.bf16.msra.mxu0 %v3814
      %5375 = vmatpush.bf16.msra.mxu0 %v3812
      %5376 = vmatmul.bf16.gmra.mxu0 %v2614
      %v5377 = vpop.f32.mrf.mxu0
      %v5378 = vadd.f32 %v5329, %v5377
      %v5379 = vpop.f32.mrf.mxu0
      %v5380 = vadd.f32 %v5331, %v5379
      %5381 = vmatmul.bf16.gmra.mxu0 %v2632
      %v5382 = vpop.f32.mrf.mxu0
      %v5383 = vadd.f32 %v5334, %v5382
      %v5384 = vpop.f32.mrf.mxu0
      %v5385 = vadd.f32 %v5336, %v5384
      %5386 = vmatmul.bf16.gmra.mxu0 %v2650
      %v5387 = vpop.f32.mrf.mxu0
      %v5388 = vadd.f32 %v5339, %v5387
      %v5389 = vpop.f32.mrf.mxu0
      %v5390 = vadd.f32 %v5341, %v5389
      %5391 = vmatmul.bf16.gmra.mxu0 %v2668
      %v5392 = vpop.f32.mrf.mxu0
      %v5393 = vadd.f32 %v5344, %v5392
      %v5394 = vpop.f32.mrf.mxu0
      %v5395 = vadd.f32 %v5346, %v5394
      %5396 = vmatmul.bf16.gmra.mxu0 %v2686
      %v5397 = vpop.f32.mrf.mxu0
      %v5398 = vadd.f32 %v5349, %v5397
      %v5399 = vpop.f32.mrf.mxu0
      %v5400 = vadd.f32 %v5351, %v5399
      %5401 = vmatmul.bf16.gmra.mxu0 %v2704
      %v5402 = vpop.f32.mrf.mxu0
      %v5403 = vadd.f32 %v5354, %v5402
      %v5404 = vpop.f32.mrf.mxu0
      %v5405 = vadd.f32 %v5356, %v5404
      %5406 = vmatmul.bf16.gmra.mxu0 %v2722
      %v5407 = vpop.f32.mrf.mxu0
      %v5408 = vadd.f32 %v5359, %v5407
      %v5409 = vpop.f32.mrf.mxu0
      %v5410 = vadd.f32 %v5361, %v5409
      %5411 = vmatmul.bf16.gmra.mxu0 %v2740
      %v5412 = vpop.f32.mrf.mxu0
      %v5413 = vadd.f32 %v5364, %v5412
      %v5414 = vpop.f32.mrf.mxu0
      %v5415 = vadd.f32 %v5366, %v5414
      %5416 = vdwg.mxu0
      %5417 = vmatpush.bf16.msra.mxu0 %v3842
      %5418 = vmatpush.bf16.msra.mxu0 %v3840
      %5419 = vmatpush.bf16.msra.mxu0 %v3838
      %5420 = vmatpush.bf16.msra.mxu0 %v3836
      %5421 = vmatpush.bf16.msra.mxu0 %v3834
      %5422 = vmatpush.bf16.msra.mxu0 %v3832
      %5423 = vmatpush.bf16.msra.mxu0 %v3830
      %5424 = vmatpush.bf16.msra.mxu0 %v3828
      %5425 = vmatmul.bf16.gmra.mxu0 %v2615
      %v5426 = vpop.f32.mrf.mxu0
      %v5427 = vadd.f32 %v5378, %v5426
      %v5428 = vpop.f32.mrf.mxu0
      %v5429 = vadd.f32 %v5380, %v5428
      %5430 = vmatmul.bf16.gmra.mxu0 %v2633
      %v5431 = vpop.f32.mrf.mxu0
      %v5432 = vadd.f32 %v5383, %v5431
      %v5433 = vpop.f32.mrf.mxu0
      %v5434 = vadd.f32 %v5385, %v5433
      %5435 = vmatmul.bf16.gmra.mxu0 %v2651
      %v5436 = vpop.f32.mrf.mxu0
      %v5437 = vadd.f32 %v5388, %v5436
      %v5438 = vpop.f32.mrf.mxu0
      %v5439 = vadd.f32 %v5390, %v5438
      %5440 = vmatmul.bf16.gmra.mxu0 %v2669
      %v5441 = vpop.f32.mrf.mxu0
      %v5442 = vadd.f32 %v5393, %v5441
      %v5443 = vpop.f32.mrf.mxu0
      %v5444 = vadd.f32 %v5395, %v5443
      %5445 = vmatmul.bf16.gmra.mxu0 %v2687
      %v5446 = vpop.f32.mrf.mxu0
      %v5447 = vadd.f32 %v5398, %v5446
      %v5448 = vpop.f32.mrf.mxu0
      %v5449 = vadd.f32 %v5400, %v5448
      %5450 = vmatmul.bf16.gmra.mxu0 %v2705
      %v5451 = vpop.f32.mrf.mxu0
      %v5452 = vadd.f32 %v5403, %v5451
      %v5453 = vpop.f32.mrf.mxu0
      %v5454 = vadd.f32 %v5405, %v5453
      %5455 = vmatmul.bf16.gmra.mxu0 %v2723
      %v5456 = vpop.f32.mrf.mxu0
      %v5457 = vadd.f32 %v5408, %v5456
      %v5458 = vpop.f32.mrf.mxu0
      %v5459 = vadd.f32 %v5410, %v5458
      %5460 = vmatmul.bf16.gmra.mxu0 %v2741
      %v5461 = vpop.f32.mrf.mxu0
      %v5462 = vadd.f32 %v5413, %v5461
      %v5463 = vpop.f32.mrf.mxu0
      %v5464 = vadd.f32 %v5415, %v5463
      %5465 = vdwg.mxu0
      %5466 = vmatpush.bf16.msra.mxu0 %v3858
      %5467 = vmatpush.bf16.msra.mxu0 %v3856
      %5468 = vmatpush.bf16.msra.mxu0 %v3854
      %5469 = vmatpush.bf16.msra.mxu0 %v3852
      %5470 = vmatpush.bf16.msra.mxu0 %v3850
      %5471 = vmatpush.bf16.msra.mxu0 %v3848
      %5472 = vmatpush.bf16.msra.mxu0 %v3846
      %5473 = vmatpush.bf16.msra.mxu0 %v3844
      %5474 = vmatmul.bf16.gmra.mxu0 %v2616
      %v5475 = vpop.f32.mrf.mxu0
      %v5476 = vadd.f32 %v5427, %v5475
      %v5477 = vpop.f32.mrf.mxu0
      %v5478 = vadd.f32 %v5429, %v5477
      %5479 = vmatmul.bf16.gmra.mxu0 %v2634
      %v5480 = vpop.f32.mrf.mxu0
      %v5481 = vadd.f32 %v5432, %v5480
      %v5482 = vpop.f32.mrf.mxu0
      %v5483 = vadd.f32 %v5434, %v5482
      %5484 = vmatmul.bf16.gmra.mxu0 %v2652
      %v5485 = vpop.f32.mrf.mxu0
      %v5486 = vadd.f32 %v5437, %v5485
      %v5487 = vpop.f32.mrf.mxu0
      %v5488 = vadd.f32 %v5439, %v5487
      %5489 = vmatmul.bf16.gmra.mxu0 %v2670
      %v5490 = vpop.f32.mrf.mxu0
      %v5491 = vadd.f32 %v5442, %v5490
      %v5492 = vpop.f32.mrf.mxu0
      %v5493 = vadd.f32 %v5444, %v5492
      %5494 = vmatmul.bf16.gmra.mxu0 %v2688
      %v5495 = vpop.f32.mrf.mxu0
      %v5496 = vadd.f32 %v5447, %v5495
      %v5497 = vpop.f32.mrf.mxu0
      %v5498 = vadd.f32 %v5449, %v5497
      %5499 = vmatmul.bf16.gmra.mxu0 %v2706
      %v5500 = vpop.f32.mrf.mxu0
      %v5501 = vadd.f32 %v5452, %v5500
      %v5502 = vpop.f32.mrf.mxu0
      %v5503 = vadd.f32 %v5454, %v5502
      %5504 = vmatmul.bf16.gmra.mxu0 %v2724
      %v5505 = vpop.f32.mrf.mxu0
      %v5506 = vadd.f32 %v5457, %v5505
      %v5507 = vpop.f32.mrf.mxu0
      %v5508 = vadd.f32 %v5459, %v5507
      %5509 = vmatmul.bf16.gmra.mxu0 %v2742
      %v5510 = vpop.f32.mrf.mxu0
      %v5511 = vadd.f32 %v5462, %v5510
      %v5512 = vpop.f32.mrf.mxu0
      %v5513 = vadd.f32 %v5464, %v5512
      %5514 = vdwg.mxu0
      %5515 = vmatpush.bf16.msra.mxu0 %v3874
      %5516 = vmatpush.bf16.msra.mxu0 %v3872
      %5517 = vmatpush.bf16.msra.mxu0 %v3870
      %5518 = vmatpush.bf16.msra.mxu0 %v3868
      %5519 = vmatpush.bf16.msra.mxu0 %v3866
      %5520 = vmatpush.bf16.msra.mxu0 %v3864
      %5521 = vmatpush.bf16.msra.mxu0 %v3862
      %5522 = vmatpush.bf16.msra.mxu0 %v3860
      %5523 = vmatmul.bf16.gmra.mxu0 %v2617
      %v5524 = vpop.f32.mrf.mxu0
      %v5525 = vadd.f32 %v5476, %v5524
      %v5526 = vpop.f32.mrf.mxu0
      %v5527 = vadd.f32 %v5478, %v5526
      %5528 = vmatmul.bf16.gmra.mxu0 %v2635
      %v5529 = vpop.f32.mrf.mxu0
      %v5530 = vadd.f32 %v5481, %v5529
      %v5531 = vpop.f32.mrf.mxu0
      %v5532 = vadd.f32 %v5483, %v5531
      %5533 = vmatmul.bf16.gmra.mxu0 %v2653
      %v5534 = vpop.f32.mrf.mxu0
      %v5535 = vadd.f32 %v5486, %v5534
      %v5536 = vpop.f32.mrf.mxu0
      %v5537 = vadd.f32 %v5488, %v5536
      %5538 = vmatmul.bf16.gmra.mxu0 %v2671
      %v5539 = vpop.f32.mrf.mxu0
      %v5540 = vadd.f32 %v5491, %v5539
      %v5541 = vpop.f32.mrf.mxu0
      %v5542 = vadd.f32 %v5493, %v5541
      %5543 = vmatmul.bf16.gmra.mxu0 %v2689
      %v5544 = vpop.f32.mrf.mxu0
      %v5545 = vadd.f32 %v5496, %v5544
      %v5546 = vpop.f32.mrf.mxu0
      %v5547 = vadd.f32 %v5498, %v5546
      %5548 = vmatmul.bf16.gmra.mxu0 %v2707
      %v5549 = vpop.f32.mrf.mxu0
      %v5550 = vadd.f32 %v5501, %v5549
      %v5551 = vpop.f32.mrf.mxu0
      %v5552 = vadd.f32 %v5503, %v5551
      %5553 = vmatmul.bf16.gmra.mxu0 %v2725
      %v5554 = vpop.f32.mrf.mxu0
      %v5555 = vadd.f32 %v5506, %v5554
      %v5556 = vpop.f32.mrf.mxu0
      %v5557 = vadd.f32 %v5508, %v5556
      %5558 = vmatmul.bf16.gmra.mxu0 %v2743
      %v5559 = vpop.f32.mrf.mxu0
      %v5560 = vadd.f32 %v5511, %v5559
      %v5561 = vpop.f32.mrf.mxu0
      %v5562 = vadd.f32 %v5513, %v5561
      %5563 = vdwg.mxu0
      %5564 = vmatpush.bf16.msra.mxu0 %v3890
      %5565 = vmatpush.bf16.msra.mxu0 %v3888
      %5566 = vmatpush.bf16.msra.mxu0 %v3886
      %5567 = vmatpush.bf16.msra.mxu0 %v3884
      %5568 = vmatpush.bf16.msra.mxu0 %v3882
      %5569 = vmatpush.bf16.msra.mxu0 %v3880
      %5570 = vmatpush.bf16.msra.mxu0 %v3878
      %5571 = vmatpush.bf16.msra.mxu0 %v3876
      %5572 = vmatmul.bf16.gmra.mxu0 %v2618
      %v5573 = vpop.f32.mrf.mxu0
      %v5574 = vadd.f32 %v5525, %v5573
      %v5575 = vpop.f32.mrf.mxu0
      %v5576 = vadd.f32 %v5527, %v5575
      %5577 = vmatmul.bf16.gmra.mxu0 %v2636
      %v5578 = vpop.f32.mrf.mxu0
      %v5579 = vadd.f32 %v5530, %v5578
      %v5580 = vpop.f32.mrf.mxu0
      %v5581 = vadd.f32 %v5532, %v5580
      %5582 = vmatmul.bf16.gmra.mxu0 %v2654
      %v5583 = vpop.f32.mrf.mxu0
      %v5584 = vadd.f32 %v5535, %v5583
      %v5585 = vpop.f32.mrf.mxu0
      %v5586 = vadd.f32 %v5537, %v5585
      %5587 = vmatmul.bf16.gmra.mxu0 %v2672
      %v5588 = vpop.f32.mrf.mxu0
      %v5589 = vadd.f32 %v5540, %v5588
      %v5590 = vpop.f32.mrf.mxu0
      %v5591 = vadd.f32 %v5542, %v5590
      %5592 = vmatmul.bf16.gmra.mxu0 %v2690
      %v5593 = vpop.f32.mrf.mxu0
      %v5594 = vadd.f32 %v5545, %v5593
      %v5595 = vpop.f32.mrf.mxu0
      %v5596 = vadd.f32 %v5547, %v5595
      %5597 = vmatmul.bf16.gmra.mxu0 %v2708
      %v5598 = vpop.f32.mrf.mxu0
      %v5599 = vadd.f32 %v5550, %v5598
      %v5600 = vpop.f32.mrf.mxu0
      %v5601 = vadd.f32 %v5552, %v5600
      %5602 = vmatmul.bf16.gmra.mxu0 %v2726
      %v5603 = vpop.f32.mrf.mxu0
      %v5604 = vadd.f32 %v5555, %v5603
      %v5605 = vpop.f32.mrf.mxu0
      %v5606 = vadd.f32 %v5557, %v5605
      %5607 = vmatmul.bf16.gmra.mxu0 %v2744
      %v5608 = vpop.f32.mrf.mxu0
      %v5609 = vadd.f32 %v5560, %v5608
      %v5610 = vpop.f32.mrf.mxu0
      %v5611 = vadd.f32 %v5562, %v5610
      %5612 = vdwg.mxu0
      %5613 = vmatpush.bf16.msra.mxu0 %v3906
      %5614 = vmatpush.bf16.msra.mxu0 %v3904
      %5615 = vmatpush.bf16.msra.mxu0 %v3902
      %5616 = vmatpush.bf16.msra.mxu0 %v3900
      %5617 = vmatpush.bf16.msra.mxu0 %v3898
      %5618 = vmatpush.bf16.msra.mxu0 %v3896
      %5619 = vmatpush.bf16.msra.mxu0 %v3894
      %5620 = vmatpush.bf16.msra.mxu0 %v3892
      %5621 = vmatmul.bf16.gmra.mxu0 %v2619
      %v5622 = vpop.f32.mrf.mxu0
      %v5623 = vadd.f32 %v5574, %v5622
      %v5624 = vpop.f32.mrf.mxu0
      %v5625 = vadd.f32 %v5576, %v5624
      %5626 = vmatmul.bf16.gmra.mxu0 %v2637
      %v5627 = vpop.f32.mrf.mxu0
      %v5628 = vadd.f32 %v5579, %v5627
      %v5629 = vpop.f32.mrf.mxu0
      %v5630 = vadd.f32 %v5581, %v5629
      %5631 = vmatmul.bf16.gmra.mxu0 %v2655
      %v5632 = vpop.f32.mrf.mxu0
      %v5633 = vadd.f32 %v5584, %v5632
      %v5634 = vpop.f32.mrf.mxu0
      %v5635 = vadd.f32 %v5586, %v5634
      %5636 = vmatmul.bf16.gmra.mxu0 %v2673
      %v5637 = vpop.f32.mrf.mxu0
      %v5638 = vadd.f32 %v5589, %v5637
      %v5639 = vpop.f32.mrf.mxu0
      %v5640 = vadd.f32 %v5591, %v5639
      %5641 = vmatmul.bf16.gmra.mxu0 %v2691
      %v5642 = vpop.f32.mrf.mxu0
      %v5643 = vadd.f32 %v5594, %v5642
      %v5644 = vpop.f32.mrf.mxu0
      %v5645 = vadd.f32 %v5596, %v5644
      %5646 = vmatmul.bf16.gmra.mxu0 %v2709
      %v5647 = vpop.f32.mrf.mxu0
      %v5648 = vadd.f32 %v5599, %v5647
      %v5649 = vpop.f32.mrf.mxu0
      %v5650 = vadd.f32 %v5601, %v5649
      %5651 = vmatmul.bf16.gmra.mxu0 %v2727
      %v5652 = vpop.f32.mrf.mxu0
      %v5653 = vadd.f32 %v5604, %v5652
      %v5654 = vpop.f32.mrf.mxu0
      %v5655 = vadd.f32 %v5606, %v5654
      %5656 = vmatmul.bf16.gmra.mxu0 %v2745
      %v5657 = vpop.f32.mrf.mxu0
      %v5658 = vadd.f32 %v5609, %v5657
      %v5659 = vpop.f32.mrf.mxu0
      %v5660 = vadd.f32 %v5611, %v5659
      %5661 = vdwg.mxu0
      %5662 = vmatpush.bf16.msra.mxu0 %v3922
      %5663 = vmatpush.bf16.msra.mxu0 %v3920
      %5664 = vmatpush.bf16.msra.mxu0 %v3918
      %5665 = vmatpush.bf16.msra.mxu0 %v3916
      %5666 = vmatpush.bf16.msra.mxu0 %v3914
      %5667 = vmatpush.bf16.msra.mxu0 %v3912
      %5668 = vmatpush.bf16.msra.mxu0 %v3910
      %5669 = vmatpush.bf16.msra.mxu0 %v3908
      %5670 = vmatmul.bf16.gmra.mxu0 %v2620
      %v5671 = vpop.f32.mrf.mxu0
      %v5672 = vadd.f32 %v5623, %v5671
      %v5673 = vpop.f32.mrf.mxu0
      %v5674 = vadd.f32 %v5625, %v5673
      %5675 = vmatmul.bf16.gmra.mxu0 %v2638
      %v5676 = vpop.f32.mrf.mxu0
      %v5677 = vadd.f32 %v5628, %v5676
      %v5678 = vpop.f32.mrf.mxu0
      %v5679 = vadd.f32 %v5630, %v5678
      %5680 = vmatmul.bf16.gmra.mxu0 %v2656
      %v5681 = vpop.f32.mrf.mxu0
      %v5682 = vadd.f32 %v5633, %v5681
      %v5683 = vpop.f32.mrf.mxu0
      %v5684 = vadd.f32 %v5635, %v5683
      %5685 = vmatmul.bf16.gmra.mxu0 %v2674
      %v5686 = vpop.f32.mrf.mxu0
      %v5687 = vadd.f32 %v5638, %v5686
      %v5688 = vpop.f32.mrf.mxu0
      %v5689 = vadd.f32 %v5640, %v5688
      %5690 = vmatmul.bf16.gmra.mxu0 %v2692
      %v5691 = vpop.f32.mrf.mxu0
      %v5692 = vadd.f32 %v5643, %v5691
      %v5693 = vpop.f32.mrf.mxu0
      %v5694 = vadd.f32 %v5645, %v5693
      %5695 = vmatmul.bf16.gmra.mxu0 %v2710
      %v5696 = vpop.f32.mrf.mxu0
      %v5697 = vadd.f32 %v5648, %v5696
      %v5698 = vpop.f32.mrf.mxu0
      %v5699 = vadd.f32 %v5650, %v5698
      %5700 = vmatmul.bf16.gmra.mxu0 %v2728
      %v5701 = vpop.f32.mrf.mxu0
      %v5702 = vadd.f32 %v5653, %v5701
      %v5703 = vpop.f32.mrf.mxu0
      %v5704 = vadd.f32 %v5655, %v5703
      %5705 = vmatmul.bf16.gmra.mxu0 %v2746
      %v5706 = vpop.f32.mrf.mxu0
      %v5707 = vadd.f32 %v5658, %v5706
      %v5708 = vpop.f32.mrf.mxu0
      %v5709 = vadd.f32 %v5660, %v5708
      %5710 = vdwg.mxu0
      %5711 = vmatpush.bf16.msra.mxu0 %v3938
      %5712 = vmatpush.bf16.msra.mxu0 %v3936
      %5713 = vmatpush.bf16.msra.mxu0 %v3934
      %5714 = vmatpush.bf16.msra.mxu0 %v3932
      %5715 = vmatpush.bf16.msra.mxu0 %v3930
      %5716 = vmatpush.bf16.msra.mxu0 %v3928
      %5717 = vmatpush.bf16.msra.mxu0 %v3926
      %5718 = vmatpush.bf16.msra.mxu0 %v3924
      %5719 = vmatmul.bf16.gmra.mxu0 %v2621
      %v5720 = vpop.f32.mrf.mxu0
      %v5721 = vadd.f32 %v5672, %v5720
      %v5722 = vpop.f32.mrf.mxu0
      %v5723 = vadd.f32 %v5674, %v5722
      %5724 = vmatmul.bf16.gmra.mxu0 %v2639
      %v5725 = vpop.f32.mrf.mxu0
      %v5726 = vadd.f32 %v5677, %v5725
      %v5727 = vpop.f32.mrf.mxu0
      %v5728 = vadd.f32 %v5679, %v5727
      %5729 = vmatmul.bf16.gmra.mxu0 %v2657
      %v5730 = vpop.f32.mrf.mxu0
      %v5731 = vadd.f32 %v5682, %v5730
      %v5732 = vpop.f32.mrf.mxu0
      %v5733 = vadd.f32 %v5684, %v5732
      %5734 = vmatmul.bf16.gmra.mxu0 %v2675
      %v5735 = vpop.f32.mrf.mxu0
      %v5736 = vadd.f32 %v5687, %v5735
      %v5737 = vpop.f32.mrf.mxu0
      %v5738 = vadd.f32 %v5689, %v5737
      %5739 = vmatmul.bf16.gmra.mxu0 %v2693
      %v5740 = vpop.f32.mrf.mxu0
      %v5741 = vadd.f32 %v5692, %v5740
      %v5742 = vpop.f32.mrf.mxu0
      %v5743 = vadd.f32 %v5694, %v5742
      %5744 = vmatmul.bf16.gmra.mxu0 %v2711
      %v5745 = vpop.f32.mrf.mxu0
      %v5746 = vadd.f32 %v5697, %v5745
      %v5747 = vpop.f32.mrf.mxu0
      %v5748 = vadd.f32 %v5699, %v5747
      %5749 = vmatmul.bf16.gmra.mxu0 %v2729
      %v5750 = vpop.f32.mrf.mxu0
      %v5751 = vadd.f32 %v5702, %v5750
      %v5752 = vpop.f32.mrf.mxu0
      %v5753 = vadd.f32 %v5704, %v5752
      %5754 = vmatmul.bf16.gmra.mxu0 %v2747
      %v5755 = vpop.f32.mrf.mxu0
      %v5756 = vadd.f32 %v5707, %v5755
      %v5757 = vpop.f32.mrf.mxu0
      %v5758 = vadd.f32 %v5709, %v5757
      %5759 = vdwg.mxu0
      %5760 = vmatpush.bf16.msra.mxu0 %v3954
      %5761 = vmatpush.bf16.msra.mxu0 %v3952
      %5762 = vmatpush.bf16.msra.mxu0 %v3950
      %5763 = vmatpush.bf16.msra.mxu0 %v3948
      %5764 = vmatpush.bf16.msra.mxu0 %v3946
      %5765 = vmatpush.bf16.msra.mxu0 %v3944
      %5766 = vmatpush.bf16.msra.mxu0 %v3942
      %5767 = vmatpush.bf16.msra.mxu0 %v3940
      %5768 = vmatmul.bf16.gmra.mxu0 %v2622
      %v5769 = vpop.f32.mrf.mxu0
      %v5770 = vadd.f32 %v5721, %v5769
      %v5771 = vpop.f32.mrf.mxu0
      %v5772 = vadd.f32 %v5723, %v5771
      %5773 = vmatmul.bf16.gmra.mxu0 %v2640
      %v5774 = vpop.f32.mrf.mxu0
      %v5775 = vadd.f32 %v5726, %v5774
      %v5776 = vpop.f32.mrf.mxu0
      %v5777 = vadd.f32 %v5728, %v5776
      %5778 = vmatmul.bf16.gmra.mxu0 %v2658
      %v5779 = vpop.f32.mrf.mxu0
      %v5780 = vadd.f32 %v5731, %v5779
      %v5781 = vpop.f32.mrf.mxu0
      %v5782 = vadd.f32 %v5733, %v5781
      %5783 = vmatmul.bf16.gmra.mxu0 %v2676
      %v5784 = vpop.f32.mrf.mxu0
      %v5785 = vadd.f32 %v5736, %v5784
      %v5786 = vpop.f32.mrf.mxu0
      %v5787 = vadd.f32 %v5738, %v5786
      %5788 = vmatmul.bf16.gmra.mxu0 %v2694
      %v5789 = vpop.f32.mrf.mxu0
      %v5790 = vadd.f32 %v5741, %v5789
      %v5791 = vpop.f32.mrf.mxu0
      %v5792 = vadd.f32 %v5743, %v5791
      %5793 = vmatmul.bf16.gmra.mxu0 %v2712
      %v5794 = vpop.f32.mrf.mxu0
      %v5795 = vadd.f32 %v5746, %v5794
      %v5796 = vpop.f32.mrf.mxu0
      %v5797 = vadd.f32 %v5748, %v5796
      %5798 = vmatmul.bf16.gmra.mxu0 %v2730
      %v5799 = vpop.f32.mrf.mxu0
      %v5800 = vadd.f32 %v5751, %v5799
      %v5801 = vpop.f32.mrf.mxu0
      %v5802 = vadd.f32 %v5753, %v5801
      %5803 = vmatmul.bf16.gmra.mxu0 %v2748
      %v5804 = vpop.f32.mrf.mxu0
      %v5805 = vadd.f32 %v5756, %v5804
      %v5806 = vpop.f32.mrf.mxu0
      %v5807 = vadd.f32 %v5758, %v5806
      %5808 = vdwg.mxu0
      %5809 = vmatpush.bf16.msra.mxu0 %v3970
      %5810 = vmatpush.bf16.msra.mxu0 %v3968
      %5811 = vmatpush.bf16.msra.mxu0 %v3966
      %5812 = vmatpush.bf16.msra.mxu0 %v3964
      %5813 = vmatpush.bf16.msra.mxu0 %v3962
      %5814 = vmatpush.bf16.msra.mxu0 %v3960
      %5815 = vmatpush.bf16.msra.mxu0 %v3958
      %5816 = vmatpush.bf16.msra.mxu0 %v3956
      %5817 = vmatmul.bf16.gmra.mxu0 %v2623
      %v5818 = vpop.f32.mrf.mxu0
      %v5819 = vadd.f32 %v5770, %v5818
      %v5820 = vpop.f32.mrf.mxu0
      %v5821 = vadd.f32 %v5772, %v5820
      %5822 = vmatmul.bf16.gmra.mxu0 %v2641
      %v5823 = vpop.f32.mrf.mxu0
      %v5824 = vadd.f32 %v5775, %v5823
      %v5825 = vpop.f32.mrf.mxu0
      %v5826 = vadd.f32 %v5777, %v5825
      %5827 = vmatmul.bf16.gmra.mxu0 %v2659
      %v5828 = vpop.f32.mrf.mxu0
      %v5829 = vadd.f32 %v5780, %v5828
      %v5830 = vpop.f32.mrf.mxu0
      %v5831 = vadd.f32 %v5782, %v5830
      %5832 = vmatmul.bf16.gmra.mxu0 %v2677
      %v5833 = vpop.f32.mrf.mxu0
      %v5834 = vadd.f32 %v5785, %v5833
      %v5835 = vpop.f32.mrf.mxu0
      %v5836 = vadd.f32 %v5787, %v5835
      %5837 = vmatmul.bf16.gmra.mxu0 %v2695
      %v5838 = vpop.f32.mrf.mxu0
      %v5839 = vadd.f32 %v5790, %v5838
      %v5840 = vpop.f32.mrf.mxu0
      %v5841 = vadd.f32 %v5792, %v5840
      %5842 = vmatmul.bf16.gmra.mxu0 %v2713
      %v5843 = vpop.f32.mrf.mxu0
      %v5844 = vadd.f32 %v5795, %v5843
      %v5845 = vpop.f32.mrf.mxu0
      %v5846 = vadd.f32 %v5797, %v5845
      %5847 = vmatmul.bf16.gmra.mxu0 %v2731
      %v5848 = vpop.f32.mrf.mxu0
      %v5849 = vadd.f32 %v5800, %v5848
      %v5850 = vpop.f32.mrf.mxu0
      %v5851 = vadd.f32 %v5802, %v5850
      %5852 = vmatmul.bf16.gmra.mxu0 %v2749
      %v5853 = vpop.f32.mrf.mxu0
      %v5854 = vadd.f32 %v5805, %v5853
      %v5855 = vpop.f32.mrf.mxu0
      %v5856 = vadd.f32 %v5807, %v5855
      %5857 = vdwg.mxu0
      %5858 = vmatpush.bf16.msra.mxu0 %v3986
      %5859 = vmatpush.bf16.msra.mxu0 %v3984
      %5860 = vmatpush.bf16.msra.mxu0 %v3982
      %5861 = vmatpush.bf16.msra.mxu0 %v3980
      %5862 = vmatpush.bf16.msra.mxu0 %v3978
      %5863 = vmatpush.bf16.msra.mxu0 %v3976
      %5864 = vmatpush.bf16.msra.mxu0 %v3974
      %5865 = vmatpush.bf16.msra.mxu0 %v3972
      %5866 = vmatmul.bf16.gmra.mxu0 %v2624
      %v5867 = vpop.f32.mrf.mxu0
      %v5868 = vadd.f32 %v5819, %v5867
      %v5869 = vpop.f32.mrf.mxu0
      %v5870 = vadd.f32 %v5821, %v5869
      %5871 = vmatmul.bf16.gmra.mxu0 %v2642
      %v5872 = vpop.f32.mrf.mxu0
      %v5873 = vadd.f32 %v5824, %v5872
      %v5874 = vpop.f32.mrf.mxu0
      %v5875 = vadd.f32 %v5826, %v5874
      %5876 = vmatmul.bf16.gmra.mxu0 %v2660
      %v5877 = vpop.f32.mrf.mxu0
      %v5878 = vadd.f32 %v5829, %v5877
      %v5879 = vpop.f32.mrf.mxu0
      %v5880 = vadd.f32 %v5831, %v5879
      %5881 = vmatmul.bf16.gmra.mxu0 %v2678
      %v5882 = vpop.f32.mrf.mxu0
      %v5883 = vadd.f32 %v5834, %v5882
      %v5884 = vpop.f32.mrf.mxu0
      %v5885 = vadd.f32 %v5836, %v5884
      %5886 = vmatmul.bf16.gmra.mxu0 %v2696
      %v5887 = vpop.f32.mrf.mxu0
      %v5888 = vadd.f32 %v5839, %v5887
      %v5889 = vpop.f32.mrf.mxu0
      %v5890 = vadd.f32 %v5841, %v5889
      %5891 = vmatmul.bf16.gmra.mxu0 %v2714
      %v5892 = vpop.f32.mrf.mxu0
      %v5893 = vadd.f32 %v5844, %v5892
      %v5894 = vpop.f32.mrf.mxu0
      %v5895 = vadd.f32 %v5846, %v5894
      %5896 = vmatmul.bf16.gmra.mxu0 %v2732
      %v5897 = vpop.f32.mrf.mxu0
      %v5898 = vadd.f32 %v5849, %v5897
      %v5899 = vpop.f32.mrf.mxu0
      %v5900 = vadd.f32 %v5851, %v5899
      %5901 = vmatmul.bf16.gmra.mxu0 %v2750
      %v5902 = vpop.f32.mrf.mxu0
      %v5903 = vadd.f32 %v5854, %v5902
      %v5904 = vpop.f32.mrf.mxu0
      %v5905 = vadd.f32 %v5856, %v5904
      %5906 = vdwg.mxu0
      %5907 = vmatpush.bf16.msra.mxu0 %v4002
      %5908 = vmatpush.bf16.msra.mxu0 %v4000
      %5909 = vmatpush.bf16.msra.mxu0 %v3998
      %5910 = vmatpush.bf16.msra.mxu0 %v3996
      %5911 = vmatpush.bf16.msra.mxu0 %v3994
      %5912 = vmatpush.bf16.msra.mxu0 %v3992
      %5913 = vmatpush.bf16.msra.mxu0 %v3990
      %5914 = vmatpush.bf16.msra.mxu0 %v3988
      %5915 = vmatmul.bf16.gmra.mxu0 %v2625
      %v5916 = vpop.f32.mrf.mxu0
      %v5917 = vadd.f32 %v5868, %v5916
      %v5918 = vpop.f32.mrf.mxu0
      %v5919 = vadd.f32 %v5870, %v5918
      %5920 = vmatmul.bf16.gmra.mxu0 %v2643
      %v5921 = vpop.f32.mrf.mxu0
      %v5922 = vadd.f32 %v5873, %v5921
      %v5923 = vpop.f32.mrf.mxu0
      %v5924 = vadd.f32 %v5875, %v5923
      %5925 = vmatmul.bf16.gmra.mxu0 %v2661
      %v5926 = vpop.f32.mrf.mxu0
      %v5927 = vadd.f32 %v5878, %v5926
      %v5928 = vpop.f32.mrf.mxu0
      %v5929 = vadd.f32 %v5880, %v5928
      %5930 = vmatmul.bf16.gmra.mxu0 %v2679
      %v5931 = vpop.f32.mrf.mxu0
      %v5932 = vadd.f32 %v5883, %v5931
      %v5933 = vpop.f32.mrf.mxu0
      %v5934 = vadd.f32 %v5885, %v5933
      %5935 = vmatmul.bf16.gmra.mxu0 %v2697
      %v5936 = vpop.f32.mrf.mxu0
      %v5937 = vadd.f32 %v5888, %v5936
      %v5938 = vpop.f32.mrf.mxu0
      %v5939 = vadd.f32 %v5890, %v5938
      %5940 = vmatmul.bf16.gmra.mxu0 %v2715
      %v5941 = vpop.f32.mrf.mxu0
      %v5942 = vadd.f32 %v5893, %v5941
      %v5943 = vpop.f32.mrf.mxu0
      %v5944 = vadd.f32 %v5895, %v5943
      %5945 = vmatmul.bf16.gmra.mxu0 %v2733
      %v5946 = vpop.f32.mrf.mxu0
      %v5947 = vadd.f32 %v5898, %v5946
      %v5948 = vpop.f32.mrf.mxu0
      %v5949 = vadd.f32 %v5900, %v5948
      %5950 = vmatmul.bf16.gmra.mxu0 %v2751
      %v5951 = vpop.f32.mrf.mxu0
      %v5952 = vadd.f32 %v5903, %v5951
      %v5953 = vpop.f32.mrf.mxu0
      %v5954 = vadd.f32 %v5905, %v5953
      %5955 = vdwg.mxu0
      %5956 = vmatpush.bf16.msra.mxu0 %v4018
      %5957 = vmatpush.bf16.msra.mxu0 %v4016
      %5958 = vmatpush.bf16.msra.mxu0 %v4014
      %5959 = vmatpush.bf16.msra.mxu0 %v4012
      %5960 = vmatpush.bf16.msra.mxu0 %v4010
      %5961 = vmatpush.bf16.msra.mxu0 %v4008
      %5962 = vmatpush.bf16.msra.mxu0 %v4006
      %5963 = vmatpush.bf16.msra.mxu0 %v4004
      %5964 = vmatmul.bf16.gmra.mxu0 %v2626
      %v5965 = vpop.f32.mrf.mxu0
      %v5966 = vadd.f32 %v5917, %v5965
      %v5967 = vpop.f32.mrf.mxu0
      %v5968 = vadd.f32 %v5919, %v5967
      %5969 = vmatmul.bf16.gmra.mxu0 %v2644
      %v5970 = vpop.f32.mrf.mxu0
      %v5971 = vadd.f32 %v5922, %v5970
      %v5972 = vpop.f32.mrf.mxu0
      %v5973 = vadd.f32 %v5924, %v5972
      %5974 = vmatmul.bf16.gmra.mxu0 %v2662
      %v5975 = vpop.f32.mrf.mxu0
      %v5976 = vadd.f32 %v5927, %v5975
      %v5977 = vpop.f32.mrf.mxu0
      %v5978 = vadd.f32 %v5929, %v5977
      %5979 = vmatmul.bf16.gmra.mxu0 %v2680
      %v5980 = vpop.f32.mrf.mxu0
      %v5981 = vadd.f32 %v5932, %v5980
      %v5982 = vpop.f32.mrf.mxu0
      %v5983 = vadd.f32 %v5934, %v5982
      %5984 = vmatmul.bf16.gmra.mxu0 %v2698
      %v5985 = vpop.f32.mrf.mxu0
      %v5986 = vadd.f32 %v5937, %v5985
      %v5987 = vpop.f32.mrf.mxu0
      %v5988 = vadd.f32 %v5939, %v5987
      %5989 = vmatmul.bf16.gmra.mxu0 %v2716
      %v5990 = vpop.f32.mrf.mxu0
      %v5991 = vadd.f32 %v5942, %v5990
      %v5992 = vpop.f32.mrf.mxu0
      %v5993 = vadd.f32 %v5944, %v5992
      %5994 = vmatmul.bf16.gmra.mxu0 %v2734
      %v5995 = vpop.f32.mrf.mxu0
      %v5996 = vadd.f32 %v5947, %v5995
      %v5997 = vpop.f32.mrf.mxu0
      %v5998 = vadd.f32 %v5949, %v5997
      %5999 = vmatmul.bf16.gmra.mxu0 %v2752
      %v6000 = vpop.f32.mrf.mxu0
      %v6001 = vadd.f32 %v5952, %v6000
      %v6002 = vpop.f32.mrf.mxu0
      %v6003 = vadd.f32 %v5954, %v6002
      %6004 = vdwg.mxu0
      %6005 = vmatpush.bf16.msra.mxu0 %v4034
      %6006 = vmatpush.bf16.msra.mxu0 %v4032
      %6007 = vmatpush.bf16.msra.mxu0 %v4030
      %6008 = vmatpush.bf16.msra.mxu0 %v4028
      %6009 = vmatpush.bf16.msra.mxu0 %v4026
      %6010 = vmatpush.bf16.msra.mxu0 %v4024
      %6011 = vmatpush.bf16.msra.mxu0 %v4022
      %6012 = vmatpush.bf16.msra.mxu0 %v4020
      %6013 = vmatmul.bf16.gmra.mxu0 %v2627
      %v6014 = vpop.f32.mrf.mxu0
      %v6015 = vadd.f32 %v5966, %v6014
      %v6016 = vpop.f32.mrf.mxu0
      %v6017 = vadd.f32 %v5968, %v6016
      %6018 = vmatmul.bf16.gmra.mxu0 %v2645
      %v6019 = vpop.f32.mrf.mxu0
      %v6020 = vadd.f32 %v5971, %v6019
      %v6021 = vpop.f32.mrf.mxu0
      %v6022 = vadd.f32 %v5973, %v6021
      %6023 = vmatmul.bf16.gmra.mxu0 %v2663
      %v6024 = vpop.f32.mrf.mxu0
      %v6025 = vadd.f32 %v5976, %v6024
      %v6026 = vpop.f32.mrf.mxu0
      %v6027 = vadd.f32 %v5978, %v6026
      %6028 = vmatmul.bf16.gmra.mxu0 %v2681
      %v6029 = vpop.f32.mrf.mxu0
      %v6030 = vadd.f32 %v5981, %v6029
      %v6031 = vpop.f32.mrf.mxu0
      %v6032 = vadd.f32 %v5983, %v6031
      %6033 = vmatmul.bf16.gmra.mxu0 %v2699
      %v6034 = vpop.f32.mrf.mxu0
      %v6035 = vadd.f32 %v5986, %v6034
      %v6036 = vpop.f32.mrf.mxu0
      %v6037 = vadd.f32 %v5988, %v6036
      %6038 = vmatmul.bf16.gmra.mxu0 %v2717
      %v6039 = vpop.f32.mrf.mxu0
      %v6040 = vadd.f32 %v5991, %v6039
      %v6041 = vpop.f32.mrf.mxu0
      %v6042 = vadd.f32 %v5993, %v6041
      %6043 = vmatmul.bf16.gmra.mxu0 %v2735
      %v6044 = vpop.f32.mrf.mxu0
      %v6045 = vadd.f32 %v5996, %v6044
      %v6046 = vpop.f32.mrf.mxu0
      %v6047 = vadd.f32 %v5998, %v6046
      %6048 = vmatmul.bf16.gmra.mxu0 %v2753
      %v6049 = vpop.f32.mrf.mxu0
      %v6050 = vadd.f32 %v6001, %v6049
      %v6051 = vpop.f32.mrf.mxu0
      %v6052 = vadd.f32 %v6003, %v6051
      %6053 = vdwg.mxu0
      %6054 = vmatpush.bf16.msra.mxu0 %v4050
      %6055 = vmatpush.bf16.msra.mxu0 %v4048
      %6056 = vmatpush.bf16.msra.mxu0 %v4046
      %6057 = vmatpush.bf16.msra.mxu0 %v4044
      %6058 = vmatpush.bf16.msra.mxu0 %v4042
      %6059 = vmatpush.bf16.msra.mxu0 %v4040
      %6060 = vmatpush.bf16.msra.mxu0 %v4038
      %6061 = vmatpush.bf16.msra.mxu0 %v4036
      %6062 = vmatmul.bf16.gmra.mxu0 %v2628
      %v6063 = vpop.f32.mrf.mxu0
      %v6064 = vadd.f32 %v6015, %v6063
      %v6065 = vpop.f32.mrf.mxu0
      %v6066 = vadd.f32 %v6017, %v6065
      %6067 = vmatmul.bf16.gmra.mxu0 %v2646
      %v6068 = vpop.f32.mrf.mxu0
      %v6069 = vadd.f32 %v6020, %v6068
      %v6070 = vpop.f32.mrf.mxu0
      %v6071 = vadd.f32 %v6022, %v6070
      %6072 = vmatmul.bf16.gmra.mxu0 %v2664
      %v6073 = vpop.f32.mrf.mxu0
      %v6074 = vadd.f32 %v6025, %v6073
      %v6075 = vpop.f32.mrf.mxu0
      %v6076 = vadd.f32 %v6027, %v6075
      %6077 = vmatmul.bf16.gmra.mxu0 %v2682
      %v6078 = vpop.f32.mrf.mxu0
      %v6079 = vadd.f32 %v6030, %v6078
      %v6080 = vpop.f32.mrf.mxu0
      %v6081 = vadd.f32 %v6032, %v6080
      %6082 = vmatmul.bf16.gmra.mxu0 %v2700
      %v6083 = vpop.f32.mrf.mxu0
      %v6084 = vadd.f32 %v6035, %v6083
      %v6085 = vpop.f32.mrf.mxu0
      %v6086 = vadd.f32 %v6037, %v6085
      %6087 = vmatmul.bf16.gmra.mxu0 %v2718
      %v6088 = vpop.f32.mrf.mxu0
      %v6089 = vadd.f32 %v6040, %v6088
      %v6090 = vpop.f32.mrf.mxu0
      %v6091 = vadd.f32 %v6042, %v6090
      %6092 = vmatmul.bf16.gmra.mxu0 %v2736
      %v6093 = vpop.f32.mrf.mxu0
      %v6094 = vadd.f32 %v6045, %v6093
      %v6095 = vpop.f32.mrf.mxu0
      %v6096 = vadd.f32 %v6047, %v6095
      %6097 = vmatmul.bf16.gmra.mxu0 %v2754
      %v6098 = vpop.f32.mrf.mxu0
      %v6099 = vadd.f32 %v6050, %v6098
      %v6100 = vpop.f32.mrf.mxu0
      %v6101 = vadd.f32 %v6052, %v6100
      %6102 = vdwg.mxu0
      %v6103 = vpack.c.bf16 %v6064, %v5182
      %v6104 = vpack.c.bf16 %v6066, %v5184
      %v6105 = vpack.c.bf16 %v6069, %v5187
      %v6106 = vpack.c.bf16 %v6071, %v5189
      %v6107 = vpack.c.bf16 %v6074, %v5192
      %v6108 = vpack.c.bf16 %v6076, %v5194
      %v6109 = vpack.c.bf16 %v6079, %v5197
      %v6110 = vpack.c.bf16 %v6081, %v5199
      %v6111 = vpack.c.bf16 %v6084, %v5202
      %v6112 = vpack.c.bf16 %v6086, %v5204
      %v6113 = vpack.c.bf16 %v6089, %v5207
      %v6114 = vpack.c.bf16 %v6091, %v5209
      %v6115 = vpack.c.bf16 %v6094, %v5212
      %v6116 = vpack.c.bf16 %v6096, %v5214
      %v6117 = vpack.c.bf16 %v6099, %v5217
      %v6118 = vpack.c.bf16 %v6101, %v5219
      %6119 = vst [vmem:[%s229] sm:$0xff] %v6103
      %6120 = vst [vmem:[%s229 + $0x8] sm:$0xff] %v6104
      %6121 = vst [vmem:[%s229 + $0x10] sm:$0xff] %v6105
      %6122 = vst [vmem:[%s229 + $0x18] sm:$0xff] %v6106
      %6123 = vst [vmem:[%s229 + $0x20] sm:$0xff] %v6107
      %6124 = vst [vmem:[%s229 + $0x28] sm:$0xff] %v6108
      %6125 = vst [vmem:[%s229 + $0x30] sm:$0xff] %v6109
      %6126 = vst [vmem:[%s229 + $0x38] sm:$0xff] %v6110
      %6127 = vst [vmem:[%s229 + $0x40] sm:$0xff] %v6111
      %6128 = vst [vmem:[%s229 + $0x48] sm:$0xff] %v6112
      %6129 = vst [vmem:[%s229 + $0x50] sm:$0xff] %v6113
      %6130 = vst [vmem:[%s229 + $0x58] sm:$0xff] %v6114
      %6131 = vst [vmem:[%s229 + $0x60] sm:$0xff] %v6115
      %6132 = vst [vmem:[%s229 + $0x68] sm:$0xff] %v6116
      %6133 = vst [vmem:[%s229 + $0x70] sm:$0xff] %v6117
      %6134 = vst [vmem:[%s229 + $0x78] sm:$0xff] %v6118
      %v6135 = vld [vmem:[%s5] ss:$8 sm:$0x3]
      %v6136 = vadd.f32 %v5182, %v5184
      %v6137 = vadd.f32 %v6136, %v5187
      %v6138 = vadd.f32 %v6137, %v5189
      %v6139 = vadd.f32 %v6138, %v5192
      %v6140 = vadd.f32 %v6139, %v5194
      %v6141 = vadd.f32 %v6140, %v5197
      %v6142 = vadd.f32 %v6141, %v5199
      %v6143 = vadd.f32 %v6142, %v5202
      %v6144 = vadd.f32 %v6143, %v5204
      %v6145 = vadd.f32 %v6144, %v5207
      %v6146 = vadd.f32 %v6145, %v5209
      %v6147 = vadd.f32 %v6146, %v5212
      %v6148 = vadd.f32 %v6147, %v5214
      %v6149 = vadd.f32 %v6148, %v5217
      %v6150 = vadd.f32 %v6149, %v5219
      %v6151 = vrot.slane %v6150, 4
      %v6152 = vadd.f32 %v6150, %v6151
      %v6153 = vrot.slane %v6152, 2
      %v6154 = vadd.f32 %v6152, %v6153
      %v6155 = vrot.slane %v6154, 1
      %v6156 = vadd.f32 %v6154, %v6155
      %v6157 = vadd.f32 %v6064, %v6066
      %v6158 = vadd.f32 %v6157, %v6069
      %v6159 = vadd.f32 %v6158, %v6071
      %v6160 = vadd.f32 %v6159, %v6074
      %v6161 = vadd.f32 %v6160, %v6076
      %v6162 = vadd.f32 %v6161, %v6079
      %v6163 = vadd.f32 %v6162, %v6081
      %v6164 = vadd.f32 %v6163, %v6084
      %v6165 = vadd.f32 %v6164, %v6086
      %v6166 = vadd.f32 %v6165, %v6089
      %v6167 = vadd.f32 %v6166, %v6091
      %v6168 = vadd.f32 %v6167, %v6094
      %v6169 = vadd.f32 %v6168, %v6096
      %v6170 = vadd.f32 %v6169, %v6099
      %v6171 = vadd.f32 %v6170, %v6101
      %v6172 = vrot.slane %v6171, 4
      %v6173 = vadd.f32 %v6171, %v6172
      %v6174 = vrot.slane %v6173, 2
      %v6175 = vadd.f32 %v6173, %v6174
      %v6176 = vrot.slane %v6175, 1
      %v6177 = vadd.f32 %v6175, %v6176
      %v6180 = vrot.slane %v6177, 7
      %vm6181 = vcmask 1040384
      %v6182 = vsel %vm6181, %v6156, %v6180
      %v6184 = vadd.f32 %v6135, %v6182
      %v6185 = vlaneseq
      %vm6186 = vcmp.ge.s32.totalorder %v6185, 0
      %vm6187 = vcmp.lt.s32.totalorder %v6185, 256
      %vm6188 = vmand %vm6186, %vm6187
      %6189 = vst.msk [vmem:[%s5] ss:$8 sm:$0x3] %vm6188, %v6184
      %6190 = vst.msk [vmem:[%s5] ss:$8 sm:$0x0] %vm6188, %v6184
      %s6191 = scalar_lea.vmem %s5, 1
      %v6192 = vld [vmem:[%s6191] ss:$8 sm:$0x3]
      %v6193 = vmul.f32 %v5182, %v5182
      %v6194 = vmul.f32 %v6064, %v6064
      %v6195 = vmul.f32 %v5184, %v5184
      %v6196 = vmul.f32 %v6066, %v6066
      %v6197 = vmul.f32 %v5187, %v5187
      %v6198 = vmul.f32 %v6069, %v6069
      %v6199 = vmul.f32 %v5189, %v5189
      %v6200 = vmul.f32 %v6071, %v6071
      %v6201 = vmul.f32 %v5192, %v5192
      %v6202 = vmul.f32 %v6074, %v6074
      %v6203 = vmul.f32 %v5194, %v5194
      %v6204 = vmul.f32 %v6076, %v6076
      %v6205 = vmul.f32 %v5197, %v5197
      %v6206 = vmul.f32 %v6079, %v6079
      %v6207 = vmul.f32 %v5199, %v5199
      %v6208 = vmul.f32 %v6081, %v6081
      %v6209 = vmul.f32 %v5202, %v5202
      %v6210 = vmul.f32 %v6084, %v6084
      %v6211 = vmul.f32 %v5204, %v5204
      %v6212 = vmul.f32 %v6086, %v6086
      %v6213 = vmul.f32 %v5207, %v5207
      %v6214 = vmul.f32 %v6089, %v6089
      %v6215 = vmul.f32 %v5209, %v5209
      %v6216 = vmul.f32 %v6091, %v6091
      %v6217 = vmul.f32 %v5212, %v5212
      %v6218 = vmul.f32 %v6094, %v6094
      %v6219 = vmul.f32 %v5214, %v5214
      %v6220 = vmul.f32 %v6096, %v6096
      %v6221 = vmul.f32 %v5217, %v5217
      %v6222 = vmul.f32 %v6099, %v6099
      %v6223 = vmul.f32 %v5219, %v5219
      %v6224 = vmul.f32 %v6101, %v6101
      %v6225 = vadd.f32 %v6193, %v6195
      %v6226 = vadd.f32 %v6225, %v6197
      %v6227 = vadd.f32 %v6226, %v6199
      %v6228 = vadd.f32 %v6227, %v6201
      %v6229 = vadd.f32 %v6228, %v6203
      %v6230 = vadd.f32 %v6229, %v6205
      %v6231 = vadd.f32 %v6230, %v6207
      %v6232 = vadd.f32 %v6231, %v6209
      %v6233 = vadd.f32 %v6232, %v6211
      %v6234 = vadd.f32 %v6233, %v6213
      %v6235 = vadd.f32 %v6234, %v6215
      %v6236 = vadd.f32 %v6235, %v6217
      %v6237 = vadd.f32 %v6236, %v6219
      %v6238 = vadd.f32 %v6237, %v6221
      %v6239 = vadd.f32 %v6238, %v6223
      %v6240 = vrot.slane %v6239, 4
      %v6241 = vadd.f32 %v6239, %v6240
      %v6242 = vrot.slane %v6241, 2
      %v6243 = vadd.f32 %v6241, %v6242
      %v6244 = vrot.slane %v6243, 1
      %v6245 = vadd.f32 %v6243, %v6244
      %v6246 = vadd.f32 %v6194, %v6196
      %v6247 = vadd.f32 %v6246, %v6198
      %v6248 = vadd.f32 %v6247, %v6200
      %v6249 = vadd.f32 %v6248, %v6202
      %v6250 = vadd.f32 %v6249, %v6204
      %v6251 = vadd.f32 %v6250, %v6206
      %v6252 = vadd.f32 %v6251, %v6208
      %v6253 = vadd.f32 %v6252, %v6210
      %v6254 = vadd.f32 %v6253, %v6212
      %v6255 = vadd.f32 %v6254, %v6214
      %v6256 = vadd.f32 %v6255, %v6216
      %v6257 = vadd.f32 %v6256, %v6218
      %v6258 = vadd.f32 %v6257, %v6220
      %v6259 = vadd.f32 %v6258, %v6222
      %v6260 = vadd.f32 %v6259, %v6224
      %v6261 = vrot.slane %v6260, 4
      %v6262 = vadd.f32 %v6260, %v6261
      %v6263 = vrot.slane %v6262, 2
      %v6264 = vadd.f32 %v6262, %v6263
      %v6265 = vrot.slane %v6264, 1
      %v6266 = vadd.f32 %v6264, %v6265
      %v6269 = vrot.slane %v6266, 7
      %v6270 = vsel %vm6181, %v6245, %v6269
      %v6272 = vadd.f32 %v6192, %v6270
      %6273 = vst.msk [vmem:[%s6191] ss:$8 sm:$0x3] %vm6188, %v6272
      %6274 = vst.msk [vmem:[%s6191] ss:$8 sm:$0x0] %vm6188, %v6272
      %s6275 = smul.u32 2, %s17
      %p6276 = scmp.lt.s32.totalorder %s6275, 3
      %s6277 = scalar_select %p6276, %s6275, 3
      %s6278 = smul.addr %s6277, 16
      %s6279 = smul.addr %s6278, 4
      %s6280 = scalar_lea.vmem %s4, %s6279
      // Predicated region
      $region41: #{_lambda_.4} parent=35 // pred_check
        %p6281 = pneg %p124
      $region42: #{_lambda_.4} parent=35 // pred_check_branch
        %6283 = sbr.rel (%p6281) target = $region44
      $region43: #{_lambda_.4} parent=35 // pred_region
        %s6284 = smul.u32 2, %s17
      $region44: #{_lambda_.4} parent=35 // pred_fallthru
        _
      // Predicated region
      $region45: #{_lambda_.4} parent=35 // pred_check
        %p6285 = pneg %p145
      $region46: #{_lambda_.4} parent=35 // pred_check_branch
        %6287 = sbr.rel (%p6285) target = $region48
      $region47: #{_lambda_.4} parent=35 // pred_region
        _
      $region48: #{_lambda_.4} parent=35 // pred_fallthru
        _
      // Predicated region
      $region49: #{_lambda_.4} parent=35 // pred_check
        %p6288 = pneg %p145
      $region50: #{_lambda_.4} parent=35 // pred_check_branch
        %6290 = sbr.rel (%p6288) target = $region52
      $region51: #{_lambda_.4} parent=35 // pred_region
        _
      $region52: #{_lambda_.4} parent=35 // pred_fallthru
        _
    $region36: #{_lambda_.4} parent=5 // pred_fallthru
      _
    %p6291 = scmp.le.s32.totalorder 2, %s12
    // Predicated region
    $region53: #{_lambda_.4} parent=5 // pred_check
      %p6292 = pneg %p6291
    $region54: #{_lambda_.4} parent=5 // pred_check_branch
      %6294 = sbr.rel (%p6292) target = $region56
    $region55: #{_lambda_.4} parent=5 // pred_region
      %s6295 = ssub.s32 %s12, 2
      // Predicated region
      $region57: #{_lambda_.4} parent=55 // pred_check
        %p6296 = pneg %p130
      $region58: #{_lambda_.4} parent=55 // pred_check_branch
        %6298 = sbr.rel (%p6296) target = $region60
      $region59: #{_lambda_.4} parent=55 // pred_region
        %s6299 = smul.u32 2, %s18
        %p6300 = scmp.lt.s32.totalorder %s6299, 3
        %s6301 = scalar_select %p6300, %s6299, 3
        %s6302 = smul.addr %s6301, 16
        %s6303 = smul.addr %s6302, 4
        %s6304 = scalar_lea.vmem %s4, %s6303
      $region60: #{_lambda_.4} parent=55 // pred_fallthru
        _
    $region56: #{_lambda_.4} parent=5 // pred_fallthru
      _
  $region6: #{_lambda_.4} parent=0 // loop_footer
    %s16 = sadd.s32 1, %s12
  $region7: #{_lambda_.4} parent=0 // loop_footer_branch
    %11 = sbr.rel target = $region3
  $region8: #{_lambda_.4} parent=0 // loop_exit
    _

</llo_original>
